<compile_context>
chip_gen: v7x
topology: tpu7x:2x2x1
jax: 0.10.0
libtpu: 0.0.40
codegen_flags: <defaults>
</compile_context>

<pallas_src>
import functools
import math

import jax
import jax.numpy as jnp
import numpy as np
from jax.experimental import pallas as pl
from jax.experimental.pallas import tpu as pltpu


def _conv_out(n):
    # Conv2d(kernel=3, stride=2, padding=1) output size == ceil(n / 2).
    return (n + 2 - 3) // 2 + 1


def _round_up(x, m):
    return ((x + m - 1) // m) * m


# ----------------------------------------------------------------------------
# Fused kernel: one batch tile per grid step.
# Activation layout: (H_pad, B, W_pad * C)  — lane index = wp * C + c.
# ----------------------------------------------------------------------------
def _fused_cnn_kernel(x_ref,
                      w1_ref, b1_ref, w2_ref, b2_ref, w3_ref, b3_ref,
                      wfc_ref, bfc_ref,
                      out_ref,
                      a1_ref, a2_ref, a3_ref,
                      *, h_outs):
    h1, h2, h3 = h_outs

    # Zero only the height-padding rows of the inter-layer buffers.  The
    # width padding comes for free from the structured weights' zero columns
    # (ReLU(0 + 0) == 0); interior rows are fully overwritten below.
    a1_ref[0] = jnp.zeros(a1_ref.shape[1:], a1_ref.dtype)
    a1_ref[a1_ref.shape[0] - 1] = jnp.zeros(a1_ref.shape[1:], a1_ref.dtype)
    a2_ref[0] = jnp.zeros(a2_ref.shape[1:], a2_ref.dtype)
    a2_ref[a2_ref.shape[0] - 1] = jnp.zeros(a2_ref.shape[1:], a2_ref.dtype)

    def conv(in_ref, dst_ref, w_ref, b_ref, h_out, row_off):
        # w_ref: (3, Wp_in*Cin, N_out) bf16 structured weights (one per kh).
        w_kh = [w_ref[k] for k in range(3)]
        bias = b_ref[...]                                     # (1, N_out) f32
        for ho in range(h_out):
            acc = jnp.dot(in_ref[2 * ho], w_kh[0],
                          preferred_element_type=jnp.float32)
            acc = acc + jnp.dot(in_ref[2 * ho + 1], w_kh[1],
                                preferred_element_type=jnp.float32)
            acc = acc + jnp.dot(in_ref[2 * ho + 2], w_kh[2],
                                preferred_element_type=jnp.float32)
            acc = jnp.maximum(acc + bias, 0.0)                # bias + ReLU (f32)
            dst_ref[ho + row_off] = acc.astype(dst_ref.dtype)

    # conv1: padded input (x_ref) -> padded act1 rows 1..h1.
    conv(x_ref, a1_ref, w1_ref, b1_ref, h1, 1)
    # conv2: padded act1 -> padded act2 rows 1..h2.
    conv(a1_ref, a2_ref, w2_ref, b2_ref, h2, 1)
    # conv3: padded act2 -> unpadded act3 rows 0..h3-1 (feeds FC directly).
    conv(a2_ref, a3_ref, w3_ref, b3_ref, h3, 0)

    # Fully connected: logits = sum_h act3[h] @ Wfc[h] + b  (K = w3*128, M = B).
    acc = jnp.dot(a3_ref[0], wfc_ref[0], preferred_element_type=jnp.float32)
    for hh in range(1, h3):
        acc = acc + jnp.dot(a3_ref[hh], wfc_ref[hh],
                            preferred_element_type=jnp.float32)
    out_ref[...] = acc + bfc_ref[...]


# ----------------------------------------------------------------------------
# One-time parameter preparation (structured, kernel-friendly weight layouts).
# ----------------------------------------------------------------------------
def _conv_wmat(wt, b, w_in, pad_out):
    """Structured per-kh conv matrices.

    W[kh, (2*wo + kw)*Cin + c, (wo + off)*Cout + co] = wt[co, c, kh, kw]
    With pad_out=True the output columns also carry the next layer's width
    zero-padding (off = 1, plus zero column blocks at both ends).
    """
    wt = np.asarray(wt, np.float32)              # (Cout, Cin, 3, 3)
    b = np.asarray(b, np.float32)                # (Cout,)
    cout, cin = wt.shape[0], wt.shape[1]
    wp_in = w_in + 2
    wo_n = _conv_out(w_in)
    off = 1 if pad_out else 0
    n_cols = (wo_n + 2 * off) * cout
    wmat = np.zeros((3, wp_in * cin, n_cols), np.float32)
    bias = np.zeros((1, n_cols), np.float32)
    for kh in range(3):
        for wo in range(wo_n):
            for kw in range(3):
                r0 = (2 * wo + kw) * cin
                c0 = (wo + off) * cout
                wmat[kh, r0:r0 + cin, c0:c0 + cout] = wt[:, :, kh, kw].T
    for wo in range(wo_n):
        bias[0, (wo + off) * cout:(wo + off + 1) * cout] = b
    return jnp.asarray(wmat, jnp.bfloat16), jnp.asarray(bias, jnp.float32)


def _fc_wmat(wfc, bfc, h3, w3, n_lane):
    """Per-h3-row FC matrices matching the (w, c) lane order of act3, with the
    class dim zero-padded to n_lane (lane-dense output)."""
    wfc = np.asarray(wfc, np.float32)            # (n_class, 128*h3*w3)
    bfc = np.asarray(bfc, np.float32)
    n_cls = wfc.shape[0]
    wfc4 = wfc.reshape(n_cls, 128, h3, w3)       # PyTorch flatten order (c,h,w)
    wmat = np.zeros((h3, w3 * 128, n_lane), np.float32)
    for hh in range(h3):
        # want Wfc_h[w*128 + c, n] = wfc[n, c, hh, w]
        wmat[hh, :, :n_cls] = (wfc4[:, :, hh, :]
                               .transpose(2, 1, 0)
                               .reshape(w3 * 128, n_cls))
    bias = np.zeros((1, n_lane), np.float32)
    bias[0, :n_cls] = bfc
    return jnp.asarray(wmat, jnp.bfloat16), jnp.asarray(bias, jnp.float32)


def init_params(key, in_shape, n_class):
    """PyTorch-layout parameters (matches nn.Conv2d / nn.Linear default init)."""
    c_in, h, _ = in_shape
    fh = h
    for _ in range(3):
        fh = math.ceil(fh / 2)
    fc_in = int(fh) * int(fh) * 128
    keys = jax.random.split(key, 8)

    def conv_init(kw_, kb_, cout, cin):
        scale = 1.0 / math.sqrt(cin * 9)
        w = jax.random.uniform(kw_, (cout, cin, 3, 3), jnp.float32, -scale, scale)
        b = jax.random.uniform(kb_, (cout,), jnp.float32, -scale, scale)
        return w, b

    def fc_init(kw_, kb_, cout, cin):
        scale = 1.0 / math.sqrt(cin)
        w = jax.random.uniform(kw_, (cout, cin), jnp.float32, -scale, scale)
        b = jax.random.uniform(kb_, (cout,), jnp.float32, -scale, scale)
        return w, b

    return {
        "conv1": conv_init(keys[0], keys[1], 32, c_in),
        "conv2": conv_init(keys[2], keys[3], 64, 32),
        "conv3": conv_init(keys[4], keys[5], 128, 64),
        "fc": fc_init(keys[6], keys[7], n_class, fc_in),
    }


def prepare_params(params, in_shape):
    """Convert PyTorch-layout params into kernel layouts, once, at init."""
    _, h, w = in_shape
    h1, w1 = _conv_out(h), _conv_out(w)
    h2, w2 = _conv_out(h1), _conv_out(w1)
    h3, w3 = _conv_out(h2), _conv_out(w2)
    n_class = params["fc"][0].shape[0]
    n_lane = _round_up(n_class, 128)

    w1m, b1m = _conv_wmat(*params["conv1"], w_in=w, pad_out=True)
    w2m, b2m = _conv_wmat(*params["conv2"], w_in=w1, pad_out=True)
    w3m, b3m = _conv_wmat(*params["conv3"], w_in=w2, pad_out=False)
    wfcm, bfcm = _fc_wmat(*params["fc"], h3=h3, w3=w3, n_lane=n_lane)
    return {"w1": w1m, "b1": b1m, "w2": w2m, "b2": b2m,
            "w3": w3m, "b3": b3m, "wfc": wfcm, "bfc": bfcm}


# ----------------------------------------------------------------------------
# Forward pass (single fused pallas_call, batch-tiled grid).
# ----------------------------------------------------------------------------
def simple_cnn_forward(kparams, images, *, n_class, b_tile=32):
    """images: (N, C, H, W) float32 -> logits (N, n_class) float32."""
    n, c, h, w = images.shape
    h1, w1 = _conv_out(h), _conv_out(w)
    h2, w2 = _conv_out(h1), _conv_out(w1)
    h3, w3 = _conv_out(h2), _conv_out(w2)
    n_lane = kparams["bfc"].shape[-1]

    # Batch tile: multiple of 8 sublanes; aim for >= 2 grid steps when the
    # batch allows it (v7x has 2 TensorCores and the grid axis is "parallel").
    bt = max(8, min(_round_up(b_tile, 8), _round_up(-(-n // 2), 8)))
    n_pad = _round_up(n, bt)
    grid = n_pad // bt

    # JAX-side layout prep only: NCHW -> (H_pad, N_pad, W_pad*C) bf16.
    x = jnp.transpose(images, (0, 2, 3, 1))                       # (n, h, w, c)
    x = jnp.pad(x, ((0, n_pad - n), (1, 1), (1, 1), (0, 0)))
    x = x.reshape(n_pad, h + 2, (w + 2) * c)
    x = jnp.transpose(x, (1, 0, 2)).astype(jnp.bfloat16)          # (h+2, n_pad, (w+2)*c)

    kernel = functools.partial(_fused_cnn_kernel, h_outs=(h1, h2, h3))

    def full_spec(arr):
        nd = arr.ndim
        return pl.BlockSpec(arr.shape, lambda g, _nd=nd: (0,) * _nd)

    out = pl.pallas_call(
        kernel,
        out_shape=jax.ShapeDtypeStruct((n_pad, n_lane), jnp.float32),
        grid_spec=pltpu.PrefetchScalarGridSpec(
            num_scalar_prefetch=0,
            grid=(grid,),
            in_specs=[
                pl.BlockSpec((h + 2, bt, (w + 2) * c), lambda g: (0, g, 0)),
                full_spec(kparams["w1"]), full_spec(kparams["b1"]),
                full_spec(kparams["w2"]), full_spec(kparams["b2"]),
                full_spec(kparams["w3"]), full_spec(kparams["b3"]),
                full_spec(kparams["wfc"]), full_spec(kparams["bfc"]),
            ],
            out_specs=pl.BlockSpec((bt, n_lane), lambda g: (g, 0)),
            scratch_shapes=[
                pltpu.VMEM((h1 + 2, bt, (w1 + 2) * 32), jnp.bfloat16),  # act1 (padded)
                pltpu.VMEM((h2 + 2, bt, (w2 + 2) * 64), jnp.bfloat16),  # act2 (padded)
                pltpu.VMEM((h3, bt, w3 * 128), jnp.bfloat16),           # act3
            ],
        ),
        compiler_params=pltpu.CompilerParams(
            dimension_semantics=("parallel",),      # shard batch tiles across TCs
            vmem_limit_bytes=32 * 1024 * 1024,      # usage is a few MiB on all gens
        ),
    )(x,
      kparams["w1"], kparams["b1"],
      kparams["w2"], kparams["b2"],
      kparams["w3"], kparams["b3"],
      kparams["wfc"], kparams["bfc"])
    return out[:n, :n_class]


# ----------------------------------------------------------------------------
# Pure-JAX reference (mirrors the PyTorch module) for a sanity check.
# ----------------------------------------------------------------------------
def _reference_forward(params, images, n_class):
    x = images
    for name in ("conv1", "conv2", "conv3"):
        wt, b = params[name]
        x = jax.lax.conv_general_dilated(
            x, wt, window_strides=(2, 2), padding=((1, 1), (1, 1)),
            dimension_numbers=("NCHW", "OIHW", "NCHW"))
        x = jnp.maximum(x + b.reshape(1, -1, 1, 1), 0.0)
    x = x.reshape(x.shape[0], -1)
    wfc, bfc = params["fc"]
    return x @ wfc.T + bfc


if __name__ == "__main__":
    in_shape = (4, 16, 16)   # (C, H, W) — small synthetic shapes
    n_class = 10
    batch = 2

    key = jax.random.PRNGKey(0)
    k_params, k_x = jax.random.split(key)
    params = init_params(k_params, in_shape, n_class)      # PyTorch layout
    kparams = prepare_params(params, in_shape)              # kernel layout (once)
    x = jax.random.normal(k_x, (batch,) + in_shape, jnp.float32)

    fwd = jax.jit(functools.partial(simple_cnn_forward, n_class=n_class))
    logits = fwd(kparams, x)
    jax.block_until_ready(logits)
    assert logits.shape == (batch, n_class)

    # Loose correctness check vs. a pure-JAX reference (bf16 MXU operands).
    ref = _reference_forward(params, x, n_class)
    err = float(jnp.max(jnp.abs(logits - ref)))
    assert err < 1e-1, f"max abs error vs reference: {err}"

    print("KERNEL_OK")
</pallas_src>

<mosaic_0001>
module attributes {stable_mosaic.version = 11 : i64} {
  func.func @_fused_cnn_kernel(%arg0: i32, %arg1: memref<18x8x72xbf16, #tpu.memory_space<vmem>>, %arg2: memref<3x72x320xbf16, #tpu.memory_space<vmem>>, %arg3: memref<1x320xf32, #tpu.memory_space<vmem>>, %arg4: memref<3x320x384xbf16, #tpu.memory_space<vmem>>, %arg5: memref<1x384xf32, #tpu.memory_space<vmem>>, %arg6: memref<3x384x256xbf16, #tpu.memory_space<vmem>>, %arg7: memref<1x256xf32, #tpu.memory_space<vmem>>, %arg8: memref<2x256x128xbf16, #tpu.memory_space<vmem>>, %arg9: memref<1x128xf32, #tpu.memory_space<vmem>>, %arg10: memref<8x128xf32, #tpu.memory_space<vmem>>, %arg11: memref<10x8x320xbf16, #tpu.memory_space<vmem>>, %arg12: memref<6x8x384xbf16, #tpu.memory_space<vmem>>, %arg13: memref<2x8x256xbf16, #tpu.memory_space<vmem>>) attributes {dimension_semantics = [#tpu.dimension_semantics<parallel>], iteration_bounds = array<i64: 1>, scalar_prefetch = 0 : i64, scratch_operands = 3 : i64, tpu.core_type = #tpu.core_type<tc>, window_params = [{transform_indices = @transform_0, window_bounds = array<i64: 18, 8, 72>}, {pipeline_mode = #tpu.pipeline_mode<synchronous>, transform_indices = @transform_1, window_bounds = array<i64: 3, 72, 320>}, {pipeline_mode = #tpu.pipeline_mode<synchronous>, transform_indices = @transform_2, window_bounds = array<i64: 1, 320>}, {pipeline_mode = #tpu.pipeline_mode<synchronous>, transform_indices = @transform_3, window_bounds = array<i64: 3, 320, 384>}, {pipeline_mode = #tpu.pipeline_mode<synchronous>, transform_indices = @transform_4, window_bounds = array<i64: 1, 384>}, {pipeline_mode = #tpu.pipeline_mode<synchronous>, transform_indices = @transform_5, window_bounds = array<i64: 3, 384, 256>}, {pipeline_mode = #tpu.pipeline_mode<synchronous>, transform_indices = @transform_6, window_bounds = array<i64: 1, 256>}, {pipeline_mode = #tpu.pipeline_mode<synchronous>, transform_indices = @transform_7, window_bounds = array<i64: 2, 256, 128>}, {pipeline_mode = #tpu.pipeline_mode<synchronous>, transform_indices = @transform_8, window_bounds = array<i64: 1, 128>}, {transform_indices = @transform_9, window_bounds = array<i64: 8, 128>}]} {
    %cst = arith.constant 0.000000e+00 : bf16
    %0 = vector.broadcast %cst : bf16 to vector<8x320xbf16>
    %c0 = arith.constant 0 : index
    %c0_0 = arith.constant 0 : index
    %c0_1 = arith.constant 0 : index
    %1 = vector.load %arg11[%c0, %c0_0, %c0_1] : memref<10x8x320xbf16, #tpu.memory_space<vmem>>, vector<1x8x320xbf16>
    %2 = vector.shape_cast %1 : vector<1x8x320xbf16> to vector<8x320xbf16>
    %3 = vector.shape_cast %0 : vector<8x320xbf16> to vector<1x8x320xbf16>
    tpu.vector_store %arg11[%c0, %c0_0, %c0_1], %3 {strides = array<i32>} : memref<10x8x320xbf16, #tpu.memory_space<vmem>>, vector<1x8x320xbf16>,
    %cst_2 = arith.constant 0.000000e+00 : bf16
    %4 = vector.broadcast %cst_2 : bf16 to vector<8x320xbf16>
    %c9 = arith.constant 9 : index
    %c0_3 = arith.constant 0 : index
    %c0_4 = arith.constant 0 : index
    %5 = vector.load %arg11[%c9, %c0_3, %c0_4] : memref<10x8x320xbf16, #tpu.memory_space<vmem>>, vector<1x8x320xbf16>
    %6 = vector.shape_cast %5 : vector<1x8x320xbf16> to vector<8x320xbf16>
    %7 = vector.shape_cast %4 : vector<8x320xbf16> to vector<1x8x320xbf16>
    tpu.vector_store %arg11[%c9, %c0_3, %c0_4], %7 {strides = array<i32>} : memref<10x8x320xbf16, #tpu.memory_space<vmem>>, vector<1x8x320xbf16>,
    %cst_5 = arith.constant 0.000000e+00 : bf16
    %8 = vector.broadcast %cst_5 : bf16 to vector<8x384xbf16>
    %c0_6 = arith.constant 0 : index
    %c0_7 = arith.constant 0 : index
    %c0_8 = arith.constant 0 : index
    %9 = vector.load %arg12[%c0_6, %c0_7, %c0_8] : memref<6x8x384xbf16, #tpu.memory_space<vmem>>, vector<1x8x384xbf16>
    %10 = vector.shape_cast %9 : vector<1x8x384xbf16> to vector<8x384xbf16>
    %11 = vector.shape_cast %8 : vector<8x384xbf16> to vector<1x8x384xbf16>
    tpu.vector_store %arg12[%c0_6, %c0_7, %c0_8], %11 {strides = array<i32>} : memref<6x8x384xbf16, #tpu.memory_space<vmem>>, vector<1x8x384xbf16>,
    %cst_9 = arith.constant 0.000000e+00 : bf16
    %12 = vector.broadcast %cst_9 : bf16 to vector<8x384xbf16>
    %c5 = arith.constant 5 : index
    %c0_10 = arith.constant 0 : index
    %c0_11 = arith.constant 0 : index
    %13 = vector.load %arg12[%c5, %c0_10, %c0_11] : memref<6x8x384xbf16, #tpu.memory_space<vmem>>, vector<1x8x384xbf16>
    %14 = vector.shape_cast %13 : vector<1x8x384xbf16> to vector<8x384xbf16>
    %15 = vector.shape_cast %12 : vector<8x384xbf16> to vector<1x8x384xbf16>
    tpu.vector_store %arg12[%c5, %c0_10, %c0_11], %15 {strides = array<i32>} : memref<6x8x384xbf16, #tpu.memory_space<vmem>>, vector<1x8x384xbf16>,
    %c0_12 = arith.constant 0 : index
    %c0_13 = arith.constant 0 : index
    %c0_14 = arith.constant 0 : index
    %16 = vector.load %arg2[%c0_12, %c0_13, %c0_14] : memref<3x72x320xbf16, #tpu.memory_space<vmem>>, vector<1x72x320xbf16>
    %17 = vector.shape_cast %16 : vector<1x72x320xbf16> to vector<72x320xbf16>
    %c1 = arith.constant 1 : index
    %c0_15 = arith.constant 0 : index
    %c0_16 = arith.constant 0 : index
    %18 = vector.load %arg2[%c1, %c0_15, %c0_16] : memref<3x72x320xbf16, #tpu.memory_space<vmem>>, vector<1x72x320xbf16>
    %19 = vector.shape_cast %18 : vector<1x72x320xbf16> to vector<72x320xbf16>
    %c2 = arith.constant 2 : index
    %c0_17 = arith.constant 0 : index
    %c0_18 = arith.constant 0 : index
    %20 = vector.load %arg2[%c2, %c0_17, %c0_18] : memref<3x72x320xbf16, #tpu.memory_space<vmem>>, vector<1x72x320xbf16>
    %21 = vector.shape_cast %20 : vector<1x72x320xbf16> to vector<72x320xbf16>
    %c0_19 = arith.constant 0 : index
    %c0_20 = arith.constant 0 : index
    %22 = vector.load %arg3[%c0_19, %c0_20] : memref<1x320xf32, #tpu.memory_space<vmem>>, vector<1x320xf32>
    %c0_21 = arith.constant 0 : index
    %c0_22 = arith.constant 0 : index
    %c0_23 = arith.constant 0 : index
    %23 = vector.load %arg1[%c0_21, %c0_22, %c0_23] : memref<18x8x72xbf16, #tpu.memory_space<vmem>>, vector<1x8x72xbf16>
    %24 = vector.shape_cast %23 : vector<1x8x72xbf16> to vector<8x72xbf16>
    %cst_24 = arith.constant dense<0.000000e+00> : vector<8x320xf32>
    %25 = tpu.matmul %24, %17, %cst_24 {dimension_numbers = #tpu.dot_dimension_numbers<[1], [0], [0], [1], [0, 0, 1, 1], [], []>} : vector<8x72xbf16>, vector<72x320xbf16>, vector<8x320xf32> -> vector<8x320xf32>
    %c1_25 = arith.constant 1 : index
    %c0_26 = arith.constant 0 : index
    %c0_27 = arith.constant 0 : index
    %26 = vector.load %arg1[%c1_25, %c0_26, %c0_27] : memref<18x8x72xbf16, #tpu.memory_space<vmem>>, vector<1x8x72xbf16>
    %27 = vector.shape_cast %26 : vector<1x8x72xbf16> to vector<8x72xbf16>
    %cst_28 = arith.constant dense<0.000000e+00> : vector<8x320xf32>
    %28 = tpu.matmul %27, %19, %cst_28 {dimension_numbers = #tpu.dot_dimension_numbers<[1], [0], [0], [1], [0, 0, 1, 1], [], []>} : vector<8x72xbf16>, vector<72x320xbf16>, vector<8x320xf32> -> vector<8x320xf32>
    %29 = arith.addf %25, %28 : vector<8x320xf32>
    %c2_29 = arith.constant 2 : index
    %c0_30 = arith.constant 0 : index
    %c0_31 = arith.constant 0 : index
    %30 = vector.load %arg1[%c2_29, %c0_30, %c0_31] : memref<18x8x72xbf16, #tpu.memory_space<vmem>>, vector<1x8x72xbf16>
    %31 = vector.shape_cast %30 : vector<1x8x72xbf16> to vector<8x72xbf16>
    %cst_32 = arith.constant dense<0.000000e+00> : vector<8x320xf32>
    %32 = tpu.matmul %31, %21, %cst_32 {dimension_numbers = #tpu.dot_dimension_numbers<[1], [0], [0], [1], [0, 0, 1, 1], [], []>} : vector<8x72xbf16>, vector<72x320xbf16>, vector<8x320xf32> -> vector<8x320xf32>
    %33 = arith.addf %29, %32 : vector<8x320xf32>
    %34 = vector.broadcast %22 : vector<1x320xf32> to vector<8x320xf32>
    %35 = arith.addf %33, %34 : vector<8x320xf32>
    %cst_33 = arith.constant 0.000000e+00 : f32
    %36 = vector.broadcast %cst_33 : f32 to vector<8x320xf32>
    %37 = arith.maximumf %35, %36 : vector<8x320xf32>
    %38 = arith.truncf %37 : vector<8x320xf32> to vector<8x320xbf16>
    %c1_34 = arith.constant 1 : index
    %c0_35 = arith.constant 0 : index
    %c0_36 = arith.constant 0 : index
    %39 = vector.load %arg11[%c1_34, %c0_35, %c0_36] : memref<10x8x320xbf16, #tpu.memory_space<vmem>>, vector<1x8x320xbf16>
    %40 = vector.shape_cast %39 : vector<1x8x320xbf16> to vector<8x320xbf16>
    %41 = vector.shape_cast %38 : vector<8x320xbf16> to vector<1x8x320xbf16>
    tpu.vector_store %arg11[%c1_34, %c0_35, %c0_36], %41 {strides = array<i32>} : memref<10x8x320xbf16, #tpu.memory_space<vmem>>, vector<1x8x320xbf16>,
    %c2_37 = arith.constant 2 : index
    %c0_38 = arith.constant 0 : index
    %c0_39 = arith.constant 0 : index
    %42 = vector.load %arg1[%c2_37, %c0_38, %c0_39] : memref<18x8x72xbf16, #tpu.memory_space<vmem>>, vector<1x8x72xbf16>
    %43 = vector.shape_cast %42 : vector<1x8x72xbf16> to vector<8x72xbf16>
    %cst_40 = arith.constant dense<0.000000e+00> : vector<8x320xf32>
    %44 = tpu.matmul %43, %17, %cst_40 {dimension_numbers = #tpu.dot_dimension_numbers<[1], [0], [0], [1], [0, 0, 1, 1], [], []>} : vector<8x72xbf16>, vector<72x320xbf16>, vector<8x320xf32> -> vector<8x320xf32>
    %c3 = arith.constant 3 : index
    %c0_41 = arith.constant 0 : index
    %c0_42 = arith.constant 0 : index
    %45 = vector.load %arg1[%c3, %c0_41, %c0_42] : memref<18x8x72xbf16, #tpu.memory_space<vmem>>, vector<1x8x72xbf16>
    %46 = vector.shape_cast %45 : vector<1x8x72xbf16> to vector<8x72xbf16>
    %cst_43 = arith.constant dense<0.000000e+00> : vector<8x320xf32>
    %47 = tpu.matmul %46, %19, %cst_43 {dimension_numbers = #tpu.dot_dimension_numbers<[1], [0], [0], [1], [0, 0, 1, 1], [], []>} : vector<8x72xbf16>, vector<72x320xbf16>, vector<8x320xf32> -> vector<8x320xf32>
    %48 = arith.addf %44, %47 : vector<8x320xf32>
    %c4 = arith.constant 4 : index
    %c0_44 = arith.constant 0 : index
    %c0_45 = arith.constant 0 : index
    %49 = vector.load %arg1[%c4, %c0_44, %c0_45] : memref<18x8x72xbf16, #tpu.memory_space<vmem>>, vector<1x8x72xbf16>
    %50 = vector.shape_cast %49 : vector<1x8x72xbf16> to vector<8x72xbf16>
    %cst_46 = arith.constant dense<0.000000e+00> : vector<8x320xf32>
    %51 = tpu.matmul %50, %21, %cst_46 {dimension_numbers = #tpu.dot_dimension_numbers<[1], [0], [0], [1], [0, 0, 1, 1], [], []>} : vector<8x72xbf16>, vector<72x320xbf16>, vector<8x320xf32> -> vector<8x320xf32>
    %52 = arith.addf %48, %51 : vector<8x320xf32>
    %53 = vector.broadcast %22 : vector<1x320xf32> to vector<8x320xf32>
    %54 = arith.addf %52, %53 : vector<8x320xf32>
    %cst_47 = arith.constant 0.000000e+00 : f32
    %55 = vector.broadcast %cst_47 : f32 to vector<8x320xf32>
    %56 = arith.maximumf %54, %55 : vector<8x320xf32>
    %57 = arith.truncf %56 : vector<8x320xf32> to vector<8x320xbf16>
    %c2_48 = arith.constant 2 : index
    %c0_49 = arith.constant 0 : index
    %c0_50 = arith.constant 0 : index
    %58 = vector.load %arg11[%c2_48, %c0_49, %c0_50] : memref<10x8x320xbf16, #tpu.memory_space<vmem>>, vector<1x8x320xbf16>
    %59 = vector.shape_cast %58 : vector<1x8x320xbf16> to vector<8x320xbf16>
    %60 = vector.shape_cast %57 : vector<8x320xbf16> to vector<1x8x320xbf16>
    tpu.vector_store %arg11[%c2_48, %c0_49, %c0_50], %60 {strides = array<i32>} : memref<10x8x320xbf16, #tpu.memory_space<vmem>>, vector<1x8x320xbf16>,
    %c4_51 = arith.constant 4 : index
    %c0_52 = arith.constant 0 : index
    %c0_53 = arith.constant 0 : index
    %61 = vector.load %arg1[%c4_51, %c0_52, %c0_53] : memref<18x8x72xbf16, #tpu.memory_space<vmem>>, vector<1x8x72xbf16>
    %62 = vector.shape_cast %61 : vector<1x8x72xbf16> to vector<8x72xbf16>
    %cst_54 = arith.constant dense<0.000000e+00> : vector<8x320xf32>
    %63 = tpu.matmul %62, %17, %cst_54 {dimension_numbers = #tpu.dot_dimension_numbers<[1], [0], [0], [1], [0, 0, 1, 1], [], []>} : vector<8x72xbf16>, vector<72x320xbf16>, vector<8x320xf32> -> vector<8x320xf32>
    %c5_55 = arith.constant 5 : index
    %c0_56 = arith.constant 0 : index
    %c0_57 = arith.constant 0 : index
    %64 = vector.load %arg1[%c5_55, %c0_56, %c0_57] : memref<18x8x72xbf16, #tpu.memory_space<vmem>>, vector<1x8x72xbf16>
    %65 = vector.shape_cast %64 : vector<1x8x72xbf16> to vector<8x72xbf16>
    %cst_58 = arith.constant dense<0.000000e+00> : vector<8x320xf32>
    %66 = tpu.matmul %65, %19, %cst_58 {dimension_numbers = #tpu.dot_dimension_numbers<[1], [0], [0], [1], [0, 0, 1, 1], [], []>} : vector<8x72xbf16>, vector<72x320xbf16>, vector<8x320xf32> -> vector<8x320xf32>
    %67 = arith.addf %63, %66 : vector<8x320xf32>
    %c6 = arith.constant 6 : index
    %c0_59 = arith.constant 0 : index
    %c0_60 = arith.constant 0 : index
    %68 = vector.load %arg1[%c6, %c0_59, %c0_60] : memref<18x8x72xbf16, #tpu.memory_space<vmem>>, vector<1x8x72xbf16>
    %69 = vector.shape_cast %68 : vector<1x8x72xbf16> to vector<8x72xbf16>
    %cst_61 = arith.constant dense<0.000000e+00> : vector<8x320xf32>
    %70 = tpu.matmul %69, %21, %cst_61 {dimension_numbers = #tpu.dot_dimension_numbers<[1], [0], [0], [1], [0, 0, 1, 1], [], []>} : vector<8x72xbf16>, vector<72x320xbf16>, vector<8x320xf32> -> vector<8x320xf32>
    %71 = arith.addf %67, %70 : vector<8x320xf32>
    %72 = vector.broadcast %22 : vector<1x320xf32> to vector<8x320xf32>
    %73 = arith.addf %71, %72 : vector<8x320xf32>
    %cst_62 = arith.constant 0.000000e+00 : f32
    %74 = vector.broadcast %cst_62 : f32 to vector<8x320xf32>
    %75 = arith.maximumf %73, %74 : vector<8x320xf32>
    %76 = arith.truncf %75 : vector<8x320xf32> to vector<8x320xbf16>
    %c3_63 = arith.constant 3 : index
    %c0_64 = arith.constant 0 : index
    %c0_65 = arith.constant 0 : index
    %77 = vector.load %arg11[%c3_63, %c0_64, %c0_65] : memref<10x8x320xbf16, #tpu.memory_space<vmem>>, vector<1x8x320xbf16>
    %78 = vector.shape_cast %77 : vector<1x8x320xbf16> to vector<8x320xbf16>
    %79 = vector.shape_cast %76 : vector<8x320xbf16> to vector<1x8x320xbf16>
    tpu.vector_store %arg11[%c3_63, %c0_64, %c0_65], %79 {strides = array<i32>} : memref<10x8x320xbf16, #tpu.memory_space<vmem>>, vector<1x8x320xbf16>,
    %c6_66 = arith.constant 6 : index
    %c0_67 = arith.constant 0 : index
    %c0_68 = arith.constant 0 : index
    %80 = vector.load %arg1[%c6_66, %c0_67, %c0_68] : memref<18x8x72xbf16, #tpu.memory_space<vmem>>, vector<1x8x72xbf16>
    %81 = vector.shape_cast %80 : vector<1x8x72xbf16> to vector<8x72xbf16>
    %cst_69 = arith.constant dense<0.000000e+00> : vector<8x320xf32>
    %82 = tpu.matmul %81, %17, %cst_69 {dimension_numbers = #tpu.dot_dimension_numbers<[1], [0], [0], [1], [0, 0, 1, 1], [], []>} : vector<8x72xbf16>, vector<72x320xbf16>, vector<8x320xf32> -> vector<8x320xf32>
    %c7 = arith.constant 7 : index
    %c0_70 = arith.constant 0 : index
    %c0_71 = arith.constant 0 : index
    %83 = vector.load %arg1[%c7, %c0_70, %c0_71] : memref<18x8x72xbf16, #tpu.memory_space<vmem>>, vector<1x8x72xbf16>
    %84 = vector.shape_cast %83 : vector<1x8x72xbf16> to vector<8x72xbf16>
    %cst_72 = arith.constant dense<0.000000e+00> : vector<8x320xf32>
    %85 = tpu.matmul %84, %19, %cst_72 {dimension_numbers = #tpu.dot_dimension_numbers<[1], [0], [0], [1], [0, 0, 1, 1], [], []>} : vector<8x72xbf16>, vector<72x320xbf16>, vector<8x320xf32> -> vector<8x320xf32>
    %86 = arith.addf %82, %85 : vector<8x320xf32>
    %c8 = arith.constant 8 : index
    %c0_73 = arith.constant 0 : index
    %c0_74 = arith.constant 0 : index
    %87 = vector.load %arg1[%c8, %c0_73, %c0_74] : memref<18x8x72xbf16, #tpu.memory_space<vmem>>, vector<1x8x72xbf16>
    %88 = vector.shape_cast %87 : vector<1x8x72xbf16> to vector<8x72xbf16>
    %cst_75 = arith.constant dense<0.000000e+00> : vector<8x320xf32>
    %89 = tpu.matmul %88, %21, %cst_75 {dimension_numbers = #tpu.dot_dimension_numbers<[1], [0], [0], [1], [0, 0, 1, 1], [], []>} : vector<8x72xbf16>, vector<72x320xbf16>, vector<8x320xf32> -> vector<8x320xf32>
    %90 = arith.addf %86, %89 : vector<8x320xf32>
    %91 = vector.broadcast %22 : vector<1x320xf32> to vector<8x320xf32>
    %92 = arith.addf %90, %91 : vector<8x320xf32>
    %cst_76 = arith.constant 0.000000e+00 : f32
    %93 = vector.broadcast %cst_76 : f32 to vector<8x320xf32>
    %94 = arith.maximumf %92, %93 : vector<8x320xf32>
    %95 = arith.truncf %94 : vector<8x320xf32> to vector<8x320xbf16>
    %c4_77 = arith.constant 4 : index
    %c0_78 = arith.constant 0 : index
    %c0_79 = arith.constant 0 : index
    %96 = vector.load %arg11[%c4_77, %c0_78, %c0_79] : memref<10x8x320xbf16, #tpu.memory_space<vmem>>, vector<1x8x320xbf16>
    %97 = vector.shape_cast %96 : vector<1x8x320xbf16> to vector<8x320xbf16>
    %98 = vector.shape_cast %95 : vector<8x320xbf16> to vector<1x8x320xbf16>
    tpu.vector_store %arg11[%c4_77, %c0_78, %c0_79], %98 {strides = array<i32>} : memref<10x8x320xbf16, #tpu.memory_space<vmem>>, vector<1x8x320xbf16>,
    %c8_80 = arith.constant 8 : index
    %c0_81 = arith.constant 0 : index
    %c0_82 = arith.constant 0 : index
    %99 = vector.load %arg1[%c8_80, %c0_81, %c0_82] : memref<18x8x72xbf16, #tpu.memory_space<vmem>>, vector<1x8x72xbf16>
    %100 = vector.shape_cast %99 : vector<1x8x72xbf16> to vector<8x72xbf16>
    %cst_83 = arith.constant dense<0.000000e+00> : vector<8x320xf32>
    %101 = tpu.matmul %100, %17, %cst_83 {dimension_numbers = #tpu.dot_dimension_numbers<[1], [0], [0], [1], [0, 0, 1, 1], [], []>} : vector<8x72xbf16>, vector<72x320xbf16>, vector<8x320xf32> -> vector<8x320xf32>
    %c9_84 = arith.constant 9 : index
    %c0_85 = arith.constant 0 : index
    %c0_86 = arith.constant 0 : index
    %102 = vector.load %arg1[%c9_84, %c0_85, %c0_86] : memref<18x8x72xbf16, #tpu.memory_space<vmem>>, vector<1x8x72xbf16>
    %103 = vector.shape_cast %102 : vector<1x8x72xbf16> to vector<8x72xbf16>
    %cst_87 = arith.constant dense<0.000000e+00> : vector<8x320xf32>
    %104 = tpu.matmul %103, %19, %cst_87 {dimension_numbers = #tpu.dot_dimension_numbers<[1], [0], [0], [1], [0, 0, 1, 1], [], []>} : vector<8x72xbf16>, vector<72x320xbf16>, vector<8x320xf32> -> vector<8x320xf32>
    %105 = arith.addf %101, %104 : vector<8x320xf32>
    %c10 = arith.constant 10 : index
    %c0_88 = arith.constant 0 : index
    %c0_89 = arith.constant 0 : index
    %106 = vector.load %arg1[%c10, %c0_88, %c0_89] : memref<18x8x72xbf16, #tpu.memory_space<vmem>>, vector<1x8x72xbf16>
    %107 = vector.shape_cast %106 : vector<1x8x72xbf16> to vector<8x72xbf16>
    %cst_90 = arith.constant dense<0.000000e+00> : vector<8x320xf32>
    %108 = tpu.matmul %107, %21, %cst_90 {dimension_numbers = #tpu.dot_dimension_numbers<[1], [0], [0], [1], [0, 0, 1, 1], [], []>} : vector<8x72xbf16>, vector<72x320xbf16>, vector<8x320xf32> -> vector<8x320xf32>
    %109 = arith.addf %105, %108 : vector<8x320xf32>
    %110 = vector.broadcast %22 : vector<1x320xf32> to vector<8x320xf32>
    %111 = arith.addf %109, %110 : vector<8x320xf32>
    %cst_91 = arith.constant 0.000000e+00 : f32
    %112 = vector.broadcast %cst_91 : f32 to vector<8x320xf32>
    %113 = arith.maximumf %111, %112 : vector<8x320xf32>
    %114 = arith.truncf %113 : vector<8x320xf32> to vector<8x320xbf16>
    %c5_92 = arith.constant 5 : index
    %c0_93 = arith.constant 0 : index
    %c0_94 = arith.constant 0 : index
    %115 = vector.load %arg11[%c5_92, %c0_93, %c0_94] : memref<10x8x320xbf16, #tpu.memory_space<vmem>>, vector<1x8x320xbf16>
    %116 = vector.shape_cast %115 : vector<1x8x320xbf16> to vector<8x320xbf16>
    %117 = vector.shape_cast %114 : vector<8x320xbf16> to vector<1x8x320xbf16>
    tpu.vector_store %arg11[%c5_92, %c0_93, %c0_94], %117 {strides = array<i32>} : memref<10x8x320xbf16, #tpu.memory_space<vmem>>, vector<1x8x320xbf16>,
    %c10_95 = arith.constant 10 : index
    %c0_96 = arith.constant 0 : index
    %c0_97 = arith.constant 0 : index
    %118 = vector.load %arg1[%c10_95, %c0_96, %c0_97] : memref<18x8x72xbf16, #tpu.memory_space<vmem>>, vector<1x8x72xbf16>
    %119 = vector.shape_cast %118 : vector<1x8x72xbf16> to vector<8x72xbf16>
    %cst_98 = arith.constant dense<0.000000e+00> : vector<8x320xf32>
    %120 = tpu.matmul %119, %17, %cst_98 {dimension_numbers = #tpu.dot_dimension_numbers<[1], [0], [0], [1], [0, 0, 1, 1], [], []>} : vector<8x72xbf16>, vector<72x320xbf16>, vector<8x320xf32> -> vector<8x320xf32>
    %c11 = arith.constant 11 : index
    %c0_99 = arith.constant 0 : index
    %c0_100 = arith.constant 0 : index
    %121 = vector.load %arg1[%c11, %c0_99, %c0_100] : memref<18x8x72xbf16, #tpu.memory_space<vmem>>, vector<1x8x72xbf16>
    %122 = vector.shape_cast %121 : vector<1x8x72xbf16> to vector<8x72xbf16>
    %cst_101 = arith.constant dense<0.000000e+00> : vector<8x320xf32>
    %123 = tpu.matmul %122, %19, %cst_101 {dimension_numbers = #tpu.dot_dimension_numbers<[1], [0], [0], [1], [0, 0, 1, 1], [], []>} : vector<8x72xbf16>, vector<72x320xbf16>, vector<8x320xf32> -> vector<8x320xf32>
    %124 = arith.addf %120, %123 : vector<8x320xf32>
    %c12 = arith.constant 12 : index
    %c0_102 = arith.constant 0 : index
    %c0_103 = arith.constant 0 : index
    %125 = vector.load %arg1[%c12, %c0_102, %c0_103] : memref<18x8x72xbf16, #tpu.memory_space<vmem>>, vector<1x8x72xbf16>
    %126 = vector.shape_cast %125 : vector<1x8x72xbf16> to vector<8x72xbf16>
    %cst_104 = arith.constant dense<0.000000e+00> : vector<8x320xf32>
    %127 = tpu.matmul %126, %21, %cst_104 {dimension_numbers = #tpu.dot_dimension_numbers<[1], [0], [0], [1], [0, 0, 1, 1], [], []>} : vector<8x72xbf16>, vector<72x320xbf16>, vector<8x320xf32> -> vector<8x320xf32>
    %128 = arith.addf %124, %127 : vector<8x320xf32>
    %129 = vector.broadcast %22 : vector<1x320xf32> to vector<8x320xf32>
    %130 = arith.addf %128, %129 : vector<8x320xf32>
    %cst_105 = arith.constant 0.000000e+00 : f32
    %131 = vector.broadcast %cst_105 : f32 to vector<8x320xf32>
    %132 = arith.maximumf %130, %131 : vector<8x320xf32>
    %133 = arith.truncf %132 : vector<8x320xf32> to vector<8x320xbf16>
    %c6_106 = arith.constant 6 : index
    %c0_107 = arith.constant 0 : index
    %c0_108 = arith.constant 0 : index
    %134 = vector.load %arg11[%c6_106, %c0_107, %c0_108] : memref<10x8x320xbf16, #tpu.memory_space<vmem>>, vector<1x8x320xbf16>
    %135 = vector.shape_cast %134 : vector<1x8x320xbf16> to vector<8x320xbf16>
    %136 = vector.shape_cast %133 : vector<8x320xbf16> to vector<1x8x320xbf16>
    tpu.vector_store %arg11[%c6_106, %c0_107, %c0_108], %136 {strides = array<i32>} : memref<10x8x320xbf16, #tpu.memory_space<vmem>>, vector<1x8x320xbf16>,
    %c12_109 = arith.constant 12 : index
    %c0_110 = arith.constant 0 : index
    %c0_111 = arith.constant 0 : index
    %137 = vector.load %arg1[%c12_109, %c0_110, %c0_111] : memref<18x8x72xbf16, #tpu.memory_space<vmem>>, vector<1x8x72xbf16>
    %138 = vector.shape_cast %137 : vector<1x8x72xbf16> to vector<8x72xbf16>
    %cst_112 = arith.constant dense<0.000000e+00> : vector<8x320xf32>
    %139 = tpu.matmul %138, %17, %cst_112 {dimension_numbers = #tpu.dot_dimension_numbers<[1], [0], [0], [1], [0, 0, 1, 1], [], []>} : vector<8x72xbf16>, vector<72x320xbf16>, vector<8x320xf32> -> vector<8x320xf32>
    %c13 = arith.constant 13 : index
    %c0_113 = arith.constant 0 : index
    %c0_114 = arith.constant 0 : index
    %140 = vector.load %arg1[%c13, %c0_113, %c0_114] : memref<18x8x72xbf16, #tpu.memory_space<vmem>>, vector<1x8x72xbf16>
    %141 = vector.shape_cast %140 : vector<1x8x72xbf16> to vector<8x72xbf16>
    %cst_115 = arith.constant dense<0.000000e+00> : vector<8x320xf32>
    %142 = tpu.matmul %141, %19, %cst_115 {dimension_numbers = #tpu.dot_dimension_numbers<[1], [0], [0], [1], [0, 0, 1, 1], [], []>} : vector<8x72xbf16>, vector<72x320xbf16>, vector<8x320xf32> -> vector<8x320xf32>
    %143 = arith.addf %139, %142 : vector<8x320xf32>
    %c14 = arith.constant 14 : index
    %c0_116 = arith.constant 0 : index
    %c0_117 = arith.constant 0 : index
    %144 = vector.load %arg1[%c14, %c0_116, %c0_117] : memref<18x8x72xbf16, #tpu.memory_space<vmem>>, vector<1x8x72xbf16>
    %145 = vector.shape_cast %144 : vector<1x8x72xbf16> to vector<8x72xbf16>
    %cst_118 = arith.constant dense<0.000000e+00> : vector<8x320xf32>
    %146 = tpu.matmul %145, %21, %cst_118 {dimension_numbers = #tpu.dot_dimension_numbers<[1], [0], [0], [1], [0, 0, 1, 1], [], []>} : vector<8x72xbf16>, vector<72x320xbf16>, vector<8x320xf32> -> vector<8x320xf32>
    %147 = arith.addf %143, %146 : vector<8x320xf32>
    %148 = vector.broadcast %22 : vector<1x320xf32> to vector<8x320xf32>
    %149 = arith.addf %147, %148 : vector<8x320xf32>
    %cst_119 = arith.constant 0.000000e+00 : f32
    %150 = vector.broadcast %cst_119 : f32 to vector<8x320xf32>
    %151 = arith.maximumf %149, %150 : vector<8x320xf32>
    %152 = arith.truncf %151 : vector<8x320xf32> to vector<8x320xbf16>
    %c7_120 = arith.constant 7 : index
    %c0_121 = arith.constant 0 : index
    %c0_122 = arith.constant 0 : index
    %153 = vector.load %arg11[%c7_120, %c0_121, %c0_122] : memref<10x8x320xbf16, #tpu.memory_space<vmem>>, vector<1x8x320xbf16>
    %154 = vector.shape_cast %153 : vector<1x8x320xbf16> to vector<8x320xbf16>
    %155 = vector.shape_cast %152 : vector<8x320xbf16> to vector<1x8x320xbf16>
    tpu.vector_store %arg11[%c7_120, %c0_121, %c0_122], %155 {strides = array<i32>} : memref<10x8x320xbf16, #tpu.memory_space<vmem>>, vector<1x8x320xbf16>,
    %c14_123 = arith.constant 14 : index
    %c0_124 = arith.constant 0 : index
    %c0_125 = arith.constant 0 : index
    %156 = vector.load %arg1[%c14_123, %c0_124, %c0_125] : memref<18x8x72xbf16, #tpu.memory_space<vmem>>, vector<1x8x72xbf16>
    %157 = vector.shape_cast %156 : vector<1x8x72xbf16> to vector<8x72xbf16>
    %cst_126 = arith.constant dense<0.000000e+00> : vector<8x320xf32>
    %158 = tpu.matmul %157, %17, %cst_126 {dimension_numbers = #tpu.dot_dimension_numbers<[1], [0], [0], [1], [0, 0, 1, 1], [], []>} : vector<8x72xbf16>, vector<72x320xbf16>, vector<8x320xf32> -> vector<8x320xf32>
    %c15 = arith.constant 15 : index
    %c0_127 = arith.constant 0 : index
    %c0_128 = arith.constant 0 : index
    %159 = vector.load %arg1[%c15, %c0_127, %c0_128] : memref<18x8x72xbf16, #tpu.memory_space<vmem>>, vector<1x8x72xbf16>
    %160 = vector.shape_cast %159 : vector<1x8x72xbf16> to vector<8x72xbf16>
    %cst_129 = arith.constant dense<0.000000e+00> : vector<8x320xf32>
    %161 = tpu.matmul %160, %19, %cst_129 {dimension_numbers = #tpu.dot_dimension_numbers<[1], [0], [0], [1], [0, 0, 1, 1], [], []>} : vector<8x72xbf16>, vector<72x320xbf16>, vector<8x320xf32> -> vector<8x320xf32>
    %162 = arith.addf %158, %161 : vector<8x320xf32>
    %c16 = arith.constant 16 : index
    %c0_130 = arith.constant 0 : index
    %c0_131 = arith.constant 0 : index
    %163 = vector.load %arg1[%c16, %c0_130, %c0_131] : memref<18x8x72xbf16, #tpu.memory_space<vmem>>, vector<1x8x72xbf16>
    %164 = vector.shape_cast %163 : vector<1x8x72xbf16> to vector<8x72xbf16>
    %cst_132 = arith.constant dense<0.000000e+00> : vector<8x320xf32>
    %165 = tpu.matmul %164, %21, %cst_132 {dimension_numbers = #tpu.dot_dimension_numbers<[1], [0], [0], [1], [0, 0, 1, 1], [], []>} : vector<8x72xbf16>, vector<72x320xbf16>, vector<8x320xf32> -> vector<8x320xf32>
    %166 = arith.addf %162, %165 : vector<8x320xf32>
    %167 = vector.broadcast %22 : vector<1x320xf32> to vector<8x320xf32>
    %168 = arith.addf %166, %167 : vector<8x320xf32>
    %cst_133 = arith.constant 0.000000e+00 : f32
    %169 = vector.broadcast %cst_133 : f32 to vector<8x320xf32>
    %170 = arith.maximumf %168, %169 : vector<8x320xf32>
    %171 = arith.truncf %170 : vector<8x320xf32> to vector<8x320xbf16>
    %c8_134 = arith.constant 8 : index
    %c0_135 = arith.constant 0 : index
    %c0_136 = arith.constant 0 : index
    %172 = vector.load %arg11[%c8_134, %c0_135, %c0_136] : memref<10x8x320xbf16, #tpu.memory_space<vmem>>, vector<1x8x320xbf16>
    %173 = vector.shape_cast %172 : vector<1x8x320xbf16> to vector<8x320xbf16>
    %174 = vector.shape_cast %171 : vector<8x320xbf16> to vector<1x8x320xbf16>
    tpu.vector_store %arg11[%c8_134, %c0_135, %c0_136], %174 {strides = array<i32>} : memref<10x8x320xbf16, #tpu.memory_space<vmem>>, vector<1x8x320xbf16>,
    %c0_137 = arith.constant 0 : index
    %c0_138 = arith.constant 0 : index
    %c0_139 = arith.constant 0 : index
    %175 = vector.load %arg4[%c0_137, %c0_138, %c0_139] : memref<3x320x384xbf16, #tpu.memory_space<vmem>>, vector<1x320x384xbf16>
    %176 = vector.shape_cast %175 : vector<1x320x384xbf16> to vector<320x384xbf16>
    %c1_140 = arith.constant 1 : index
    %c0_141 = arith.constant 0 : index
    %c0_142 = arith.constant 0 : index
    %177 = vector.load %arg4[%c1_140, %c0_141, %c0_142] : memref<3x320x384xbf16, #tpu.memory_space<vmem>>, vector<1x320x384xbf16>
    %178 = vector.shape_cast %177 : vector<1x320x384xbf16> to vector<320x384xbf16>
    %c2_143 = arith.constant 2 : index
    %c0_144 = arith.constant 0 : index
    %c0_145 = arith.constant 0 : index
    %179 = vector.load %arg4[%c2_143, %c0_144, %c0_145] : memref<3x320x384xbf16, #tpu.memory_space<vmem>>, vector<1x320x384xbf16>
    %180 = vector.shape_cast %179 : vector<1x320x384xbf16> to vector<320x384xbf16>
    %c0_146 = arith.constant 0 : index
    %c0_147 = arith.constant 0 : index
    %181 = vector.load %arg5[%c0_146, %c0_147] : memref<1x384xf32, #tpu.memory_space<vmem>>, vector<1x384xf32>
    %c0_148 = arith.constant 0 : index
    %c0_149 = arith.constant 0 : index
    %c0_150 = arith.constant 0 : index
    %182 = vector.load %arg11[%c0_148, %c0_149, %c0_150] : memref<10x8x320xbf16, #tpu.memory_space<vmem>>, vector<1x8x320xbf16>
    %183 = vector.shape_cast %182 : vector<1x8x320xbf16> to vector<8x320xbf16>
    %cst_151 = arith.constant dense<0.000000e+00> : vector<8x384xf32>
    %184 = tpu.matmul %183, %176, %cst_151 {dimension_numbers = #tpu.dot_dimension_numbers<[1], [0], [0], [1], [0, 0, 1, 1], [], []>} : vector<8x320xbf16>, vector<320x384xbf16>, vector<8x384xf32> -> vector<8x384xf32>
    %c1_152 = arith.constant 1 : index
    %c0_153 = arith.constant 0 : index
    %c0_154 = arith.constant 0 : index
    %185 = vector.load %arg11[%c1_152, %c0_153, %c0_154] : memref<10x8x320xbf16, #tpu.memory_space<vmem>>, vector<1x8x320xbf16>
    %186 = vector.shape_cast %185 : vector<1x8x320xbf16> to vector<8x320xbf16>
    %cst_155 = arith.constant dense<0.000000e+00> : vector<8x384xf32>
    %187 = tpu.matmul %186, %178, %cst_155 {dimension_numbers = #tpu.dot_dimension_numbers<[1], [0], [0], [1], [0, 0, 1, 1], [], []>} : vector<8x320xbf16>, vector<320x384xbf16>, vector<8x384xf32> -> vector<8x384xf32>
    %188 = arith.addf %184, %187 : vector<8x384xf32>
    %c2_156 = arith.constant 2 : index
    %c0_157 = arith.constant 0 : index
    %c0_158 = arith.constant 0 : index
    %189 = vector.load %arg11[%c2_156, %c0_157, %c0_158] : memref<10x8x320xbf16, #tpu.memory_space<vmem>>, vector<1x8x320xbf16>
    %190 = vector.shape_cast %189 : vector<1x8x320xbf16> to vector<8x320xbf16>
    %cst_159 = arith.constant dense<0.000000e+00> : vector<8x384xf32>
    %191 = tpu.matmul %190, %180, %cst_159 {dimension_numbers = #tpu.dot_dimension_numbers<[1], [0], [0], [1], [0, 0, 1, 1], [], []>} : vector<8x320xbf16>, vector<320x384xbf16>, vector<8x384xf32> -> vector<8x384xf32>
    %192 = arith.addf %188, %191 : vector<8x384xf32>
    %193 = vector.broadcast %181 : vector<1x384xf32> to vector<8x384xf32>
    %194 = arith.addf %192, %193 : vector<8x384xf32>
    %cst_160 = arith.constant 0.000000e+00 : f32
    %195 = vector.broadcast %cst_160 : f32 to vector<8x384xf32>
    %196 = arith.maximumf %194, %195 : vector<8x384xf32>
    %197 = arith.truncf %196 : vector<8x384xf32> to vector<8x384xbf16>
    %c1_161 = arith.constant 1 : index
    %c0_162 = arith.constant 0 : index
    %c0_163 = arith.constant 0 : index
    %198 = vector.load %arg12[%c1_161, %c0_162, %c0_163] : memref<6x8x384xbf16, #tpu.memory_space<vmem>>, vector<1x8x384xbf16>
    %199 = vector.shape_cast %198 : vector<1x8x384xbf16> to vector<8x384xbf16>
    %200 = vector.shape_cast %197 : vector<8x384xbf16> to vector<1x8x384xbf16>
    tpu.vector_store %arg12[%c1_161, %c0_162, %c0_163], %200 {strides = array<i32>} : memref<6x8x384xbf16, #tpu.memory_space<vmem>>, vector<1x8x384xbf16>,
    %c2_164 = arith.constant 2 : index
    %c0_165 = arith.constant 0 : index
    %c0_166 = arith.constant 0 : index
    %201 = vector.load %arg11[%c2_164, %c0_165, %c0_166] : memref<10x8x320xbf16, #tpu.memory_space<vmem>>, vector<1x8x320xbf16>
    %202 = vector.shape_cast %201 : vector<1x8x320xbf16> to vector<8x320xbf16>
    %cst_167 = arith.constant dense<0.000000e+00> : vector<8x384xf32>
    %203 = tpu.matmul %202, %176, %cst_167 {dimension_numbers = #tpu.dot_dimension_numbers<[1], [0], [0], [1], [0, 0, 1, 1], [], []>} : vector<8x320xbf16>, vector<320x384xbf16>, vector<8x384xf32> -> vector<8x384xf32>
    %c3_168 = arith.constant 3 : index
    %c0_169 = arith.constant 0 : index
    %c0_170 = arith.constant 0 : index
    %204 = vector.load %arg11[%c3_168, %c0_169, %c0_170] : memref<10x8x320xbf16, #tpu.memory_space<vmem>>, vector<1x8x320xbf16>
    %205 = vector.shape_cast %204 : vector<1x8x320xbf16> to vector<8x320xbf16>
    %cst_171 = arith.constant dense<0.000000e+00> : vector<8x384xf32>
    %206 = tpu.matmul %205, %178, %cst_171 {dimension_numbers = #tpu.dot_dimension_numbers<[1], [0], [0], [1], [0, 0, 1, 1], [], []>} : vector<8x320xbf16>, vector<320x384xbf16>, vector<8x384xf32> -> vector<8x384xf32>
    %207 = arith.addf %203, %206 : vector<8x384xf32>
    %c4_172 = arith.constant 4 : index
    %c0_173 = arith.constant 0 : index
    %c0_174 = arith.constant 0 : index
    %208 = vector.load %arg11[%c4_172, %c0_173, %c0_174] : memref<10x8x320xbf16, #tpu.memory_space<vmem>>, vector<1x8x320xbf16>
    %209 = vector.shape_cast %208 : vector<1x8x320xbf16> to vector<8x320xbf16>
    %cst_175 = arith.constant dense<0.000000e+00> : vector<8x384xf32>
    %210 = tpu.matmul %209, %180, %cst_175 {dimension_numbers = #tpu.dot_dimension_numbers<[1], [0], [0], [1], [0, 0, 1, 1], [], []>} : vector<8x320xbf16>, vector<320x384xbf16>, vector<8x384xf32> -> vector<8x384xf32>
    %211 = arith.addf %207, %210 : vector<8x384xf32>
    %212 = vector.broadcast %181 : vector<1x384xf32> to vector<8x384xf32>
    %213 = arith.addf %211, %212 : vector<8x384xf32>
    %cst_176 = arith.constant 0.000000e+00 : f32
    %214 = vector.broadcast %cst_176 : f32 to vector<8x384xf32>
    %215 = arith.maximumf %213, %214 : vector<8x384xf32>
    %216 = arith.truncf %215 : vector<8x384xf32> to vector<8x384xbf16>
    %c2_177 = arith.constant 2 : index
    %c0_178 = arith.constant 0 : index
    %c0_179 = arith.constant 0 : index
    %217 = vector.load %arg12[%c2_177, %c0_178, %c0_179] : memref<6x8x384xbf16, #tpu.memory_space<vmem>>, vector<1x8x384xbf16>
    %218 = vector.shape_cast %217 : vector<1x8x384xbf16> to vector<8x384xbf16>
    %219 = vector.shape_cast %216 : vector<8x384xbf16> to vector<1x8x384xbf16>
    tpu.vector_store %arg12[%c2_177, %c0_178, %c0_179], %219 {strides = array<i32>} : memref<6x8x384xbf16, #tpu.memory_space<vmem>>, vector<1x8x384xbf16>,
    %c4_180 = arith.constant 4 : index
    %c0_181 = arith.constant 0 : index
    %c0_182 = arith.constant 0 : index
    %220 = vector.load %arg11[%c4_180, %c0_181, %c0_182] : memref<10x8x320xbf16, #tpu.memory_space<vmem>>, vector<1x8x320xbf16>
    %221 = vector.shape_cast %220 : vector<1x8x320xbf16> to vector<8x320xbf16>
    %cst_183 = arith.constant dense<0.000000e+00> : vector<8x384xf32>
    %222 = tpu.matmul %221, %176, %cst_183 {dimension_numbers = #tpu.dot_dimension_numbers<[1], [0], [0], [1], [0, 0, 1, 1], [], []>} : vector<8x320xbf16>, vector<320x384xbf16>, vector<8x384xf32> -> vector<8x384xf32>
    %c5_184 = arith.constant 5 : index
    %c0_185 = arith.constant 0 : index
    %c0_186 = arith.constant 0 : index
    %223 = vector.load %arg11[%c5_184, %c0_185, %c0_186] : memref<10x8x320xbf16, #tpu.memory_space<vmem>>, vector<1x8x320xbf16>
    %224 = vector.shape_cast %223 : vector<1x8x320xbf16> to vector<8x320xbf16>
    %cst_187 = arith.constant dense<0.000000e+00> : vector<8x384xf32>
    %225 = tpu.matmul %224, %178, %cst_187 {dimension_numbers = #tpu.dot_dimension_numbers<[1], [0], [0], [1], [0, 0, 1, 1], [], []>} : vector<8x320xbf16>, vector<320x384xbf16>, vector<8x384xf32> -> vector<8x384xf32>
    %226 = arith.addf %222, %225 : vector<8x384xf32>
    %c6_188 = arith.constant 6 : index
    %c0_189 = arith.constant 0 : index
    %c0_190 = arith.constant 0 : index
    %227 = vector.load %arg11[%c6_188, %c0_189, %c0_190] : memref<10x8x320xbf16, #tpu.memory_space<vmem>>, vector<1x8x320xbf16>
    %228 = vector.shape_cast %227 : vector<1x8x320xbf16> to vector<8x320xbf16>
    %cst_191 = arith.constant dense<0.000000e+00> : vector<8x384xf32>
    %229 = tpu.matmul %228, %180, %cst_191 {dimension_numbers = #tpu.dot_dimension_numbers<[1], [0], [0], [1], [0, 0, 1, 1], [], []>} : vector<8x320xbf16>, vector<320x384xbf16>, vector<8x384xf32> -> vector<8x384xf32>
    %230 = arith.addf %226, %229 : vector<8x384xf32>
    %231 = vector.broadcast %181 : vector<1x384xf32> to vector<8x384xf32>
    %232 = arith.addf %230, %231 : vector<8x384xf32>
    %cst_192 = arith.constant 0.000000e+00 : f32
    %233 = vector.broadcast %cst_192 : f32 to vector<8x384xf32>
    %234 = arith.maximumf %232, %233 : vector<8x384xf32>
    %235 = arith.truncf %234 : vector<8x384xf32> to vector<8x384xbf16>
    %c3_193 = arith.constant 3 : index
    %c0_194 = arith.constant 0 : index
    %c0_195 = arith.constant 0 : index
    %236 = vector.load %arg12[%c3_193, %c0_194, %c0_195] : memref<6x8x384xbf16, #tpu.memory_space<vmem>>, vector<1x8x384xbf16>
    %237 = vector.shape_cast %236 : vector<1x8x384xbf16> to vector<8x384xbf16>
    %238 = vector.shape_cast %235 : vector<8x384xbf16> to vector<1x8x384xbf16>
    tpu.vector_store %arg12[%c3_193, %c0_194, %c0_195], %238 {strides = array<i32>} : memref<6x8x384xbf16, #tpu.memory_space<vmem>>, vector<1x8x384xbf16>,
    %c6_196 = arith.constant 6 : index
    %c0_197 = arith.constant 0 : index
    %c0_198 = arith.constant 0 : index
    %239 = vector.load %arg11[%c6_196, %c0_197, %c0_198] : memref<10x8x320xbf16, #tpu.memory_space<vmem>>, vector<1x8x320xbf16>
    %240 = vector.shape_cast %239 : vector<1x8x320xbf16> to vector<8x320xbf16>
    %cst_199 = arith.constant dense<0.000000e+00> : vector<8x384xf32>
    %241 = tpu.matmul %240, %176, %cst_199 {dimension_numbers = #tpu.dot_dimension_numbers<[1], [0], [0], [1], [0, 0, 1, 1], [], []>} : vector<8x320xbf16>, vector<320x384xbf16>, vector<8x384xf32> -> vector<8x384xf32>
    %c7_200 = arith.constant 7 : index
    %c0_201 = arith.constant 0 : index
    %c0_202 = arith.constant 0 : index
    %242 = vector.load %arg11[%c7_200, %c0_201, %c0_202] : memref<10x8x320xbf16, #tpu.memory_space<vmem>>, vector<1x8x320xbf16>
    %243 = vector.shape_cast %242 : vector<1x8x320xbf16> to vector<8x320xbf16>
    %cst_203 = arith.constant dense<0.000000e+00> : vector<8x384xf32>
    %244 = tpu.matmul %243, %178, %cst_203 {dimension_numbers = #tpu.dot_dimension_numbers<[1], [0], [0], [1], [0, 0, 1, 1], [], []>} : vector<8x320xbf16>, vector<320x384xbf16>, vector<8x384xf32> -> vector<8x384xf32>
    %245 = arith.addf %241, %244 : vector<8x384xf32>
    %c8_204 = arith.constant 8 : index
    %c0_205 = arith.constant 0 : index
    %c0_206 = arith.constant 0 : index
    %246 = vector.load %arg11[%c8_204, %c0_205, %c0_206] : memref<10x8x320xbf16, #tpu.memory_space<vmem>>, vector<1x8x320xbf16>
    %247 = vector.shape_cast %246 : vector<1x8x320xbf16> to vector<8x320xbf16>
    %cst_207 = arith.constant dense<0.000000e+00> : vector<8x384xf32>
    %248 = tpu.matmul %247, %180, %cst_207 {dimension_numbers = #tpu.dot_dimension_numbers<[1], [0], [0], [1], [0, 0, 1, 1], [], []>} : vector<8x320xbf16>, vector<320x384xbf16>, vector<8x384xf32> -> vector<8x384xf32>
    %249 = arith.addf %245, %248 : vector<8x384xf32>
    %250 = vector.broadcast %181 : vector<1x384xf32> to vector<8x384xf32>
    %251 = arith.addf %249, %250 : vector<8x384xf32>
    %cst_208 = arith.constant 0.000000e+00 : f32
    %252 = vector.broadcast %cst_208 : f32 to vector<8x384xf32>
    %253 = arith.maximumf %251, %252 : vector<8x384xf32>
    %254 = arith.truncf %253 : vector<8x384xf32> to vector<8x384xbf16>
    %c4_209 = arith.constant 4 : index
    %c0_210 = arith.constant 0 : index
    %c0_211 = arith.constant 0 : index
    %255 = vector.load %arg12[%c4_209, %c0_210, %c0_211] : memref<6x8x384xbf16, #tpu.memory_space<vmem>>, vector<1x8x384xbf16>
    %256 = vector.shape_cast %255 : vector<1x8x384xbf16> to vector<8x384xbf16>
    %257 = vector.shape_cast %254 : vector<8x384xbf16> to vector<1x8x384xbf16>
    tpu.vector_store %arg12[%c4_209, %c0_210, %c0_211], %257 {strides = array<i32>} : memref<6x8x384xbf16, #tpu.memory_space<vmem>>, vector<1x8x384xbf16>,
    %c0_212 = arith.constant 0 : index
    %c0_213 = arith.constant 0 : index
    %c0_214 = arith.constant 0 : index
    %258 = vector.load %arg6[%c0_212, %c0_213, %c0_214] : memref<3x384x256xbf16, #tpu.memory_space<vmem>>, vector<1x384x256xbf16>
    %259 = vector.shape_cast %258 : vector<1x384x256xbf16> to vector<384x256xbf16>
    %c1_215 = arith.constant 1 : index
    %c0_216 = arith.constant 0 : index
    %c0_217 = arith.constant 0 : index
    %260 = vector.load %arg6[%c1_215, %c0_216, %c0_217] : memref<3x384x256xbf16, #tpu.memory_space<vmem>>, vector<1x384x256xbf16>
    %261 = vector.shape_cast %260 : vector<1x384x256xbf16> to vector<384x256xbf16>
    %c2_218 = arith.constant 2 : index
    %c0_219 = arith.constant 0 : index
    %c0_220 = arith.constant 0 : index
    %262 = vector.load %arg6[%c2_218, %c0_219, %c0_220] : memref<3x384x256xbf16, #tpu.memory_space<vmem>>, vector<1x384x256xbf16>
    %263 = vector.shape_cast %262 : vector<1x384x256xbf16> to vector<384x256xbf16>
    %c0_221 = arith.constant 0 : index
    %c0_222 = arith.constant 0 : index
    %264 = vector.load %arg7[%c0_221, %c0_222] : memref<1x256xf32, #tpu.memory_space<vmem>>, vector<1x256xf32>
    %c0_223 = arith.constant 0 : index
    %c0_224 = arith.constant 0 : index
    %c0_225 = arith.constant 0 : index
    %265 = vector.load %arg12[%c0_223, %c0_224, %c0_225] : memref<6x8x384xbf16, #tpu.memory_space<vmem>>, vector<1x8x384xbf16>
    %266 = vector.shape_cast %265 : vector<1x8x384xbf16> to vector<8x384xbf16>
    %cst_226 = arith.constant dense<0.000000e+00> : vector<8x256xf32>
    %267 = tpu.matmul %266, %259, %cst_226 {dimension_numbers = #tpu.dot_dimension_numbers<[1], [0], [0], [1], [0, 0, 1, 1], [], []>} : vector<8x384xbf16>, vector<384x256xbf16>, vector<8x256xf32> -> vector<8x256xf32>
    %c1_227 = arith.constant 1 : index
    %c0_228 = arith.constant 0 : index
    %c0_229 = arith.constant 0 : index
    %268 = vector.load %arg12[%c1_227, %c0_228, %c0_229] : memref<6x8x384xbf16, #tpu.memory_space<vmem>>, vector<1x8x384xbf16>
    %269 = vector.shape_cast %268 : vector<1x8x384xbf16> to vector<8x384xbf16>
    %cst_230 = arith.constant dense<0.000000e+00> : vector<8x256xf32>
    %270 = tpu.matmul %269, %261, %cst_230 {dimension_numbers = #tpu.dot_dimension_numbers<[1], [0], [0], [1], [0, 0, 1, 1], [], []>} : vector<8x384xbf16>, vector<384x256xbf16>, vector<8x256xf32> -> vector<8x256xf32>
    %271 = arith.addf %267, %270 : vector<8x256xf32>
    %c2_231 = arith.constant 2 : index
    %c0_232 = arith.constant 0 : index
    %c0_233 = arith.constant 0 : index
    %272 = vector.load %arg12[%c2_231, %c0_232, %c0_233] : memref<6x8x384xbf16, #tpu.memory_space<vmem>>, vector<1x8x384xbf16>
    %273 = vector.shape_cast %272 : vector<1x8x384xbf16> to vector<8x384xbf16>
    %cst_234 = arith.constant dense<0.000000e+00> : vector<8x256xf32>
    %274 = tpu.matmul %273, %263, %cst_234 {dimension_numbers = #tpu.dot_dimension_numbers<[1], [0], [0], [1], [0, 0, 1, 1], [], []>} : vector<8x384xbf16>, vector<384x256xbf16>, vector<8x256xf32> -> vector<8x256xf32>
    %275 = arith.addf %271, %274 : vector<8x256xf32>
    %276 = vector.broadcast %264 : vector<1x256xf32> to vector<8x256xf32>
    %277 = arith.addf %275, %276 : vector<8x256xf32>
    %cst_235 = arith.constant 0.000000e+00 : f32
    %278 = vector.broadcast %cst_235 : f32 to vector<8x256xf32>
    %279 = arith.maximumf %277, %278 : vector<8x256xf32>
    %280 = arith.truncf %279 : vector<8x256xf32> to vector<8x256xbf16>
    %c0_236 = arith.constant 0 : index
    %c0_237 = arith.constant 0 : index
    %c0_238 = arith.constant 0 : index
    %281 = vector.load %arg13[%c0_236, %c0_237, %c0_238] : memref<2x8x256xbf16, #tpu.memory_space<vmem>>, vector<1x8x256xbf16>
    %282 = vector.shape_cast %281 : vector<1x8x256xbf16> to vector<8x256xbf16>
    %283 = vector.shape_cast %280 : vector<8x256xbf16> to vector<1x8x256xbf16>
    tpu.vector_store %arg13[%c0_236, %c0_237, %c0_238], %283 {strides = array<i32>} : memref<2x8x256xbf16, #tpu.memory_space<vmem>>, vector<1x8x256xbf16>,
    %c2_239 = arith.constant 2 : index
    %c0_240 = arith.constant 0 : index
    %c0_241 = arith.constant 0 : index
    %284 = vector.load %arg12[%c2_239, %c0_240, %c0_241] : memref<6x8x384xbf16, #tpu.memory_space<vmem>>, vector<1x8x384xbf16>
    %285 = vector.shape_cast %284 : vector<1x8x384xbf16> to vector<8x384xbf16>
    %cst_242 = arith.constant dense<0.000000e+00> : vector<8x256xf32>
    %286 = tpu.matmul %285, %259, %cst_242 {dimension_numbers = #tpu.dot_dimension_numbers<[1], [0], [0], [1], [0, 0, 1, 1], [], []>} : vector<8x384xbf16>, vector<384x256xbf16>, vector<8x256xf32> -> vector<8x256xf32>
    %c3_243 = arith.constant 3 : index
    %c0_244 = arith.constant 0 : index
    %c0_245 = arith.constant 0 : index
    %287 = vector.load %arg12[%c3_243, %c0_244, %c0_245] : memref<6x8x384xbf16, #tpu.memory_space<vmem>>, vector<1x8x384xbf16>
    %288 = vector.shape_cast %287 : vector<1x8x384xbf16> to vector<8x384xbf16>
    %cst_246 = arith.constant dense<0.000000e+00> : vector<8x256xf32>
    %289 = tpu.matmul %288, %261, %cst_246 {dimension_numbers = #tpu.dot_dimension_numbers<[1], [0], [0], [1], [0, 0, 1, 1], [], []>} : vector<8x384xbf16>, vector<384x256xbf16>, vector<8x256xf32> -> vector<8x256xf32>
    %290 = arith.addf %286, %289 : vector<8x256xf32>
    %c4_247 = arith.constant 4 : index
    %c0_248 = arith.constant 0 : index
    %c0_249 = arith.constant 0 : index
    %291 = vector.load %arg12[%c4_247, %c0_248, %c0_249] : memref<6x8x384xbf16, #tpu.memory_space<vmem>>, vector<1x8x384xbf16>
    %292 = vector.shape_cast %291 : vector<1x8x384xbf16> to vector<8x384xbf16>
    %cst_250 = arith.constant dense<0.000000e+00> : vector<8x256xf32>
    %293 = tpu.matmul %292, %263, %cst_250 {dimension_numbers = #tpu.dot_dimension_numbers<[1], [0], [0], [1], [0, 0, 1, 1], [], []>} : vector<8x384xbf16>, vector<384x256xbf16>, vector<8x256xf32> -> vector<8x256xf32>
    %294 = arith.addf %290, %293 : vector<8x256xf32>
    %295 = vector.broadcast %264 : vector<1x256xf32> to vector<8x256xf32>
    %296 = arith.addf %294, %295 : vector<8x256xf32>
    %cst_251 = arith.constant 0.000000e+00 : f32
    %297 = vector.broadcast %cst_251 : f32 to vector<8x256xf32>
    %298 = arith.maximumf %296, %297 : vector<8x256xf32>
    %299 = arith.truncf %298 : vector<8x256xf32> to vector<8x256xbf16>
    %c1_252 = arith.constant 1 : index
    %c0_253 = arith.constant 0 : index
    %c0_254 = arith.constant 0 : index
    %300 = vector.load %arg13[%c1_252, %c0_253, %c0_254] : memref<2x8x256xbf16, #tpu.memory_space<vmem>>, vector<1x8x256xbf16>
    %301 = vector.shape_cast %300 : vector<1x8x256xbf16> to vector<8x256xbf16>
    %302 = vector.shape_cast %299 : vector<8x256xbf16> to vector<1x8x256xbf16>
    tpu.vector_store %arg13[%c1_252, %c0_253, %c0_254], %302 {strides = array<i32>} : memref<2x8x256xbf16, #tpu.memory_space<vmem>>, vector<1x8x256xbf16>,
    %c0_255 = arith.constant 0 : index
    %c0_256 = arith.constant 0 : index
    %c0_257 = arith.constant 0 : index
    %303 = vector.load %arg13[%c0_255, %c0_256, %c0_257] : memref<2x8x256xbf16, #tpu.memory_space<vmem>>, vector<1x8x256xbf16>
    %304 = vector.shape_cast %303 : vector<1x8x256xbf16> to vector<8x256xbf16>
    %c0_258 = arith.constant 0 : index
    %c0_259 = arith.constant 0 : index
    %c0_260 = arith.constant 0 : index
    %305 = vector.load %arg8[%c0_258, %c0_259, %c0_260] : memref<2x256x128xbf16, #tpu.memory_space<vmem>>, vector<1x256x128xbf16>
    %306 = vector.shape_cast %305 : vector<1x256x128xbf16> to vector<256x128xbf16>
    %cst_261 = arith.constant dense<0.000000e+00> : vector<8x128xf32>
    %307 = tpu.matmul %304, %306, %cst_261 {dimension_numbers = #tpu.dot_dimension_numbers<[1], [0], [0], [1], [0, 0, 1, 1], [], []>} : vector<8x256xbf16>, vector<256x128xbf16>, vector<8x128xf32> -> vector<8x128xf32>
    %c1_262 = arith.constant 1 : index
    %c0_263 = arith.constant 0 : index
    %c0_264 = arith.constant 0 : index
    %308 = vector.load %arg13[%c1_262, %c0_263, %c0_264] : memref<2x8x256xbf16, #tpu.memory_space<vmem>>, vector<1x8x256xbf16>
    %309 = vector.shape_cast %308 : vector<1x8x256xbf16> to vector<8x256xbf16>
    %c1_265 = arith.constant 1 : index
    %c0_266 = arith.constant 0 : index
    %c0_267 = arith.constant 0 : index
    %310 = vector.load %arg8[%c1_265, %c0_266, %c0_267] : memref<2x256x128xbf16, #tpu.memory_space<vmem>>, vector<1x256x128xbf16>
    %311 = vector.shape_cast %310 : vector<1x256x128xbf16> to vector<256x128xbf16>
    %cst_268 = arith.constant dense<0.000000e+00> : vector<8x128xf32>
    %312 = tpu.matmul %309, %311, %cst_268 {dimension_numbers = #tpu.dot_dimension_numbers<[1], [0], [0], [1], [0, 0, 1, 1], [], []>} : vector<8x256xbf16>, vector<256x128xbf16>, vector<8x128xf32> -> vector<8x128xf32>
    %313 = arith.addf %307, %312 : vector<8x128xf32>
    %c0_269 = arith.constant 0 : index
    %c0_270 = arith.constant 0 : index
    %314 = vector.load %arg9[%c0_269, %c0_270] : memref<1x128xf32, #tpu.memory_space<vmem>>, vector<1x128xf32>
    %315 = vector.broadcast %314 : vector<1x128xf32> to vector<8x128xf32>
    %316 = arith.addf %313, %315 : vector<8x128xf32>
    %c0_271 = arith.constant 0 : index
    %c0_272 = arith.constant 0 : index
    %317 = vector.load %arg10[%c0_271, %c0_272] : memref<8x128xf32, #tpu.memory_space<vmem>>, vector<8x128xf32>
    tpu.vector_store %arg10[%c0_271, %c0_272], %316 {strides = array<i32>} : memref<8x128xf32, #tpu.memory_space<vmem>>, vector<8x128xf32>,
    return
  }
  func.func @transform_0(%arg0: i32) -> (i32, i32, i32) {
    %c0_i32 = arith.constant 0 : i32
    %c0_i32_0 = arith.constant 0 : i32
    %c0_i32_1 = arith.constant 0 : i32
    return %c0_i32, %arg0, %c0_i32_0 : i32, i32, i32
  }
  func.func @transform_1(%arg0: i32) -> (i32, i32, i32) {
    %c0_i32 = arith.constant 0 : i32
    %c0_i32_0 = arith.constant 0 : i32
    %c0_i32_1 = arith.constant 0 : i32
    %c0_i32_2 = arith.constant 0 : i32
    return %c0_i32, %c0_i32_0, %c0_i32_1 : i32, i32, i32
  }
  func.func @transform_2(%arg0: i32) -> (i32, i32) {
    %c0_i32 = arith.constant 0 : i32
    %c0_i32_0 = arith.constant 0 : i32
    %c0_i32_1 = arith.constant 0 : i32
    return %c0_i32, %c0_i32_0 : i32, i32
  }
  func.func @transform_3(%arg0: i32) -> (i32, i32, i32) {
    %c0_i32 = arith.constant 0 : i32
    %c0_i32_0 = arith.constant 0 : i32
    %c0_i32_1 = arith.constant 0 : i32
    %c0_i32_2 = arith.constant 0 : i32
    return %c0_i32, %c0_i32_0, %c0_i32_1 : i32, i32, i32
  }
  func.func @transform_4(%arg0: i32) -> (i32, i32) {
    %c0_i32 = arith.constant 0 : i32
    %c0_i32_0 = arith.constant 0 : i32
    %c0_i32_1 = arith.constant 0 : i32
    return %c0_i32, %c0_i32_0 : i32, i32
  }
  func.func @transform_5(%arg0: i32) -> (i32, i32, i32) {
    %c0_i32 = arith.constant 0 : i32
    %c0_i32_0 = arith.constant 0 : i32
    %c0_i32_1 = arith.constant 0 : i32
    %c0_i32_2 = arith.constant 0 : i32
    return %c0_i32, %c0_i32_0, %c0_i32_1 : i32, i32, i32
  }
  func.func @transform_6(%arg0: i32) -> (i32, i32) {
    %c0_i32 = arith.constant 0 : i32
    %c0_i32_0 = arith.constant 0 : i32
    %c0_i32_1 = arith.constant 0 : i32
    return %c0_i32, %c0_i32_0 : i32, i32
  }
  func.func @transform_7(%arg0: i32) -> (i32, i32, i32) {
    %c0_i32 = arith.constant 0 : i32
    %c0_i32_0 = arith.constant 0 : i32
    %c0_i32_1 = arith.constant 0 : i32
    %c0_i32_2 = arith.constant 0 : i32
    return %c0_i32, %c0_i32_0, %c0_i32_1 : i32, i32, i32
  }
  func.func @transform_8(%arg0: i32) -> (i32, i32) {
    %c0_i32 = arith.constant 0 : i32
    %c0_i32_0 = arith.constant 0 : i32
    %c0_i32_1 = arith.constant 0 : i32
    return %c0_i32, %c0_i32_0 : i32, i32
  }
  func.func @transform_9(%arg0: i32) -> (i32, i32) {
    %c0_i32 = arith.constant 0 : i32
    %c0_i32_0 = arith.constant 0 : i32
    return %arg0, %c0_i32 : i32, i32
  }
}

</mosaic_0001>

<llo_original>
// kernel: simple_cnn_forward.1
$region0: #{simple_cnn_forward.1}
  #allocation0 [shape = 'u32[]', space=smem, size = 0x4, offset = 0x4, fixed_abs, tag = 'smem constant byte address 0x4 - core index']
  #allocation1 [shape = 'u32[144,128]{1,0:T(1,128)}', space=vmem, size = 0x12000, scoped, tag = 'internal scratch']
  #allocation2 [shape = 'bf16[10,8,320]{2,1,0:T(8,128)(2,1)}', space=vmem, size = 0xf000, scoped, tag = 'scratch operand']
  #allocation3 [shape = 'bf16[6,8,384]{2,1,0:T(8,128)(2,1)}', space=vmem, size = 0x9000, scoped, tag = 'scratch operand']
  #allocation4 [shape = 'bf16[2,8,256]{2,1,0:T(8,128)(2,1)}', space=vmem, size = 0x2000, scoped, tag = 'scratch operand']
  %s0 = inlined_call_operand.vmem [shape: bf16[18,8,72], index: 0, kind: input, shape index: {}]
  %s1 = inlined_call_operand.vmem [shape: bf16[3,72,320], index: 1, kind: input, shape index: {}]
  %s2 = inlined_call_operand.vmem [shape: f32[1,320], index: 2, kind: input, shape index: {}]
  %s3 = inlined_call_operand.hbm [shape: bf16[3,320,384], index: 3, kind: input, shape index: {}]
  %s4 = inlined_call_operand.vmem [shape: f32[1,384], index: 4, kind: input, shape index: {}]
  %s5 = inlined_call_operand.hbm [shape: bf16[3,384,256], index: 5, kind: input, shape index: {}]
  %s6 = inlined_call_operand.vmem [shape: f32[1,256], index: 6, kind: input, shape index: {}]
  %s7 = inlined_call_operand.vmem [shape: bf16[2,256,128], index: 7, kind: input, shape index: {}]
  %s8 = inlined_call_operand.vmem [shape: f32[1,128], index: 8, kind: input, shape index: {}]
  %s9 = inlined_call_operand.vmem [shape: f32[8,128], index: 9, kind: output, shape index: {}]
  %s10 = sld [smem:[#allocation0]]
  $region54: #{simple_cnn_forward.1} parent=0
    _
  %s12 = ssub.s32 1, %s10
  %s13 = scalar_select 0, %s12, %s10
  $region1: #{simple_cnn_forward.1} parent=0
    #allocation5 [shape = 'u8[737280]{0}', space=vmem, size = 0xb4000, scoped, tag = 'input window, operand 3, single buffered']
    #allocation6 [shape = 's32[1]{0}', space=sflag, size = 0x4, scoped, tag = 'scoped memory for simple_cnn_forward.1']
    #allocation7 [shape = 'u8[589824]{0}', space=vmem, size = 0x90000, scoped, tag = 'input window, operand 5, single buffered']
    #allocation8 [shape = 's32[1]{0}', space=sflag, size = 0x4, scoped, tag = 'scoped memory for simple_cnn_forward.1']
    %14 = vsyncpa [#allocation6], 0
    %15 = vsyncpa [#allocation8], 0
    // Predicated region
    $region2: #{simple_cnn_forward.1} parent=1 // pred_check
      _
    $region3: #{simple_cnn_forward.1} parent=1 // pred_check_branch
      %17 = sbr.rel (0) target = $region5
    $region4: #{simple_cnn_forward.1} parent=1 // pred_region
      _
    $region5: #{simple_cnn_forward.1} parent=1 // pred_fallthru
      _
    // Predicated region
    $region6: #{simple_cnn_forward.1} parent=1 // pred_check
      _
    $region7: #{simple_cnn_forward.1} parent=1 // pred_check_branch
      %19 = sbr.rel (0) target = $region9
    $region8: #{simple_cnn_forward.1} parent=1 // pred_region
      _
    $region9: #{simple_cnn_forward.1} parent=1 // pred_fallthru
      _
    // Predicated region
    $region10: #{simple_cnn_forward.1} parent=1 // pred_check
      _
    $region11: #{simple_cnn_forward.1} parent=1 // pred_check_branch
      %21 = sbr.rel (0) target = $region13
    $region12: #{simple_cnn_forward.1} parent=1 // pred_region
      _
    $region13: #{simple_cnn_forward.1} parent=1 // pred_fallthru
      _
    // Predicated region
    $region14: #{simple_cnn_forward.1} parent=1 // pred_check
      _
    $region15: #{simple_cnn_forward.1} parent=1 // pred_check_branch
      %23 = sbr.rel (0) target = $region17
    $region16: #{simple_cnn_forward.1} parent=1 // pred_region
      %s25 = ssub.s32 23040, 23040
      %26 = vsyncadd [#allocation6], %s25
      %s27 = sshll.u32 [#allocation5], 4
      %s28 = int_to_ptr.vmem [resolvable:$true] %s27
      %33 = dma.hbm_to_vmem [thread:$0]  %s3, 23040, %s28, [#allocation6], 192, 192, 12
    $region17: #{simple_cnn_forward.1} parent=1 // pred_fallthru
      _
    // Predicated region
    $region18: #{simple_cnn_forward.1} parent=1 // pred_check
      _
    $region19: #{simple_cnn_forward.1} parent=1 // pred_check_branch
      %35 = sbr.rel (0) target = $region21
    $region20: #{simple_cnn_forward.1} parent=1 // pred_region
      _
    $region21: #{simple_cnn_forward.1} parent=1 // pred_fallthru
      _
    // Predicated region
    $region22: #{simple_cnn_forward.1} parent=1 // pred_check
      _
    $region23: #{simple_cnn_forward.1} parent=1 // pred_check_branch
      %37 = sbr.rel (0) target = $region25
    $region24: #{simple_cnn_forward.1} parent=1 // pred_region
      %s39 = ssub.s32 18432, 18432
      %40 = vsyncadd [#allocation8], %s39
      %s41 = sshll.u32 [#allocation7], 4
      %s42 = int_to_ptr.vmem [resolvable:$true] %s41
      %47 = dma.hbm_to_vmem [thread:$0]  %s5, 18432, %s42, [#allocation8], 128, 128, 8
    $region25: #{simple_cnn_forward.1} parent=1 // pred_fallthru
      _
    // Predicated region
    $region26: #{simple_cnn_forward.1} parent=1 // pred_check
      _
    $region27: #{simple_cnn_forward.1} parent=1 // pred_check_branch
      %49 = sbr.rel (0) target = $region29
    $region28: #{simple_cnn_forward.1} parent=1 // pred_region
      _
    $region29: #{simple_cnn_forward.1} parent=1 // pred_fallthru
      _
    // Predicated region
    $region30: #{simple_cnn_forward.1} parent=1 // pred_check
      _
    $region31: #{simple_cnn_forward.1} parent=1 // pred_check_branch
      %51 = sbr.rel (0) target = $region33
    $region32: #{simple_cnn_forward.1} parent=1 // pred_region
      _
    $region33: #{simple_cnn_forward.1} parent=1 // pred_fallthru
      _
    // Predicated region
    $region34: #{simple_cnn_forward.1} parent=1 // pred_check
      _
    $region35: #{simple_cnn_forward.1} parent=1 // pred_check_branch
      %53 = sbr.rel (0) target = $region37
    $region36: #{simple_cnn_forward.1} parent=1 // pred_region
      _
    $region37: #{simple_cnn_forward.1} parent=1 // pred_fallthru
      _
    // Predicated region
    $region38: #{simple_cnn_forward.1} parent=1 // pred_check
      _
    $region39: #{simple_cnn_forward.1} parent=1 // pred_check_branch
      %55 = sbr.rel (0) target = $region41
    $region40: #{simple_cnn_forward.1} parent=1 // pred_region
      %56 = dma.done [#allocation6], 23040
    $region41: #{simple_cnn_forward.1} parent=1 // pred_fallthru
      _
    // Predicated region
    $region42: #{simple_cnn_forward.1} parent=1 // pred_check
      _
    $region43: #{simple_cnn_forward.1} parent=1 // pred_check_branch
      %58 = sbr.rel (0) target = $region45
    $region44: #{simple_cnn_forward.1} parent=1 // pred_region
      %59 = dma.done [#allocation8], 18432
    $region45: #{simple_cnn_forward.1} parent=1 // pred_fallthru
      _
    %61 = vst [vmem:[#allocation2] sm:$0xff] 0
    %vm62 = vcmask 519168
    %63 = vst.msk [vmem:[#allocation2 + $0x8] sm:$0xf] %vm62, 0
    %s64 = scalar_lea.vmem [#allocation2], 108
    %65 = vst [vmem:[%s64] sm:$0xff] 0
    %66 = vst.msk [vmem:[%s64 + $0x8] sm:$0xf] %vm62, 0
    %67 = vst [vmem:[#allocation3] sm:$0xff] 0
    %68 = vst [vmem:[#allocation3 + $0x8] sm:$0xf] 0
    %s69 = scalar_lea.vmem [#allocation3], 60
    %70 = vst [vmem:[%s69] sm:$0xff] 0
    %71 = vst [vmem:[%s69 + $0x8] sm:$0xf] 0
    %v72 = vld [vmem:[%s1] sm:$0xff]
    %v73 = vld [vmem:[%s1 + $0x8] sm:$0xf]
    %v74 = vld [vmem:[%s1 + $0xc] sm:$0xff]
    %v75 = vld [vmem:[%s1 + $0x14] sm:$0xf]
    %v76 = vld [vmem:[%s1 + $0x18] sm:$0xff]
    %v77 = vld [vmem:[%s1 + $0x20] sm:$0xf]
    %v78 = vld [vmem:[%s1 + $0x24] sm:$0xff]
    %v79 = vld [vmem:[%s1 + $0x2c] sm:$0xf]
    %v80 = vld [vmem:[%s1 + $0x30] sm:$0xff]
    %v81 = vld [vmem:[%s1 + $0x38] sm:$0xf]
    %v82 = vld [vmem:[%s1 + $0x3c] sm:$0xff]
    %v83 = vld [vmem:[%s1 + $0x44] sm:$0xf]
    %v84 = vld [vmem:[%s1 + $0x48] sm:$0xff]
    %v85 = vld [vmem:[%s1 + $0x50] sm:$0xf]
    %v86 = vld [vmem:[%s1 + $0x54] sm:$0xff]
    %v87 = vld [vmem:[%s1 + $0x5c] sm:$0xf]
    %v88 = vld [vmem:[%s1 + $0x60] sm:$0xff]
    %v89 = vld [vmem:[%s1 + $0x68] sm:$0xf]
    %s90 = scalar_lea.vmem %s1, 108
    %v91 = vld [vmem:[%s90] sm:$0xff]
    %v92 = vld [vmem:[%s90 + $0x8] sm:$0xf]
    %v93 = vld [vmem:[%s90 + $0xc] sm:$0xff]
    %v94 = vld [vmem:[%s90 + $0x14] sm:$0xf]
    %v95 = vld [vmem:[%s90 + $0x18] sm:$0xff]
    %v96 = vld [vmem:[%s90 + $0x20] sm:$0xf]
    %v97 = vld [vmem:[%s90 + $0x24] sm:$0xff]
    %v98 = vld [vmem:[%s90 + $0x2c] sm:$0xf]
    %v99 = vld [vmem:[%s90 + $0x30] sm:$0xff]
    %v100 = vld [vmem:[%s90 + $0x38] sm:$0xf]
    %v101 = vld [vmem:[%s90 + $0x3c] sm:$0xff]
    %v102 = vld [vmem:[%s90 + $0x44] sm:$0xf]
    %v103 = vld [vmem:[%s90 + $0x48] sm:$0xff]
    %v104 = vld [vmem:[%s90 + $0x50] sm:$0xf]
    %v105 = vld [vmem:[%s90 + $0x54] sm:$0xff]
    %v106 = vld [vmem:[%s90 + $0x5c] sm:$0xf]
    %v107 = vld [vmem:[%s90 + $0x60] sm:$0xff]
    %v108 = vld [vmem:[%s90 + $0x68] sm:$0xf]
    %s109 = scalar_lea.vmem %s1, 216
    %v110 = vld [vmem:[%s109] sm:$0xff]
    %v111 = vld [vmem:[%s109 + $0x8] sm:$0xf]
    %v112 = vld [vmem:[%s109 + $0xc] sm:$0xff]
    %v113 = vld [vmem:[%s109 + $0x14] sm:$0xf]
    %v114 = vld [vmem:[%s109 + $0x18] sm:$0xff]
    %v115 = vld [vmem:[%s109 + $0x20] sm:$0xf]
    %v116 = vld [vmem:[%s109 + $0x24] sm:$0xff]
    %v117 = vld [vmem:[%s109 + $0x2c] sm:$0xf]
    %v118 = vld [vmem:[%s109 + $0x30] sm:$0xff]
    %v119 = vld [vmem:[%s109 + $0x38] sm:$0xf]
    %v120 = vld [vmem:[%s109 + $0x3c] sm:$0xff]
    %v121 = vld [vmem:[%s109 + $0x44] sm:$0xf]
    %v122 = vld [vmem:[%s109 + $0x48] sm:$0xff]
    %v123 = vld [vmem:[%s109 + $0x50] sm:$0xf]
    %v124 = vld [vmem:[%s109 + $0x54] sm:$0xff]
    %v125 = vld [vmem:[%s109 + $0x5c] sm:$0xf]
    %v126 = vld [vmem:[%s109 + $0x60] sm:$0xff]
    %v127 = vld [vmem:[%s109 + $0x68] sm:$0xf]
    %v128 = vld [vmem:[%s2] sm:$0x7]
    %v129 = vld [vmem:[%s0] sm:$0xf]
    %s130 = scalar_lea.vmem %s0, 4
    %v131 = vld [vmem:[%s130] sm:$0xf]
    %v150 = vunpack.c.l.b16 %v91
    %v151 = vunpack.c.h.b16 %v91
    %v152 = vunpack.c.l.b16 %v92
    %v153 = vunpack.c.l.b16 %v93
    %v154 = vunpack.c.h.b16 %v93
    %v155 = vunpack.c.l.b16 %v94
    %v156 = vunpack.c.l.b16 %v95
    %v157 = vunpack.c.h.b16 %v95
    %v158 = vunpack.c.l.b16 %v96
    %v159 = vunpack.c.l.b16 %v97
    %v160 = vunpack.c.h.b16 %v97
    %v161 = vunpack.c.l.b16 %v98
    %v162 = vunpack.c.l.b16 %v99
    %v163 = vunpack.c.h.b16 %v99
    %v164 = vunpack.c.l.b16 %v100
    %v165 = vunpack.c.l.b16 %v101
    %v166 = vunpack.c.h.b16 %v101
    %v167 = vunpack.c.l.b16 %v102
    %v168 = vunpack.c.l.b16 %v103
    %v169 = vunpack.c.h.b16 %v103
    %v170 = vunpack.c.l.b16 %v104
    %v171 = vunpack.c.l.b16 %v105
    %v172 = vunpack.c.h.b16 %v105
    %v173 = vunpack.c.l.b16 %v106
    %v174 = vunpack.c.l.b16 %v107
    %v175 = vunpack.c.h.b16 %v107
    %v176 = vunpack.c.l.b16 %v108
    %v177 = vpack.c.b16 %v153, %v150
    %v178 = vpack.c.b16 %v154, %v151
    %v179 = vpack.c.b16 %v155, %v152
    %v180 = vpack.c.b16 %v159, %v156
    %v181 = vpack.c.b16 %v160, %v157
    %v182 = vpack.c.b16 %v161, %v158
    %v183 = vpack.c.b16 %v165, %v162
    %v184 = vpack.c.b16 %v166, %v163
    %v185 = vpack.c.b16 %v167, %v164
    %v186 = vpack.c.b16 %v171, %v168
    %v187 = vpack.c.b16 %v172, %v169
    %v188 = vpack.c.b16 %v173, %v170
    %v189 = vpack.c.b16 %v174, %v174
    %v190 = vpack.c.b16 %v175, %v175
    %v191 = vpack.c.b16 %v176, %v176
    %vm204 = vcmask 588800
    %v206 = vsel %vm204, %v131, 0
    %vm208 = vcmask 1043456
    %v210 = vsel %vm208, %v189, 0
    %v213 = vsel %vm208, %v190, 0
    %v216 = vsel %vm208, %v191, 0
    %218 = vmatprep.subr.bf16.mxu0 %v178
    %219 = vmatpush1.bf16.msra.mxu0 %v177
    %220 = vmatprep.subr.bf16.mxu0 %v181
    %221 = vmatpush1.bf16.msra.mxu0 %v180
    %222 = vmatprep.subr.bf16.mxu0 %v184
    %223 = vmatpush1.bf16.msra.mxu0 %v183
    %224 = vmatprep.subr.bf16.mxu0 %v187
    %225 = vmatpush1.bf16.msra.mxu0 %v186
    %226 = vmatprep.subr.bf16.mxu0 %v213
    %227 = vmatpush1.bf16.msra.mxu0 %v210
    %228 = vmatprep.subr.bf16.mxu0 0
    %229 = vmatpush1.bf16.msra.mxu0 0
    %230 = vmatprep.subr.bf16.mxu0 0
    %231 = vmatpush1.bf16.msra.mxu0 0
    %232 = vmatprep.subr.bf16.mxu0 0
    %233 = vmatpush1.bf16.msra.mxu0 0
    %234 = vmatprep.subr.bf16.mxu0 0
    %235 = vmatpush1.bf16.msra.mxu0 0
    %236 = vmatprep.subr.bf16.mxu0 0
    %237 = vmatpush1.bf16.msra.mxu0 0
    %238 = vmatprep.subr.bf16.mxu0 0
    %239 = vmatpush1.bf16.msra.mxu0 0
    %240 = vmatprep.subr.bf16.mxu0 0
    %241 = vmatpush1.bf16.msra.mxu0 0
    %242 = vmatprep.subr.bf16.mxu0 0
    %243 = vmatpush1.bf16.msra.mxu0 0
    %244 = vmatprep.subr.bf16.mxu0 0
    %245 = vmatpush1.bf16.msra.mxu0 0
    %246 = vmatprep.subr.bf16.mxu0 0
    %247 = vmatpush1.bf16.msra.mxu0 0
    %248 = vmatprep.subr.bf16.mxu0 0
    %249 = vmatpush1.bf16.msra.mxu0 0
    %250 = vmatprep.mubr.bf16.mxu0 0
    %251 = vmatmul.mubr.bf16.gmra.mrb[0].mxu0 %v206
    %v252 = vpop.f32.mrb[0].mxu0
    %v253 = vadd.f32 0.0, %v252
    %v254 = vpop.f32.mrb[0].mxu0
    %v255 = vadd.f32 0.0, %v254
    %v256 = vpop.f32.mrb[0].mxu0
    %v257 = vpop.f32.mrb[0].mxu0
    %258 = vdwg.mxu0
    %259 = vmatprep.subr.bf16.mxu0 0
    %260 = vmatpush1.bf16.msra.mxu0 %v179
    %261 = vmatprep.subr.bf16.mxu0 0
    %262 = vmatpush1.bf16.msra.mxu0 %v182
    %263 = vmatprep.subr.bf16.mxu0 0
    %264 = vmatpush1.bf16.msra.mxu0 %v185
    %265 = vmatprep.subr.bf16.mxu0 0
    %266 = vmatpush1.bf16.msra.mxu0 %v188
    %267 = vmatprep.subr.bf16.mxu0 0
    %268 = vmatpush1.bf16.msra.mxu0 %v216
    %269 = vmatprep.subr.bf16.mxu0 0
    %270 = vmatpush1.bf16.msra.mxu0 0
    %271 = vmatprep.subr.bf16.mxu0 0
    %272 = vmatpush1.bf16.msra.mxu0 0
    %273 = vmatprep.subr.bf16.mxu0 0
    %274 = vmatpush1.bf16.msra.mxu0 0
    %275 = vmatprep.subr.bf16.mxu0 0
    %276 = vmatpush1.bf16.msra.mxu0 0
    %277 = vmatprep.subr.bf16.mxu0 0
    %278 = vmatpush1.bf16.msra.mxu0 0
    %279 = vmatprep.subr.bf16.mxu0 0
    %280 = vmatpush1.bf16.msra.mxu0 0
    %281 = vmatprep.subr.bf16.mxu0 0
    %282 = vmatpush1.bf16.msra.mxu0 0
    %283 = vmatprep.subr.bf16.mxu0 0
    %284 = vmatpush1.bf16.msra.mxu0 0
    %285 = vmatprep.subr.bf16.mxu0 0
    %286 = vmatpush1.bf16.msra.mxu0 0
    %287 = vmatprep.subr.bf16.mxu0 0
    %288 = vmatpush1.bf16.msra.mxu0 0
    %289 = vmatprep.subr.bf16.mxu0 0
    %290 = vmatpush1.bf16.msra.mxu0 0
    %291 = vmatprep.mubr.bf16.mxu0 0
    %292 = vmatmul.mubr.bf16.gmra.mrb[0].mxu0 %v206
    %v293 = vpop.f32.mrb[0].mxu0
    %v294 = vadd.f32 0.0, %v293
    %v295 = vpop.f32.mrb[0].mxu0
    %v296 = vpop.f32.mrb[0].mxu0
    %v297 = vpop.f32.mrb[0].mxu0
    %298 = vdwg.mxu0
    %v317 = vunpack.c.l.b16 %v72
    %v318 = vunpack.c.h.b16 %v72
    %v319 = vunpack.c.l.b16 %v73
    %v320 = vunpack.c.l.b16 %v74
    %v321 = vunpack.c.h.b16 %v74
    %v322 = vunpack.c.l.b16 %v75
    %v323 = vunpack.c.l.b16 %v76
    %v324 = vunpack.c.h.b16 %v76
    %v325 = vunpack.c.l.b16 %v77
    %v326 = vunpack.c.l.b16 %v78
    %v327 = vunpack.c.h.b16 %v78
    %v328 = vunpack.c.l.b16 %v79
    %v329 = vunpack.c.l.b16 %v80
    %v330 = vunpack.c.h.b16 %v80
    %v331 = vunpack.c.l.b16 %v81
    %v332 = vunpack.c.l.b16 %v82
    %v333 = vunpack.c.h.b16 %v82
    %v334 = vunpack.c.l.b16 %v83
    %v335 = vunpack.c.l.b16 %v84
    %v336 = vunpack.c.h.b16 %v84
    %v337 = vunpack.c.l.b16 %v85
    %v338 = vunpack.c.l.b16 %v86
    %v339 = vunpack.c.h.b16 %v86
    %v340 = vunpack.c.l.b16 %v87
    %v341 = vunpack.c.l.b16 %v88
    %v342 = vunpack.c.h.b16 %v88
    %v343 = vunpack.c.l.b16 %v89
    %v344 = vpack.c.b16 %v320, %v317
    %v345 = vpack.c.b16 %v321, %v318
    %v346 = vpack.c.b16 %v322, %v319
    %v347 = vpack.c.b16 %v326, %v323
    %v348 = vpack.c.b16 %v327, %v324
    %v349 = vpack.c.b16 %v328, %v325
    %v350 = vpack.c.b16 %v332, %v329
    %v351 = vpack.c.b16 %v333, %v330
    %v352 = vpack.c.b16 %v334, %v331
    %v353 = vpack.c.b16 %v338, %v335
    %v354 = vpack.c.b16 %v339, %v336
    %v355 = vpack.c.b16 %v340, %v337
    %v356 = vpack.c.b16 %v341, %v341
    %v357 = vpack.c.b16 %v342, %v342
    %v358 = vpack.c.b16 %v343, %v343
    %v372 = vsel %vm204, %v129, 0
    %v375 = vsel %vm208, %v356, 0
    %v378 = vsel %vm208, %v357, 0
    %v381 = vsel %vm208, %v358, 0
    %383 = vmatprep.subr.bf16.mxu0 %v345
    %384 = vmatpush1.bf16.msra.mxu0 %v344
    %385 = vmatprep.subr.bf16.mxu0 %v348
    %386 = vmatpush1.bf16.msra.mxu0 %v347
    %387 = vmatprep.subr.bf16.mxu0 %v351
    %388 = vmatpush1.bf16.msra.mxu0 %v350
    %389 = vmatprep.subr.bf16.mxu0 %v354
    %390 = vmatpush1.bf16.msra.mxu0 %v353
    %391 = vmatprep.subr.bf16.mxu0 %v378
    %392 = vmatpush1.bf16.msra.mxu0 %v375
    %393 = vmatprep.subr.bf16.mxu0 0
    %394 = vmatpush1.bf16.msra.mxu0 0
    %395 = vmatprep.subr.bf16.mxu0 0
    %396 = vmatpush1.bf16.msra.mxu0 0
    %397 = vmatprep.subr.bf16.mxu0 0
    %398 = vmatpush1.bf16.msra.mxu0 0
    %399 = vmatprep.subr.bf16.mxu0 0
    %400 = vmatpush1.bf16.msra.mxu0 0
    %401 = vmatprep.subr.bf16.mxu0 0
    %402 = vmatpush1.bf16.msra.mxu0 0
    %403 = vmatprep.subr.bf16.mxu0 0
    %404 = vmatpush1.bf16.msra.mxu0 0
    %405 = vmatprep.subr.bf16.mxu0 0
    %406 = vmatpush1.bf16.msra.mxu0 0
    %407 = vmatprep.subr.bf16.mxu0 0
    %408 = vmatpush1.bf16.msra.mxu0 0
    %409 = vmatprep.subr.bf16.mxu0 0
    %410 = vmatpush1.bf16.msra.mxu0 0
    %411 = vmatprep.subr.bf16.mxu0 0
    %412 = vmatpush1.bf16.msra.mxu0 0
    %413 = vmatprep.subr.bf16.mxu0 0
    %414 = vmatpush1.bf16.msra.mxu0 0
    %415 = vmatprep.mubr.bf16.mxu0 0
    %416 = vmatmul.mubr.bf16.gmra.mrb[0].mxu0 %v372
    %v417 = vpop.f32.mrb[0].mxu0
    %v418 = vadd.f32 %v253, %v417
    %v419 = vpop.f32.mrb[0].mxu0
    %v420 = vadd.f32 %v255, %v419
    %v421 = vpop.f32.mrb[0].mxu0
    %v422 = vpop.f32.mrb[0].mxu0
    %423 = vdwg.mxu0
    %424 = vmatprep.subr.bf16.mxu0 0
    %425 = vmatpush1.bf16.msra.mxu0 %v346
    %426 = vmatprep.subr.bf16.mxu0 0
    %427 = vmatpush1.bf16.msra.mxu0 %v349
    %428 = vmatprep.subr.bf16.mxu0 0
    %429 = vmatpush1.bf16.msra.mxu0 %v352
    %430 = vmatprep.subr.bf16.mxu0 0
    %431 = vmatpush1.bf16.msra.mxu0 %v355
    %432 = vmatprep.subr.bf16.mxu0 0
    %433 = vmatpush1.bf16.msra.mxu0 %v381
    %434 = vmatprep.subr.bf16.mxu0 0
    %435 = vmatpush1.bf16.msra.mxu0 0
    %436 = vmatprep.subr.bf16.mxu0 0
    %437 = vmatpush1.bf16.msra.mxu0 0
    %438 = vmatprep.subr.bf16.mxu0 0
    %439 = vmatpush1.bf16.msra.mxu0 0
    %440 = vmatprep.subr.bf16.mxu0 0
    %441 = vmatpush1.bf16.msra.mxu0 0
    %442 = vmatprep.subr.bf16.mxu0 0
    %443 = vmatpush1.bf16.msra.mxu0 0
    %444 = vmatprep.subr.bf16.mxu0 0
    %445 = vmatpush1.bf16.msra.mxu0 0
    %446 = vmatprep.subr.bf16.mxu0 0
    %447 = vmatpush1.bf16.msra.mxu0 0
    %448 = vmatprep.subr.bf16.mxu0 0
    %449 = vmatpush1.bf16.msra.mxu0 0
    %450 = vmatprep.subr.bf16.mxu0 0
    %451 = vmatpush1.bf16.msra.mxu0 0
    %452 = vmatprep.subr.bf16.mxu0 0
    %453 = vmatpush1.bf16.msra.mxu0 0
    %454 = vmatprep.subr.bf16.mxu0 0
    %455 = vmatpush1.bf16.msra.mxu0 0
    %456 = vmatprep.mubr.bf16.mxu0 0
    %457 = vmatmul.mubr.bf16.gmra.mrb[0].mxu0 %v372
    %v458 = vpop.f32.mrb[0].mxu0
    %v459 = vadd.f32 %v294, %v458
    %v460 = vpop.f32.mrb[0].mxu0
    %v461 = vpop.f32.mrb[0].mxu0
    %v462 = vpop.f32.mrb[0].mxu0
    %463 = vdwg.mxu0
    %s464 = scalar_lea.vmem %s0, 8
    %v465 = vld [vmem:[%s464] sm:$0xf]
    %v484 = vunpack.c.l.b16 %v110
    %v485 = vunpack.c.h.b16 %v110
    %v486 = vunpack.c.l.b16 %v111
    %v487 = vunpack.c.l.b16 %v112
    %v488 = vunpack.c.h.b16 %v112
    %v489 = vunpack.c.l.b16 %v113
    %v490 = vunpack.c.l.b16 %v114
    %v491 = vunpack.c.h.b16 %v114
    %v492 = vunpack.c.l.b16 %v115
    %v493 = vunpack.c.l.b16 %v116
    %v494 = vunpack.c.h.b16 %v116
    %v495 = vunpack.c.l.b16 %v117
    %v496 = vunpack.c.l.b16 %v118
    %v497 = vunpack.c.h.b16 %v118
    %v498 = vunpack.c.l.b16 %v119
    %v499 = vunpack.c.l.b16 %v120
    %v500 = vunpack.c.h.b16 %v120
    %v501 = vunpack.c.l.b16 %v121
    %v502 = vunpack.c.l.b16 %v122
    %v503 = vunpack.c.h.b16 %v122
    %v504 = vunpack.c.l.b16 %v123
    %v505 = vunpack.c.l.b16 %v124
    %v506 = vunpack.c.h.b16 %v124
    %v507 = vunpack.c.l.b16 %v125
    %v508 = vunpack.c.l.b16 %v126
    %v509 = vunpack.c.h.b16 %v126
    %v510 = vunpack.c.l.b16 %v127
    %v511 = vpack.c.b16 %v487, %v484
    %v512 = vpack.c.b16 %v488, %v485
    %v513 = vpack.c.b16 %v489, %v486
    %v514 = vpack.c.b16 %v493, %v490
    %v515 = vpack.c.b16 %v494, %v491
    %v516 = vpack.c.b16 %v495, %v492
    %v517 = vpack.c.b16 %v499, %v496
    %v518 = vpack.c.b16 %v500, %v497
    %v519 = vpack.c.b16 %v501, %v498
    %v520 = vpack.c.b16 %v505, %v502
    %v521 = vpack.c.b16 %v506, %v503
    %v522 = vpack.c.b16 %v507, %v504
    %v523 = vpack.c.b16 %v508, %v508
    %v524 = vpack.c.b16 %v509, %v509
    %v525 = vpack.c.b16 %v510, %v510
    %v539 = vsel %vm204, %v465, 0
    %v542 = vsel %vm208, %v523, 0
    %v545 = vsel %vm208, %v524, 0
    %v548 = vsel %vm208, %v525, 0
    %550 = vmatprep.subr.bf16.mxu0 %v512
    %551 = vmatpush1.bf16.msra.mxu0 %v511
    %552 = vmatprep.subr.bf16.mxu0 %v515
    %553 = vmatpush1.bf16.msra.mxu0 %v514
    %554 = vmatprep.subr.bf16.mxu0 %v518
    %555 = vmatpush1.bf16.msra.mxu0 %v517
    %556 = vmatprep.subr.bf16.mxu0 %v521
    %557 = vmatpush1.bf16.msra.mxu0 %v520
    %558 = vmatprep.subr.bf16.mxu0 %v545
    %559 = vmatpush1.bf16.msra.mxu0 %v542
    %560 = vmatprep.subr.bf16.mxu0 0
    %561 = vmatpush1.bf16.msra.mxu0 0
    %562 = vmatprep.subr.bf16.mxu0 0
    %563 = vmatpush1.bf16.msra.mxu0 0
    %564 = vmatprep.subr.bf16.mxu0 0
    %565 = vmatpush1.bf16.msra.mxu0 0
    %566 = vmatprep.subr.bf16.mxu0 0
    %567 = vmatpush1.bf16.msra.mxu0 0
    %568 = vmatprep.subr.bf16.mxu0 0
    %569 = vmatpush1.bf16.msra.mxu0 0
    %570 = vmatprep.subr.bf16.mxu0 0
    %571 = vmatpush1.bf16.msra.mxu0 0
    %572 = vmatprep.subr.bf16.mxu0 0
    %573 = vmatpush1.bf16.msra.mxu0 0
    %574 = vmatprep.subr.bf16.mxu0 0
    %575 = vmatpush1.bf16.msra.mxu0 0
    %576 = vmatprep.subr.bf16.mxu0 0
    %577 = vmatpush1.bf16.msra.mxu0 0
    %578 = vmatprep.subr.bf16.mxu0 0
    %579 = vmatpush1.bf16.msra.mxu0 0
    %580 = vmatprep.subr.bf16.mxu0 0
    %581 = vmatpush1.bf16.msra.mxu0 0
    %582 = vmatprep.mubr.bf16.mxu0 0
    %583 = vmatmul.mubr.bf16.gmra.mrb[0].mxu0 %v539
    %v584 = vpop.f32.mrb[0].mxu0
    %v585 = vadd.f32 0.0, %v584
    %v586 = vpop.f32.mrb[0].mxu0
    %v587 = vadd.f32 0.0, %v586
    %v588 = vpop.f32.mrb[0].mxu0
    %v589 = vpop.f32.mrb[0].mxu0
    %590 = vdwg.mxu0
    %591 = vmatprep.subr.bf16.mxu0 0
    %592 = vmatpush1.bf16.msra.mxu0 %v513
    %593 = vmatprep.subr.bf16.mxu0 0
    %594 = vmatpush1.bf16.msra.mxu0 %v516
    %595 = vmatprep.subr.bf16.mxu0 0
    %596 = vmatpush1.bf16.msra.mxu0 %v519
    %597 = vmatprep.subr.bf16.mxu0 0
    %598 = vmatpush1.bf16.msra.mxu0 %v522
    %599 = vmatprep.subr.bf16.mxu0 0
    %600 = vmatpush1.bf16.msra.mxu0 %v548
    %601 = vmatprep.subr.bf16.mxu0 0
    %602 = vmatpush1.bf16.msra.mxu0 0
    %603 = vmatprep.subr.bf16.mxu0 0
    %604 = vmatpush1.bf16.msra.mxu0 0
    %605 = vmatprep.subr.bf16.mxu0 0
    %606 = vmatpush1.bf16.msra.mxu0 0
    %607 = vmatprep.subr.bf16.mxu0 0
    %608 = vmatpush1.bf16.msra.mxu0 0
    %609 = vmatprep.subr.bf16.mxu0 0
    %610 = vmatpush1.bf16.msra.mxu0 0
    %611 = vmatprep.subr.bf16.mxu0 0
    %612 = vmatpush1.bf16.msra.mxu0 0
    %613 = vmatprep.subr.bf16.mxu0 0
    %614 = vmatpush1.bf16.msra.mxu0 0
    %615 = vmatprep.subr.bf16.mxu0 0
    %616 = vmatpush1.bf16.msra.mxu0 0
    %617 = vmatprep.subr.bf16.mxu0 0
    %618 = vmatpush1.bf16.msra.mxu0 0
    %619 = vmatprep.subr.bf16.mxu0 0
    %620 = vmatpush1.bf16.msra.mxu0 0
    %621 = vmatprep.subr.bf16.mxu0 0
    %622 = vmatpush1.bf16.msra.mxu0 0
    %623 = vmatprep.mubr.bf16.mxu0 0
    %624 = vmatmul.mubr.bf16.gmra.mrb[0].mxu0 %v539
    %v625 = vpop.f32.mrb[0].mxu0
    %v626 = vadd.f32 0.0, %v625
    %v627 = vpop.f32.mrb[0].mxu0
    %v628 = vpop.f32.mrb[0].mxu0
    %v629 = vpop.f32.mrb[0].mxu0
    %630 = vdwg.mxu0
    %v631 = vadd.f32 %v418, %v585
    %v632 = vadd.f32 %v420, %v587
    %v633 = vadd.f32 %v459, %v626
    %v635 = vlaneseq
    %v636 = vshrl.u32 %v635, 7
    %v637 = vsub.s32 0, %v636
    %v638 = vrot.slane %v128, %v637
    %v639 = vlaneseq
    %v640 = vshrl.u32 %v639, 7
    %v641 = vsub.s32 1, %v640
    %v642 = vrot.slane %v128, %v641
    %v643 = vlaneseq
    %v644 = vshrl.u32 %v643, 7
    %v645 = vsub.s32 2, %v644
    %v646 = vrot.slane %v128, %v645
    %v650 = vadd.f32 %v631, %v638
    %v651 = vadd.f32 %v632, %v642
    %v652 = vadd.f32 %v633, %v646
    %v653 = vmax.f32 %v650, 0.0
    %v654 = vmax.f32 %v651, 0.0
    %v655 = vmax.f32 %v652, 0.0
    %v656 = vpack.c.bf16 %v653, %v653
    %v657 = vpack.c.bf16 %v654, %v654
    %v658 = vpack.c.bf16 %v655, %v655
    %v662 = vunpack.c.l.b16 %v656
    %v663 = vunpack.c.l.b16 %v657
    %v664 = vunpack.c.l.b16 %v658
    %v665 = vpack.c.b16 %v663, %v662
    %v666 = vpack.c.b16 %v664, %v664
    %s669 = scalar_lea.vmem [#allocation2], 12
    %670 = vst [vmem:[%s669] sm:$0xff] %v665
    %671 = vst.msk [vmem:[%s669 + $0x8] sm:$0xf] %vm62, %v666
    %v672 = vld [vmem:[%s464] sm:$0xf]
    %s673 = scalar_lea.vmem %s0, 12
    %v674 = vld [vmem:[%s673] sm:$0xf]
    %v676 = vsel %vm204, %v674, 0
    %678 = vmatprep.subr.bf16.mxu0 %v178
    %679 = vmatpush1.bf16.msra.mxu0 %v177
    %680 = vmatprep.subr.bf16.mxu0 %v181
    %681 = vmatpush1.bf16.msra.mxu0 %v180
    %682 = vmatprep.subr.bf16.mxu0 %v184
    %683 = vmatpush1.bf16.msra.mxu0 %v183
    %684 = vmatprep.subr.bf16.mxu0 %v187
    %685 = vmatpush1.bf16.msra.mxu0 %v186
    %686 = vmatprep.subr.bf16.mxu0 %v213
    %687 = vmatpush1.bf16.msra.mxu0 %v210
    %688 = vmatprep.subr.bf16.mxu0 0
    %689 = vmatpush1.bf16.msra.mxu0 0
    %690 = vmatprep.subr.bf16.mxu0 0
    %691 = vmatpush1.bf16.msra.mxu0 0
    %692 = vmatprep.subr.bf16.mxu0 0
    %693 = vmatpush1.bf16.msra.mxu0 0
    %694 = vmatprep.subr.bf16.mxu0 0
    %695 = vmatpush1.bf16.msra.mxu0 0
    %696 = vmatprep.subr.bf16.mxu0 0
    %697 = vmatpush1.bf16.msra.mxu0 0
    %698 = vmatprep.subr.bf16.mxu0 0
    %699 = vmatpush1.bf16.msra.mxu0 0
    %700 = vmatprep.subr.bf16.mxu0 0
    %701 = vmatpush1.bf16.msra.mxu0 0
    %702 = vmatprep.subr.bf16.mxu0 0
    %703 = vmatpush1.bf16.msra.mxu0 0
    %704 = vmatprep.subr.bf16.mxu0 0
    %705 = vmatpush1.bf16.msra.mxu0 0
    %706 = vmatprep.subr.bf16.mxu0 0
    %707 = vmatpush1.bf16.msra.mxu0 0
    %708 = vmatprep.subr.bf16.mxu0 0
    %709 = vmatpush1.bf16.msra.mxu0 0
    %710 = vmatprep.mubr.bf16.mxu0 0
    %711 = vmatmul.mubr.bf16.gmra.mrb[0].mxu0 %v676
    %v712 = vpop.f32.mrb[0].mxu0
    %v713 = vadd.f32 0.0, %v712
    %v714 = vpop.f32.mrb[0].mxu0
    %v715 = vadd.f32 0.0, %v714
    %v716 = vpop.f32.mrb[0].mxu0
    %v717 = vpop.f32.mrb[0].mxu0
    %718 = vdwg.mxu0
    %719 = vmatprep.subr.bf16.mxu0 0
    %720 = vmatpush1.bf16.msra.mxu0 %v179
    %721 = vmatprep.subr.bf16.mxu0 0
    %722 = vmatpush1.bf16.msra.mxu0 %v182
    %723 = vmatprep.subr.bf16.mxu0 0
    %724 = vmatpush1.bf16.msra.mxu0 %v185
    %725 = vmatprep.subr.bf16.mxu0 0
    %726 = vmatpush1.bf16.msra.mxu0 %v188
    %727 = vmatprep.subr.bf16.mxu0 0
    %728 = vmatpush1.bf16.msra.mxu0 %v216
    %729 = vmatprep.subr.bf16.mxu0 0
    %730 = vmatpush1.bf16.msra.mxu0 0
    %731 = vmatprep.subr.bf16.mxu0 0
    %732 = vmatpush1.bf16.msra.mxu0 0
    %733 = vmatprep.subr.bf16.mxu0 0
    %734 = vmatpush1.bf16.msra.mxu0 0
    %735 = vmatprep.subr.bf16.mxu0 0
    %736 = vmatpush1.bf16.msra.mxu0 0
    %737 = vmatprep.subr.bf16.mxu0 0
    %738 = vmatpush1.bf16.msra.mxu0 0
    %739 = vmatprep.subr.bf16.mxu0 0
    %740 = vmatpush1.bf16.msra.mxu0 0
    %741 = vmatprep.subr.bf16.mxu0 0
    %742 = vmatpush1.bf16.msra.mxu0 0
    %743 = vmatprep.subr.bf16.mxu0 0
    %744 = vmatpush1.bf16.msra.mxu0 0
    %745 = vmatprep.subr.bf16.mxu0 0
    %746 = vmatpush1.bf16.msra.mxu0 0
    %747 = vmatprep.subr.bf16.mxu0 0
    %748 = vmatpush1.bf16.msra.mxu0 0
    %749 = vmatprep.subr.bf16.mxu0 0
    %750 = vmatpush1.bf16.msra.mxu0 0
    %751 = vmatprep.mubr.bf16.mxu0 0
    %752 = vmatmul.mubr.bf16.gmra.mrb[0].mxu0 %v676
    %v753 = vpop.f32.mrb[0].mxu0
    %v754 = vadd.f32 0.0, %v753
    %v755 = vpop.f32.mrb[0].mxu0
    %v756 = vpop.f32.mrb[0].mxu0
    %v757 = vpop.f32.mrb[0].mxu0
    %758 = vdwg.mxu0
    %v760 = vsel %vm204, %v672, 0
    %762 = vmatprep.subr.bf16.mxu0 %v345
    %763 = vmatpush1.bf16.msra.mxu0 %v344
    %764 = vmatprep.subr.bf16.mxu0 %v348
    %765 = vmatpush1.bf16.msra.mxu0 %v347
    %766 = vmatprep.subr.bf16.mxu0 %v351
    %767 = vmatpush1.bf16.msra.mxu0 %v350
    %768 = vmatprep.subr.bf16.mxu0 %v354
    %769 = vmatpush1.bf16.msra.mxu0 %v353
    %770 = vmatprep.subr.bf16.mxu0 %v378
    %771 = vmatpush1.bf16.msra.mxu0 %v375
    %772 = vmatprep.subr.bf16.mxu0 0
    %773 = vmatpush1.bf16.msra.mxu0 0
    %774 = vmatprep.subr.bf16.mxu0 0
    %775 = vmatpush1.bf16.msra.mxu0 0
    %776 = vmatprep.subr.bf16.mxu0 0
    %777 = vmatpush1.bf16.msra.mxu0 0
    %778 = vmatprep.subr.bf16.mxu0 0
    %779 = vmatpush1.bf16.msra.mxu0 0
    %780 = vmatprep.subr.bf16.mxu0 0
    %781 = vmatpush1.bf16.msra.mxu0 0
    %782 = vmatprep.subr.bf16.mxu0 0
    %783 = vmatpush1.bf16.msra.mxu0 0
    %784 = vmatprep.subr.bf16.mxu0 0
    %785 = vmatpush1.bf16.msra.mxu0 0
    %786 = vmatprep.subr.bf16.mxu0 0
    %787 = vmatpush1.bf16.msra.mxu0 0
    %788 = vmatprep.subr.bf16.mxu0 0
    %789 = vmatpush1.bf16.msra.mxu0 0
    %790 = vmatprep.subr.bf16.mxu0 0
    %791 = vmatpush1.bf16.msra.mxu0 0
    %792 = vmatprep.subr.bf16.mxu0 0
    %793 = vmatpush1.bf16.msra.mxu0 0
    %794 = vmatprep.mubr.bf16.mxu0 0
    %795 = vmatmul.mubr.bf16.gmra.mrb[0].mxu0 %v760
    %v796 = vpop.f32.mrb[0].mxu0
    %v797 = vadd.f32 %v713, %v796
    %v798 = vpop.f32.mrb[0].mxu0
    %v799 = vadd.f32 %v715, %v798
    %v800 = vpop.f32.mrb[0].mxu0
    %v801 = vpop.f32.mrb[0].mxu0
    %802 = vdwg.mxu0
    %803 = vmatprep.subr.bf16.mxu0 0
    %804 = vmatpush1.bf16.msra.mxu0 %v346
    %805 = vmatprep.subr.bf16.mxu0 0
    %806 = vmatpush1.bf16.msra.mxu0 %v349
    %807 = vmatprep.subr.bf16.mxu0 0
    %808 = vmatpush1.bf16.msra.mxu0 %v352
    %809 = vmatprep.subr.bf16.mxu0 0
    %810 = vmatpush1.bf16.msra.mxu0 %v355
    %811 = vmatprep.subr.bf16.mxu0 0
    %812 = vmatpush1.bf16.msra.mxu0 %v381
    %813 = vmatprep.subr.bf16.mxu0 0
    %814 = vmatpush1.bf16.msra.mxu0 0
    %815 = vmatprep.subr.bf16.mxu0 0
    %816 = vmatpush1.bf16.msra.mxu0 0
    %817 = vmatprep.subr.bf16.mxu0 0
    %818 = vmatpush1.bf16.msra.mxu0 0
    %819 = vmatprep.subr.bf16.mxu0 0
    %820 = vmatpush1.bf16.msra.mxu0 0
    %821 = vmatprep.subr.bf16.mxu0 0
    %822 = vmatpush1.bf16.msra.mxu0 0
    %823 = vmatprep.subr.bf16.mxu0 0
    %824 = vmatpush1.bf16.msra.mxu0 0
    %825 = vmatprep.subr.bf16.mxu0 0
    %826 = vmatpush1.bf16.msra.mxu0 0
    %827 = vmatprep.subr.bf16.mxu0 0
    %828 = vmatpush1.bf16.msra.mxu0 0
    %829 = vmatprep.subr.bf16.mxu0 0
    %830 = vmatpush1.bf16.msra.mxu0 0
    %831 = vmatprep.subr.bf16.mxu0 0
    %832 = vmatpush1.bf16.msra.mxu0 0
    %833 = vmatprep.subr.bf16.mxu0 0
    %834 = vmatpush1.bf16.msra.mxu0 0
    %835 = vmatprep.mubr.bf16.mxu0 0
    %836 = vmatmul.mubr.bf16.gmra.mrb[0].mxu0 %v760
    %v837 = vpop.f32.mrb[0].mxu0
    %v838 = vadd.f32 %v754, %v837
    %v839 = vpop.f32.mrb[0].mxu0
    %v840 = vpop.f32.mrb[0].mxu0
    %v841 = vpop.f32.mrb[0].mxu0
    %842 = vdwg.mxu0
    %s843 = scalar_lea.vmem %s0, 16
    %v844 = vld [vmem:[%s843] sm:$0xf]
    %v846 = vsel %vm204, %v844, 0
    %848 = vmatprep.subr.bf16.mxu0 %v512
    %849 = vmatpush1.bf16.msra.mxu0 %v511
    %850 = vmatprep.subr.bf16.mxu0 %v515
    %851 = vmatpush1.bf16.msra.mxu0 %v514
    %852 = vmatprep.subr.bf16.mxu0 %v518
    %853 = vmatpush1.bf16.msra.mxu0 %v517
    %854 = vmatprep.subr.bf16.mxu0 %v521
    %855 = vmatpush1.bf16.msra.mxu0 %v520
    %856 = vmatprep.subr.bf16.mxu0 %v545
    %857 = vmatpush1.bf16.msra.mxu0 %v542
    %858 = vmatprep.subr.bf16.mxu0 0
    %859 = vmatpush1.bf16.msra.mxu0 0
    %860 = vmatprep.subr.bf16.mxu0 0
    %861 = vmatpush1.bf16.msra.mxu0 0
    %862 = vmatprep.subr.bf16.mxu0 0
    %863 = vmatpush1.bf16.msra.mxu0 0
    %864 = vmatprep.subr.bf16.mxu0 0
    %865 = vmatpush1.bf16.msra.mxu0 0
    %866 = vmatprep.subr.bf16.mxu0 0
    %867 = vmatpush1.bf16.msra.mxu0 0
    %868 = vmatprep.subr.bf16.mxu0 0
    %869 = vmatpush1.bf16.msra.mxu0 0
    %870 = vmatprep.subr.bf16.mxu0 0
    %871 = vmatpush1.bf16.msra.mxu0 0
    %872 = vmatprep.subr.bf16.mxu0 0
    %873 = vmatpush1.bf16.msra.mxu0 0
    %874 = vmatprep.subr.bf16.mxu0 0
    %875 = vmatpush1.bf16.msra.mxu0 0
    %876 = vmatprep.subr.bf16.mxu0 0
    %877 = vmatpush1.bf16.msra.mxu0 0
    %878 = vmatprep.subr.bf16.mxu0 0
    %879 = vmatpush1.bf16.msra.mxu0 0
    %880 = vmatprep.mubr.bf16.mxu0 0
    %881 = vmatmul.mubr.bf16.gmra.mrb[0].mxu0 %v846
    %v882 = vpop.f32.mrb[0].mxu0
    %v883 = vadd.f32 0.0, %v882
    %v884 = vpop.f32.mrb[0].mxu0
    %v885 = vadd.f32 0.0, %v884
    %v886 = vpop.f32.mrb[0].mxu0
    %v887 = vpop.f32.mrb[0].mxu0
    %888 = vdwg.mxu0
    %889 = vmatprep.subr.bf16.mxu0 0
    %890 = vmatpush1.bf16.msra.mxu0 %v513
    %891 = vmatprep.subr.bf16.mxu0 0
    %892 = vmatpush1.bf16.msra.mxu0 %v516
    %893 = vmatprep.subr.bf16.mxu0 0
    %894 = vmatpush1.bf16.msra.mxu0 %v519
    %895 = vmatprep.subr.bf16.mxu0 0
    %896 = vmatpush1.bf16.msra.mxu0 %v522
    %897 = vmatprep.subr.bf16.mxu0 0
    %898 = vmatpush1.bf16.msra.mxu0 %v548
    %899 = vmatprep.subr.bf16.mxu0 0
    %900 = vmatpush1.bf16.msra.mxu0 0
    %901 = vmatprep.subr.bf16.mxu0 0
    %902 = vmatpush1.bf16.msra.mxu0 0
    %903 = vmatprep.subr.bf16.mxu0 0
    %904 = vmatpush1.bf16.msra.mxu0 0
    %905 = vmatprep.subr.bf16.mxu0 0
    %906 = vmatpush1.bf16.msra.mxu0 0
    %907 = vmatprep.subr.bf16.mxu0 0
    %908 = vmatpush1.bf16.msra.mxu0 0
    %909 = vmatprep.subr.bf16.mxu0 0
    %910 = vmatpush1.bf16.msra.mxu0 0
    %911 = vmatprep.subr.bf16.mxu0 0
    %912 = vmatpush1.bf16.msra.mxu0 0
    %913 = vmatprep.subr.bf16.mxu0 0
    %914 = vmatpush1.bf16.msra.mxu0 0
    %915 = vmatprep.subr.bf16.mxu0 0
    %916 = vmatpush1.bf16.msra.mxu0 0
    %917 = vmatprep.subr.bf16.mxu0 0
    %918 = vmatpush1.bf16.msra.mxu0 0
    %919 = vmatprep.subr.bf16.mxu0 0
    %920 = vmatpush1.bf16.msra.mxu0 0
    %921 = vmatprep.mubr.bf16.mxu0 0
    %922 = vmatmul.mubr.bf16.gmra.mrb[0].mxu0 %v846
    %v923 = vpop.f32.mrb[0].mxu0
    %v924 = vadd.f32 0.0, %v923
    %v925 = vpop.f32.mrb[0].mxu0
    %v926 = vpop.f32.mrb[0].mxu0
    %v927 = vpop.f32.mrb[0].mxu0
    %928 = vdwg.mxu0
    %v929 = vadd.f32 %v797, %v883
    %v930 = vadd.f32 %v799, %v885
    %v931 = vadd.f32 %v838, %v924
    %v932 = vadd.f32 %v929, %v638
    %v933 = vadd.f32 %v930, %v642
    %v934 = vadd.f32 %v931, %v646
    %v935 = vmax.f32 %v932, 0.0
    %v936 = vmax.f32 %v933, 0.0
    %v937 = vmax.f32 %v934, 0.0
    %v938 = vpack.c.bf16 %v935, %v935
    %v939 = vpack.c.bf16 %v936, %v936
    %v940 = vpack.c.bf16 %v937, %v937
    %v944 = vunpack.c.l.b16 %v938
    %v945 = vunpack.c.l.b16 %v939
    %v946 = vunpack.c.l.b16 %v940
    %v947 = vpack.c.b16 %v945, %v944
    %v948 = vpack.c.b16 %v946, %v946
    %s951 = scalar_lea.vmem [#allocation2], 24
    %952 = vst [vmem:[%s951] sm:$0xff] %v947
    %953 = vst.msk [vmem:[%s951 + $0x8] sm:$0xf] %vm62, %v948
    %v954 = vld [vmem:[%s843] sm:$0xf]
    %s955 = scalar_lea.vmem %s0, 20
    %v956 = vld [vmem:[%s955] sm:$0xf]
    %v958 = vsel %vm204, %v956, 0
    %960 = vmatprep.subr.bf16.mxu0 %v178
    %961 = vmatpush1.bf16.msra.mxu0 %v177
    %962 = vmatprep.subr.bf16.mxu0 %v181
    %963 = vmatpush1.bf16.msra.mxu0 %v180
    %964 = vmatprep.subr.bf16.mxu0 %v184
    %965 = vmatpush1.bf16.msra.mxu0 %v183
    %966 = vmatprep.subr.bf16.mxu0 %v187
    %967 = vmatpush1.bf16.msra.mxu0 %v186
    %968 = vmatprep.subr.bf16.mxu0 %v213
    %969 = vmatpush1.bf16.msra.mxu0 %v210
    %970 = vmatprep.subr.bf16.mxu0 0
    %971 = vmatpush1.bf16.msra.mxu0 0
    %972 = vmatprep.subr.bf16.mxu0 0
    %973 = vmatpush1.bf16.msra.mxu0 0
    %974 = vmatprep.subr.bf16.mxu0 0
    %975 = vmatpush1.bf16.msra.mxu0 0
    %976 = vmatprep.subr.bf16.mxu0 0
    %977 = vmatpush1.bf16.msra.mxu0 0
    %978 = vmatprep.subr.bf16.mxu0 0
    %979 = vmatpush1.bf16.msra.mxu0 0
    %980 = vmatprep.subr.bf16.mxu0 0
    %981 = vmatpush1.bf16.msra.mxu0 0
    %982 = vmatprep.subr.bf16.mxu0 0
    %983 = vmatpush1.bf16.msra.mxu0 0
    %984 = vmatprep.subr.bf16.mxu0 0
    %985 = vmatpush1.bf16.msra.mxu0 0
    %986 = vmatprep.subr.bf16.mxu0 0
    %987 = vmatpush1.bf16.msra.mxu0 0
    %988 = vmatprep.subr.bf16.mxu0 0
    %989 = vmatpush1.bf16.msra.mxu0 0
    %990 = vmatprep.subr.bf16.mxu0 0
    %991 = vmatpush1.bf16.msra.mxu0 0
    %992 = vmatprep.mubr.bf16.mxu0 0
    %993 = vmatmul.mubr.bf16.gmra.mrb[0].mxu0 %v958
    %v994 = vpop.f32.mrb[0].mxu0
    %v995 = vadd.f32 0.0, %v994
    %v996 = vpop.f32.mrb[0].mxu0
    %v997 = vadd.f32 0.0, %v996
    %v998 = vpop.f32.mrb[0].mxu0
    %v999 = vpop.f32.mrb[0].mxu0
    %1000 = vdwg.mxu0
    %1001 = vmatprep.subr.bf16.mxu0 0
    %1002 = vmatpush1.bf16.msra.mxu0 %v179
    %1003 = vmatprep.subr.bf16.mxu0 0
    %1004 = vmatpush1.bf16.msra.mxu0 %v182
    %1005 = vmatprep.subr.bf16.mxu0 0
    %1006 = vmatpush1.bf16.msra.mxu0 %v185
    %1007 = vmatprep.subr.bf16.mxu0 0
    %1008 = vmatpush1.bf16.msra.mxu0 %v188
    %1009 = vmatprep.subr.bf16.mxu0 0
    %1010 = vmatpush1.bf16.msra.mxu0 %v216
    %1011 = vmatprep.subr.bf16.mxu0 0
    %1012 = vmatpush1.bf16.msra.mxu0 0
    %1013 = vmatprep.subr.bf16.mxu0 0
    %1014 = vmatpush1.bf16.msra.mxu0 0
    %1015 = vmatprep.subr.bf16.mxu0 0
    %1016 = vmatpush1.bf16.msra.mxu0 0
    %1017 = vmatprep.subr.bf16.mxu0 0
    %1018 = vmatpush1.bf16.msra.mxu0 0
    %1019 = vmatprep.subr.bf16.mxu0 0
    %1020 = vmatpush1.bf16.msra.mxu0 0
    %1021 = vmatprep.subr.bf16.mxu0 0
    %1022 = vmatpush1.bf16.msra.mxu0 0
    %1023 = vmatprep.subr.bf16.mxu0 0
    %1024 = vmatpush1.bf16.msra.mxu0 0
    %1025 = vmatprep.subr.bf16.mxu0 0
    %1026 = vmatpush1.bf16.msra.mxu0 0
    %1027 = vmatprep.subr.bf16.mxu0 0
    %1028 = vmatpush1.bf16.msra.mxu0 0
    %1029 = vmatprep.subr.bf16.mxu0 0
    %1030 = vmatpush1.bf16.msra.mxu0 0
    %1031 = vmatprep.subr.bf16.mxu0 0
    %1032 = vmatpush1.bf16.msra.mxu0 0
    %1033 = vmatprep.mubr.bf16.mxu0 0
    %1034 = vmatmul.mubr.bf16.gmra.mrb[0].mxu0 %v958
    %v1035 = vpop.f32.mrb[0].mxu0
    %v1036 = vadd.f32 0.0, %v1035
    %v1037 = vpop.f32.mrb[0].mxu0
    %v1038 = vpop.f32.mrb[0].mxu0
    %v1039 = vpop.f32.mrb[0].mxu0
    %1040 = vdwg.mxu0
    %v1042 = vsel %vm204, %v954, 0
    %1044 = vmatprep.subr.bf16.mxu0 %v345
    %1045 = vmatpush1.bf16.msra.mxu0 %v344
    %1046 = vmatprep.subr.bf16.mxu0 %v348
    %1047 = vmatpush1.bf16.msra.mxu0 %v347
    %1048 = vmatprep.subr.bf16.mxu0 %v351
    %1049 = vmatpush1.bf16.msra.mxu0 %v350
    %1050 = vmatprep.subr.bf16.mxu0 %v354
    %1051 = vmatpush1.bf16.msra.mxu0 %v353
    %1052 = vmatprep.subr.bf16.mxu0 %v378
    %1053 = vmatpush1.bf16.msra.mxu0 %v375
    %1054 = vmatprep.subr.bf16.mxu0 0
    %1055 = vmatpush1.bf16.msra.mxu0 0
    %1056 = vmatprep.subr.bf16.mxu0 0
    %1057 = vmatpush1.bf16.msra.mxu0 0
    %1058 = vmatprep.subr.bf16.mxu0 0
    %1059 = vmatpush1.bf16.msra.mxu0 0
    %1060 = vmatprep.subr.bf16.mxu0 0
    %1061 = vmatpush1.bf16.msra.mxu0 0
    %1062 = vmatprep.subr.bf16.mxu0 0
    %1063 = vmatpush1.bf16.msra.mxu0 0
    %1064 = vmatprep.subr.bf16.mxu0 0
    %1065 = vmatpush1.bf16.msra.mxu0 0
    %1066 = vmatprep.subr.bf16.mxu0 0
    %1067 = vmatpush1.bf16.msra.mxu0 0
    %1068 = vmatprep.subr.bf16.mxu0 0
    %1069 = vmatpush1.bf16.msra.mxu0 0
    %1070 = vmatprep.subr.bf16.mxu0 0
    %1071 = vmatpush1.bf16.msra.mxu0 0
    %1072 = vmatprep.subr.bf16.mxu0 0
    %1073 = vmatpush1.bf16.msra.mxu0 0
    %1074 = vmatprep.subr.bf16.mxu0 0
    %1075 = vmatpush1.bf16.msra.mxu0 0
    %1076 = vmatprep.mubr.bf16.mxu0 0
    %1077 = vmatmul.mubr.bf16.gmra.mrb[0].mxu0 %v1042
    %v1078 = vpop.f32.mrb[0].mxu0
    %v1079 = vadd.f32 %v995, %v1078
    %v1080 = vpop.f32.mrb[0].mxu0
    %v1081 = vadd.f32 %v997, %v1080
    %v1082 = vpop.f32.mrb[0].mxu0
    %v1083 = vpop.f32.mrb[0].mxu0
    %1084 = vdwg.mxu0
    %1085 = vmatprep.subr.bf16.mxu0 0
    %1086 = vmatpush1.bf16.msra.mxu0 %v346
    %1087 = vmatprep.subr.bf16.mxu0 0
    %1088 = vmatpush1.bf16.msra.mxu0 %v349
    %1089 = vmatprep.subr.bf16.mxu0 0
    %1090 = vmatpush1.bf16.msra.mxu0 %v352
    %1091 = vmatprep.subr.bf16.mxu0 0
    %1092 = vmatpush1.bf16.msra.mxu0 %v355
    %1093 = vmatprep.subr.bf16.mxu0 0
    %1094 = vmatpush1.bf16.msra.mxu0 %v381
    %1095 = vmatprep.subr.bf16.mxu0 0
    %1096 = vmatpush1.bf16.msra.mxu0 0
    %1097 = vmatprep.subr.bf16.mxu0 0
    %1098 = vmatpush1.bf16.msra.mxu0 0
    %1099 = vmatprep.subr.bf16.mxu0 0
    %1100 = vmatpush1.bf16.msra.mxu0 0
    %1101 = vmatprep.subr.bf16.mxu0 0
    %1102 = vmatpush1.bf16.msra.mxu0 0
    %1103 = vmatprep.subr.bf16.mxu0 0
    %1104 = vmatpush1.bf16.msra.mxu0 0
    %1105 = vmatprep.subr.bf16.mxu0 0
    %1106 = vmatpush1.bf16.msra.mxu0 0
    %1107 = vmatprep.subr.bf16.mxu0 0
    %1108 = vmatpush1.bf16.msra.mxu0 0
    %1109 = vmatprep.subr.bf16.mxu0 0
    %1110 = vmatpush1.bf16.msra.mxu0 0
    %1111 = vmatprep.subr.bf16.mxu0 0
    %1112 = vmatpush1.bf16.msra.mxu0 0
    %1113 = vmatprep.subr.bf16.mxu0 0
    %1114 = vmatpush1.bf16.msra.mxu0 0
    %1115 = vmatprep.subr.bf16.mxu0 0
    %1116 = vmatpush1.bf16.msra.mxu0 0
    %1117 = vmatprep.mubr.bf16.mxu0 0
    %1118 = vmatmul.mubr.bf16.gmra.mrb[0].mxu0 %v1042
    %v1119 = vpop.f32.mrb[0].mxu0
    %v1120 = vadd.f32 %v1036, %v1119
    %v1121 = vpop.f32.mrb[0].mxu0
    %v1122 = vpop.f32.mrb[0].mxu0
    %v1123 = vpop.f32.mrb[0].mxu0
    %1124 = vdwg.mxu0
    %s1125 = scalar_lea.vmem %s0, 24
    %v1126 = vld [vmem:[%s1125] sm:$0xf]
    %v1128 = vsel %vm204, %v1126, 0
    %1130 = vmatprep.subr.bf16.mxu0 %v512
    %1131 = vmatpush1.bf16.msra.mxu0 %v511
    %1132 = vmatprep.subr.bf16.mxu0 %v515
    %1133 = vmatpush1.bf16.msra.mxu0 %v514
    %1134 = vmatprep.subr.bf16.mxu0 %v518
    %1135 = vmatpush1.bf16.msra.mxu0 %v517
    %1136 = vmatprep.subr.bf16.mxu0 %v521
    %1137 = vmatpush1.bf16.msra.mxu0 %v520
    %1138 = vmatprep.subr.bf16.mxu0 %v545
    %1139 = vmatpush1.bf16.msra.mxu0 %v542
    %1140 = vmatprep.subr.bf16.mxu0 0
    %1141 = vmatpush1.bf16.msra.mxu0 0
    %1142 = vmatprep.subr.bf16.mxu0 0
    %1143 = vmatpush1.bf16.msra.mxu0 0
    %1144 = vmatprep.subr.bf16.mxu0 0
    %1145 = vmatpush1.bf16.msra.mxu0 0
    %1146 = vmatprep.subr.bf16.mxu0 0
    %1147 = vmatpush1.bf16.msra.mxu0 0
    %1148 = vmatprep.subr.bf16.mxu0 0
    %1149 = vmatpush1.bf16.msra.mxu0 0
    %1150 = vmatprep.subr.bf16.mxu0 0
    %1151 = vmatpush1.bf16.msra.mxu0 0
    %1152 = vmatprep.subr.bf16.mxu0 0
    %1153 = vmatpush1.bf16.msra.mxu0 0
    %1154 = vmatprep.subr.bf16.mxu0 0
    %1155 = vmatpush1.bf16.msra.mxu0 0
    %1156 = vmatprep.subr.bf16.mxu0 0
    %1157 = vmatpush1.bf16.msra.mxu0 0
    %1158 = vmatprep.subr.bf16.mxu0 0
    %1159 = vmatpush1.bf16.msra.mxu0 0
    %1160 = vmatprep.subr.bf16.mxu0 0
    %1161 = vmatpush1.bf16.msra.mxu0 0
    %1162 = vmatprep.mubr.bf16.mxu0 0
    %1163 = vmatmul.mubr.bf16.gmra.mrb[0].mxu0 %v1128
    %v1164 = vpop.f32.mrb[0].mxu0
    %v1165 = vadd.f32 0.0, %v1164
    %v1166 = vpop.f32.mrb[0].mxu0
    %v1167 = vadd.f32 0.0, %v1166
    %v1168 = vpop.f32.mrb[0].mxu0
    %v1169 = vpop.f32.mrb[0].mxu0
    %1170 = vdwg.mxu0
    %1171 = vmatprep.subr.bf16.mxu0 0
    %1172 = vmatpush1.bf16.msra.mxu0 %v513
    %1173 = vmatprep.subr.bf16.mxu0 0
    %1174 = vmatpush1.bf16.msra.mxu0 %v516
    %1175 = vmatprep.subr.bf16.mxu0 0
    %1176 = vmatpush1.bf16.msra.mxu0 %v519
    %1177 = vmatprep.subr.bf16.mxu0 0
    %1178 = vmatpush1.bf16.msra.mxu0 %v522
    %1179 = vmatprep.subr.bf16.mxu0 0
    %1180 = vmatpush1.bf16.msra.mxu0 %v548
    %1181 = vmatprep.subr.bf16.mxu0 0
    %1182 = vmatpush1.bf16.msra.mxu0 0
    %1183 = vmatprep.subr.bf16.mxu0 0
    %1184 = vmatpush1.bf16.msra.mxu0 0
    %1185 = vmatprep.subr.bf16.mxu0 0
    %1186 = vmatpush1.bf16.msra.mxu0 0
    %1187 = vmatprep.subr.bf16.mxu0 0
    %1188 = vmatpush1.bf16.msra.mxu0 0
    %1189 = vmatprep.subr.bf16.mxu0 0
    %1190 = vmatpush1.bf16.msra.mxu0 0
    %1191 = vmatprep.subr.bf16.mxu0 0
    %1192 = vmatpush1.bf16.msra.mxu0 0
    %1193 = vmatprep.subr.bf16.mxu0 0
    %1194 = vmatpush1.bf16.msra.mxu0 0
    %1195 = vmatprep.subr.bf16.mxu0 0
    %1196 = vmatpush1.bf16.msra.mxu0 0
    %1197 = vmatprep.subr.bf16.mxu0 0
    %1198 = vmatpush1.bf16.msra.mxu0 0
    %1199 = vmatprep.subr.bf16.mxu0 0
    %1200 = vmatpush1.bf16.msra.mxu0 0
    %1201 = vmatprep.subr.bf16.mxu0 0
    %1202 = vmatpush1.bf16.msra.mxu0 0
    %1203 = vmatprep.mubr.bf16.mxu0 0
    %1204 = vmatmul.mubr.bf16.gmra.mrb[0].mxu0 %v1128
    %v1205 = vpop.f32.mrb[0].mxu0
    %v1206 = vadd.f32 0.0, %v1205
    %v1207 = vpop.f32.mrb[0].mxu0
    %v1208 = vpop.f32.mrb[0].mxu0
    %v1209 = vpop.f32.mrb[0].mxu0
    %1210 = vdwg.mxu0
    %v1211 = vadd.f32 %v1079, %v1165
    %v1212 = vadd.f32 %v1081, %v1167
    %v1213 = vadd.f32 %v1120, %v1206
    %v1214 = vadd.f32 %v1211, %v638
    %v1215 = vadd.f32 %v1212, %v642
    %v1216 = vadd.f32 %v1213, %v646
    %v1217 = vmax.f32 %v1214, 0.0
    %v1218 = vmax.f32 %v1215, 0.0
    %v1219 = vmax.f32 %v1216, 0.0
    %v1220 = vpack.c.bf16 %v1217, %v1217
    %v1221 = vpack.c.bf16 %v1218, %v1218
    %v1222 = vpack.c.bf16 %v1219, %v1219
    %v1226 = vunpack.c.l.b16 %v1220
    %v1227 = vunpack.c.l.b16 %v1221
    %v1228 = vunpack.c.l.b16 %v1222
    %v1229 = vpack.c.b16 %v1227, %v1226
    %v1230 = vpack.c.b16 %v1228, %v1228
    %s1233 = scalar_lea.vmem [#allocation2], 36
    %1234 = vst [vmem:[%s1233] sm:$0xff] %v1229
    %1235 = vst.msk [vmem:[%s1233 + $0x8] sm:$0xf] %vm62, %v1230
    %v1236 = vld [vmem:[%s1125] sm:$0xf]
    %s1237 = scalar_lea.vmem %s0, 28
    %v1238 = vld [vmem:[%s1237] sm:$0xf]
    %v1240 = vsel %vm204, %v1238, 0
    %1242 = vmatprep.subr.bf16.mxu0 %v178
    %1243 = vmatpush1.bf16.msra.mxu0 %v177
    %1244 = vmatprep.subr.bf16.mxu0 %v181
    %1245 = vmatpush1.bf16.msra.mxu0 %v180
    %1246 = vmatprep.subr.bf16.mxu0 %v184
    %1247 = vmatpush1.bf16.msra.mxu0 %v183
    %1248 = vmatprep.subr.bf16.mxu0 %v187
    %1249 = vmatpush1.bf16.msra.mxu0 %v186
    %1250 = vmatprep.subr.bf16.mxu0 %v213
    %1251 = vmatpush1.bf16.msra.mxu0 %v210
    %1252 = vmatprep.subr.bf16.mxu0 0
    %1253 = vmatpush1.bf16.msra.mxu0 0
    %1254 = vmatprep.subr.bf16.mxu0 0
    %1255 = vmatpush1.bf16.msra.mxu0 0
    %1256 = vmatprep.subr.bf16.mxu0 0
    %1257 = vmatpush1.bf16.msra.mxu0 0
    %1258 = vmatprep.subr.bf16.mxu0 0
    %1259 = vmatpush1.bf16.msra.mxu0 0
    %1260 = vmatprep.subr.bf16.mxu0 0
    %1261 = vmatpush1.bf16.msra.mxu0 0
    %1262 = vmatprep.subr.bf16.mxu0 0
    %1263 = vmatpush1.bf16.msra.mxu0 0
    %1264 = vmatprep.subr.bf16.mxu0 0
    %1265 = vmatpush1.bf16.msra.mxu0 0
    %1266 = vmatprep.subr.bf16.mxu0 0
    %1267 = vmatpush1.bf16.msra.mxu0 0
    %1268 = vmatprep.subr.bf16.mxu0 0
    %1269 = vmatpush1.bf16.msra.mxu0 0
    %1270 = vmatprep.subr.bf16.mxu0 0
    %1271 = vmatpush1.bf16.msra.mxu0 0
    %1272 = vmatprep.subr.bf16.mxu0 0
    %1273 = vmatpush1.bf16.msra.mxu0 0
    %1274 = vmatprep.mubr.bf16.mxu0 0
    %1275 = vmatmul.mubr.bf16.gmra.mrb[0].mxu0 %v1240
    %v1276 = vpop.f32.mrb[0].mxu0
    %v1277 = vadd.f32 0.0, %v1276
    %v1278 = vpop.f32.mrb[0].mxu0
    %v1279 = vadd.f32 0.0, %v1278
    %v1280 = vpop.f32.mrb[0].mxu0
    %v1281 = vpop.f32.mrb[0].mxu0
    %1282 = vdwg.mxu0
    %1283 = vmatprep.subr.bf16.mxu0 0
    %1284 = vmatpush1.bf16.msra.mxu0 %v179
    %1285 = vmatprep.subr.bf16.mxu0 0
    %1286 = vmatpush1.bf16.msra.mxu0 %v182
    %1287 = vmatprep.subr.bf16.mxu0 0
    %1288 = vmatpush1.bf16.msra.mxu0 %v185
    %1289 = vmatprep.subr.bf16.mxu0 0
    %1290 = vmatpush1.bf16.msra.mxu0 %v188
    %1291 = vmatprep.subr.bf16.mxu0 0
    %1292 = vmatpush1.bf16.msra.mxu0 %v216
    %1293 = vmatprep.subr.bf16.mxu0 0
    %1294 = vmatpush1.bf16.msra.mxu0 0
    %1295 = vmatprep.subr.bf16.mxu0 0
    %1296 = vmatpush1.bf16.msra.mxu0 0
    %1297 = vmatprep.subr.bf16.mxu0 0
    %1298 = vmatpush1.bf16.msra.mxu0 0
    %1299 = vmatprep.subr.bf16.mxu0 0
    %1300 = vmatpush1.bf16.msra.mxu0 0
    %1301 = vmatprep.subr.bf16.mxu0 0
    %1302 = vmatpush1.bf16.msra.mxu0 0
    %1303 = vmatprep.subr.bf16.mxu0 0
    %1304 = vmatpush1.bf16.msra.mxu0 0
    %1305 = vmatprep.subr.bf16.mxu0 0
    %1306 = vmatpush1.bf16.msra.mxu0 0
    %1307 = vmatprep.subr.bf16.mxu0 0
    %1308 = vmatpush1.bf16.msra.mxu0 0
    %1309 = vmatprep.subr.bf16.mxu0 0
    %1310 = vmatpush1.bf16.msra.mxu0 0
    %1311 = vmatprep.subr.bf16.mxu0 0
    %1312 = vmatpush1.bf16.msra.mxu0 0
    %1313 = vmatprep.subr.bf16.mxu0 0
    %1314 = vmatpush1.bf16.msra.mxu0 0
    %1315 = vmatprep.mubr.bf16.mxu0 0
    %1316 = vmatmul.mubr.bf16.gmra.mrb[0].mxu0 %v1240
    %v1317 = vpop.f32.mrb[0].mxu0
    %v1318 = vadd.f32 0.0, %v1317
    %v1319 = vpop.f32.mrb[0].mxu0
    %v1320 = vpop.f32.mrb[0].mxu0
    %v1321 = vpop.f32.mrb[0].mxu0
    %1322 = vdwg.mxu0
    %v1324 = vsel %vm204, %v1236, 0
    %1326 = vmatprep.subr.bf16.mxu0 %v345
    %1327 = vmatpush1.bf16.msra.mxu0 %v344
    %1328 = vmatprep.subr.bf16.mxu0 %v348
    %1329 = vmatpush1.bf16.msra.mxu0 %v347
    %1330 = vmatprep.subr.bf16.mxu0 %v351
    %1331 = vmatpush1.bf16.msra.mxu0 %v350
    %1332 = vmatprep.subr.bf16.mxu0 %v354
    %1333 = vmatpush1.bf16.msra.mxu0 %v353
    %1334 = vmatprep.subr.bf16.mxu0 %v378
    %1335 = vmatpush1.bf16.msra.mxu0 %v375
    %1336 = vmatprep.subr.bf16.mxu0 0
    %1337 = vmatpush1.bf16.msra.mxu0 0
    %1338 = vmatprep.subr.bf16.mxu0 0
    %1339 = vmatpush1.bf16.msra.mxu0 0
    %1340 = vmatprep.subr.bf16.mxu0 0
    %1341 = vmatpush1.bf16.msra.mxu0 0
    %1342 = vmatprep.subr.bf16.mxu0 0
    %1343 = vmatpush1.bf16.msra.mxu0 0
    %1344 = vmatprep.subr.bf16.mxu0 0
    %1345 = vmatpush1.bf16.msra.mxu0 0
    %1346 = vmatprep.subr.bf16.mxu0 0
    %1347 = vmatpush1.bf16.msra.mxu0 0
    %1348 = vmatprep.subr.bf16.mxu0 0
    %1349 = vmatpush1.bf16.msra.mxu0 0
    %1350 = vmatprep.subr.bf16.mxu0 0
    %1351 = vmatpush1.bf16.msra.mxu0 0
    %1352 = vmatprep.subr.bf16.mxu0 0
    %1353 = vmatpush1.bf16.msra.mxu0 0
    %1354 = vmatprep.subr.bf16.mxu0 0
    %1355 = vmatpush1.bf16.msra.mxu0 0
    %1356 = vmatprep.subr.bf16.mxu0 0
    %1357 = vmatpush1.bf16.msra.mxu0 0
    %1358 = vmatprep.mubr.bf16.mxu0 0
    %1359 = vmatmul.mubr.bf16.gmra.mrb[0].mxu0 %v1324
    %v1360 = vpop.f32.mrb[0].mxu0
    %v1361 = vadd.f32 %v1277, %v1360
    %v1362 = vpop.f32.mrb[0].mxu0
    %v1363 = vadd.f32 %v1279, %v1362
    %v1364 = vpop.f32.mrb[0].mxu0
    %v1365 = vpop.f32.mrb[0].mxu0
    %1366 = vdwg.mxu0
    %1367 = vmatprep.subr.bf16.mxu0 0
    %1368 = vmatpush1.bf16.msra.mxu0 %v346
    %1369 = vmatprep.subr.bf16.mxu0 0
    %1370 = vmatpush1.bf16.msra.mxu0 %v349
    %1371 = vmatprep.subr.bf16.mxu0 0
    %1372 = vmatpush1.bf16.msra.mxu0 %v352
    %1373 = vmatprep.subr.bf16.mxu0 0
    %1374 = vmatpush1.bf16.msra.mxu0 %v355
    %1375 = vmatprep.subr.bf16.mxu0 0
    %1376 = vmatpush1.bf16.msra.mxu0 %v381
    %1377 = vmatprep.subr.bf16.mxu0 0
    %1378 = vmatpush1.bf16.msra.mxu0 0
    %1379 = vmatprep.subr.bf16.mxu0 0
    %1380 = vmatpush1.bf16.msra.mxu0 0
    %1381 = vmatprep.subr.bf16.mxu0 0
    %1382 = vmatpush1.bf16.msra.mxu0 0
    %1383 = vmatprep.subr.bf16.mxu0 0
    %1384 = vmatpush1.bf16.msra.mxu0 0
    %1385 = vmatprep.subr.bf16.mxu0 0
    %1386 = vmatpush1.bf16.msra.mxu0 0
    %1387 = vmatprep.subr.bf16.mxu0 0
    %1388 = vmatpush1.bf16.msra.mxu0 0
    %1389 = vmatprep.subr.bf16.mxu0 0
    %1390 = vmatpush1.bf16.msra.mxu0 0
    %1391 = vmatprep.subr.bf16.mxu0 0
    %1392 = vmatpush1.bf16.msra.mxu0 0
    %1393 = vmatprep.subr.bf16.mxu0 0
    %1394 = vmatpush1.bf16.msra.mxu0 0
    %1395 = vmatprep.subr.bf16.mxu0 0
    %1396 = vmatpush1.bf16.msra.mxu0 0
    %1397 = vmatprep.subr.bf16.mxu0 0
    %1398 = vmatpush1.bf16.msra.mxu0 0
    %1399 = vmatprep.mubr.bf16.mxu0 0
    %1400 = vmatmul.mubr.bf16.gmra.mrb[0].mxu0 %v1324
    %v1401 = vpop.f32.mrb[0].mxu0
    %v1402 = vadd.f32 %v1318, %v1401
    %v1403 = vpop.f32.mrb[0].mxu0
    %v1404 = vpop.f32.mrb[0].mxu0
    %v1405 = vpop.f32.mrb[0].mxu0
    %1406 = vdwg.mxu0
    %s1407 = scalar_lea.vmem %s0, 32
    %v1408 = vld [vmem:[%s1407] sm:$0xf]
    %v1410 = vsel %vm204, %v1408, 0
    %1412 = vmatprep.subr.bf16.mxu0 %v512
    %1413 = vmatpush1.bf16.msra.mxu0 %v511
    %1414 = vmatprep.subr.bf16.mxu0 %v515
    %1415 = vmatpush1.bf16.msra.mxu0 %v514
    %1416 = vmatprep.subr.bf16.mxu0 %v518
    %1417 = vmatpush1.bf16.msra.mxu0 %v517
    %1418 = vmatprep.subr.bf16.mxu0 %v521
    %1419 = vmatpush1.bf16.msra.mxu0 %v520
    %1420 = vmatprep.subr.bf16.mxu0 %v545
    %1421 = vmatpush1.bf16.msra.mxu0 %v542
    %1422 = vmatprep.subr.bf16.mxu0 0
    %1423 = vmatpush1.bf16.msra.mxu0 0
    %1424 = vmatprep.subr.bf16.mxu0 0
    %1425 = vmatpush1.bf16.msra.mxu0 0
    %1426 = vmatprep.subr.bf16.mxu0 0
    %1427 = vmatpush1.bf16.msra.mxu0 0
    %1428 = vmatprep.subr.bf16.mxu0 0
    %1429 = vmatpush1.bf16.msra.mxu0 0
    %1430 = vmatprep.subr.bf16.mxu0 0
    %1431 = vmatpush1.bf16.msra.mxu0 0
    %1432 = vmatprep.subr.bf16.mxu0 0
    %1433 = vmatpush1.bf16.msra.mxu0 0
    %1434 = vmatprep.subr.bf16.mxu0 0
    %1435 = vmatpush1.bf16.msra.mxu0 0
    %1436 = vmatprep.subr.bf16.mxu0 0
    %1437 = vmatpush1.bf16.msra.mxu0 0
    %1438 = vmatprep.subr.bf16.mxu0 0
    %1439 = vmatpush1.bf16.msra.mxu0 0
    %1440 = vmatprep.subr.bf16.mxu0 0
    %1441 = vmatpush1.bf16.msra.mxu0 0
    %1442 = vmatprep.subr.bf16.mxu0 0
    %1443 = vmatpush1.bf16.msra.mxu0 0
    %1444 = vmatprep.mubr.bf16.mxu0 0
    %1445 = vmatmul.mubr.bf16.gmra.mrb[0].mxu0 %v1410
    %v1446 = vpop.f32.mrb[0].mxu0
    %v1447 = vadd.f32 0.0, %v1446
    %v1448 = vpop.f32.mrb[0].mxu0
    %v1449 = vadd.f32 0.0, %v1448
    %v1450 = vpop.f32.mrb[0].mxu0
    %v1451 = vpop.f32.mrb[0].mxu0
    %1452 = vdwg.mxu0
    %1453 = vmatprep.subr.bf16.mxu0 0
    %1454 = vmatpush1.bf16.msra.mxu0 %v513
    %1455 = vmatprep.subr.bf16.mxu0 0
    %1456 = vmatpush1.bf16.msra.mxu0 %v516
    %1457 = vmatprep.subr.bf16.mxu0 0
    %1458 = vmatpush1.bf16.msra.mxu0 %v519
    %1459 = vmatprep.subr.bf16.mxu0 0
    %1460 = vmatpush1.bf16.msra.mxu0 %v522
    %1461 = vmatprep.subr.bf16.mxu0 0
    %1462 = vmatpush1.bf16.msra.mxu0 %v548
    %1463 = vmatprep.subr.bf16.mxu0 0
    %1464 = vmatpush1.bf16.msra.mxu0 0
    %1465 = vmatprep.subr.bf16.mxu0 0
    %1466 = vmatpush1.bf16.msra.mxu0 0
    %1467 = vmatprep.subr.bf16.mxu0 0
    %1468 = vmatpush1.bf16.msra.mxu0 0
    %1469 = vmatprep.subr.bf16.mxu0 0
    %1470 = vmatpush1.bf16.msra.mxu0 0
    %1471 = vmatprep.subr.bf16.mxu0 0
    %1472 = vmatpush1.bf16.msra.mxu0 0
    %1473 = vmatprep.subr.bf16.mxu0 0
    %1474 = vmatpush1.bf16.msra.mxu0 0
    %1475 = vmatprep.subr.bf16.mxu0 0
    %1476 = vmatpush1.bf16.msra.mxu0 0
    %1477 = vmatprep.subr.bf16.mxu0 0
    %1478 = vmatpush1.bf16.msra.mxu0 0
    %1479 = vmatprep.subr.bf16.mxu0 0
    %1480 = vmatpush1.bf16.msra.mxu0 0
    %1481 = vmatprep.subr.bf16.mxu0 0
    %1482 = vmatpush1.bf16.msra.mxu0 0
    %1483 = vmatprep.subr.bf16.mxu0 0
    %1484 = vmatpush1.bf16.msra.mxu0 0
    %1485 = vmatprep.mubr.bf16.mxu0 0
    %1486 = vmatmul.mubr.bf16.gmra.mrb[0].mxu0 %v1410
    %v1487 = vpop.f32.mrb[0].mxu0
    %v1488 = vadd.f32 0.0, %v1487
    %v1489 = vpop.f32.mrb[0].mxu0
    %v1490 = vpop.f32.mrb[0].mxu0
    %v1491 = vpop.f32.mrb[0].mxu0
    %1492 = vdwg.mxu0
    %v1493 = vadd.f32 %v1361, %v1447
    %v1494 = vadd.f32 %v1363, %v1449
    %v1495 = vadd.f32 %v1402, %v1488
    %v1496 = vadd.f32 %v1493, %v638
    %v1497 = vadd.f32 %v1494, %v642
    %v1498 = vadd.f32 %v1495, %v646
    %v1499 = vmax.f32 %v1496, 0.0
    %v1500 = vmax.f32 %v1497, 0.0
    %v1501 = vmax.f32 %v1498, 0.0
    %v1502 = vpack.c.bf16 %v1499, %v1499
    %v1503 = vpack.c.bf16 %v1500, %v1500
    %v1504 = vpack.c.bf16 %v1501, %v1501
    %v1508 = vunpack.c.l.b16 %v1502
    %v1509 = vunpack.c.l.b16 %v1503
    %v1510 = vunpack.c.l.b16 %v1504
    %v1511 = vpack.c.b16 %v1509, %v1508
    %v1512 = vpack.c.b16 %v1510, %v1510
    %s1515 = scalar_lea.vmem [#allocation2], 48
    %1516 = vst [vmem:[%s1515] sm:$0xff] %v1511
    %1517 = vst.msk [vmem:[%s1515 + $0x8] sm:$0xf] %vm62, %v1512
    %v1518 = vld [vmem:[%s1407] sm:$0xf]
    %s1519 = scalar_lea.vmem %s0, 36
    %v1520 = vld [vmem:[%s1519] sm:$0xf]
    %v1522 = vsel %vm204, %v1520, 0
    %1524 = vmatprep.subr.bf16.mxu0 %v178
    %1525 = vmatpush1.bf16.msra.mxu0 %v177
    %1526 = vmatprep.subr.bf16.mxu0 %v181
    %1527 = vmatpush1.bf16.msra.mxu0 %v180
    %1528 = vmatprep.subr.bf16.mxu0 %v184
    %1529 = vmatpush1.bf16.msra.mxu0 %v183
    %1530 = vmatprep.subr.bf16.mxu0 %v187
    %1531 = vmatpush1.bf16.msra.mxu0 %v186
    %1532 = vmatprep.subr.bf16.mxu0 %v213
    %1533 = vmatpush1.bf16.msra.mxu0 %v210
    %1534 = vmatprep.subr.bf16.mxu0 0
    %1535 = vmatpush1.bf16.msra.mxu0 0
    %1536 = vmatprep.subr.bf16.mxu0 0
    %1537 = vmatpush1.bf16.msra.mxu0 0
    %1538 = vmatprep.subr.bf16.mxu0 0
    %1539 = vmatpush1.bf16.msra.mxu0 0
    %1540 = vmatprep.subr.bf16.mxu0 0
    %1541 = vmatpush1.bf16.msra.mxu0 0
    %1542 = vmatprep.subr.bf16.mxu0 0
    %1543 = vmatpush1.bf16.msra.mxu0 0
    %1544 = vmatprep.subr.bf16.mxu0 0
    %1545 = vmatpush1.bf16.msra.mxu0 0
    %1546 = vmatprep.subr.bf16.mxu0 0
    %1547 = vmatpush1.bf16.msra.mxu0 0
    %1548 = vmatprep.subr.bf16.mxu0 0
    %1549 = vmatpush1.bf16.msra.mxu0 0
    %1550 = vmatprep.subr.bf16.mxu0 0
    %1551 = vmatpush1.bf16.msra.mxu0 0
    %1552 = vmatprep.subr.bf16.mxu0 0
    %1553 = vmatpush1.bf16.msra.mxu0 0
    %1554 = vmatprep.subr.bf16.mxu0 0
    %1555 = vmatpush1.bf16.msra.mxu0 0
    %1556 = vmatprep.mubr.bf16.mxu0 0
    %1557 = vmatmul.mubr.bf16.gmra.mrb[0].mxu0 %v1522
    %v1558 = vpop.f32.mrb[0].mxu0
    %v1559 = vadd.f32 0.0, %v1558
    %v1560 = vpop.f32.mrb[0].mxu0
    %v1561 = vadd.f32 0.0, %v1560
    %v1562 = vpop.f32.mrb[0].mxu0
    %v1563 = vpop.f32.mrb[0].mxu0
    %1564 = vdwg.mxu0
    %1565 = vmatprep.subr.bf16.mxu0 0
    %1566 = vmatpush1.bf16.msra.mxu0 %v179
    %1567 = vmatprep.subr.bf16.mxu0 0
    %1568 = vmatpush1.bf16.msra.mxu0 %v182
    %1569 = vmatprep.subr.bf16.mxu0 0
    %1570 = vmatpush1.bf16.msra.mxu0 %v185
    %1571 = vmatprep.subr.bf16.mxu0 0
    %1572 = vmatpush1.bf16.msra.mxu0 %v188
    %1573 = vmatprep.subr.bf16.mxu0 0
    %1574 = vmatpush1.bf16.msra.mxu0 %v216
    %1575 = vmatprep.subr.bf16.mxu0 0
    %1576 = vmatpush1.bf16.msra.mxu0 0
    %1577 = vmatprep.subr.bf16.mxu0 0
    %1578 = vmatpush1.bf16.msra.mxu0 0
    %1579 = vmatprep.subr.bf16.mxu0 0
    %1580 = vmatpush1.bf16.msra.mxu0 0
    %1581 = vmatprep.subr.bf16.mxu0 0
    %1582 = vmatpush1.bf16.msra.mxu0 0
    %1583 = vmatprep.subr.bf16.mxu0 0
    %1584 = vmatpush1.bf16.msra.mxu0 0
    %1585 = vmatprep.subr.bf16.mxu0 0
    %1586 = vmatpush1.bf16.msra.mxu0 0
    %1587 = vmatprep.subr.bf16.mxu0 0
    %1588 = vmatpush1.bf16.msra.mxu0 0
    %1589 = vmatprep.subr.bf16.mxu0 0
    %1590 = vmatpush1.bf16.msra.mxu0 0
    %1591 = vmatprep.subr.bf16.mxu0 0
    %1592 = vmatpush1.bf16.msra.mxu0 0
    %1593 = vmatprep.subr.bf16.mxu0 0
    %1594 = vmatpush1.bf16.msra.mxu0 0
    %1595 = vmatprep.subr.bf16.mxu0 0
    %1596 = vmatpush1.bf16.msra.mxu0 0
    %1597 = vmatprep.mubr.bf16.mxu0 0
    %1598 = vmatmul.mubr.bf16.gmra.mrb[0].mxu0 %v1522
    %v1599 = vpop.f32.mrb[0].mxu0
    %v1600 = vadd.f32 0.0, %v1599
    %v1601 = vpop.f32.mrb[0].mxu0
    %v1602 = vpop.f32.mrb[0].mxu0
    %v1603 = vpop.f32.mrb[0].mxu0
    %1604 = vdwg.mxu0
    %v1606 = vsel %vm204, %v1518, 0
    %1608 = vmatprep.subr.bf16.mxu0 %v345
    %1609 = vmatpush1.bf16.msra.mxu0 %v344
    %1610 = vmatprep.subr.bf16.mxu0 %v348
    %1611 = vmatpush1.bf16.msra.mxu0 %v347
    %1612 = vmatprep.subr.bf16.mxu0 %v351
    %1613 = vmatpush1.bf16.msra.mxu0 %v350
    %1614 = vmatprep.subr.bf16.mxu0 %v354
    %1615 = vmatpush1.bf16.msra.mxu0 %v353
    %1616 = vmatprep.subr.bf16.mxu0 %v378
    %1617 = vmatpush1.bf16.msra.mxu0 %v375
    %1618 = vmatprep.subr.bf16.mxu0 0
    %1619 = vmatpush1.bf16.msra.mxu0 0
    %1620 = vmatprep.subr.bf16.mxu0 0
    %1621 = vmatpush1.bf16.msra.mxu0 0
    %1622 = vmatprep.subr.bf16.mxu0 0
    %1623 = vmatpush1.bf16.msra.mxu0 0
    %1624 = vmatprep.subr.bf16.mxu0 0
    %1625 = vmatpush1.bf16.msra.mxu0 0
    %1626 = vmatprep.subr.bf16.mxu0 0
    %1627 = vmatpush1.bf16.msra.mxu0 0
    %1628 = vmatprep.subr.bf16.mxu0 0
    %1629 = vmatpush1.bf16.msra.mxu0 0
    %1630 = vmatprep.subr.bf16.mxu0 0
    %1631 = vmatpush1.bf16.msra.mxu0 0
    %1632 = vmatprep.subr.bf16.mxu0 0
    %1633 = vmatpush1.bf16.msra.mxu0 0
    %1634 = vmatprep.subr.bf16.mxu0 0
    %1635 = vmatpush1.bf16.msra.mxu0 0
    %1636 = vmatprep.subr.bf16.mxu0 0
    %1637 = vmatpush1.bf16.msra.mxu0 0
    %1638 = vmatprep.subr.bf16.mxu0 0
    %1639 = vmatpush1.bf16.msra.mxu0 0
    %1640 = vmatprep.mubr.bf16.mxu0 0
    %1641 = vmatmul.mubr.bf16.gmra.mrb[0].mxu0 %v1606
    %v1642 = vpop.f32.mrb[0].mxu0
    %v1643 = vadd.f32 %v1559, %v1642
    %v1644 = vpop.f32.mrb[0].mxu0
    %v1645 = vadd.f32 %v1561, %v1644
    %v1646 = vpop.f32.mrb[0].mxu0
    %v1647 = vpop.f32.mrb[0].mxu0
    %1648 = vdwg.mxu0
    %1649 = vmatprep.subr.bf16.mxu0 0
    %1650 = vmatpush1.bf16.msra.mxu0 %v346
    %1651 = vmatprep.subr.bf16.mxu0 0
    %1652 = vmatpush1.bf16.msra.mxu0 %v349
    %1653 = vmatprep.subr.bf16.mxu0 0
    %1654 = vmatpush1.bf16.msra.mxu0 %v352
    %1655 = vmatprep.subr.bf16.mxu0 0
    %1656 = vmatpush1.bf16.msra.mxu0 %v355
    %1657 = vmatprep.subr.bf16.mxu0 0
    %1658 = vmatpush1.bf16.msra.mxu0 %v381
    %1659 = vmatprep.subr.bf16.mxu0 0
    %1660 = vmatpush1.bf16.msra.mxu0 0
    %1661 = vmatprep.subr.bf16.mxu0 0
    %1662 = vmatpush1.bf16.msra.mxu0 0
    %1663 = vmatprep.subr.bf16.mxu0 0
    %1664 = vmatpush1.bf16.msra.mxu0 0
    %1665 = vmatprep.subr.bf16.mxu0 0
    %1666 = vmatpush1.bf16.msra.mxu0 0
    %1667 = vmatprep.subr.bf16.mxu0 0
    %1668 = vmatpush1.bf16.msra.mxu0 0
    %1669 = vmatprep.subr.bf16.mxu0 0
    %1670 = vmatpush1.bf16.msra.mxu0 0
    %1671 = vmatprep.subr.bf16.mxu0 0
    %1672 = vmatpush1.bf16.msra.mxu0 0
    %1673 = vmatprep.subr.bf16.mxu0 0
    %1674 = vmatpush1.bf16.msra.mxu0 0
    %1675 = vmatprep.subr.bf16.mxu0 0
    %1676 = vmatpush1.bf16.msra.mxu0 0
    %1677 = vmatprep.subr.bf16.mxu0 0
    %1678 = vmatpush1.bf16.msra.mxu0 0
    %1679 = vmatprep.subr.bf16.mxu0 0
    %1680 = vmatpush1.bf16.msra.mxu0 0
    %1681 = vmatprep.mubr.bf16.mxu0 0
    %1682 = vmatmul.mubr.bf16.gmra.mrb[0].mxu0 %v1606
    %v1683 = vpop.f32.mrb[0].mxu0
    %v1684 = vadd.f32 %v1600, %v1683
    %v1685 = vpop.f32.mrb[0].mxu0
    %v1686 = vpop.f32.mrb[0].mxu0
    %v1687 = vpop.f32.mrb[0].mxu0
    %1688 = vdwg.mxu0
    %s1689 = scalar_lea.vmem %s0, 40
    %v1690 = vld [vmem:[%s1689] sm:$0xf]
    %v1692 = vsel %vm204, %v1690, 0
    %1694 = vmatprep.subr.bf16.mxu0 %v512
    %1695 = vmatpush1.bf16.msra.mxu0 %v511
    %1696 = vmatprep.subr.bf16.mxu0 %v515
    %1697 = vmatpush1.bf16.msra.mxu0 %v514
    %1698 = vmatprep.subr.bf16.mxu0 %v518
    %1699 = vmatpush1.bf16.msra.mxu0 %v517
    %1700 = vmatprep.subr.bf16.mxu0 %v521
    %1701 = vmatpush1.bf16.msra.mxu0 %v520
    %1702 = vmatprep.subr.bf16.mxu0 %v545
    %1703 = vmatpush1.bf16.msra.mxu0 %v542
    %1704 = vmatprep.subr.bf16.mxu0 0
    %1705 = vmatpush1.bf16.msra.mxu0 0
    %1706 = vmatprep.subr.bf16.mxu0 0
    %1707 = vmatpush1.bf16.msra.mxu0 0
    %1708 = vmatprep.subr.bf16.mxu0 0
    %1709 = vmatpush1.bf16.msra.mxu0 0
    %1710 = vmatprep.subr.bf16.mxu0 0
    %1711 = vmatpush1.bf16.msra.mxu0 0
    %1712 = vmatprep.subr.bf16.mxu0 0
    %1713 = vmatpush1.bf16.msra.mxu0 0
    %1714 = vmatprep.subr.bf16.mxu0 0
    %1715 = vmatpush1.bf16.msra.mxu0 0
    %1716 = vmatprep.subr.bf16.mxu0 0
    %1717 = vmatpush1.bf16.msra.mxu0 0
    %1718 = vmatprep.subr.bf16.mxu0 0
    %1719 = vmatpush1.bf16.msra.mxu0 0
    %1720 = vmatprep.subr.bf16.mxu0 0
    %1721 = vmatpush1.bf16.msra.mxu0 0
    %1722 = vmatprep.subr.bf16.mxu0 0
    %1723 = vmatpush1.bf16.msra.mxu0 0
    %1724 = vmatprep.subr.bf16.mxu0 0
    %1725 = vmatpush1.bf16.msra.mxu0 0
    %1726 = vmatprep.mubr.bf16.mxu0 0
    %1727 = vmatmul.mubr.bf16.gmra.mrb[0].mxu0 %v1692
    %v1728 = vpop.f32.mrb[0].mxu0
    %v1729 = vadd.f32 0.0, %v1728
    %v1730 = vpop.f32.mrb[0].mxu0
    %v1731 = vadd.f32 0.0, %v1730
    %v1732 = vpop.f32.mrb[0].mxu0
    %v1733 = vpop.f32.mrb[0].mxu0
    %1734 = vdwg.mxu0
    %1735 = vmatprep.subr.bf16.mxu0 0
    %1736 = vmatpush1.bf16.msra.mxu0 %v513
    %1737 = vmatprep.subr.bf16.mxu0 0
    %1738 = vmatpush1.bf16.msra.mxu0 %v516
    %1739 = vmatprep.subr.bf16.mxu0 0
    %1740 = vmatpush1.bf16.msra.mxu0 %v519
    %1741 = vmatprep.subr.bf16.mxu0 0
    %1742 = vmatpush1.bf16.msra.mxu0 %v522
    %1743 = vmatprep.subr.bf16.mxu0 0
    %1744 = vmatpush1.bf16.msra.mxu0 %v548
    %1745 = vmatprep.subr.bf16.mxu0 0
    %1746 = vmatpush1.bf16.msra.mxu0 0
    %1747 = vmatprep.subr.bf16.mxu0 0
    %1748 = vmatpush1.bf16.msra.mxu0 0
    %1749 = vmatprep.subr.bf16.mxu0 0
    %1750 = vmatpush1.bf16.msra.mxu0 0
    %1751 = vmatprep.subr.bf16.mxu0 0
    %1752 = vmatpush1.bf16.msra.mxu0 0
    %1753 = vmatprep.subr.bf16.mxu0 0
    %1754 = vmatpush1.bf16.msra.mxu0 0
    %1755 = vmatprep.subr.bf16.mxu0 0
    %1756 = vmatpush1.bf16.msra.mxu0 0
    %1757 = vmatprep.subr.bf16.mxu0 0
    %1758 = vmatpush1.bf16.msra.mxu0 0
    %1759 = vmatprep.subr.bf16.mxu0 0
    %1760 = vmatpush1.bf16.msra.mxu0 0
    %1761 = vmatprep.subr.bf16.mxu0 0
    %1762 = vmatpush1.bf16.msra.mxu0 0
    %1763 = vmatprep.subr.bf16.mxu0 0
    %1764 = vmatpush1.bf16.msra.mxu0 0
    %1765 = vmatprep.subr.bf16.mxu0 0
    %1766 = vmatpush1.bf16.msra.mxu0 0
    %1767 = vmatprep.mubr.bf16.mxu0 0
    %1768 = vmatmul.mubr.bf16.gmra.mrb[0].mxu0 %v1692
    %v1769 = vpop.f32.mrb[0].mxu0
    %v1770 = vadd.f32 0.0, %v1769
    %v1771 = vpop.f32.mrb[0].mxu0
    %v1772 = vpop.f32.mrb[0].mxu0
    %v1773 = vpop.f32.mrb[0].mxu0
    %1774 = vdwg.mxu0
    %v1775 = vadd.f32 %v1643, %v1729
    %v1776 = vadd.f32 %v1645, %v1731
    %v1777 = vadd.f32 %v1684, %v1770
    %v1778 = vadd.f32 %v1775, %v638
    %v1779 = vadd.f32 %v1776, %v642
    %v1780 = vadd.f32 %v1777, %v646
    %v1781 = vmax.f32 %v1778, 0.0
    %v1782 = vmax.f32 %v1779, 0.0
    %v1783 = vmax.f32 %v1780, 0.0
    %v1784 = vpack.c.bf16 %v1781, %v1781
    %v1785 = vpack.c.bf16 %v1782, %v1782
    %v1786 = vpack.c.bf16 %v1783, %v1783
    %v1790 = vunpack.c.l.b16 %v1784
    %v1791 = vunpack.c.l.b16 %v1785
    %v1792 = vunpack.c.l.b16 %v1786
    %v1793 = vpack.c.b16 %v1791, %v1790
    %v1794 = vpack.c.b16 %v1792, %v1792
    %s1797 = scalar_lea.vmem [#allocation2], 60
    %1798 = vst [vmem:[%s1797] sm:$0xff] %v1793
    %1799 = vst.msk [vmem:[%s1797 + $0x8] sm:$0xf] %vm62, %v1794
    %v1800 = vld [vmem:[%s1689] sm:$0xf]
    %s1801 = scalar_lea.vmem %s0, 44
    %v1802 = vld [vmem:[%s1801] sm:$0xf]
    %v1804 = vsel %vm204, %v1802, 0
    %1806 = vmatprep.subr.bf16.mxu0 %v178
    %1807 = vmatpush1.bf16.msra.mxu0 %v177
    %1808 = vmatprep.subr.bf16.mxu0 %v181
    %1809 = vmatpush1.bf16.msra.mxu0 %v180
    %1810 = vmatprep.subr.bf16.mxu0 %v184
    %1811 = vmatpush1.bf16.msra.mxu0 %v183
    %1812 = vmatprep.subr.bf16.mxu0 %v187
    %1813 = vmatpush1.bf16.msra.mxu0 %v186
    %1814 = vmatprep.subr.bf16.mxu0 %v213
    %1815 = vmatpush1.bf16.msra.mxu0 %v210
    %1816 = vmatprep.subr.bf16.mxu0 0
    %1817 = vmatpush1.bf16.msra.mxu0 0
    %1818 = vmatprep.subr.bf16.mxu0 0
    %1819 = vmatpush1.bf16.msra.mxu0 0
    %1820 = vmatprep.subr.bf16.mxu0 0
    %1821 = vmatpush1.bf16.msra.mxu0 0
    %1822 = vmatprep.subr.bf16.mxu0 0
    %1823 = vmatpush1.bf16.msra.mxu0 0
    %1824 = vmatprep.subr.bf16.mxu0 0
    %1825 = vmatpush1.bf16.msra.mxu0 0
    %1826 = vmatprep.subr.bf16.mxu0 0
    %1827 = vmatpush1.bf16.msra.mxu0 0
    %1828 = vmatprep.subr.bf16.mxu0 0
    %1829 = vmatpush1.bf16.msra.mxu0 0
    %1830 = vmatprep.subr.bf16.mxu0 0
    %1831 = vmatpush1.bf16.msra.mxu0 0
    %1832 = vmatprep.subr.bf16.mxu0 0
    %1833 = vmatpush1.bf16.msra.mxu0 0
    %1834 = vmatprep.subr.bf16.mxu0 0
    %1835 = vmatpush1.bf16.msra.mxu0 0
    %1836 = vmatprep.subr.bf16.mxu0 0
    %1837 = vmatpush1.bf16.msra.mxu0 0
    %1838 = vmatprep.mubr.bf16.mxu0 0
    %1839 = vmatmul.mubr.bf16.gmra.mrb[0].mxu0 %v1804
    %v1840 = vpop.f32.mrb[0].mxu0
    %v1841 = vadd.f32 0.0, %v1840
    %v1842 = vpop.f32.mrb[0].mxu0
    %v1843 = vadd.f32 0.0, %v1842
    %v1844 = vpop.f32.mrb[0].mxu0
    %v1845 = vpop.f32.mrb[0].mxu0
    %1846 = vdwg.mxu0
    %1847 = vmatprep.subr.bf16.mxu0 0
    %1848 = vmatpush1.bf16.msra.mxu0 %v179
    %1849 = vmatprep.subr.bf16.mxu0 0
    %1850 = vmatpush1.bf16.msra.mxu0 %v182
    %1851 = vmatprep.subr.bf16.mxu0 0
    %1852 = vmatpush1.bf16.msra.mxu0 %v185
    %1853 = vmatprep.subr.bf16.mxu0 0
    %1854 = vmatpush1.bf16.msra.mxu0 %v188
    %1855 = vmatprep.subr.bf16.mxu0 0
    %1856 = vmatpush1.bf16.msra.mxu0 %v216
    %1857 = vmatprep.subr.bf16.mxu0 0
    %1858 = vmatpush1.bf16.msra.mxu0 0
    %1859 = vmatprep.subr.bf16.mxu0 0
    %1860 = vmatpush1.bf16.msra.mxu0 0
    %1861 = vmatprep.subr.bf16.mxu0 0
    %1862 = vmatpush1.bf16.msra.mxu0 0
    %1863 = vmatprep.subr.bf16.mxu0 0
    %1864 = vmatpush1.bf16.msra.mxu0 0
    %1865 = vmatprep.subr.bf16.mxu0 0
    %1866 = vmatpush1.bf16.msra.mxu0 0
    %1867 = vmatprep.subr.bf16.mxu0 0
    %1868 = vmatpush1.bf16.msra.mxu0 0
    %1869 = vmatprep.subr.bf16.mxu0 0
    %1870 = vmatpush1.bf16.msra.mxu0 0
    %1871 = vmatprep.subr.bf16.mxu0 0
    %1872 = vmatpush1.bf16.msra.mxu0 0
    %1873 = vmatprep.subr.bf16.mxu0 0
    %1874 = vmatpush1.bf16.msra.mxu0 0
    %1875 = vmatprep.subr.bf16.mxu0 0
    %1876 = vmatpush1.bf16.msra.mxu0 0
    %1877 = vmatprep.subr.bf16.mxu0 0
    %1878 = vmatpush1.bf16.msra.mxu0 0
    %1879 = vmatprep.mubr.bf16.mxu0 0
    %1880 = vmatmul.mubr.bf16.gmra.mrb[0].mxu0 %v1804
    %v1881 = vpop.f32.mrb[0].mxu0
    %v1882 = vadd.f32 0.0, %v1881
    %v1883 = vpop.f32.mrb[0].mxu0
    %v1884 = vpop.f32.mrb[0].mxu0
    %v1885 = vpop.f32.mrb[0].mxu0
    %1886 = vdwg.mxu0
    %v1888 = vsel %vm204, %v1800, 0
    %1890 = vmatprep.subr.bf16.mxu0 %v345
    %1891 = vmatpush1.bf16.msra.mxu0 %v344
    %1892 = vmatprep.subr.bf16.mxu0 %v348
    %1893 = vmatpush1.bf16.msra.mxu0 %v347
    %1894 = vmatprep.subr.bf16.mxu0 %v351
    %1895 = vmatpush1.bf16.msra.mxu0 %v350
    %1896 = vmatprep.subr.bf16.mxu0 %v354
    %1897 = vmatpush1.bf16.msra.mxu0 %v353
    %1898 = vmatprep.subr.bf16.mxu0 %v378
    %1899 = vmatpush1.bf16.msra.mxu0 %v375
    %1900 = vmatprep.subr.bf16.mxu0 0
    %1901 = vmatpush1.bf16.msra.mxu0 0
    %1902 = vmatprep.subr.bf16.mxu0 0
    %1903 = vmatpush1.bf16.msra.mxu0 0
    %1904 = vmatprep.subr.bf16.mxu0 0
    %1905 = vmatpush1.bf16.msra.mxu0 0
    %1906 = vmatprep.subr.bf16.mxu0 0
    %1907 = vmatpush1.bf16.msra.mxu0 0
    %1908 = vmatprep.subr.bf16.mxu0 0
    %1909 = vmatpush1.bf16.msra.mxu0 0
    %1910 = vmatprep.subr.bf16.mxu0 0
    %1911 = vmatpush1.bf16.msra.mxu0 0
    %1912 = vmatprep.subr.bf16.mxu0 0
    %1913 = vmatpush1.bf16.msra.mxu0 0
    %1914 = vmatprep.subr.bf16.mxu0 0
    %1915 = vmatpush1.bf16.msra.mxu0 0
    %1916 = vmatprep.subr.bf16.mxu0 0
    %1917 = vmatpush1.bf16.msra.mxu0 0
    %1918 = vmatprep.subr.bf16.mxu0 0
    %1919 = vmatpush1.bf16.msra.mxu0 0
    %1920 = vmatprep.subr.bf16.mxu0 0
    %1921 = vmatpush1.bf16.msra.mxu0 0
    %1922 = vmatprep.mubr.bf16.mxu0 0
    %1923 = vmatmul.mubr.bf16.gmra.mrb[0].mxu0 %v1888
    %v1924 = vpop.f32.mrb[0].mxu0
    %v1925 = vadd.f32 %v1841, %v1924
    %v1926 = vpop.f32.mrb[0].mxu0
    %v1927 = vadd.f32 %v1843, %v1926
    %v1928 = vpop.f32.mrb[0].mxu0
    %v1929 = vpop.f32.mrb[0].mxu0
    %1930 = vdwg.mxu0
    %1931 = vmatprep.subr.bf16.mxu0 0
    %1932 = vmatpush1.bf16.msra.mxu0 %v346
    %1933 = vmatprep.subr.bf16.mxu0 0
    %1934 = vmatpush1.bf16.msra.mxu0 %v349
    %1935 = vmatprep.subr.bf16.mxu0 0
    %1936 = vmatpush1.bf16.msra.mxu0 %v352
    %1937 = vmatprep.subr.bf16.mxu0 0
    %1938 = vmatpush1.bf16.msra.mxu0 %v355
    %1939 = vmatprep.subr.bf16.mxu0 0
    %1940 = vmatpush1.bf16.msra.mxu0 %v381
    %1941 = vmatprep.subr.bf16.mxu0 0
    %1942 = vmatpush1.bf16.msra.mxu0 0
    %1943 = vmatprep.subr.bf16.mxu0 0
    %1944 = vmatpush1.bf16.msra.mxu0 0
    %1945 = vmatprep.subr.bf16.mxu0 0
    %1946 = vmatpush1.bf16.msra.mxu0 0
    %1947 = vmatprep.subr.bf16.mxu0 0
    %1948 = vmatpush1.bf16.msra.mxu0 0
    %1949 = vmatprep.subr.bf16.mxu0 0
    %1950 = vmatpush1.bf16.msra.mxu0 0
    %1951 = vmatprep.subr.bf16.mxu0 0
    %1952 = vmatpush1.bf16.msra.mxu0 0
    %1953 = vmatprep.subr.bf16.mxu0 0
    %1954 = vmatpush1.bf16.msra.mxu0 0
    %1955 = vmatprep.subr.bf16.mxu0 0
    %1956 = vmatpush1.bf16.msra.mxu0 0
    %1957 = vmatprep.subr.bf16.mxu0 0
    %1958 = vmatpush1.bf16.msra.mxu0 0
    %1959 = vmatprep.subr.bf16.mxu0 0
    %1960 = vmatpush1.bf16.msra.mxu0 0
    %1961 = vmatprep.subr.bf16.mxu0 0
    %1962 = vmatpush1.bf16.msra.mxu0 0
    %1963 = vmatprep.mubr.bf16.mxu0 0
    %1964 = vmatmul.mubr.bf16.gmra.mrb[0].mxu0 %v1888
    %v1965 = vpop.f32.mrb[0].mxu0
    %v1966 = vadd.f32 %v1882, %v1965
    %v1967 = vpop.f32.mrb[0].mxu0
    %v1968 = vpop.f32.mrb[0].mxu0
    %v1969 = vpop.f32.mrb[0].mxu0
    %1970 = vdwg.mxu0
    %s1971 = scalar_lea.vmem %s0, 48
    %v1972 = vld [vmem:[%s1971] sm:$0xf]
    %v1974 = vsel %vm204, %v1972, 0
    %1976 = vmatprep.subr.bf16.mxu0 %v512
    %1977 = vmatpush1.bf16.msra.mxu0 %v511
    %1978 = vmatprep.subr.bf16.mxu0 %v515
    %1979 = vmatpush1.bf16.msra.mxu0 %v514
    %1980 = vmatprep.subr.bf16.mxu0 %v518
    %1981 = vmatpush1.bf16.msra.mxu0 %v517
    %1982 = vmatprep.subr.bf16.mxu0 %v521
    %1983 = vmatpush1.bf16.msra.mxu0 %v520
    %1984 = vmatprep.subr.bf16.mxu0 %v545
    %1985 = vmatpush1.bf16.msra.mxu0 %v542
    %1986 = vmatprep.subr.bf16.mxu0 0
    %1987 = vmatpush1.bf16.msra.mxu0 0
    %1988 = vmatprep.subr.bf16.mxu0 0
    %1989 = vmatpush1.bf16.msra.mxu0 0
    %1990 = vmatprep.subr.bf16.mxu0 0
    %1991 = vmatpush1.bf16.msra.mxu0 0
    %1992 = vmatprep.subr.bf16.mxu0 0
    %1993 = vmatpush1.bf16.msra.mxu0 0
    %1994 = vmatprep.subr.bf16.mxu0 0
    %1995 = vmatpush1.bf16.msra.mxu0 0
    %1996 = vmatprep.subr.bf16.mxu0 0
    %1997 = vmatpush1.bf16.msra.mxu0 0
    %1998 = vmatprep.subr.bf16.mxu0 0
    %1999 = vmatpush1.bf16.msra.mxu0 0
    %2000 = vmatprep.subr.bf16.mxu0 0
    %2001 = vmatpush1.bf16.msra.mxu0 0
    %2002 = vmatprep.subr.bf16.mxu0 0
    %2003 = vmatpush1.bf16.msra.mxu0 0
    %2004 = vmatprep.subr.bf16.mxu0 0
    %2005 = vmatpush1.bf16.msra.mxu0 0
    %2006 = vmatprep.subr.bf16.mxu0 0
    %2007 = vmatpush1.bf16.msra.mxu0 0
    %2008 = vmatprep.mubr.bf16.mxu0 0
    %2009 = vmatmul.mubr.bf16.gmra.mrb[0].mxu0 %v1974
    %v2010 = vpop.f32.mrb[0].mxu0
    %v2011 = vadd.f32 0.0, %v2010
    %v2012 = vpop.f32.mrb[0].mxu0
    %v2013 = vadd.f32 0.0, %v2012
    %v2014 = vpop.f32.mrb[0].mxu0
    %v2015 = vpop.f32.mrb[0].mxu0
    %2016 = vdwg.mxu0
    %2017 = vmatprep.subr.bf16.mxu0 0
    %2018 = vmatpush1.bf16.msra.mxu0 %v513
    %2019 = vmatprep.subr.bf16.mxu0 0
    %2020 = vmatpush1.bf16.msra.mxu0 %v516
    %2021 = vmatprep.subr.bf16.mxu0 0
    %2022 = vmatpush1.bf16.msra.mxu0 %v519
    %2023 = vmatprep.subr.bf16.mxu0 0
    %2024 = vmatpush1.bf16.msra.mxu0 %v522
    %2025 = vmatprep.subr.bf16.mxu0 0
    %2026 = vmatpush1.bf16.msra.mxu0 %v548
    %2027 = vmatprep.subr.bf16.mxu0 0
    %2028 = vmatpush1.bf16.msra.mxu0 0
    %2029 = vmatprep.subr.bf16.mxu0 0
    %2030 = vmatpush1.bf16.msra.mxu0 0
    %2031 = vmatprep.subr.bf16.mxu0 0
    %2032 = vmatpush1.bf16.msra.mxu0 0
    %2033 = vmatprep.subr.bf16.mxu0 0
    %2034 = vmatpush1.bf16.msra.mxu0 0
    %2035 = vmatprep.subr.bf16.mxu0 0
    %2036 = vmatpush1.bf16.msra.mxu0 0
    %2037 = vmatprep.subr.bf16.mxu0 0
    %2038 = vmatpush1.bf16.msra.mxu0 0
    %2039 = vmatprep.subr.bf16.mxu0 0
    %2040 = vmatpush1.bf16.msra.mxu0 0
    %2041 = vmatprep.subr.bf16.mxu0 0
    %2042 = vmatpush1.bf16.msra.mxu0 0
    %2043 = vmatprep.subr.bf16.mxu0 0
    %2044 = vmatpush1.bf16.msra.mxu0 0
    %2045 = vmatprep.subr.bf16.mxu0 0
    %2046 = vmatpush1.bf16.msra.mxu0 0
    %2047 = vmatprep.subr.bf16.mxu0 0
    %2048 = vmatpush1.bf16.msra.mxu0 0
    %2049 = vmatprep.mubr.bf16.mxu0 0
    %2050 = vmatmul.mubr.bf16.gmra.mrb[0].mxu0 %v1974
    %v2051 = vpop.f32.mrb[0].mxu0
    %v2052 = vadd.f32 0.0, %v2051
    %v2053 = vpop.f32.mrb[0].mxu0
    %v2054 = vpop.f32.mrb[0].mxu0
    %v2055 = vpop.f32.mrb[0].mxu0
    %2056 = vdwg.mxu0
    %v2057 = vadd.f32 %v1925, %v2011
    %v2058 = vadd.f32 %v1927, %v2013
    %v2059 = vadd.f32 %v1966, %v2052
    %v2060 = vadd.f32 %v2057, %v638
    %v2061 = vadd.f32 %v2058, %v642
    %v2062 = vadd.f32 %v2059, %v646
    %v2063 = vmax.f32 %v2060, 0.0
    %v2064 = vmax.f32 %v2061, 0.0
    %v2065 = vmax.f32 %v2062, 0.0
    %v2066 = vpack.c.bf16 %v2063, %v2063
    %v2067 = vpack.c.bf16 %v2064, %v2064
    %v2068 = vpack.c.bf16 %v2065, %v2065
    %v2072 = vunpack.c.l.b16 %v2066
    %v2073 = vunpack.c.l.b16 %v2067
    %v2074 = vunpack.c.l.b16 %v2068
    %v2075 = vpack.c.b16 %v2073, %v2072
    %v2076 = vpack.c.b16 %v2074, %v2074
    %s2079 = scalar_lea.vmem [#allocation2], 72
    %2080 = vst [vmem:[%s2079] sm:$0xff] %v2075
    %2081 = vst.msk [vmem:[%s2079 + $0x8] sm:$0xf] %vm62, %v2076
    %v2082 = vld [vmem:[%s1971] sm:$0xf]
    %s2083 = scalar_lea.vmem %s0, 52
    %v2084 = vld [vmem:[%s2083] sm:$0xf]
    %v2086 = vsel %vm204, %v2084, 0
    %2088 = vmatprep.subr.bf16.mxu0 %v178
    %2089 = vmatpush1.bf16.msra.mxu0 %v177
    %2090 = vmatprep.subr.bf16.mxu0 %v181
    %2091 = vmatpush1.bf16.msra.mxu0 %v180
    %2092 = vmatprep.subr.bf16.mxu0 %v184
    %2093 = vmatpush1.bf16.msra.mxu0 %v183
    %2094 = vmatprep.subr.bf16.mxu0 %v187
    %2095 = vmatpush1.bf16.msra.mxu0 %v186
    %2096 = vmatprep.subr.bf16.mxu0 %v213
    %2097 = vmatpush1.bf16.msra.mxu0 %v210
    %2098 = vmatprep.subr.bf16.mxu0 0
    %2099 = vmatpush1.bf16.msra.mxu0 0
    %2100 = vmatprep.subr.bf16.mxu0 0
    %2101 = vmatpush1.bf16.msra.mxu0 0
    %2102 = vmatprep.subr.bf16.mxu0 0
    %2103 = vmatpush1.bf16.msra.mxu0 0
    %2104 = vmatprep.subr.bf16.mxu0 0
    %2105 = vmatpush1.bf16.msra.mxu0 0
    %2106 = vmatprep.subr.bf16.mxu0 0
    %2107 = vmatpush1.bf16.msra.mxu0 0
    %2108 = vmatprep.subr.bf16.mxu0 0
    %2109 = vmatpush1.bf16.msra.mxu0 0
    %2110 = vmatprep.subr.bf16.mxu0 0
    %2111 = vmatpush1.bf16.msra.mxu0 0
    %2112 = vmatprep.subr.bf16.mxu0 0
    %2113 = vmatpush1.bf16.msra.mxu0 0
    %2114 = vmatprep.subr.bf16.mxu0 0
    %2115 = vmatpush1.bf16.msra.mxu0 0
    %2116 = vmatprep.subr.bf16.mxu0 0
    %2117 = vmatpush1.bf16.msra.mxu0 0
    %2118 = vmatprep.subr.bf16.mxu0 0
    %2119 = vmatpush1.bf16.msra.mxu0 0
    %2120 = vmatprep.mubr.bf16.mxu0 0
    %2121 = vmatmul.mubr.bf16.gmra.mrb[0].mxu0 %v2086
    %v2122 = vpop.f32.mrb[0].mxu0
    %v2123 = vadd.f32 0.0, %v2122
    %v2124 = vpop.f32.mrb[0].mxu0
    %v2125 = vadd.f32 0.0, %v2124
    %v2126 = vpop.f32.mrb[0].mxu0
    %v2127 = vpop.f32.mrb[0].mxu0
    %2128 = vdwg.mxu0
    %2129 = vmatprep.subr.bf16.mxu0 0
    %2130 = vmatpush1.bf16.msra.mxu0 %v179
    %2131 = vmatprep.subr.bf16.mxu0 0
    %2132 = vmatpush1.bf16.msra.mxu0 %v182
    %2133 = vmatprep.subr.bf16.mxu0 0
    %2134 = vmatpush1.bf16.msra.mxu0 %v185
    %2135 = vmatprep.subr.bf16.mxu0 0
    %2136 = vmatpush1.bf16.msra.mxu0 %v188
    %2137 = vmatprep.subr.bf16.mxu0 0
    %2138 = vmatpush1.bf16.msra.mxu0 %v216
    %2139 = vmatprep.subr.bf16.mxu0 0
    %2140 = vmatpush1.bf16.msra.mxu0 0
    %2141 = vmatprep.subr.bf16.mxu0 0
    %2142 = vmatpush1.bf16.msra.mxu0 0
    %2143 = vmatprep.subr.bf16.mxu0 0
    %2144 = vmatpush1.bf16.msra.mxu0 0
    %2145 = vmatprep.subr.bf16.mxu0 0
    %2146 = vmatpush1.bf16.msra.mxu0 0
    %2147 = vmatprep.subr.bf16.mxu0 0
    %2148 = vmatpush1.bf16.msra.mxu0 0
    %2149 = vmatprep.subr.bf16.mxu0 0
    %2150 = vmatpush1.bf16.msra.mxu0 0
    %2151 = vmatprep.subr.bf16.mxu0 0
    %2152 = vmatpush1.bf16.msra.mxu0 0
    %2153 = vmatprep.subr.bf16.mxu0 0
    %2154 = vmatpush1.bf16.msra.mxu0 0
    %2155 = vmatprep.subr.bf16.mxu0 0
    %2156 = vmatpush1.bf16.msra.mxu0 0
    %2157 = vmatprep.subr.bf16.mxu0 0
    %2158 = vmatpush1.bf16.msra.mxu0 0
    %2159 = vmatprep.subr.bf16.mxu0 0
    %2160 = vmatpush1.bf16.msra.mxu0 0
    %2161 = vmatprep.mubr.bf16.mxu0 0
    %2162 = vmatmul.mubr.bf16.gmra.mrb[0].mxu0 %v2086
    %v2163 = vpop.f32.mrb[0].mxu0
    %v2164 = vadd.f32 0.0, %v2163
    %v2165 = vpop.f32.mrb[0].mxu0
    %v2166 = vpop.f32.mrb[0].mxu0
    %v2167 = vpop.f32.mrb[0].mxu0
    %2168 = vdwg.mxu0
    %v2170 = vsel %vm204, %v2082, 0
    %2172 = vmatprep.subr.bf16.mxu0 %v345
    %2173 = vmatpush1.bf16.msra.mxu0 %v344
    %2174 = vmatprep.subr.bf16.mxu0 %v348
    %2175 = vmatpush1.bf16.msra.mxu0 %v347
    %2176 = vmatprep.subr.bf16.mxu0 %v351
    %2177 = vmatpush1.bf16.msra.mxu0 %v350
    %2178 = vmatprep.subr.bf16.mxu0 %v354
    %2179 = vmatpush1.bf16.msra.mxu0 %v353
    %2180 = vmatprep.subr.bf16.mxu0 %v378
    %2181 = vmatpush1.bf16.msra.mxu0 %v375
    %2182 = vmatprep.subr.bf16.mxu0 0
    %2183 = vmatpush1.bf16.msra.mxu0 0
    %2184 = vmatprep.subr.bf16.mxu0 0
    %2185 = vmatpush1.bf16.msra.mxu0 0
    %2186 = vmatprep.subr.bf16.mxu0 0
    %2187 = vmatpush1.bf16.msra.mxu0 0
    %2188 = vmatprep.subr.bf16.mxu0 0
    %2189 = vmatpush1.bf16.msra.mxu0 0
    %2190 = vmatprep.subr.bf16.mxu0 0
    %2191 = vmatpush1.bf16.msra.mxu0 0
    %2192 = vmatprep.subr.bf16.mxu0 0
    %2193 = vmatpush1.bf16.msra.mxu0 0
    %2194 = vmatprep.subr.bf16.mxu0 0
    %2195 = vmatpush1.bf16.msra.mxu0 0
    %2196 = vmatprep.subr.bf16.mxu0 0
    %2197 = vmatpush1.bf16.msra.mxu0 0
    %2198 = vmatprep.subr.bf16.mxu0 0
    %2199 = vmatpush1.bf16.msra.mxu0 0
    %2200 = vmatprep.subr.bf16.mxu0 0
    %2201 = vmatpush1.bf16.msra.mxu0 0
    %2202 = vmatprep.subr.bf16.mxu0 0
    %2203 = vmatpush1.bf16.msra.mxu0 0
    %2204 = vmatprep.mubr.bf16.mxu0 0
    %2205 = vmatmul.mubr.bf16.gmra.mrb[0].mxu0 %v2170
    %v2206 = vpop.f32.mrb[0].mxu0
    %v2207 = vadd.f32 %v2123, %v2206
    %v2208 = vpop.f32.mrb[0].mxu0
    %v2209 = vadd.f32 %v2125, %v2208
    %v2210 = vpop.f32.mrb[0].mxu0
    %v2211 = vpop.f32.mrb[0].mxu0
    %2212 = vdwg.mxu0
    %2213 = vmatprep.subr.bf16.mxu0 0
    %2214 = vmatpush1.bf16.msra.mxu0 %v346
    %2215 = vmatprep.subr.bf16.mxu0 0
    %2216 = vmatpush1.bf16.msra.mxu0 %v349
    %2217 = vmatprep.subr.bf16.mxu0 0
    %2218 = vmatpush1.bf16.msra.mxu0 %v352
    %2219 = vmatprep.subr.bf16.mxu0 0
    %2220 = vmatpush1.bf16.msra.mxu0 %v355
    %2221 = vmatprep.subr.bf16.mxu0 0
    %2222 = vmatpush1.bf16.msra.mxu0 %v381
    %2223 = vmatprep.subr.bf16.mxu0 0
    %2224 = vmatpush1.bf16.msra.mxu0 0
    %2225 = vmatprep.subr.bf16.mxu0 0
    %2226 = vmatpush1.bf16.msra.mxu0 0
    %2227 = vmatprep.subr.bf16.mxu0 0
    %2228 = vmatpush1.bf16.msra.mxu0 0
    %2229 = vmatprep.subr.bf16.mxu0 0
    %2230 = vmatpush1.bf16.msra.mxu0 0
    %2231 = vmatprep.subr.bf16.mxu0 0
    %2232 = vmatpush1.bf16.msra.mxu0 0
    %2233 = vmatprep.subr.bf16.mxu0 0
    %2234 = vmatpush1.bf16.msra.mxu0 0
    %2235 = vmatprep.subr.bf16.mxu0 0
    %2236 = vmatpush1.bf16.msra.mxu0 0
    %2237 = vmatprep.subr.bf16.mxu0 0
    %2238 = vmatpush1.bf16.msra.mxu0 0
    %2239 = vmatprep.subr.bf16.mxu0 0
    %2240 = vmatpush1.bf16.msra.mxu0 0
    %2241 = vmatprep.subr.bf16.mxu0 0
    %2242 = vmatpush1.bf16.msra.mxu0 0
    %2243 = vmatprep.subr.bf16.mxu0 0
    %2244 = vmatpush1.bf16.msra.mxu0 0
    %2245 = vmatprep.mubr.bf16.mxu0 0
    %2246 = vmatmul.mubr.bf16.gmra.mrb[0].mxu0 %v2170
    %v2247 = vpop.f32.mrb[0].mxu0
    %v2248 = vadd.f32 %v2164, %v2247
    %v2249 = vpop.f32.mrb[0].mxu0
    %v2250 = vpop.f32.mrb[0].mxu0
    %v2251 = vpop.f32.mrb[0].mxu0
    %2252 = vdwg.mxu0
    %s2253 = scalar_lea.vmem %s0, 56
    %v2254 = vld [vmem:[%s2253] sm:$0xf]
    %v2256 = vsel %vm204, %v2254, 0
    %2258 = vmatprep.subr.bf16.mxu0 %v512
    %2259 = vmatpush1.bf16.msra.mxu0 %v511
    %2260 = vmatprep.subr.bf16.mxu0 %v515
    %2261 = vmatpush1.bf16.msra.mxu0 %v514
    %2262 = vmatprep.subr.bf16.mxu0 %v518
    %2263 = vmatpush1.bf16.msra.mxu0 %v517
    %2264 = vmatprep.subr.bf16.mxu0 %v521
    %2265 = vmatpush1.bf16.msra.mxu0 %v520
    %2266 = vmatprep.subr.bf16.mxu0 %v545
    %2267 = vmatpush1.bf16.msra.mxu0 %v542
    %2268 = vmatprep.subr.bf16.mxu0 0
    %2269 = vmatpush1.bf16.msra.mxu0 0
    %2270 = vmatprep.subr.bf16.mxu0 0
    %2271 = vmatpush1.bf16.msra.mxu0 0
    %2272 = vmatprep.subr.bf16.mxu0 0
    %2273 = vmatpush1.bf16.msra.mxu0 0
    %2274 = vmatprep.subr.bf16.mxu0 0
    %2275 = vmatpush1.bf16.msra.mxu0 0
    %2276 = vmatprep.subr.bf16.mxu0 0
    %2277 = vmatpush1.bf16.msra.mxu0 0
    %2278 = vmatprep.subr.bf16.mxu0 0
    %2279 = vmatpush1.bf16.msra.mxu0 0
    %2280 = vmatprep.subr.bf16.mxu0 0
    %2281 = vmatpush1.bf16.msra.mxu0 0
    %2282 = vmatprep.subr.bf16.mxu0 0
    %2283 = vmatpush1.bf16.msra.mxu0 0
    %2284 = vmatprep.subr.bf16.mxu0 0
    %2285 = vmatpush1.bf16.msra.mxu0 0
    %2286 = vmatprep.subr.bf16.mxu0 0
    %2287 = vmatpush1.bf16.msra.mxu0 0
    %2288 = vmatprep.subr.bf16.mxu0 0
    %2289 = vmatpush1.bf16.msra.mxu0 0
    %2290 = vmatprep.mubr.bf16.mxu0 0
    %2291 = vmatmul.mubr.bf16.gmra.mrb[0].mxu0 %v2256
    %v2292 = vpop.f32.mrb[0].mxu0
    %v2293 = vadd.f32 0.0, %v2292
    %v2294 = vpop.f32.mrb[0].mxu0
    %v2295 = vadd.f32 0.0, %v2294
    %v2296 = vpop.f32.mrb[0].mxu0
    %v2297 = vpop.f32.mrb[0].mxu0
    %2298 = vdwg.mxu0
    %2299 = vmatprep.subr.bf16.mxu0 0
    %2300 = vmatpush1.bf16.msra.mxu0 %v513
    %2301 = vmatprep.subr.bf16.mxu0 0
    %2302 = vmatpush1.bf16.msra.mxu0 %v516
    %2303 = vmatprep.subr.bf16.mxu0 0
    %2304 = vmatpush1.bf16.msra.mxu0 %v519
    %2305 = vmatprep.subr.bf16.mxu0 0
    %2306 = vmatpush1.bf16.msra.mxu0 %v522
    %2307 = vmatprep.subr.bf16.mxu0 0
    %2308 = vmatpush1.bf16.msra.mxu0 %v548
    %2309 = vmatprep.subr.bf16.mxu0 0
    %2310 = vmatpush1.bf16.msra.mxu0 0
    %2311 = vmatprep.subr.bf16.mxu0 0
    %2312 = vmatpush1.bf16.msra.mxu0 0
    %2313 = vmatprep.subr.bf16.mxu0 0
    %2314 = vmatpush1.bf16.msra.mxu0 0
    %2315 = vmatprep.subr.bf16.mxu0 0
    %2316 = vmatpush1.bf16.msra.mxu0 0
    %2317 = vmatprep.subr.bf16.mxu0 0
    %2318 = vmatpush1.bf16.msra.mxu0 0
    %2319 = vmatprep.subr.bf16.mxu0 0
    %2320 = vmatpush1.bf16.msra.mxu0 0
    %2321 = vmatprep.subr.bf16.mxu0 0
    %2322 = vmatpush1.bf16.msra.mxu0 0
    %2323 = vmatprep.subr.bf16.mxu0 0
    %2324 = vmatpush1.bf16.msra.mxu0 0
    %2325 = vmatprep.subr.bf16.mxu0 0
    %2326 = vmatpush1.bf16.msra.mxu0 0
    %2327 = vmatprep.subr.bf16.mxu0 0
    %2328 = vmatpush1.bf16.msra.mxu0 0
    %2329 = vmatprep.subr.bf16.mxu0 0
    %2330 = vmatpush1.bf16.msra.mxu0 0
    %2331 = vmatprep.mubr.bf16.mxu0 0
    %2332 = vmatmul.mubr.bf16.gmra.mrb[0].mxu0 %v2256
    %v2333 = vpop.f32.mrb[0].mxu0
    %v2334 = vadd.f32 0.0, %v2333
    %v2335 = vpop.f32.mrb[0].mxu0
    %v2336 = vpop.f32.mrb[0].mxu0
    %v2337 = vpop.f32.mrb[0].mxu0
    %2338 = vdwg.mxu0
    %v2339 = vadd.f32 %v2207, %v2293
    %v2340 = vadd.f32 %v2209, %v2295
    %v2341 = vadd.f32 %v2248, %v2334
    %v2342 = vadd.f32 %v2339, %v638
    %v2343 = vadd.f32 %v2340, %v642
    %v2344 = vadd.f32 %v2341, %v646
    %v2345 = vmax.f32 %v2342, 0.0
    %v2346 = vmax.f32 %v2343, 0.0
    %v2347 = vmax.f32 %v2344, 0.0
    %v2348 = vpack.c.bf16 %v2345, %v2345
    %v2349 = vpack.c.bf16 %v2346, %v2346
    %v2350 = vpack.c.bf16 %v2347, %v2347
    %v2354 = vunpack.c.l.b16 %v2348
    %v2355 = vunpack.c.l.b16 %v2349
    %v2356 = vunpack.c.l.b16 %v2350
    %v2357 = vpack.c.b16 %v2355, %v2354
    %v2358 = vpack.c.b16 %v2356, %v2356
    %s2361 = scalar_lea.vmem [#allocation2], 84
    %2362 = vst [vmem:[%s2361] sm:$0xff] %v2357
    %2363 = vst.msk [vmem:[%s2361 + $0x8] sm:$0xf] %vm62, %v2358
    %v2364 = vld [vmem:[%s2253] sm:$0xf]
    %s2365 = scalar_lea.vmem %s0, 60
    %v2366 = vld [vmem:[%s2365] sm:$0xf]
    %v2368 = vsel %vm204, %v2366, 0
    %2370 = vmatprep.subr.bf16.mxu0 %v178
    %2371 = vmatpush1.bf16.msra.mxu0 %v177
    %2372 = vmatprep.subr.bf16.mxu0 %v181
    %2373 = vmatpush1.bf16.msra.mxu0 %v180
    %2374 = vmatprep.subr.bf16.mxu0 %v184
    %2375 = vmatpush1.bf16.msra.mxu0 %v183
    %2376 = vmatprep.subr.bf16.mxu0 %v187
    %2377 = vmatpush1.bf16.msra.mxu0 %v186
    %2378 = vmatprep.subr.bf16.mxu0 %v213
    %2379 = vmatpush1.bf16.msra.mxu0 %v210
    %2380 = vmatprep.subr.bf16.mxu0 0
    %2381 = vmatpush1.bf16.msra.mxu0 0
    %2382 = vmatprep.subr.bf16.mxu0 0
    %2383 = vmatpush1.bf16.msra.mxu0 0
    %2384 = vmatprep.subr.bf16.mxu0 0
    %2385 = vmatpush1.bf16.msra.mxu0 0
    %2386 = vmatprep.subr.bf16.mxu0 0
    %2387 = vmatpush1.bf16.msra.mxu0 0
    %2388 = vmatprep.subr.bf16.mxu0 0
    %2389 = vmatpush1.bf16.msra.mxu0 0
    %2390 = vmatprep.subr.bf16.mxu0 0
    %2391 = vmatpush1.bf16.msra.mxu0 0
    %2392 = vmatprep.subr.bf16.mxu0 0
    %2393 = vmatpush1.bf16.msra.mxu0 0
    %2394 = vmatprep.subr.bf16.mxu0 0
    %2395 = vmatpush1.bf16.msra.mxu0 0
    %2396 = vmatprep.subr.bf16.mxu0 0
    %2397 = vmatpush1.bf16.msra.mxu0 0
    %2398 = vmatprep.subr.bf16.mxu0 0
    %2399 = vmatpush1.bf16.msra.mxu0 0
    %2400 = vmatprep.subr.bf16.mxu0 0
    %2401 = vmatpush1.bf16.msra.mxu0 0
    %2402 = vmatprep.mubr.bf16.mxu0 0
    %2403 = vmatmul.mubr.bf16.gmra.mrb[0].mxu0 %v2368
    %v2404 = vpop.f32.mrb[0].mxu0
    %v2405 = vadd.f32 0.0, %v2404
    %v2406 = vpop.f32.mrb[0].mxu0
    %v2407 = vadd.f32 0.0, %v2406
    %v2408 = vpop.f32.mrb[0].mxu0
    %v2409 = vpop.f32.mrb[0].mxu0
    %2410 = vdwg.mxu0
    %2411 = vmatprep.subr.bf16.mxu0 0
    %2412 = vmatpush1.bf16.msra.mxu0 %v179
    %2413 = vmatprep.subr.bf16.mxu0 0
    %2414 = vmatpush1.bf16.msra.mxu0 %v182
    %2415 = vmatprep.subr.bf16.mxu0 0
    %2416 = vmatpush1.bf16.msra.mxu0 %v185
    %2417 = vmatprep.subr.bf16.mxu0 0
    %2418 = vmatpush1.bf16.msra.mxu0 %v188
    %2419 = vmatprep.subr.bf16.mxu0 0
    %2420 = vmatpush1.bf16.msra.mxu0 %v216
    %2421 = vmatprep.subr.bf16.mxu0 0
    %2422 = vmatpush1.bf16.msra.mxu0 0
    %2423 = vmatprep.subr.bf16.mxu0 0
    %2424 = vmatpush1.bf16.msra.mxu0 0
    %2425 = vmatprep.subr.bf16.mxu0 0
    %2426 = vmatpush1.bf16.msra.mxu0 0
    %2427 = vmatprep.subr.bf16.mxu0 0
    %2428 = vmatpush1.bf16.msra.mxu0 0
    %2429 = vmatprep.subr.bf16.mxu0 0
    %2430 = vmatpush1.bf16.msra.mxu0 0
    %2431 = vmatprep.subr.bf16.mxu0 0
    %2432 = vmatpush1.bf16.msra.mxu0 0
    %2433 = vmatprep.subr.bf16.mxu0 0
    %2434 = vmatpush1.bf16.msra.mxu0 0
    %2435 = vmatprep.subr.bf16.mxu0 0
    %2436 = vmatpush1.bf16.msra.mxu0 0
    %2437 = vmatprep.subr.bf16.mxu0 0
    %2438 = vmatpush1.bf16.msra.mxu0 0
    %2439 = vmatprep.subr.bf16.mxu0 0
    %2440 = vmatpush1.bf16.msra.mxu0 0
    %2441 = vmatprep.subr.bf16.mxu0 0
    %2442 = vmatpush1.bf16.msra.mxu0 0
    %2443 = vmatprep.mubr.bf16.mxu0 0
    %2444 = vmatmul.mubr.bf16.gmra.mrb[0].mxu0 %v2368
    %v2445 = vpop.f32.mrb[0].mxu0
    %v2446 = vadd.f32 0.0, %v2445
    %v2447 = vpop.f32.mrb[0].mxu0
    %v2448 = vpop.f32.mrb[0].mxu0
    %v2449 = vpop.f32.mrb[0].mxu0
    %2450 = vdwg.mxu0
    %v2452 = vsel %vm204, %v2364, 0
    %2454 = vmatprep.subr.bf16.mxu0 %v345
    %2455 = vmatpush1.bf16.msra.mxu0 %v344
    %2456 = vmatprep.subr.bf16.mxu0 %v348
    %2457 = vmatpush1.bf16.msra.mxu0 %v347
    %2458 = vmatprep.subr.bf16.mxu0 %v351
    %2459 = vmatpush1.bf16.msra.mxu0 %v350
    %2460 = vmatprep.subr.bf16.mxu0 %v354
    %2461 = vmatpush1.bf16.msra.mxu0 %v353
    %2462 = vmatprep.subr.bf16.mxu0 %v378
    %2463 = vmatpush1.bf16.msra.mxu0 %v375
    %2464 = vmatprep.subr.bf16.mxu0 0
    %2465 = vmatpush1.bf16.msra.mxu0 0
    %2466 = vmatprep.subr.bf16.mxu0 0
    %2467 = vmatpush1.bf16.msra.mxu0 0
    %2468 = vmatprep.subr.bf16.mxu0 0
    %2469 = vmatpush1.bf16.msra.mxu0 0
    %2470 = vmatprep.subr.bf16.mxu0 0
    %2471 = vmatpush1.bf16.msra.mxu0 0
    %2472 = vmatprep.subr.bf16.mxu0 0
    %2473 = vmatpush1.bf16.msra.mxu0 0
    %2474 = vmatprep.subr.bf16.mxu0 0
    %2475 = vmatpush1.bf16.msra.mxu0 0
    %2476 = vmatprep.subr.bf16.mxu0 0
    %2477 = vmatpush1.bf16.msra.mxu0 0
    %2478 = vmatprep.subr.bf16.mxu0 0
    %2479 = vmatpush1.bf16.msra.mxu0 0
    %2480 = vmatprep.subr.bf16.mxu0 0
    %2481 = vmatpush1.bf16.msra.mxu0 0
    %2482 = vmatprep.subr.bf16.mxu0 0
    %2483 = vmatpush1.bf16.msra.mxu0 0
    %2484 = vmatprep.subr.bf16.mxu0 0
    %2485 = vmatpush1.bf16.msra.mxu0 0
    %2486 = vmatprep.mubr.bf16.mxu0 0
    %2487 = vmatmul.mubr.bf16.gmra.mrb[0].mxu0 %v2452
    %v2488 = vpop.f32.mrb[0].mxu0
    %v2489 = vadd.f32 %v2405, %v2488
    %v2490 = vpop.f32.mrb[0].mxu0
    %v2491 = vadd.f32 %v2407, %v2490
    %v2492 = vpop.f32.mrb[0].mxu0
    %v2493 = vpop.f32.mrb[0].mxu0
    %2494 = vdwg.mxu0
    %2495 = vmatprep.subr.bf16.mxu0 0
    %2496 = vmatpush1.bf16.msra.mxu0 %v346
    %2497 = vmatprep.subr.bf16.mxu0 0
    %2498 = vmatpush1.bf16.msra.mxu0 %v349
    %2499 = vmatprep.subr.bf16.mxu0 0
    %2500 = vmatpush1.bf16.msra.mxu0 %v352
    %2501 = vmatprep.subr.bf16.mxu0 0
    %2502 = vmatpush1.bf16.msra.mxu0 %v355
    %2503 = vmatprep.subr.bf16.mxu0 0
    %2504 = vmatpush1.bf16.msra.mxu0 %v381
    %2505 = vmatprep.subr.bf16.mxu0 0
    %2506 = vmatpush1.bf16.msra.mxu0 0
    %2507 = vmatprep.subr.bf16.mxu0 0
    %2508 = vmatpush1.bf16.msra.mxu0 0
    %2509 = vmatprep.subr.bf16.mxu0 0
    %2510 = vmatpush1.bf16.msra.mxu0 0
    %2511 = vmatprep.subr.bf16.mxu0 0
    %2512 = vmatpush1.bf16.msra.mxu0 0
    %2513 = vmatprep.subr.bf16.mxu0 0
    %2514 = vmatpush1.bf16.msra.mxu0 0
    %2515 = vmatprep.subr.bf16.mxu0 0
    %2516 = vmatpush1.bf16.msra.mxu0 0
    %2517 = vmatprep.subr.bf16.mxu0 0
    %2518 = vmatpush1.bf16.msra.mxu0 0
    %2519 = vmatprep.subr.bf16.mxu0 0
    %2520 = vmatpush1.bf16.msra.mxu0 0
    %2521 = vmatprep.subr.bf16.mxu0 0
    %2522 = vmatpush1.bf16.msra.mxu0 0
    %2523 = vmatprep.subr.bf16.mxu0 0
    %2524 = vmatpush1.bf16.msra.mxu0 0
    %2525 = vmatprep.subr.bf16.mxu0 0
    %2526 = vmatpush1.bf16.msra.mxu0 0
    %2527 = vmatprep.mubr.bf16.mxu0 0
    %2528 = vmatmul.mubr.bf16.gmra.mrb[0].mxu0 %v2452
    %v2529 = vpop.f32.mrb[0].mxu0
    %v2530 = vadd.f32 %v2446, %v2529
    %v2531 = vpop.f32.mrb[0].mxu0
    %v2532 = vpop.f32.mrb[0].mxu0
    %v2533 = vpop.f32.mrb[0].mxu0
    %2534 = vdwg.mxu0
    %s2535 = scalar_lea.vmem %s0, 64
    %v2536 = vld [vmem:[%s2535] sm:$0xf]
    %v2538 = vsel %vm204, %v2536, 0
    %2540 = vmatprep.subr.bf16.mxu0 %v512
    %2541 = vmatpush1.bf16.msra.mxu0 %v511
    %2542 = vmatprep.subr.bf16.mxu0 %v515
    %2543 = vmatpush1.bf16.msra.mxu0 %v514
    %2544 = vmatprep.subr.bf16.mxu0 %v518
    %2545 = vmatpush1.bf16.msra.mxu0 %v517
    %2546 = vmatprep.subr.bf16.mxu0 %v521
    %2547 = vmatpush1.bf16.msra.mxu0 %v520
    %2548 = vmatprep.subr.bf16.mxu0 %v545
    %2549 = vmatpush1.bf16.msra.mxu0 %v542
    %2550 = vmatprep.subr.bf16.mxu0 0
    %2551 = vmatpush1.bf16.msra.mxu0 0
    %2552 = vmatprep.subr.bf16.mxu0 0
    %2553 = vmatpush1.bf16.msra.mxu0 0
    %2554 = vmatprep.subr.bf16.mxu0 0
    %2555 = vmatpush1.bf16.msra.mxu0 0
    %2556 = vmatprep.subr.bf16.mxu0 0
    %2557 = vmatpush1.bf16.msra.mxu0 0
    %2558 = vmatprep.subr.bf16.mxu0 0
    %2559 = vmatpush1.bf16.msra.mxu0 0
    %2560 = vmatprep.subr.bf16.mxu0 0
    %2561 = vmatpush1.bf16.msra.mxu0 0
    %2562 = vmatprep.subr.bf16.mxu0 0
    %2563 = vmatpush1.bf16.msra.mxu0 0
    %2564 = vmatprep.subr.bf16.mxu0 0
    %2565 = vmatpush1.bf16.msra.mxu0 0
    %2566 = vmatprep.subr.bf16.mxu0 0
    %2567 = vmatpush1.bf16.msra.mxu0 0
    %2568 = vmatprep.subr.bf16.mxu0 0
    %2569 = vmatpush1.bf16.msra.mxu0 0
    %2570 = vmatprep.subr.bf16.mxu0 0
    %2571 = vmatpush1.bf16.msra.mxu0 0
    %2572 = vmatprep.mubr.bf16.mxu0 0
    %2573 = vmatmul.mubr.bf16.gmra.mrb[0].mxu0 %v2538
    %v2574 = vpop.f32.mrb[0].mxu0
    %v2575 = vadd.f32 0.0, %v2574
    %v2576 = vpop.f32.mrb[0].mxu0
    %v2577 = vadd.f32 0.0, %v2576
    %v2578 = vpop.f32.mrb[0].mxu0
    %v2579 = vpop.f32.mrb[0].mxu0
    %2580 = vdwg.mxu0
    %2581 = vmatprep.subr.bf16.mxu0 0
    %2582 = vmatpush1.bf16.msra.mxu0 %v513
    %2583 = vmatprep.subr.bf16.mxu0 0
    %2584 = vmatpush1.bf16.msra.mxu0 %v516
    %2585 = vmatprep.subr.bf16.mxu0 0
    %2586 = vmatpush1.bf16.msra.mxu0 %v519
    %2587 = vmatprep.subr.bf16.mxu0 0
    %2588 = vmatpush1.bf16.msra.mxu0 %v522
    %2589 = vmatprep.subr.bf16.mxu0 0
    %2590 = vmatpush1.bf16.msra.mxu0 %v548
    %2591 = vmatprep.subr.bf16.mxu0 0
    %2592 = vmatpush1.bf16.msra.mxu0 0
    %2593 = vmatprep.subr.bf16.mxu0 0
    %2594 = vmatpush1.bf16.msra.mxu0 0
    %2595 = vmatprep.subr.bf16.mxu0 0
    %2596 = vmatpush1.bf16.msra.mxu0 0
    %2597 = vmatprep.subr.bf16.mxu0 0
    %2598 = vmatpush1.bf16.msra.mxu0 0
    %2599 = vmatprep.subr.bf16.mxu0 0
    %2600 = vmatpush1.bf16.msra.mxu0 0
    %2601 = vmatprep.subr.bf16.mxu0 0
    %2602 = vmatpush1.bf16.msra.mxu0 0
    %2603 = vmatprep.subr.bf16.mxu0 0
    %2604 = vmatpush1.bf16.msra.mxu0 0
    %2605 = vmatprep.subr.bf16.mxu0 0
    %2606 = vmatpush1.bf16.msra.mxu0 0
    %2607 = vmatprep.subr.bf16.mxu0 0
    %2608 = vmatpush1.bf16.msra.mxu0 0
    %2609 = vmatprep.subr.bf16.mxu0 0
    %2610 = vmatpush1.bf16.msra.mxu0 0
    %2611 = vmatprep.subr.bf16.mxu0 0
    %2612 = vmatpush1.bf16.msra.mxu0 0
    %2613 = vmatprep.mubr.bf16.mxu0 0
    %2614 = vmatmul.mubr.bf16.gmra.mrb[0].mxu0 %v2538
    %v2615 = vpop.f32.mrb[0].mxu0
    %v2616 = vadd.f32 0.0, %v2615
    %v2617 = vpop.f32.mrb[0].mxu0
    %v2618 = vpop.f32.mrb[0].mxu0
    %v2619 = vpop.f32.mrb[0].mxu0
    %2620 = vdwg.mxu0
    %v2621 = vadd.f32 %v2489, %v2575
    %v2622 = vadd.f32 %v2491, %v2577
    %v2623 = vadd.f32 %v2530, %v2616
    %v2624 = vadd.f32 %v2621, %v638
    %v2625 = vadd.f32 %v2622, %v642
    %v2626 = vadd.f32 %v2623, %v646
    %v2627 = vmax.f32 %v2624, 0.0
    %v2628 = vmax.f32 %v2625, 0.0
    %v2629 = vmax.f32 %v2626, 0.0
    %v2630 = vpack.c.bf16 %v2627, %v2627
    %v2631 = vpack.c.bf16 %v2628, %v2628
    %v2632 = vpack.c.bf16 %v2629, %v2629
    %v2636 = vunpack.c.l.b16 %v2630
    %v2637 = vunpack.c.l.b16 %v2631
    %v2638 = vunpack.c.l.b16 %v2632
    %v2639 = vpack.c.b16 %v2637, %v2636
    %v2640 = vpack.c.b16 %v2638, %v2638
    %s2643 = scalar_lea.vmem [#allocation2], 96
    %2644 = vst [vmem:[%s2643] sm:$0xff] %v2639
    %2645 = vst.msk [vmem:[%s2643 + $0x8] sm:$0xf] %vm62, %v2640
    %v2646 = vld [vmem:[#allocation5] sm:$0xff]
    %v2647 = vld [vmem:[#allocation5 + $0x8] sm:$0xf]
    %v2648 = vld [vmem:[#allocation5 + $0xc] sm:$0xff]
    %v2649 = vld [vmem:[#allocation5 + $0x14] sm:$0xf]
    %v2650 = vld [vmem:[#allocation5 + $0x18] sm:$0xff]
    %v2651 = vld [vmem:[#allocation5 + $0x20] sm:$0xf]
    %v2652 = vld [vmem:[#allocation5 + $0x24] sm:$0xff]
    %v2653 = vld [vmem:[#allocation5 + $0x2c] sm:$0xf]
    %v2654 = vld [vmem:[#allocation5 + $0x30] sm:$0xff]
    %v2655 = vld [vmem:[#allocation5 + $0x38] sm:$0xf]
    %v2656 = vld [vmem:[#allocation5 + $0x3c] sm:$0xff]
    %v2657 = vld [vmem:[#allocation5 + $0x44] sm:$0xf]
    %v2658 = vld [vmem:[#allocation5 + $0x48] sm:$0xff]
    %v2659 = vld [vmem:[#allocation5 + $0x50] sm:$0xf]
    %v2660 = vld [vmem:[#allocation5 + $0x54] sm:$0xff]
    %v2661 = vld [vmem:[#allocation5 + $0x5c] sm:$0xf]
    %v2662 = vld [vmem:[#allocation5 + $0x60] sm:$0xff]
    %v2663 = vld [vmem:[#allocation5 + $0x68] sm:$0xf]
    %v2664 = vld [vmem:[#allocation5 + $0x6c] sm:$0xff]
    %v2665 = vld [vmem:[#allocation5 + $0x74] sm:$0xf]
    %v2666 = vld [vmem:[#allocation5 + $0x78] sm:$0xff]
    %v2667 = vld [vmem:[#allocation5 + $0x80] sm:$0xf]
    %v2668 = vld [vmem:[#allocation5 + $0x84] sm:$0xff]
    %v2669 = vld [vmem:[#allocation5 + $0x8c] sm:$0xf]
    %v2670 = vld [vmem:[#allocation5 + $0x90] sm:$0xff]
    %v2671 = vld [vmem:[#allocation5 + $0x98] sm:$0xf]
    %v2672 = vld [vmem:[#allocation5 + $0x9c] sm:$0xff]
    %v2673 = vld [vmem:[#allocation5 + $0xa4] sm:$0xf]
    %v2674 = vld [vmem:[#allocation5 + $0xa8] sm:$0xff]
    %v2675 = vld [vmem:[#allocation5 + $0xb0] sm:$0xf]
    %v2676 = vld [vmem:[#allocation5 + $0xb4] sm:$0xff]
    %v2677 = vld [vmem:[#allocation5 + $0xbc] sm:$0xf]
    %v2678 = vld [vmem:[#allocation5 + $0xc0] sm:$0xff]
    %v2679 = vld [vmem:[#allocation5 + $0xc8] sm:$0xf]
    %v2680 = vld [vmem:[#allocation5 + $0xcc] sm:$0xff]
    %v2681 = vld [vmem:[#allocation5 + $0xd4] sm:$0xf]
    %v2682 = vld [vmem:[#allocation5 + $0xd8] sm:$0xff]
    %v2683 = vld [vmem:[#allocation5 + $0xe0] sm:$0xf]
    %v2684 = vld [vmem:[#allocation5 + $0xe4] sm:$0xff]
    %v2685 = vld [vmem:[#allocation5 + $0xec] sm:$0xf]
    %v2686 = vld [vmem:[#allocation5 + $0xf0] sm:$0xff]
    %v2687 = vld [vmem:[#allocation5 + $0xf8] sm:$0xf]
    %v2688 = vld [vmem:[#allocation5 + $0xfc] sm:$0xff]
    %v2689 = vld [vmem:[#allocation5 + $0x104] sm:$0xf]
    %v2690 = vld [vmem:[#allocation5 + $0x108] sm:$0xff]
    %v2691 = vld [vmem:[#allocation5 + $0x110] sm:$0xf]
    %v2692 = vld [vmem:[#allocation5 + $0x114] sm:$0xff]
    %v2693 = vld [vmem:[#allocation5 + $0x11c] sm:$0xf]
    %v2694 = vld [vmem:[#allocation5 + $0x120] sm:$0xff]
    %v2695 = vld [vmem:[#allocation5 + $0x128] sm:$0xf]
    %v2696 = vld [vmem:[#allocation5 + $0x12c] sm:$0xff]
    %v2697 = vld [vmem:[#allocation5 + $0x134] sm:$0xf]
    %v2698 = vld [vmem:[#allocation5 + $0x138] sm:$0xff]
    %v2699 = vld [vmem:[#allocation5 + $0x140] sm:$0xf]
    %v2700 = vld [vmem:[#allocation5 + $0x144] sm:$0xff]
    %v2701 = vld [vmem:[#allocation5 + $0x14c] sm:$0xf]
    %v2702 = vld [vmem:[#allocation5 + $0x150] sm:$0xff]
    %v2703 = vld [vmem:[#allocation5 + $0x158] sm:$0xf]
    %v2704 = vld [vmem:[#allocation5 + $0x15c] sm:$0xff]
    %v2705 = vld [vmem:[#allocation5 + $0x164] sm:$0xf]
    %v2706 = vld [vmem:[#allocation5 + $0x168] sm:$0xff]
    %v2707 = vld [vmem:[#allocation5 + $0x170] sm:$0xf]
    %v2708 = vld [vmem:[#allocation5 + $0x174] sm:$0xff]
    %v2709 = vld [vmem:[#allocation5 + $0x17c] sm:$0xf]
    %v2710 = vld [vmem:[#allocation5 + $0x180] sm:$0xff]
    %v2711 = vld [vmem:[#allocation5 + $0x188] sm:$0xf]
    %v2712 = vld [vmem:[#allocation5 + $0x18c] sm:$0xff]
    %v2713 = vld [vmem:[#allocation5 + $0x194] sm:$0xf]
    %v2714 = vld [vmem:[#allocation5 + $0x198] sm:$0xff]
    %v2715 = vld [vmem:[#allocation5 + $0x1a0] sm:$0xf]
    %v2716 = vld [vmem:[#allocation5 + $0x1a4] sm:$0xff]
    %v2717 = vld [vmem:[#allocation5 + $0x1ac] sm:$0xf]
    %v2718 = vld [vmem:[#allocation5 + $0x1b0] sm:$0xff]
    %v2719 = vld [vmem:[#allocation5 + $0x1b8] sm:$0xf]
    %v2720 = vld [vmem:[#allocation5 + $0x1bc] sm:$0xff]
    %v2721 = vld [vmem:[#allocation5 + $0x1c4] sm:$0xf]
    %v2722 = vld [vmem:[#allocation5 + $0x1c8] sm:$0xff]
    %v2723 = vld [vmem:[#allocation5 + $0x1d0] sm:$0xf]
    %v2724 = vld [vmem:[#allocation5 + $0x1d4] sm:$0xff]
    %v2725 = vld [vmem:[#allocation5 + $0x1dc] sm:$0xf]
    %s2726 = scalar_lea.vmem [#allocation5], 480
    %v2727 = vld [vmem:[%s2726] sm:$0xff]
    %v2728 = vld [vmem:[%s2726 + $0x8] sm:$0xf]
    %v2729 = vld [vmem:[%s2726 + $0xc] sm:$0xff]
    %v2730 = vld [vmem:[%s2726 + $0x14] sm:$0xf]
    %v2731 = vld [vmem:[%s2726 + $0x18] sm:$0xff]
    %v2732 = vld [vmem:[%s2726 + $0x20] sm:$0xf]
    %v2733 = vld [vmem:[%s2726 + $0x24] sm:$0xff]
    %v2734 = vld [vmem:[%s2726 + $0x2c] sm:$0xf]
    %v2735 = vld [vmem:[%s2726 + $0x30] sm:$0xff]
    %v2736 = vld [vmem:[%s2726 + $0x38] sm:$0xf]
    %v2737 = vld [vmem:[%s2726 + $0x3c] sm:$0xff]
    %v2738 = vld [vmem:[%s2726 + $0x44] sm:$0xf]
    %v2739 = vld [vmem:[%s2726 + $0x48] sm:$0xff]
    %v2740 = vld [vmem:[%s2726 + $0x50] sm:$0xf]
    %v2741 = vld [vmem:[%s2726 + $0x54] sm:$0xff]
    %v2742 = vld [vmem:[%s2726 + $0x5c] sm:$0xf]
    %v2743 = vld [vmem:[%s2726 + $0x60] sm:$0xff]
    %v2744 = vld [vmem:[%s2726 + $0x68] sm:$0xf]
    %v2745 = vld [vmem:[%s2726 + $0x6c] sm:$0xff]
    %v2746 = vld [vmem:[%s2726 + $0x74] sm:$0xf]
    %v2747 = vld [vmem:[%s2726 + $0x78] sm:$0xff]
    %v2748 = vld [vmem:[%s2726 + $0x80] sm:$0xf]
    %v2749 = vld [vmem:[%s2726 + $0x84] sm:$0xff]
    %v2750 = vld [vmem:[%s2726 + $0x8c] sm:$0xf]
    %v2751 = vld [vmem:[%s2726 + $0x90] sm:$0xff]
    %v2752 = vld [vmem:[%s2726 + $0x98] sm:$0xf]
    %v2753 = vld [vmem:[%s2726 + $0x9c] sm:$0xff]
    %v2754 = vld [vmem:[%s2726 + $0xa4] sm:$0xf]
    %v2755 = vld [vmem:[%s2726 + $0xa8] sm:$0xff]
    %v2756 = vld [vmem:[%s2726 + $0xb0] sm:$0xf]
    %v2757 = vld [vmem:[%s2726 + $0xb4] sm:$0xff]
    %v2758 = vld [vmem:[%s2726 + $0xbc] sm:$0xf]
    %v2759 = vld [vmem:[%s2726 + $0xc0] sm:$0xff]
    %v2760 = vld [vmem:[%s2726 + $0xc8] sm:$0xf]
    %v2761 = vld [vmem:[%s2726 + $0xcc] sm:$0xff]
    %v2762 = vld [vmem:[%s2726 + $0xd4] sm:$0xf]
    %v2763 = vld [vmem:[%s2726 + $0xd8] sm:$0xff]
    %v2764 = vld [vmem:[%s2726 + $0xe0] sm:$0xf]
    %v2765 = vld [vmem:[%s2726 + $0xe4] sm:$0xff]
    %v2766 = vld [vmem:[%s2726 + $0xec] sm:$0xf]
    %v2767 = vld [vmem:[%s2726 + $0xf0] sm:$0xff]
    %v2768 = vld [vmem:[%s2726 + $0xf8] sm:$0xf]
    %v2769 = vld [vmem:[%s2726 + $0xfc] sm:$0xff]
    %v2770 = vld [vmem:[%s2726 + $0x104] sm:$0xf]
    %v2771 = vld [vmem:[%s2726 + $0x108] sm:$0xff]
    %v2772 = vld [vmem:[%s2726 + $0x110] sm:$0xf]
    %v2773 = vld [vmem:[%s2726 + $0x114] sm:$0xff]
    %v2774 = vld [vmem:[%s2726 + $0x11c] sm:$0xf]
    %v2775 = vld [vmem:[%s2726 + $0x120] sm:$0xff]
    %v2776 = vld [vmem:[%s2726 + $0x128] sm:$0xf]
    %v2777 = vld [vmem:[%s2726 + $0x12c] sm:$0xff]
    %v2778 = vld [vmem:[%s2726 + $0x134] sm:$0xf]
    %v2779 = vld [vmem:[%s2726 + $0x138] sm:$0xff]
    %v2780 = vld [vmem:[%s2726 + $0x140] sm:$0xf]
    %v2781 = vld [vmem:[%s2726 + $0x144] sm:$0xff]
    %v2782 = vld [vmem:[%s2726 + $0x14c] sm:$0xf]
    %v2783 = vld [vmem:[%s2726 + $0x150] sm:$0xff]
    %v2784 = vld [vmem:[%s2726 + $0x158] sm:$0xf]
    %v2785 = vld [vmem:[%s2726 + $0x15c] sm:$0xff]
    %v2786 = vld [vmem:[%s2726 + $0x164] sm:$0xf]
    %v2787 = vld [vmem:[%s2726 + $0x168] sm:$0xff]
    %v2788 = vld [vmem:[%s2726 + $0x170] sm:$0xf]
    %v2789 = vld [vmem:[%s2726 + $0x174] sm:$0xff]
    %v2790 = vld [vmem:[%s2726 + $0x17c] sm:$0xf]
    %v2791 = vld [vmem:[%s2726 + $0x180] sm:$0xff]
    %v2792 = vld [vmem:[%s2726 + $0x188] sm:$0xf]
    %v2793 = vld [vmem:[%s2726 + $0x18c] sm:$0xff]
    %v2794 = vld [vmem:[%s2726 + $0x194] sm:$0xf]
    %v2795 = vld [vmem:[%s2726 + $0x198] sm:$0xff]
    %v2796 = vld [vmem:[%s2726 + $0x1a0] sm:$0xf]
    %v2797 = vld [vmem:[%s2726 + $0x1a4] sm:$0xff]
    %v2798 = vld [vmem:[%s2726 + $0x1ac] sm:$0xf]
    %v2799 = vld [vmem:[%s2726 + $0x1b0] sm:$0xff]
    %v2800 = vld [vmem:[%s2726 + $0x1b8] sm:$0xf]
    %v2801 = vld [vmem:[%s2726 + $0x1bc] sm:$0xff]
    %v2802 = vld [vmem:[%s2726 + $0x1c4] sm:$0xf]
    %v2803 = vld [vmem:[%s2726 + $0x1c8] sm:$0xff]
    %v2804 = vld [vmem:[%s2726 + $0x1d0] sm:$0xf]
    %v2805 = vld [vmem:[%s2726 + $0x1d4] sm:$0xff]
    %v2806 = vld [vmem:[%s2726 + $0x1dc] sm:$0xf]
    %s2807 = scalar_lea.vmem [#allocation5], 960
    %v2808 = vld [vmem:[%s2807] sm:$0xff]
    %v2809 = vld [vmem:[%s2807 + $0x8] sm:$0xf]
    %v2810 = vld [vmem:[%s2807 + $0xc] sm:$0xff]
    %v2811 = vld [vmem:[%s2807 + $0x14] sm:$0xf]
    %v2812 = vld [vmem:[%s2807 + $0x18] sm:$0xff]
    %v2813 = vld [vmem:[%s2807 + $0x20] sm:$0xf]
    %v2814 = vld [vmem:[%s2807 + $0x24] sm:$0xff]
    %v2815 = vld [vmem:[%s2807 + $0x2c] sm:$0xf]
    %v2816 = vld [vmem:[%s2807 + $0x30] sm:$0xff]
    %v2817 = vld [vmem:[%s2807 + $0x38] sm:$0xf]
    %v2818 = vld [vmem:[%s2807 + $0x3c] sm:$0xff]
    %v2819 = vld [vmem:[%s2807 + $0x44] sm:$0xf]
    %v2820 = vld [vmem:[%s2807 + $0x48] sm:$0xff]
    %v2821 = vld [vmem:[%s2807 + $0x50] sm:$0xf]
    %v2822 = vld [vmem:[%s2807 + $0x54] sm:$0xff]
    %v2823 = vld [vmem:[%s2807 + $0x5c] sm:$0xf]
    %v2824 = vld [vmem:[%s2807 + $0x60] sm:$0xff]
    %v2825 = vld [vmem:[%s2807 + $0x68] sm:$0xf]
    %v2826 = vld [vmem:[%s2807 + $0x6c] sm:$0xff]
    %v2827 = vld [vmem:[%s2807 + $0x74] sm:$0xf]
    %v2828 = vld [vmem:[%s2807 + $0x78] sm:$0xff]
    %v2829 = vld [vmem:[%s2807 + $0x80] sm:$0xf]
    %v2830 = vld [vmem:[%s2807 + $0x84] sm:$0xff]
    %v2831 = vld [vmem:[%s2807 + $0x8c] sm:$0xf]
    %v2832 = vld [vmem:[%s2807 + $0x90] sm:$0xff]
    %v2833 = vld [vmem:[%s2807 + $0x98] sm:$0xf]
    %v2834 = vld [vmem:[%s2807 + $0x9c] sm:$0xff]
    %v2835 = vld [vmem:[%s2807 + $0xa4] sm:$0xf]
    %v2836 = vld [vmem:[%s2807 + $0xa8] sm:$0xff]
    %v2837 = vld [vmem:[%s2807 + $0xb0] sm:$0xf]
    %v2838 = vld [vmem:[%s2807 + $0xb4] sm:$0xff]
    %v2839 = vld [vmem:[%s2807 + $0xbc] sm:$0xf]
    %v2840 = vld [vmem:[%s2807 + $0xc0] sm:$0xff]
    %v2841 = vld [vmem:[%s2807 + $0xc8] sm:$0xf]
    %v2842 = vld [vmem:[%s2807 + $0xcc] sm:$0xff]
    %v2843 = vld [vmem:[%s2807 + $0xd4] sm:$0xf]
    %v2844 = vld [vmem:[%s2807 + $0xd8] sm:$0xff]
    %v2845 = vld [vmem:[%s2807 + $0xe0] sm:$0xf]
    %v2846 = vld [vmem:[%s2807 + $0xe4] sm:$0xff]
    %v2847 = vld [vmem:[%s2807 + $0xec] sm:$0xf]
    %v2848 = vld [vmem:[%s2807 + $0xf0] sm:$0xff]
    %v2849 = vld [vmem:[%s2807 + $0xf8] sm:$0xf]
    %v2850 = vld [vmem:[%s2807 + $0xfc] sm:$0xff]
    %v2851 = vld [vmem:[%s2807 + $0x104] sm:$0xf]
    %v2852 = vld [vmem:[%s2807 + $0x108] sm:$0xff]
    %v2853 = vld [vmem:[%s2807 + $0x110] sm:$0xf]
    %v2854 = vld [vmem:[%s2807 + $0x114] sm:$0xff]
    %v2855 = vld [vmem:[%s2807 + $0x11c] sm:$0xf]
    %v2856 = vld [vmem:[%s2807 + $0x120] sm:$0xff]
    %v2857 = vld [vmem:[%s2807 + $0x128] sm:$0xf]
    %v2858 = vld [vmem:[%s2807 + $0x12c] sm:$0xff]
    %v2859 = vld [vmem:[%s2807 + $0x134] sm:$0xf]
    %v2860 = vld [vmem:[%s2807 + $0x138] sm:$0xff]
    %v2861 = vld [vmem:[%s2807 + $0x140] sm:$0xf]
    %v2862 = vld [vmem:[%s2807 + $0x144] sm:$0xff]
    %v2863 = vld [vmem:[%s2807 + $0x14c] sm:$0xf]
    %v2864 = vld [vmem:[%s2807 + $0x150] sm:$0xff]
    %v2865 = vld [vmem:[%s2807 + $0x158] sm:$0xf]
    %v2866 = vld [vmem:[%s2807 + $0x15c] sm:$0xff]
    %v2867 = vld [vmem:[%s2807 + $0x164] sm:$0xf]
    %v2868 = vld [vmem:[%s2807 + $0x168] sm:$0xff]
    %v2869 = vld [vmem:[%s2807 + $0x170] sm:$0xf]
    %v2870 = vld [vmem:[%s2807 + $0x174] sm:$0xff]
    %v2871 = vld [vmem:[%s2807 + $0x17c] sm:$0xf]
    %v2872 = vld [vmem:[%s2807 + $0x180] sm:$0xff]
    %v2873 = vld [vmem:[%s2807 + $0x188] sm:$0xf]
    %v2874 = vld [vmem:[%s2807 + $0x18c] sm:$0xff]
    %v2875 = vld [vmem:[%s2807 + $0x194] sm:$0xf]
    %v2876 = vld [vmem:[%s2807 + $0x198] sm:$0xff]
    %v2877 = vld [vmem:[%s2807 + $0x1a0] sm:$0xf]
    %v2878 = vld [vmem:[%s2807 + $0x1a4] sm:$0xff]
    %v2879 = vld [vmem:[%s2807 + $0x1ac] sm:$0xf]
    %v2880 = vld [vmem:[%s2807 + $0x1b0] sm:$0xff]
    %v2881 = vld [vmem:[%s2807 + $0x1b8] sm:$0xf]
    %v2882 = vld [vmem:[%s2807 + $0x1bc] sm:$0xff]
    %v2883 = vld [vmem:[%s2807 + $0x1c4] sm:$0xf]
    %v2884 = vld [vmem:[%s2807 + $0x1c8] sm:$0xff]
    %v2885 = vld [vmem:[%s2807 + $0x1d0] sm:$0xf]
    %v2886 = vld [vmem:[%s2807 + $0x1d4] sm:$0xff]
    %v2887 = vld [vmem:[%s2807 + $0x1dc] sm:$0xf]
    %v2888 = vld [vmem:[%s4] sm:$0x7]
    %v2889 = vld [vmem:[#allocation2] sm:$0xff]
    %v2890 = vld [vmem:[#allocation2 + $0x8] sm:$0xf]
    %v2891 = vld [vmem:[%s669] sm:$0xff]
    %v2892 = vld [vmem:[%s669 + $0x8] sm:$0xf]
    %v2895 = vunpack.c.l.b16 %v2891
    %v2896 = vunpack.c.h.b16 %v2891
    %v2897 = vunpack.c.l.b16 %v2892
    %v2898 = vpack.c.b16 %v2895, %v2895
    %v2899 = vpack.c.b16 %v2896, %v2896
    %v2900 = vpack.c.b16 %v2897, %v2897
    %v2983 = vunpack.c.l.b16 %v2727
    %v2984 = vunpack.c.h.b16 %v2727
    %v2985 = vunpack.c.l.b16 %v2728
    %v2986 = vunpack.c.l.b16 %v2729
    %v2987 = vunpack.c.h.b16 %v2729
    %v2988 = vunpack.c.l.b16 %v2730
    %v2989 = vunpack.c.l.b16 %v2731
    %v2990 = vunpack.c.h.b16 %v2731
    %v2991 = vunpack.c.l.b16 %v2732
    %v2992 = vunpack.c.l.b16 %v2733
    %v2993 = vunpack.c.h.b16 %v2733
    %v2994 = vunpack.c.l.b16 %v2734
    %v2995 = vunpack.c.l.b16 %v2735
    %v2996 = vunpack.c.h.b16 %v2735
    %v2997 = vunpack.c.l.b16 %v2736
    %v2998 = vunpack.c.l.b16 %v2737
    %v2999 = vunpack.c.h.b16 %v2737
    %v3000 = vunpack.c.l.b16 %v2738
    %v3001 = vunpack.c.l.b16 %v2739
    %v3002 = vunpack.c.h.b16 %v2739
    %v3003 = vunpack.c.l.b16 %v2740
    %v3004 = vunpack.c.l.b16 %v2741
    %v3005 = vunpack.c.h.b16 %v2741
    %v3006 = vunpack.c.l.b16 %v2742
    %v3007 = vunpack.c.l.b16 %v2743
    %v3008 = vunpack.c.h.b16 %v2743
    %v3009 = vunpack.c.l.b16 %v2744
    %v3010 = vunpack.c.l.b16 %v2745
    %v3011 = vunpack.c.h.b16 %v2745
    %v3012 = vunpack.c.l.b16 %v2746
    %v3013 = vunpack.c.l.b16 %v2747
    %v3014 = vunpack.c.h.b16 %v2747
    %v3015 = vunpack.c.l.b16 %v2748
    %v3016 = vunpack.c.l.b16 %v2749
    %v3017 = vunpack.c.h.b16 %v2749
    %v3018 = vunpack.c.l.b16 %v2750
    %v3019 = vunpack.c.l.b16 %v2751
    %v3020 = vunpack.c.h.b16 %v2751
    %v3021 = vunpack.c.l.b16 %v2752
    %v3022 = vunpack.c.l.b16 %v2753
    %v3023 = vunpack.c.h.b16 %v2753
    %v3024 = vunpack.c.l.b16 %v2754
    %v3025 = vunpack.c.l.b16 %v2755
    %v3026 = vunpack.c.h.b16 %v2755
    %v3027 = vunpack.c.l.b16 %v2756
    %v3028 = vunpack.c.l.b16 %v2757
    %v3029 = vunpack.c.h.b16 %v2757
    %v3030 = vunpack.c.l.b16 %v2758
    %v3031 = vunpack.c.l.b16 %v2759
    %v3032 = vunpack.c.h.b16 %v2759
    %v3033 = vunpack.c.l.b16 %v2760
    %v3034 = vunpack.c.l.b16 %v2761
    %v3035 = vunpack.c.h.b16 %v2761
    %v3036 = vunpack.c.l.b16 %v2762
    %v3037 = vunpack.c.l.b16 %v2763
    %v3038 = vunpack.c.h.b16 %v2763
    %v3039 = vunpack.c.l.b16 %v2764
    %v3040 = vunpack.c.l.b16 %v2765
    %v3041 = vunpack.c.h.b16 %v2765
    %v3042 = vunpack.c.l.b16 %v2766
    %v3043 = vunpack.c.l.b16 %v2767
    %v3044 = vunpack.c.h.b16 %v2767
    %v3045 = vunpack.c.l.b16 %v2768
    %v3046 = vunpack.c.l.b16 %v2769
    %v3047 = vunpack.c.h.b16 %v2769
    %v3048 = vunpack.c.l.b16 %v2770
    %v3049 = vunpack.c.l.b16 %v2771
    %v3050 = vunpack.c.h.b16 %v2771
    %v3051 = vunpack.c.l.b16 %v2772
    %v3052 = vunpack.c.l.b16 %v2773
    %v3053 = vunpack.c.h.b16 %v2773
    %v3054 = vunpack.c.l.b16 %v2774
    %v3055 = vunpack.c.l.b16 %v2775
    %v3056 = vunpack.c.h.b16 %v2775
    %v3057 = vunpack.c.l.b16 %v2776
    %v3058 = vunpack.c.l.b16 %v2777
    %v3059 = vunpack.c.h.b16 %v2777
    %v3060 = vunpack.c.l.b16 %v2778
    %v3061 = vunpack.c.l.b16 %v2779
    %v3062 = vunpack.c.h.b16 %v2779
    %v3063 = vunpack.c.l.b16 %v2780
    %v3064 = vunpack.c.l.b16 %v2781
    %v3065 = vunpack.c.h.b16 %v2781
    %v3066 = vunpack.c.l.b16 %v2782
    %v3067 = vunpack.c.l.b16 %v2783
    %v3068 = vunpack.c.h.b16 %v2783
    %v3069 = vunpack.c.l.b16 %v2784
    %v3070 = vunpack.c.l.b16 %v2785
    %v3071 = vunpack.c.h.b16 %v2785
    %v3072 = vunpack.c.l.b16 %v2786
    %v3073 = vunpack.c.l.b16 %v2787
    %v3074 = vunpack.c.h.b16 %v2787
    %v3075 = vunpack.c.l.b16 %v2788
    %v3076 = vunpack.c.l.b16 %v2789
    %v3077 = vunpack.c.h.b16 %v2789
    %v3078 = vunpack.c.l.b16 %v2790
    %v3079 = vunpack.c.l.b16 %v2791
    %v3080 = vunpack.c.h.b16 %v2791
    %v3081 = vunpack.c.l.b16 %v2792
    %v3082 = vunpack.c.l.b16 %v2793
    %v3083 = vunpack.c.h.b16 %v2793
    %v3084 = vunpack.c.l.b16 %v2794
    %v3085 = vunpack.c.l.b16 %v2795
    %v3086 = vunpack.c.h.b16 %v2795
    %v3087 = vunpack.c.l.b16 %v2796
    %v3088 = vunpack.c.l.b16 %v2797
    %v3089 = vunpack.c.h.b16 %v2797
    %v3090 = vunpack.c.l.b16 %v2798
    %v3091 = vunpack.c.l.b16 %v2799
    %v3092 = vunpack.c.h.b16 %v2799
    %v3093 = vunpack.c.l.b16 %v2800
    %v3094 = vunpack.c.l.b16 %v2801
    %v3095 = vunpack.c.h.b16 %v2801
    %v3096 = vunpack.c.l.b16 %v2802
    %v3097 = vunpack.c.l.b16 %v2803
    %v3098 = vunpack.c.h.b16 %v2803
    %v3099 = vunpack.c.l.b16 %v2804
    %v3100 = vunpack.c.l.b16 %v2805
    %v3101 = vunpack.c.h.b16 %v2805
    %v3102 = vunpack.c.l.b16 %v2806
    %v3103 = vpack.c.b16 %v2986, %v2983
    %v3104 = vpack.c.b16 %v2987, %v2984
    %v3105 = vpack.c.b16 %v2988, %v2985
    %v3106 = vpack.c.b16 %v2992, %v2989
    %v3107 = vpack.c.b16 %v2993, %v2990
    %v3108 = vpack.c.b16 %v2994, %v2991
    %v3109 = vpack.c.b16 %v2998, %v2995
    %v3110 = vpack.c.b16 %v2999, %v2996
    %v3111 = vpack.c.b16 %v3000, %v2997
    %v3112 = vpack.c.b16 %v3004, %v3001
    %v3113 = vpack.c.b16 %v3005, %v3002
    %v3114 = vpack.c.b16 %v3006, %v3003
    %v3115 = vpack.c.b16 %v3010, %v3007
    %v3116 = vpack.c.b16 %v3011, %v3008
    %v3117 = vpack.c.b16 %v3012, %v3009
    %v3118 = vpack.c.b16 %v3016, %v3013
    %v3119 = vpack.c.b16 %v3017, %v3014
    %v3120 = vpack.c.b16 %v3018, %v3015
    %v3121 = vpack.c.b16 %v3022, %v3019
    %v3122 = vpack.c.b16 %v3023, %v3020
    %v3123 = vpack.c.b16 %v3024, %v3021
    %v3124 = vpack.c.b16 %v3028, %v3025
    %v3125 = vpack.c.b16 %v3029, %v3026
    %v3126 = vpack.c.b16 %v3030, %v3027
    %v3127 = vpack.c.b16 %v3034, %v3031
    %v3128 = vpack.c.b16 %v3035, %v3032
    %v3129 = vpack.c.b16 %v3036, %v3033
    %v3130 = vpack.c.b16 %v3040, %v3037
    %v3131 = vpack.c.b16 %v3041, %v3038
    %v3132 = vpack.c.b16 %v3042, %v3039
    %v3133 = vpack.c.b16 %v3046, %v3043
    %v3134 = vpack.c.b16 %v3047, %v3044
    %v3135 = vpack.c.b16 %v3048, %v3045
    %v3136 = vpack.c.b16 %v3052, %v3049
    %v3137 = vpack.c.b16 %v3053, %v3050
    %v3138 = vpack.c.b16 %v3054, %v3051
    %v3139 = vpack.c.b16 %v3058, %v3055
    %v3140 = vpack.c.b16 %v3059, %v3056
    %v3141 = vpack.c.b16 %v3060, %v3057
    %v3142 = vpack.c.b16 %v3064, %v3061
    %v3143 = vpack.c.b16 %v3065, %v3062
    %v3144 = vpack.c.b16 %v3066, %v3063
    %v3145 = vpack.c.b16 %v3070, %v3067
    %v3146 = vpack.c.b16 %v3071, %v3068
    %v3147 = vpack.c.b16 %v3072, %v3069
    %v3148 = vpack.c.b16 %v3076, %v3073
    %v3149 = vpack.c.b16 %v3077, %v3074
    %v3150 = vpack.c.b16 %v3078, %v3075
    %v3151 = vpack.c.b16 %v3082, %v3079
    %v3152 = vpack.c.b16 %v3083, %v3080
    %v3153 = vpack.c.b16 %v3084, %v3081
    %v3154 = vpack.c.b16 %v3088, %v3085
    %v3155 = vpack.c.b16 %v3089, %v3086
    %v3156 = vpack.c.b16 %v3090, %v3087
    %v3157 = vpack.c.b16 %v3094, %v3091
    %v3158 = vpack.c.b16 %v3095, %v3092
    %v3159 = vpack.c.b16 %v3096, %v3093
    %v3160 = vpack.c.b16 %v3100, %v3097
    %v3161 = vpack.c.b16 %v3101, %v3098
    %v3162 = vpack.c.b16 %v3102, %v3099
    %vm3223 = vcmask 523264
    %v3225 = vsel %vm3223, %v2900, 0
    %3227 = vmatprep.subr.bf16.mxu0 %v3104
    %3228 = vmatpush1.bf16.msra.mxu0 %v3103
    %3229 = vmatprep.subr.bf16.mxu0 %v3107
    %3230 = vmatpush1.bf16.msra.mxu0 %v3106
    %3231 = vmatprep.subr.bf16.mxu0 %v3110
    %3232 = vmatpush1.bf16.msra.mxu0 %v3109
    %3233 = vmatprep.subr.bf16.mxu0 %v3113
    %3234 = vmatpush1.bf16.msra.mxu0 %v3112
    %3235 = vmatprep.subr.bf16.mxu0 %v3116
    %3236 = vmatpush1.bf16.msra.mxu0 %v3115
    %3237 = vmatprep.subr.bf16.mxu0 %v3119
    %3238 = vmatpush1.bf16.msra.mxu0 %v3118
    %3239 = vmatprep.subr.bf16.mxu0 %v3122
    %3240 = vmatpush1.bf16.msra.mxu0 %v3121
    %3241 = vmatprep.subr.bf16.mxu0 %v3125
    %3242 = vmatpush1.bf16.msra.mxu0 %v3124
    %3243 = vmatprep.subr.bf16.mxu0 %v3128
    %3244 = vmatpush1.bf16.msra.mxu0 %v3127
    %3245 = vmatprep.subr.bf16.mxu0 %v3131
    %3246 = vmatpush1.bf16.msra.mxu0 %v3130
    %3247 = vmatprep.subr.bf16.mxu0 %v3134
    %3248 = vmatpush1.bf16.msra.mxu0 %v3133
    %3249 = vmatprep.subr.bf16.mxu0 %v3137
    %3250 = vmatpush1.bf16.msra.mxu0 %v3136
    %3251 = vmatprep.subr.bf16.mxu0 %v3140
    %3252 = vmatpush1.bf16.msra.mxu0 %v3139
    %3253 = vmatprep.subr.bf16.mxu0 %v3143
    %3254 = vmatpush1.bf16.msra.mxu0 %v3142
    %3255 = vmatprep.subr.bf16.mxu0 %v3146
    %3256 = vmatpush1.bf16.msra.mxu0 %v3145
    %3257 = vmatprep.subr.bf16.mxu0 %v3149
    %3258 = vmatpush1.bf16.msra.mxu0 %v3148
    %3259 = vmatprep.mubr.bf16.mxu0 %v2899
    %3260 = vmatmul.mubr.bf16.gmra.mrb[0].mxu0 %v2898
    %v3261 = vpop.f32.mrb[0].mxu0
    %v3262 = vadd.f32 0.0, %v3261
    %v3263 = vpop.f32.mrb[0].mxu0
    %v3264 = vadd.f32 0.0, %v3263
    %v3265 = vpop.f32.mrb[0].mxu0
    %v3266 = vpop.f32.mrb[0].mxu0
    %3267 = vdwg.mxu0
    %3268 = vmatprep.subr.bf16.mxu0 %v3152
    %3269 = vmatpush1.bf16.msra.mxu0 %v3151
    %3270 = vmatprep.subr.bf16.mxu0 %v3155
    %3271 = vmatpush1.bf16.msra.mxu0 %v3154
    %3272 = vmatprep.subr.bf16.mxu0 %v3158
    %3273 = vmatpush1.bf16.msra.mxu0 %v3157
    %3274 = vmatprep.subr.bf16.mxu0 %v3161
    %3275 = vmatpush1.bf16.msra.mxu0 %v3160
    %3276 = vmatprep.subr.bf16.mxu0 0
    %3277 = vmatpush1.bf16.msra.mxu0 0
    %3278 = vmatprep.subr.bf16.mxu0 0
    %3279 = vmatpush1.bf16.msra.mxu0 0
    %3280 = vmatprep.subr.bf16.mxu0 0
    %3281 = vmatpush1.bf16.msra.mxu0 0
    %3282 = vmatprep.subr.bf16.mxu0 0
    %3283 = vmatpush1.bf16.msra.mxu0 0
    %3284 = vmatprep.subr.bf16.mxu0 0
    %3285 = vmatpush1.bf16.msra.mxu0 0
    %3286 = vmatprep.subr.bf16.mxu0 0
    %3287 = vmatpush1.bf16.msra.mxu0 0
    %3288 = vmatprep.subr.bf16.mxu0 0
    %3289 = vmatpush1.bf16.msra.mxu0 0
    %3290 = vmatprep.subr.bf16.mxu0 0
    %3291 = vmatpush1.bf16.msra.mxu0 0
    %3292 = vmatprep.subr.bf16.mxu0 0
    %3293 = vmatpush1.bf16.msra.mxu0 0
    %3294 = vmatprep.subr.bf16.mxu0 0
    %3295 = vmatpush1.bf16.msra.mxu0 0
    %3296 = vmatprep.subr.bf16.mxu0 0
    %3297 = vmatpush1.bf16.msra.mxu0 0
    %3298 = vmatprep.subr.bf16.mxu0 0
    %3299 = vmatpush1.bf16.msra.mxu0 0
    %3300 = vmatprep.mubr.bf16.mxu0 0
    %3301 = vmatmul.mubr.bf16.gmra.mrb[0].mxu0 %v3225
    %v3302 = vpop.f32.mrb[0].mxu0
    %v3303 = vadd.f32 %v3262, %v3302
    %v3304 = vpop.f32.mrb[0].mxu0
    %v3305 = vadd.f32 %v3264, %v3304
    %v3306 = vpop.f32.mrb[0].mxu0
    %v3307 = vpop.f32.mrb[0].mxu0
    %3308 = vdwg.mxu0
    %3309 = vmatprep.subr.bf16.mxu0 0
    %3310 = vmatpush1.bf16.msra.mxu0 %v3105
    %3311 = vmatprep.subr.bf16.mxu0 0
    %3312 = vmatpush1.bf16.msra.mxu0 %v3108
    %3313 = vmatprep.subr.bf16.mxu0 0
    %3314 = vmatpush1.bf16.msra.mxu0 %v3111
    %3315 = vmatprep.subr.bf16.mxu0 0
    %3316 = vmatpush1.bf16.msra.mxu0 %v3114
    %3317 = vmatprep.subr.bf16.mxu0 0
    %3318 = vmatpush1.bf16.msra.mxu0 %v3117
    %3319 = vmatprep.subr.bf16.mxu0 0
    %3320 = vmatpush1.bf16.msra.mxu0 %v3120
    %3321 = vmatprep.subr.bf16.mxu0 0
    %3322 = vmatpush1.bf16.msra.mxu0 %v3123
    %3323 = vmatprep.subr.bf16.mxu0 0
    %3324 = vmatpush1.bf16.msra.mxu0 %v3126
    %3325 = vmatprep.subr.bf16.mxu0 0
    %3326 = vmatpush1.bf16.msra.mxu0 %v3129
    %3327 = vmatprep.subr.bf16.mxu0 0
    %3328 = vmatpush1.bf16.msra.mxu0 %v3132
    %3329 = vmatprep.subr.bf16.mxu0 0
    %3330 = vmatpush1.bf16.msra.mxu0 %v3135
    %3331 = vmatprep.subr.bf16.mxu0 0
    %3332 = vmatpush1.bf16.msra.mxu0 %v3138
    %3333 = vmatprep.subr.bf16.mxu0 0
    %3334 = vmatpush1.bf16.msra.mxu0 %v3141
    %3335 = vmatprep.subr.bf16.mxu0 0
    %3336 = vmatpush1.bf16.msra.mxu0 %v3144
    %3337 = vmatprep.subr.bf16.mxu0 0
    %3338 = vmatpush1.bf16.msra.mxu0 %v3147
    %3339 = vmatprep.subr.bf16.mxu0 0
    %3340 = vmatpush1.bf16.msra.mxu0 %v3150
    %3341 = vmatprep.mubr.bf16.mxu0 %v2899
    %3342 = vmatmul.mubr.bf16.gmra.mrb[0].mxu0 %v2898
    %v3343 = vpop.f32.mrb[0].mxu0
    %v3344 = vadd.f32 0.0, %v3343
    %v3345 = vpop.f32.mrb[0].mxu0
    %v3346 = vpop.f32.mrb[0].mxu0
    %v3347 = vpop.f32.mrb[0].mxu0
    %3348 = vdwg.mxu0
    %3349 = vmatprep.subr.bf16.mxu0 0
    %3350 = vmatpush1.bf16.msra.mxu0 %v3153
    %3351 = vmatprep.subr.bf16.mxu0 0
    %3352 = vmatpush1.bf16.msra.mxu0 %v3156
    %3353 = vmatprep.subr.bf16.mxu0 0
    %3354 = vmatpush1.bf16.msra.mxu0 %v3159
    %3355 = vmatprep.subr.bf16.mxu0 0
    %3356 = vmatpush1.bf16.msra.mxu0 %v3162
    %3357 = vmatprep.subr.bf16.mxu0 0
    %3358 = vmatpush1.bf16.msra.mxu0 0
    %3359 = vmatprep.subr.bf16.mxu0 0
    %3360 = vmatpush1.bf16.msra.mxu0 0
    %3361 = vmatprep.subr.bf16.mxu0 0
    %3362 = vmatpush1.bf16.msra.mxu0 0
    %3363 = vmatprep.subr.bf16.mxu0 0
    %3364 = vmatpush1.bf16.msra.mxu0 0
    %3365 = vmatprep.subr.bf16.mxu0 0
    %3366 = vmatpush1.bf16.msra.mxu0 0
    %3367 = vmatprep.subr.bf16.mxu0 0
    %3368 = vmatpush1.bf16.msra.mxu0 0
    %3369 = vmatprep.subr.bf16.mxu0 0
    %3370 = vmatpush1.bf16.msra.mxu0 0
    %3371 = vmatprep.subr.bf16.mxu0 0
    %3372 = vmatpush1.bf16.msra.mxu0 0
    %3373 = vmatprep.subr.bf16.mxu0 0
    %3374 = vmatpush1.bf16.msra.mxu0 0
    %3375 = vmatprep.subr.bf16.mxu0 0
    %3376 = vmatpush1.bf16.msra.mxu0 0
    %3377 = vmatprep.subr.bf16.mxu0 0
    %3378 = vmatpush1.bf16.msra.mxu0 0
    %3379 = vmatprep.subr.bf16.mxu0 0
    %3380 = vmatpush1.bf16.msra.mxu0 0
    %3381 = vmatprep.mubr.bf16.mxu0 0
    %3382 = vmatmul.mubr.bf16.gmra.mrb[0].mxu0 %v3225
    %v3383 = vpop.f32.mrb[0].mxu0
    %v3384 = vadd.f32 %v3344, %v3383
    %v3385 = vpop.f32.mrb[0].mxu0
    %v3386 = vpop.f32.mrb[0].mxu0
    %v3387 = vpop.f32.mrb[0].mxu0
    %3388 = vdwg.mxu0
    %v3391 = vunpack.c.l.b16 %v2889
    %v3392 = vunpack.c.h.b16 %v2889
    %v3393 = vunpack.c.l.b16 %v2890
    %v3394 = vpack.c.b16 %v3391, %v3391
    %v3395 = vpack.c.b16 %v3392, %v3392
    %v3396 = vpack.c.b16 %v3393, %v3393
    %v3479 = vunpack.c.l.b16 %v2646
    %v3480 = vunpack.c.h.b16 %v2646
    %v3481 = vunpack.c.l.b16 %v2647
    %v3482 = vunpack.c.l.b16 %v2648
    %v3483 = vunpack.c.h.b16 %v2648
    %v3484 = vunpack.c.l.b16 %v2649
    %v3485 = vunpack.c.l.b16 %v2650
    %v3486 = vunpack.c.h.b16 %v2650
    %v3487 = vunpack.c.l.b16 %v2651
    %v3488 = vunpack.c.l.b16 %v2652
    %v3489 = vunpack.c.h.b16 %v2652
    %v3490 = vunpack.c.l.b16 %v2653
    %v3491 = vunpack.c.l.b16 %v2654
    %v3492 = vunpack.c.h.b16 %v2654
    %v3493 = vunpack.c.l.b16 %v2655
    %v3494 = vunpack.c.l.b16 %v2656
    %v3495 = vunpack.c.h.b16 %v2656
    %v3496 = vunpack.c.l.b16 %v2657
    %v3497 = vunpack.c.l.b16 %v2658
    %v3498 = vunpack.c.h.b16 %v2658
    %v3499 = vunpack.c.l.b16 %v2659
    %v3500 = vunpack.c.l.b16 %v2660
    %v3501 = vunpack.c.h.b16 %v2660
    %v3502 = vunpack.c.l.b16 %v2661
    %v3503 = vunpack.c.l.b16 %v2662
    %v3504 = vunpack.c.h.b16 %v2662
    %v3505 = vunpack.c.l.b16 %v2663
    %v3506 = vunpack.c.l.b16 %v2664
    %v3507 = vunpack.c.h.b16 %v2664
    %v3508 = vunpack.c.l.b16 %v2665
    %v3509 = vunpack.c.l.b16 %v2666
    %v3510 = vunpack.c.h.b16 %v2666
    %v3511 = vunpack.c.l.b16 %v2667
    %v3512 = vunpack.c.l.b16 %v2668
    %v3513 = vunpack.c.h.b16 %v2668
    %v3514 = vunpack.c.l.b16 %v2669
    %v3515 = vunpack.c.l.b16 %v2670
    %v3516 = vunpack.c.h.b16 %v2670
    %v3517 = vunpack.c.l.b16 %v2671
    %v3518 = vunpack.c.l.b16 %v2672
    %v3519 = vunpack.c.h.b16 %v2672
    %v3520 = vunpack.c.l.b16 %v2673
    %v3521 = vunpack.c.l.b16 %v2674
    %v3522 = vunpack.c.h.b16 %v2674
    %v3523 = vunpack.c.l.b16 %v2675
    %v3524 = vunpack.c.l.b16 %v2676
    %v3525 = vunpack.c.h.b16 %v2676
    %v3526 = vunpack.c.l.b16 %v2677
    %v3527 = vunpack.c.l.b16 %v2678
    %v3528 = vunpack.c.h.b16 %v2678
    %v3529 = vunpack.c.l.b16 %v2679
    %v3530 = vunpack.c.l.b16 %v2680
    %v3531 = vunpack.c.h.b16 %v2680
    %v3532 = vunpack.c.l.b16 %v2681
    %v3533 = vunpack.c.l.b16 %v2682
    %v3534 = vunpack.c.h.b16 %v2682
    %v3535 = vunpack.c.l.b16 %v2683
    %v3536 = vunpack.c.l.b16 %v2684
    %v3537 = vunpack.c.h.b16 %v2684
    %v3538 = vunpack.c.l.b16 %v2685
    %v3539 = vunpack.c.l.b16 %v2686
    %v3540 = vunpack.c.h.b16 %v2686
    %v3541 = vunpack.c.l.b16 %v2687
    %v3542 = vunpack.c.l.b16 %v2688
    %v3543 = vunpack.c.h.b16 %v2688
    %v3544 = vunpack.c.l.b16 %v2689
    %v3545 = vunpack.c.l.b16 %v2690
    %v3546 = vunpack.c.h.b16 %v2690
    %v3547 = vunpack.c.l.b16 %v2691
    %v3548 = vunpack.c.l.b16 %v2692
    %v3549 = vunpack.c.h.b16 %v2692
    %v3550 = vunpack.c.l.b16 %v2693
    %v3551 = vunpack.c.l.b16 %v2694
    %v3552 = vunpack.c.h.b16 %v2694
    %v3553 = vunpack.c.l.b16 %v2695
    %v3554 = vunpack.c.l.b16 %v2696
    %v3555 = vunpack.c.h.b16 %v2696
    %v3556 = vunpack.c.l.b16 %v2697
    %v3557 = vunpack.c.l.b16 %v2698
    %v3558 = vunpack.c.h.b16 %v2698
    %v3559 = vunpack.c.l.b16 %v2699
    %v3560 = vunpack.c.l.b16 %v2700
    %v3561 = vunpack.c.h.b16 %v2700
    %v3562 = vunpack.c.l.b16 %v2701
    %v3563 = vunpack.c.l.b16 %v2702
    %v3564 = vunpack.c.h.b16 %v2702
    %v3565 = vunpack.c.l.b16 %v2703
    %v3566 = vunpack.c.l.b16 %v2704
    %v3567 = vunpack.c.h.b16 %v2704
    %v3568 = vunpack.c.l.b16 %v2705
    %v3569 = vunpack.c.l.b16 %v2706
    %v3570 = vunpack.c.h.b16 %v2706
    %v3571 = vunpack.c.l.b16 %v2707
    %v3572 = vunpack.c.l.b16 %v2708
    %v3573 = vunpack.c.h.b16 %v2708
    %v3574 = vunpack.c.l.b16 %v2709
    %v3575 = vunpack.c.l.b16 %v2710
    %v3576 = vunpack.c.h.b16 %v2710
    %v3577 = vunpack.c.l.b16 %v2711
    %v3578 = vunpack.c.l.b16 %v2712
    %v3579 = vunpack.c.h.b16 %v2712
    %v3580 = vunpack.c.l.b16 %v2713
    %v3581 = vunpack.c.l.b16 %v2714
    %v3582 = vunpack.c.h.b16 %v2714
    %v3583 = vunpack.c.l.b16 %v2715
    %v3584 = vunpack.c.l.b16 %v2716
    %v3585 = vunpack.c.h.b16 %v2716
    %v3586 = vunpack.c.l.b16 %v2717
    %v3587 = vunpack.c.l.b16 %v2718
    %v3588 = vunpack.c.h.b16 %v2718
    %v3589 = vunpack.c.l.b16 %v2719
    %v3590 = vunpack.c.l.b16 %v2720
    %v3591 = vunpack.c.h.b16 %v2720
    %v3592 = vunpack.c.l.b16 %v2721
    %v3593 = vunpack.c.l.b16 %v2722
    %v3594 = vunpack.c.h.b16 %v2722
    %v3595 = vunpack.c.l.b16 %v2723
    %v3596 = vunpack.c.l.b16 %v2724
    %v3597 = vunpack.c.h.b16 %v2724
    %v3598 = vunpack.c.l.b16 %v2725
    %v3599 = vpack.c.b16 %v3482, %v3479
    %v3600 = vpack.c.b16 %v3483, %v3480
    %v3601 = vpack.c.b16 %v3484, %v3481
    %v3602 = vpack.c.b16 %v3488, %v3485
    %v3603 = vpack.c.b16 %v3489, %v3486
    %v3604 = vpack.c.b16 %v3490, %v3487
    %v3605 = vpack.c.b16 %v3494, %v3491
    %v3606 = vpack.c.b16 %v3495, %v3492
    %v3607 = vpack.c.b16 %v3496, %v3493
    %v3608 = vpack.c.b16 %v3500, %v3497
    %v3609 = vpack.c.b16 %v3501, %v3498
    %v3610 = vpack.c.b16 %v3502, %v3499
    %v3611 = vpack.c.b16 %v3506, %v3503
    %v3612 = vpack.c.b16 %v3507, %v3504
    %v3613 = vpack.c.b16 %v3508, %v3505
    %v3614 = vpack.c.b16 %v3512, %v3509
    %v3615 = vpack.c.b16 %v3513, %v3510
    %v3616 = vpack.c.b16 %v3514, %v3511
    %v3617 = vpack.c.b16 %v3518, %v3515
    %v3618 = vpack.c.b16 %v3519, %v3516
    %v3619 = vpack.c.b16 %v3520, %v3517
    %v3620 = vpack.c.b16 %v3524, %v3521
    %v3621 = vpack.c.b16 %v3525, %v3522
    %v3622 = vpack.c.b16 %v3526, %v3523
    %v3623 = vpack.c.b16 %v3530, %v3527
    %v3624 = vpack.c.b16 %v3531, %v3528
    %v3625 = vpack.c.b16 %v3532, %v3529
    %v3626 = vpack.c.b16 %v3536, %v3533
    %v3627 = vpack.c.b16 %v3537, %v3534
    %v3628 = vpack.c.b16 %v3538, %v3535
    %v3629 = vpack.c.b16 %v3542, %v3539
    %v3630 = vpack.c.b16 %v3543, %v3540
    %v3631 = vpack.c.b16 %v3544, %v3541
    %v3632 = vpack.c.b16 %v3548, %v3545
    %v3633 = vpack.c.b16 %v3549, %v3546
    %v3634 = vpack.c.b16 %v3550, %v3547
    %v3635 = vpack.c.b16 %v3554, %v3551
    %v3636 = vpack.c.b16 %v3555, %v3552
    %v3637 = vpack.c.b16 %v3556, %v3553
    %v3638 = vpack.c.b16 %v3560, %v3557
    %v3639 = vpack.c.b16 %v3561, %v3558
    %v3640 = vpack.c.b16 %v3562, %v3559
    %v3641 = vpack.c.b16 %v3566, %v3563
    %v3642 = vpack.c.b16 %v3567, %v3564
    %v3643 = vpack.c.b16 %v3568, %v3565
    %v3644 = vpack.c.b16 %v3572, %v3569
    %v3645 = vpack.c.b16 %v3573, %v3570
    %v3646 = vpack.c.b16 %v3574, %v3571
    %v3647 = vpack.c.b16 %v3578, %v3575
    %v3648 = vpack.c.b16 %v3579, %v3576
    %v3649 = vpack.c.b16 %v3580, %v3577
    %v3650 = vpack.c.b16 %v3584, %v3581
    %v3651 = vpack.c.b16 %v3585, %v3582
    %v3652 = vpack.c.b16 %v3586, %v3583
    %v3653 = vpack.c.b16 %v3590, %v3587
    %v3654 = vpack.c.b16 %v3591, %v3588
    %v3655 = vpack.c.b16 %v3592, %v3589
    %v3656 = vpack.c.b16 %v3596, %v3593
    %v3657 = vpack.c.b16 %v3597, %v3594
    %v3658 = vpack.c.b16 %v3598, %v3595
    %v3720 = vsel %vm3223, %v3396, 0
    %3722 = vmatprep.subr.bf16.mxu0 %v3600
    %3723 = vmatpush1.bf16.msra.mxu0 %v3599
    %3724 = vmatprep.subr.bf16.mxu0 %v3603
    %3725 = vmatpush1.bf16.msra.mxu0 %v3602
    %3726 = vmatprep.subr.bf16.mxu0 %v3606
    %3727 = vmatpush1.bf16.msra.mxu0 %v3605
    %3728 = vmatprep.subr.bf16.mxu0 %v3609
    %3729 = vmatpush1.bf16.msra.mxu0 %v3608
    %3730 = vmatprep.subr.bf16.mxu0 %v3612
    %3731 = vmatpush1.bf16.msra.mxu0 %v3611
    %3732 = vmatprep.subr.bf16.mxu0 %v3615
    %3733 = vmatpush1.bf16.msra.mxu0 %v3614
    %3734 = vmatprep.subr.bf16.mxu0 %v3618
    %3735 = vmatpush1.bf16.msra.mxu0 %v3617
    %3736 = vmatprep.subr.bf16.mxu0 %v3621
    %3737 = vmatpush1.bf16.msra.mxu0 %v3620
    %3738 = vmatprep.subr.bf16.mxu0 %v3624
    %3739 = vmatpush1.bf16.msra.mxu0 %v3623
    %3740 = vmatprep.subr.bf16.mxu0 %v3627
    %3741 = vmatpush1.bf16.msra.mxu0 %v3626
    %3742 = vmatprep.subr.bf16.mxu0 %v3630
    %3743 = vmatpush1.bf16.msra.mxu0 %v3629
    %3744 = vmatprep.subr.bf16.mxu0 %v3633
    %3745 = vmatpush1.bf16.msra.mxu0 %v3632
    %3746 = vmatprep.subr.bf16.mxu0 %v3636
    %3747 = vmatpush1.bf16.msra.mxu0 %v3635
    %3748 = vmatprep.subr.bf16.mxu0 %v3639
    %3749 = vmatpush1.bf16.msra.mxu0 %v3638
    %3750 = vmatprep.subr.bf16.mxu0 %v3642
    %3751 = vmatpush1.bf16.msra.mxu0 %v3641
    %3752 = vmatprep.subr.bf16.mxu0 %v3645
    %3753 = vmatpush1.bf16.msra.mxu0 %v3644
    %3754 = vmatprep.mubr.bf16.mxu0 %v3395
    %3755 = vmatmul.mubr.bf16.gmra.mrb[0].mxu0 %v3394
    %v3756 = vpop.f32.mrb[0].mxu0
    %v3757 = vadd.f32 %v3303, %v3756
    %v3758 = vpop.f32.mrb[0].mxu0
    %v3759 = vadd.f32 %v3305, %v3758
    %v3760 = vpop.f32.mrb[0].mxu0
    %v3761 = vpop.f32.mrb[0].mxu0
    %3762 = vdwg.mxu0
    %3763 = vmatprep.subr.bf16.mxu0 %v3648
    %3764 = vmatpush1.bf16.msra.mxu0 %v3647
    %3765 = vmatprep.subr.bf16.mxu0 %v3651
    %3766 = vmatpush1.bf16.msra.mxu0 %v3650
    %3767 = vmatprep.subr.bf16.mxu0 %v3654
    %3768 = vmatpush1.bf16.msra.mxu0 %v3653
    %3769 = vmatprep.subr.bf16.mxu0 %v3657
    %3770 = vmatpush1.bf16.msra.mxu0 %v3656
    %3771 = vmatprep.subr.bf16.mxu0 0
    %3772 = vmatpush1.bf16.msra.mxu0 0
    %3773 = vmatprep.subr.bf16.mxu0 0
    %3774 = vmatpush1.bf16.msra.mxu0 0
    %3775 = vmatprep.subr.bf16.mxu0 0
    %3776 = vmatpush1.bf16.msra.mxu0 0
    %3777 = vmatprep.subr.bf16.mxu0 0
    %3778 = vmatpush1.bf16.msra.mxu0 0
    %3779 = vmatprep.subr.bf16.mxu0 0
    %3780 = vmatpush1.bf16.msra.mxu0 0
    %3781 = vmatprep.subr.bf16.mxu0 0
    %3782 = vmatpush1.bf16.msra.mxu0 0
    %3783 = vmatprep.subr.bf16.mxu0 0
    %3784 = vmatpush1.bf16.msra.mxu0 0
    %3785 = vmatprep.subr.bf16.mxu0 0
    %3786 = vmatpush1.bf16.msra.mxu0 0
    %3787 = vmatprep.subr.bf16.mxu0 0
    %3788 = vmatpush1.bf16.msra.mxu0 0
    %3789 = vmatprep.subr.bf16.mxu0 0
    %3790 = vmatpush1.bf16.msra.mxu0 0
    %3791 = vmatprep.subr.bf16.mxu0 0
    %3792 = vmatpush1.bf16.msra.mxu0 0
    %3793 = vmatprep.subr.bf16.mxu0 0
    %3794 = vmatpush1.bf16.msra.mxu0 0
    %3795 = vmatprep.mubr.bf16.mxu0 0
    %3796 = vmatmul.mubr.bf16.gmra.mrb[0].mxu0 %v3720
    %v3797 = vpop.f32.mrb[0].mxu0
    %v3798 = vadd.f32 %v3757, %v3797
    %v3799 = vpop.f32.mrb[0].mxu0
    %v3800 = vadd.f32 %v3759, %v3799
    %v3801 = vpop.f32.mrb[0].mxu0
    %v3802 = vpop.f32.mrb[0].mxu0
    %3803 = vdwg.mxu0
    %3804 = vmatprep.subr.bf16.mxu0 0
    %3805 = vmatpush1.bf16.msra.mxu0 %v3601
    %3806 = vmatprep.subr.bf16.mxu0 0
    %3807 = vmatpush1.bf16.msra.mxu0 %v3604
    %3808 = vmatprep.subr.bf16.mxu0 0
    %3809 = vmatpush1.bf16.msra.mxu0 %v3607
    %3810 = vmatprep.subr.bf16.mxu0 0
    %3811 = vmatpush1.bf16.msra.mxu0 %v3610
    %3812 = vmatprep.subr.bf16.mxu0 0
    %3813 = vmatpush1.bf16.msra.mxu0 %v3613
    %3814 = vmatprep.subr.bf16.mxu0 0
    %3815 = vmatpush1.bf16.msra.mxu0 %v3616
    %3816 = vmatprep.subr.bf16.mxu0 0
    %3817 = vmatpush1.bf16.msra.mxu0 %v3619
    %3818 = vmatprep.subr.bf16.mxu0 0
    %3819 = vmatpush1.bf16.msra.mxu0 %v3622
    %3820 = vmatprep.subr.bf16.mxu0 0
    %3821 = vmatpush1.bf16.msra.mxu0 %v3625
    %3822 = vmatprep.subr.bf16.mxu0 0
    %3823 = vmatpush1.bf16.msra.mxu0 %v3628
    %3824 = vmatprep.subr.bf16.mxu0 0
    %3825 = vmatpush1.bf16.msra.mxu0 %v3631
    %3826 = vmatprep.subr.bf16.mxu0 0
    %3827 = vmatpush1.bf16.msra.mxu0 %v3634
    %3828 = vmatprep.subr.bf16.mxu0 0
    %3829 = vmatpush1.bf16.msra.mxu0 %v3637
    %3830 = vmatprep.subr.bf16.mxu0 0
    %3831 = vmatpush1.bf16.msra.mxu0 %v3640
    %3832 = vmatprep.subr.bf16.mxu0 0
    %3833 = vmatpush1.bf16.msra.mxu0 %v3643
    %3834 = vmatprep.subr.bf16.mxu0 0
    %3835 = vmatpush1.bf16.msra.mxu0 %v3646
    %3836 = vmatprep.mubr.bf16.mxu0 %v3395
    %3837 = vmatmul.mubr.bf16.gmra.mrb[0].mxu0 %v3394
    %v3838 = vpop.f32.mrb[0].mxu0
    %v3839 = vadd.f32 %v3384, %v3838
    %v3840 = vpop.f32.mrb[0].mxu0
    %v3841 = vpop.f32.mrb[0].mxu0
    %v3842 = vpop.f32.mrb[0].mxu0
    %3843 = vdwg.mxu0
    %3844 = vmatprep.subr.bf16.mxu0 0
    %3845 = vmatpush1.bf16.msra.mxu0 %v3649
    %3846 = vmatprep.subr.bf16.mxu0 0
    %3847 = vmatpush1.bf16.msra.mxu0 %v3652
    %3848 = vmatprep.subr.bf16.mxu0 0
    %3849 = vmatpush1.bf16.msra.mxu0 %v3655
    %3850 = vmatprep.subr.bf16.mxu0 0
    %3851 = vmatpush1.bf16.msra.mxu0 %v3658
    %3852 = vmatprep.subr.bf16.mxu0 0
    %3853 = vmatpush1.bf16.msra.mxu0 0
    %3854 = vmatprep.subr.bf16.mxu0 0
    %3855 = vmatpush1.bf16.msra.mxu0 0
    %3856 = vmatprep.subr.bf16.mxu0 0
    %3857 = vmatpush1.bf16.msra.mxu0 0
    %3858 = vmatprep.subr.bf16.mxu0 0
    %3859 = vmatpush1.bf16.msra.mxu0 0
    %3860 = vmatprep.subr.bf16.mxu0 0
    %3861 = vmatpush1.bf16.msra.mxu0 0
    %3862 = vmatprep.subr.bf16.mxu0 0
    %3863 = vmatpush1.bf16.msra.mxu0 0
    %3864 = vmatprep.subr.bf16.mxu0 0
    %3865 = vmatpush1.bf16.msra.mxu0 0
    %3866 = vmatprep.subr.bf16.mxu0 0
    %3867 = vmatpush1.bf16.msra.mxu0 0
    %3868 = vmatprep.subr.bf16.mxu0 0
    %3869 = vmatpush1.bf16.msra.mxu0 0
    %3870 = vmatprep.subr.bf16.mxu0 0
    %3871 = vmatpush1.bf16.msra.mxu0 0
    %3872 = vmatprep.subr.bf16.mxu0 0
    %3873 = vmatpush1.bf16.msra.mxu0 0
    %3874 = vmatprep.subr.bf16.mxu0 0
    %3875 = vmatpush1.bf16.msra.mxu0 0
    %3876 = vmatprep.mubr.bf16.mxu0 0
    %3877 = vmatmul.mubr.bf16.gmra.mrb[0].mxu0 %v3720
    %v3878 = vpop.f32.mrb[0].mxu0
    %v3879 = vadd.f32 %v3839, %v3878
    %v3880 = vpop.f32.mrb[0].mxu0
    %v3881 = vpop.f32.mrb[0].mxu0
    %v3882 = vpop.f32.mrb[0].mxu0
    %3883 = vdwg.mxu0
    %v3884 = vld [vmem:[%s951] sm:$0xff]
    %v3885 = vld [vmem:[%s951 + $0x8] sm:$0xf]
    %v3888 = vunpack.c.l.b16 %v3884
    %v3889 = vunpack.c.h.b16 %v3884
    %v3890 = vunpack.c.l.b16 %v3885
    %v3891 = vpack.c.b16 %v3888, %v3888
    %v3892 = vpack.c.b16 %v3889, %v3889
    %v3893 = vpack.c.b16 %v3890, %v3890
    %v3976 = vunpack.c.l.b16 %v2808
    %v3977 = vunpack.c.h.b16 %v2808
    %v3978 = vunpack.c.l.b16 %v2809
    %v3979 = vunpack.c.l.b16 %v2810
    %v3980 = vunpack.c.h.b16 %v2810
    %v3981 = vunpack.c.l.b16 %v2811
    %v3982 = vunpack.c.l.b16 %v2812
    %v3983 = vunpack.c.h.b16 %v2812
    %v3984 = vunpack.c.l.b16 %v2813
    %v3985 = vunpack.c.l.b16 %v2814
    %v3986 = vunpack.c.h.b16 %v2814
    %v3987 = vunpack.c.l.b16 %v2815
    %v3988 = vunpack.c.l.b16 %v2816
    %v3989 = vunpack.c.h.b16 %v2816
    %v3990 = vunpack.c.l.b16 %v2817
    %v3991 = vunpack.c.l.b16 %v2818
    %v3992 = vunpack.c.h.b16 %v2818
    %v3993 = vunpack.c.l.b16 %v2819
    %v3994 = vunpack.c.l.b16 %v2820
    %v3995 = vunpack.c.h.b16 %v2820
    %v3996 = vunpack.c.l.b16 %v2821
    %v3997 = vunpack.c.l.b16 %v2822
    %v3998 = vunpack.c.h.b16 %v2822
    %v3999 = vunpack.c.l.b16 %v2823
    %v4000 = vunpack.c.l.b16 %v2824
    %v4001 = vunpack.c.h.b16 %v2824
    %v4002 = vunpack.c.l.b16 %v2825
    %v4003 = vunpack.c.l.b16 %v2826
    %v4004 = vunpack.c.h.b16 %v2826
    %v4005 = vunpack.c.l.b16 %v2827
    %v4006 = vunpack.c.l.b16 %v2828
    %v4007 = vunpack.c.h.b16 %v2828
    %v4008 = vunpack.c.l.b16 %v2829
    %v4009 = vunpack.c.l.b16 %v2830
    %v4010 = vunpack.c.h.b16 %v2830
    %v4011 = vunpack.c.l.b16 %v2831
    %v4012 = vunpack.c.l.b16 %v2832
    %v4013 = vunpack.c.h.b16 %v2832
    %v4014 = vunpack.c.l.b16 %v2833
    %v4015 = vunpack.c.l.b16 %v2834
    %v4016 = vunpack.c.h.b16 %v2834
    %v4017 = vunpack.c.l.b16 %v2835
    %v4018 = vunpack.c.l.b16 %v2836
    %v4019 = vunpack.c.h.b16 %v2836
    %v4020 = vunpack.c.l.b16 %v2837
    %v4021 = vunpack.c.l.b16 %v2838
    %v4022 = vunpack.c.h.b16 %v2838
    %v4023 = vunpack.c.l.b16 %v2839
    %v4024 = vunpack.c.l.b16 %v2840
    %v4025 = vunpack.c.h.b16 %v2840
    %v4026 = vunpack.c.l.b16 %v2841
    %v4027 = vunpack.c.l.b16 %v2842
    %v4028 = vunpack.c.h.b16 %v2842
    %v4029 = vunpack.c.l.b16 %v2843
    %v4030 = vunpack.c.l.b16 %v2844
    %v4031 = vunpack.c.h.b16 %v2844
    %v4032 = vunpack.c.l.b16 %v2845
    %v4033 = vunpack.c.l.b16 %v2846
    %v4034 = vunpack.c.h.b16 %v2846
    %v4035 = vunpack.c.l.b16 %v2847
    %v4036 = vunpack.c.l.b16 %v2848
    %v4037 = vunpack.c.h.b16 %v2848
    %v4038 = vunpack.c.l.b16 %v2849
    %v4039 = vunpack.c.l.b16 %v2850
    %v4040 = vunpack.c.h.b16 %v2850
    %v4041 = vunpack.c.l.b16 %v2851
    %v4042 = vunpack.c.l.b16 %v2852
    %v4043 = vunpack.c.h.b16 %v2852
    %v4044 = vunpack.c.l.b16 %v2853
    %v4045 = vunpack.c.l.b16 %v2854
    %v4046 = vunpack.c.h.b16 %v2854
    %v4047 = vunpack.c.l.b16 %v2855
    %v4048 = vunpack.c.l.b16 %v2856
    %v4049 = vunpack.c.h.b16 %v2856
    %v4050 = vunpack.c.l.b16 %v2857
    %v4051 = vunpack.c.l.b16 %v2858
    %v4052 = vunpack.c.h.b16 %v2858
    %v4053 = vunpack.c.l.b16 %v2859
    %v4054 = vunpack.c.l.b16 %v2860
    %v4055 = vunpack.c.h.b16 %v2860
    %v4056 = vunpack.c.l.b16 %v2861
    %v4057 = vunpack.c.l.b16 %v2862
    %v4058 = vunpack.c.h.b16 %v2862
    %v4059 = vunpack.c.l.b16 %v2863
    %v4060 = vunpack.c.l.b16 %v2864
    %v4061 = vunpack.c.h.b16 %v2864
    %v4062 = vunpack.c.l.b16 %v2865
    %v4063 = vunpack.c.l.b16 %v2866
    %v4064 = vunpack.c.h.b16 %v2866
    %v4065 = vunpack.c.l.b16 %v2867
    %v4066 = vunpack.c.l.b16 %v2868
    %v4067 = vunpack.c.h.b16 %v2868
    %v4068 = vunpack.c.l.b16 %v2869
    %v4069 = vunpack.c.l.b16 %v2870
    %v4070 = vunpack.c.h.b16 %v2870
    %v4071 = vunpack.c.l.b16 %v2871
    %v4072 = vunpack.c.l.b16 %v2872
    %v4073 = vunpack.c.h.b16 %v2872
    %v4074 = vunpack.c.l.b16 %v2873
    %v4075 = vunpack.c.l.b16 %v2874
    %v4076 = vunpack.c.h.b16 %v2874
    %v4077 = vunpack.c.l.b16 %v2875
    %v4078 = vunpack.c.l.b16 %v2876
    %v4079 = vunpack.c.h.b16 %v2876
    %v4080 = vunpack.c.l.b16 %v2877
    %v4081 = vunpack.c.l.b16 %v2878
    %v4082 = vunpack.c.h.b16 %v2878
    %v4083 = vunpack.c.l.b16 %v2879
    %v4084 = vunpack.c.l.b16 %v2880
    %v4085 = vunpack.c.h.b16 %v2880
    %v4086 = vunpack.c.l.b16 %v2881
    %v4087 = vunpack.c.l.b16 %v2882
    %v4088 = vunpack.c.h.b16 %v2882
    %v4089 = vunpack.c.l.b16 %v2883
    %v4090 = vunpack.c.l.b16 %v2884
    %v4091 = vunpack.c.h.b16 %v2884
    %v4092 = vunpack.c.l.b16 %v2885
    %v4093 = vunpack.c.l.b16 %v2886
    %v4094 = vunpack.c.h.b16 %v2886
    %v4095 = vunpack.c.l.b16 %v2887
    %v4096 = vpack.c.b16 %v3979, %v3976
    %v4097 = vpack.c.b16 %v3980, %v3977
    %v4098 = vpack.c.b16 %v3981, %v3978
    %v4099 = vpack.c.b16 %v3985, %v3982
    %v4100 = vpack.c.b16 %v3986, %v3983
    %v4101 = vpack.c.b16 %v3987, %v3984
    %v4102 = vpack.c.b16 %v3991, %v3988
    %v4103 = vpack.c.b16 %v3992, %v3989
    %v4104 = vpack.c.b16 %v3993, %v3990
    %v4105 = vpack.c.b16 %v3997, %v3994
    %v4106 = vpack.c.b16 %v3998, %v3995
    %v4107 = vpack.c.b16 %v3999, %v3996
    %v4108 = vpack.c.b16 %v4003, %v4000
    %v4109 = vpack.c.b16 %v4004, %v4001
    %v4110 = vpack.c.b16 %v4005, %v4002
    %v4111 = vpack.c.b16 %v4009, %v4006
    %v4112 = vpack.c.b16 %v4010, %v4007
    %v4113 = vpack.c.b16 %v4011, %v4008
    %v4114 = vpack.c.b16 %v4015, %v4012
    %v4115 = vpack.c.b16 %v4016, %v4013
    %v4116 = vpack.c.b16 %v4017, %v4014
    %v4117 = vpack.c.b16 %v4021, %v4018
    %v4118 = vpack.c.b16 %v4022, %v4019
    %v4119 = vpack.c.b16 %v4023, %v4020
    %v4120 = vpack.c.b16 %v4027, %v4024
    %v4121 = vpack.c.b16 %v4028, %v4025
    %v4122 = vpack.c.b16 %v4029, %v4026
    %v4123 = vpack.c.b16 %v4033, %v4030
    %v4124 = vpack.c.b16 %v4034, %v4031
    %v4125 = vpack.c.b16 %v4035, %v4032
    %v4126 = vpack.c.b16 %v4039, %v4036
    %v4127 = vpack.c.b16 %v4040, %v4037
    %v4128 = vpack.c.b16 %v4041, %v4038
    %v4129 = vpack.c.b16 %v4045, %v4042
    %v4130 = vpack.c.b16 %v4046, %v4043
    %v4131 = vpack.c.b16 %v4047, %v4044
    %v4132 = vpack.c.b16 %v4051, %v4048
    %v4133 = vpack.c.b16 %v4052, %v4049
    %v4134 = vpack.c.b16 %v4053, %v4050
    %v4135 = vpack.c.b16 %v4057, %v4054
    %v4136 = vpack.c.b16 %v4058, %v4055
    %v4137 = vpack.c.b16 %v4059, %v4056
    %v4138 = vpack.c.b16 %v4063, %v4060
    %v4139 = vpack.c.b16 %v4064, %v4061
    %v4140 = vpack.c.b16 %v4065, %v4062
    %v4141 = vpack.c.b16 %v4069, %v4066
    %v4142 = vpack.c.b16 %v4070, %v4067
    %v4143 = vpack.c.b16 %v4071, %v4068
    %v4144 = vpack.c.b16 %v4075, %v4072
    %v4145 = vpack.c.b16 %v4076, %v4073
    %v4146 = vpack.c.b16 %v4077, %v4074
    %v4147 = vpack.c.b16 %v4081, %v4078
    %v4148 = vpack.c.b16 %v4082, %v4079
    %v4149 = vpack.c.b16 %v4083, %v4080
    %v4150 = vpack.c.b16 %v4087, %v4084
    %v4151 = vpack.c.b16 %v4088, %v4085
    %v4152 = vpack.c.b16 %v4089, %v4086
    %v4153 = vpack.c.b16 %v4093, %v4090
    %v4154 = vpack.c.b16 %v4094, %v4091
    %v4155 = vpack.c.b16 %v4095, %v4092
    %v4217 = vsel %vm3223, %v3893, 0
    %4219 = vmatprep.subr.bf16.mxu0 %v4097
    %4220 = vmatpush1.bf16.msra.mxu0 %v4096
    %4221 = vmatprep.subr.bf16.mxu0 %v4100
    %4222 = vmatpush1.bf16.msra.mxu0 %v4099
    %4223 = vmatprep.subr.bf16.mxu0 %v4103
    %4224 = vmatpush1.bf16.msra.mxu0 %v4102
    %4225 = vmatprep.subr.bf16.mxu0 %v4106
    %4226 = vmatpush1.bf16.msra.mxu0 %v4105
    %4227 = vmatprep.subr.bf16.mxu0 %v4109
    %4228 = vmatpush1.bf16.msra.mxu0 %v4108
    %4229 = vmatprep.subr.bf16.mxu0 %v4112
    %4230 = vmatpush1.bf16.msra.mxu0 %v4111
    %4231 = vmatprep.subr.bf16.mxu0 %v4115
    %4232 = vmatpush1.bf16.msra.mxu0 %v4114
    %4233 = vmatprep.subr.bf16.mxu0 %v4118
    %4234 = vmatpush1.bf16.msra.mxu0 %v4117
    %4235 = vmatprep.subr.bf16.mxu0 %v4121
    %4236 = vmatpush1.bf16.msra.mxu0 %v4120
    %4237 = vmatprep.subr.bf16.mxu0 %v4124
    %4238 = vmatpush1.bf16.msra.mxu0 %v4123
    %4239 = vmatprep.subr.bf16.mxu0 %v4127
    %4240 = vmatpush1.bf16.msra.mxu0 %v4126
    %4241 = vmatprep.subr.bf16.mxu0 %v4130
    %4242 = vmatpush1.bf16.msra.mxu0 %v4129
    %4243 = vmatprep.subr.bf16.mxu0 %v4133
    %4244 = vmatpush1.bf16.msra.mxu0 %v4132
    %4245 = vmatprep.subr.bf16.mxu0 %v4136
    %4246 = vmatpush1.bf16.msra.mxu0 %v4135
    %4247 = vmatprep.subr.bf16.mxu0 %v4139
    %4248 = vmatpush1.bf16.msra.mxu0 %v4138
    %4249 = vmatprep.subr.bf16.mxu0 %v4142
    %4250 = vmatpush1.bf16.msra.mxu0 %v4141
    %4251 = vmatprep.mubr.bf16.mxu0 %v3892
    %4252 = vmatmul.mubr.bf16.gmra.mrb[0].mxu0 %v3891
    %v4253 = vpop.f32.mrb[0].mxu0
    %v4254 = vadd.f32 0.0, %v4253
    %v4255 = vpop.f32.mrb[0].mxu0
    %v4256 = vadd.f32 0.0, %v4255
    %v4257 = vpop.f32.mrb[0].mxu0
    %v4258 = vpop.f32.mrb[0].mxu0
    %4259 = vdwg.mxu0
    %4260 = vmatprep.subr.bf16.mxu0 %v4145
    %4261 = vmatpush1.bf16.msra.mxu0 %v4144
    %4262 = vmatprep.subr.bf16.mxu0 %v4148
    %4263 = vmatpush1.bf16.msra.mxu0 %v4147
    %4264 = vmatprep.subr.bf16.mxu0 %v4151
    %4265 = vmatpush1.bf16.msra.mxu0 %v4150
    %4266 = vmatprep.subr.bf16.mxu0 %v4154
    %4267 = vmatpush1.bf16.msra.mxu0 %v4153
    %4268 = vmatprep.subr.bf16.mxu0 0
    %4269 = vmatpush1.bf16.msra.mxu0 0
    %4270 = vmatprep.subr.bf16.mxu0 0
    %4271 = vmatpush1.bf16.msra.mxu0 0
    %4272 = vmatprep.subr.bf16.mxu0 0
    %4273 = vmatpush1.bf16.msra.mxu0 0
    %4274 = vmatprep.subr.bf16.mxu0 0
    %4275 = vmatpush1.bf16.msra.mxu0 0
    %4276 = vmatprep.subr.bf16.mxu0 0
    %4277 = vmatpush1.bf16.msra.mxu0 0
    %4278 = vmatprep.subr.bf16.mxu0 0
    %4279 = vmatpush1.bf16.msra.mxu0 0
    %4280 = vmatprep.subr.bf16.mxu0 0
    %4281 = vmatpush1.bf16.msra.mxu0 0
    %4282 = vmatprep.subr.bf16.mxu0 0
    %4283 = vmatpush1.bf16.msra.mxu0 0
    %4284 = vmatprep.subr.bf16.mxu0 0
    %4285 = vmatpush1.bf16.msra.mxu0 0
    %4286 = vmatprep.subr.bf16.mxu0 0
    %4287 = vmatpush1.bf16.msra.mxu0 0
    %4288 = vmatprep.subr.bf16.mxu0 0
    %4289 = vmatpush1.bf16.msra.mxu0 0
    %4290 = vmatprep.subr.bf16.mxu0 0
    %4291 = vmatpush1.bf16.msra.mxu0 0
    %4292 = vmatprep.mubr.bf16.mxu0 0
    %4293 = vmatmul.mubr.bf16.gmra.mrb[0].mxu0 %v4217
    %v4294 = vpop.f32.mrb[0].mxu0
    %v4295 = vadd.f32 %v4254, %v4294
    %v4296 = vpop.f32.mrb[0].mxu0
    %v4297 = vadd.f32 %v4256, %v4296
    %v4298 = vpop.f32.mrb[0].mxu0
    %v4299 = vpop.f32.mrb[0].mxu0
    %4300 = vdwg.mxu0
    %4301 = vmatprep.subr.bf16.mxu0 0
    %4302 = vmatpush1.bf16.msra.mxu0 %v4098
    %4303 = vmatprep.subr.bf16.mxu0 0
    %4304 = vmatpush1.bf16.msra.mxu0 %v4101
    %4305 = vmatprep.subr.bf16.mxu0 0
    %4306 = vmatpush1.bf16.msra.mxu0 %v4104
    %4307 = vmatprep.subr.bf16.mxu0 0
    %4308 = vmatpush1.bf16.msra.mxu0 %v4107
    %4309 = vmatprep.subr.bf16.mxu0 0
    %4310 = vmatpush1.bf16.msra.mxu0 %v4110
    %4311 = vmatprep.subr.bf16.mxu0 0
    %4312 = vmatpush1.bf16.msra.mxu0 %v4113
    %4313 = vmatprep.subr.bf16.mxu0 0
    %4314 = vmatpush1.bf16.msra.mxu0 %v4116
    %4315 = vmatprep.subr.bf16.mxu0 0
    %4316 = vmatpush1.bf16.msra.mxu0 %v4119
    %4317 = vmatprep.subr.bf16.mxu0 0
    %4318 = vmatpush1.bf16.msra.mxu0 %v4122
    %4319 = vmatprep.subr.bf16.mxu0 0
    %4320 = vmatpush1.bf16.msra.mxu0 %v4125
    %4321 = vmatprep.subr.bf16.mxu0 0
    %4322 = vmatpush1.bf16.msra.mxu0 %v4128
    %4323 = vmatprep.subr.bf16.mxu0 0
    %4324 = vmatpush1.bf16.msra.mxu0 %v4131
    %4325 = vmatprep.subr.bf16.mxu0 0
    %4326 = vmatpush1.bf16.msra.mxu0 %v4134
    %4327 = vmatprep.subr.bf16.mxu0 0
    %4328 = vmatpush1.bf16.msra.mxu0 %v4137
    %4329 = vmatprep.subr.bf16.mxu0 0
    %4330 = vmatpush1.bf16.msra.mxu0 %v4140
    %4331 = vmatprep.subr.bf16.mxu0 0
    %4332 = vmatpush1.bf16.msra.mxu0 %v4143
    %4333 = vmatprep.mubr.bf16.mxu0 %v3892
    %4334 = vmatmul.mubr.bf16.gmra.mrb[0].mxu0 %v3891
    %v4335 = vpop.f32.mrb[0].mxu0
    %v4336 = vadd.f32 0.0, %v4335
    %v4337 = vpop.f32.mrb[0].mxu0
    %v4338 = vpop.f32.mrb[0].mxu0
    %v4339 = vpop.f32.mrb[0].mxu0
    %4340 = vdwg.mxu0
    %4341 = vmatprep.subr.bf16.mxu0 0
    %4342 = vmatpush1.bf16.msra.mxu0 %v4146
    %4343 = vmatprep.subr.bf16.mxu0 0
    %4344 = vmatpush1.bf16.msra.mxu0 %v4149
    %4345 = vmatprep.subr.bf16.mxu0 0
    %4346 = vmatpush1.bf16.msra.mxu0 %v4152
    %4347 = vmatprep.subr.bf16.mxu0 0
    %4348 = vmatpush1.bf16.msra.mxu0 %v4155
    %4349 = vmatprep.subr.bf16.mxu0 0
    %4350 = vmatpush1.bf16.msra.mxu0 0
    %4351 = vmatprep.subr.bf16.mxu0 0
    %4352 = vmatpush1.bf16.msra.mxu0 0
    %4353 = vmatprep.subr.bf16.mxu0 0
    %4354 = vmatpush1.bf16.msra.mxu0 0
    %4355 = vmatprep.subr.bf16.mxu0 0
    %4356 = vmatpush1.bf16.msra.mxu0 0
    %4357 = vmatprep.subr.bf16.mxu0 0
    %4358 = vmatpush1.bf16.msra.mxu0 0
    %4359 = vmatprep.subr.bf16.mxu0 0
    %4360 = vmatpush1.bf16.msra.mxu0 0
    %4361 = vmatprep.subr.bf16.mxu0 0
    %4362 = vmatpush1.bf16.msra.mxu0 0
    %4363 = vmatprep.subr.bf16.mxu0 0
    %4364 = vmatpush1.bf16.msra.mxu0 0
    %4365 = vmatprep.subr.bf16.mxu0 0
    %4366 = vmatpush1.bf16.msra.mxu0 0
    %4367 = vmatprep.subr.bf16.mxu0 0
    %4368 = vmatpush1.bf16.msra.mxu0 0
    %4369 = vmatprep.subr.bf16.mxu0 0
    %4370 = vmatpush1.bf16.msra.mxu0 0
    %4371 = vmatprep.subr.bf16.mxu0 0
    %4372 = vmatpush1.bf16.msra.mxu0 0
    %4373 = vmatprep.mubr.bf16.mxu0 0
    %4374 = vmatmul.mubr.bf16.gmra.mrb[0].mxu0 %v4217
    %v4375 = vpop.f32.mrb[0].mxu0
    %v4376 = vadd.f32 %v4336, %v4375
    %v4377 = vpop.f32.mrb[0].mxu0
    %v4378 = vpop.f32.mrb[0].mxu0
    %v4379 = vpop.f32.mrb[0].mxu0
    %4380 = vdwg.mxu0
    %v4381 = vadd.f32 %v3798, %v4295
    %v4382 = vadd.f32 %v3800, %v4297
    %v4383 = vadd.f32 %v3879, %v4376
    %v4385 = vlaneseq
    %v4386 = vshrl.u32 %v4385, 7
    %v4387 = vsub.s32 0, %v4386
    %v4388 = vrot.slane %v2888, %v4387
    %v4389 = vlaneseq
    %v4390 = vshrl.u32 %v4389, 7
    %v4391 = vsub.s32 1, %v4390
    %v4392 = vrot.slane %v2888, %v4391
    %v4393 = vlaneseq
    %v4394 = vshrl.u32 %v4393, 7
    %v4395 = vsub.s32 2, %v4394
    %v4396 = vrot.slane %v2888, %v4395
    %v4400 = vadd.f32 %v4381, %v4388
    %v4401 = vadd.f32 %v4382, %v4392
    %v4402 = vadd.f32 %v4383, %v4396
    %v4403 = vmax.f32 %v4400, 0.0
    %v4404 = vmax.f32 %v4401, 0.0
    %v4405 = vmax.f32 %v4402, 0.0
    %v4406 = vpack.c.bf16 %v4403, %v4403
    %v4407 = vpack.c.bf16 %v4404, %v4404
    %v4408 = vpack.c.bf16 %v4405, %v4405
    %v4412 = vunpack.c.l.b16 %v4406
    %v4413 = vunpack.c.l.b16 %v4407
    %v4414 = vunpack.c.l.b16 %v4408
    %v4415 = vpack.c.b16 %v4413, %v4412
    %v4416 = vpack.c.b16 %v4414, %v4414
    %s4419 = scalar_lea.vmem [#allocation3], 12
    %4420 = vst [vmem:[%s4419] sm:$0xff] %v4415
    %4421 = vst [vmem:[%s4419 + $0x8] sm:$0xf] %v4416
    %v4422 = vld [vmem:[%s951] sm:$0xff]
    %v4423 = vld [vmem:[%s951 + $0x8] sm:$0xf]
    %v4424 = vld [vmem:[%s1233] sm:$0xff]
    %v4425 = vld [vmem:[%s1233 + $0x8] sm:$0xf]
    %v4428 = vunpack.c.l.b16 %v4424
    %v4429 = vunpack.c.h.b16 %v4424
    %v4430 = vunpack.c.l.b16 %v4425
    %v4431 = vpack.c.b16 %v4428, %v4428
    %v4432 = vpack.c.b16 %v4429, %v4429
    %v4433 = vpack.c.b16 %v4430, %v4430
    %v4437 = vsel %vm3223, %v4433, 0
    %4439 = vmatprep.subr.bf16.mxu0 %v3104
    %4440 = vmatpush1.bf16.msra.mxu0 %v3103
    %4441 = vmatprep.subr.bf16.mxu0 %v3107
    %4442 = vmatpush1.bf16.msra.mxu0 %v3106
    %4443 = vmatprep.subr.bf16.mxu0 %v3110
    %4444 = vmatpush1.bf16.msra.mxu0 %v3109
    %4445 = vmatprep.subr.bf16.mxu0 %v3113
    %4446 = vmatpush1.bf16.msra.mxu0 %v3112
    %4447 = vmatprep.subr.bf16.mxu0 %v3116
    %4448 = vmatpush1.bf16.msra.mxu0 %v3115
    %4449 = vmatprep.subr.bf16.mxu0 %v3119
    %4450 = vmatpush1.bf16.msra.mxu0 %v3118
    %4451 = vmatprep.subr.bf16.mxu0 %v3122
    %4452 = vmatpush1.bf16.msra.mxu0 %v3121
    %4453 = vmatprep.subr.bf16.mxu0 %v3125
    %4454 = vmatpush1.bf16.msra.mxu0 %v3124
    %4455 = vmatprep.subr.bf16.mxu0 %v3128
    %4456 = vmatpush1.bf16.msra.mxu0 %v3127
    %4457 = vmatprep.subr.bf16.mxu0 %v3131
    %4458 = vmatpush1.bf16.msra.mxu0 %v3130
    %4459 = vmatprep.subr.bf16.mxu0 %v3134
    %4460 = vmatpush1.bf16.msra.mxu0 %v3133
    %4461 = vmatprep.subr.bf16.mxu0 %v3137
    %4462 = vmatpush1.bf16.msra.mxu0 %v3136
    %4463 = vmatprep.subr.bf16.mxu0 %v3140
    %4464 = vmatpush1.bf16.msra.mxu0 %v3139
    %4465 = vmatprep.subr.bf16.mxu0 %v3143
    %4466 = vmatpush1.bf16.msra.mxu0 %v3142
    %4467 = vmatprep.subr.bf16.mxu0 %v3146
    %4468 = vmatpush1.bf16.msra.mxu0 %v3145
    %4469 = vmatprep.subr.bf16.mxu0 %v3149
    %4470 = vmatpush1.bf16.msra.mxu0 %v3148
    %4471 = vmatprep.mubr.bf16.mxu0 %v4432
    %4472 = vmatmul.mubr.bf16.gmra.mrb[0].mxu0 %v4431
    %v4473 = vpop.f32.mrb[0].mxu0
    %v4474 = vadd.f32 0.0, %v4473
    %v4475 = vpop.f32.mrb[0].mxu0
    %v4476 = vadd.f32 0.0, %v4475
    %v4477 = vpop.f32.mrb[0].mxu0
    %v4478 = vpop.f32.mrb[0].mxu0
    %4479 = vdwg.mxu0
    %4480 = vmatprep.subr.bf16.mxu0 %v3152
    %4481 = vmatpush1.bf16.msra.mxu0 %v3151
    %4482 = vmatprep.subr.bf16.mxu0 %v3155
    %4483 = vmatpush1.bf16.msra.mxu0 %v3154
    %4484 = vmatprep.subr.bf16.mxu0 %v3158
    %4485 = vmatpush1.bf16.msra.mxu0 %v3157
    %4486 = vmatprep.subr.bf16.mxu0 %v3161
    %4487 = vmatpush1.bf16.msra.mxu0 %v3160
    %4488 = vmatprep.subr.bf16.mxu0 0
    %4489 = vmatpush1.bf16.msra.mxu0 0
    %4490 = vmatprep.subr.bf16.mxu0 0
    %4491 = vmatpush1.bf16.msra.mxu0 0
    %4492 = vmatprep.subr.bf16.mxu0 0
    %4493 = vmatpush1.bf16.msra.mxu0 0
    %4494 = vmatprep.subr.bf16.mxu0 0
    %4495 = vmatpush1.bf16.msra.mxu0 0
    %4496 = vmatprep.subr.bf16.mxu0 0
    %4497 = vmatpush1.bf16.msra.mxu0 0
    %4498 = vmatprep.subr.bf16.mxu0 0
    %4499 = vmatpush1.bf16.msra.mxu0 0
    %4500 = vmatprep.subr.bf16.mxu0 0
    %4501 = vmatpush1.bf16.msra.mxu0 0
    %4502 = vmatprep.subr.bf16.mxu0 0
    %4503 = vmatpush1.bf16.msra.mxu0 0
    %4504 = vmatprep.subr.bf16.mxu0 0
    %4505 = vmatpush1.bf16.msra.mxu0 0
    %4506 = vmatprep.subr.bf16.mxu0 0
    %4507 = vmatpush1.bf16.msra.mxu0 0
    %4508 = vmatprep.subr.bf16.mxu0 0
    %4509 = vmatpush1.bf16.msra.mxu0 0
    %4510 = vmatprep.subr.bf16.mxu0 0
    %4511 = vmatpush1.bf16.msra.mxu0 0
    %4512 = vmatprep.mubr.bf16.mxu0 0
    %4513 = vmatmul.mubr.bf16.gmra.mrb[0].mxu0 %v4437
    %v4514 = vpop.f32.mrb[0].mxu0
    %v4515 = vadd.f32 %v4474, %v4514
    %v4516 = vpop.f32.mrb[0].mxu0
    %v4517 = vadd.f32 %v4476, %v4516
    %v4518 = vpop.f32.mrb[0].mxu0
    %v4519 = vpop.f32.mrb[0].mxu0
    %4520 = vdwg.mxu0
    %4521 = vmatprep.subr.bf16.mxu0 0
    %4522 = vmatpush1.bf16.msra.mxu0 %v3105
    %4523 = vmatprep.subr.bf16.mxu0 0
    %4524 = vmatpush1.bf16.msra.mxu0 %v3108
    %4525 = vmatprep.subr.bf16.mxu0 0
    %4526 = vmatpush1.bf16.msra.mxu0 %v3111
    %4527 = vmatprep.subr.bf16.mxu0 0
    %4528 = vmatpush1.bf16.msra.mxu0 %v3114
    %4529 = vmatprep.subr.bf16.mxu0 0
    %4530 = vmatpush1.bf16.msra.mxu0 %v3117
    %4531 = vmatprep.subr.bf16.mxu0 0
    %4532 = vmatpush1.bf16.msra.mxu0 %v3120
    %4533 = vmatprep.subr.bf16.mxu0 0
    %4534 = vmatpush1.bf16.msra.mxu0 %v3123
    %4535 = vmatprep.subr.bf16.mxu0 0
    %4536 = vmatpush1.bf16.msra.mxu0 %v3126
    %4537 = vmatprep.subr.bf16.mxu0 0
    %4538 = vmatpush1.bf16.msra.mxu0 %v3129
    %4539 = vmatprep.subr.bf16.mxu0 0
    %4540 = vmatpush1.bf16.msra.mxu0 %v3132
    %4541 = vmatprep.subr.bf16.mxu0 0
    %4542 = vmatpush1.bf16.msra.mxu0 %v3135
    %4543 = vmatprep.subr.bf16.mxu0 0
    %4544 = vmatpush1.bf16.msra.mxu0 %v3138
    %4545 = vmatprep.subr.bf16.mxu0 0
    %4546 = vmatpush1.bf16.msra.mxu0 %v3141
    %4547 = vmatprep.subr.bf16.mxu0 0
    %4548 = vmatpush1.bf16.msra.mxu0 %v3144
    %4549 = vmatprep.subr.bf16.mxu0 0
    %4550 = vmatpush1.bf16.msra.mxu0 %v3147
    %4551 = vmatprep.subr.bf16.mxu0 0
    %4552 = vmatpush1.bf16.msra.mxu0 %v3150
    %4553 = vmatprep.mubr.bf16.mxu0 %v4432
    %4554 = vmatmul.mubr.bf16.gmra.mrb[0].mxu0 %v4431
    %v4555 = vpop.f32.mrb[0].mxu0
    %v4556 = vadd.f32 0.0, %v4555
    %v4557 = vpop.f32.mrb[0].mxu0
    %v4558 = vpop.f32.mrb[0].mxu0
    %v4559 = vpop.f32.mrb[0].mxu0
    %4560 = vdwg.mxu0
    %4561 = vmatprep.subr.bf16.mxu0 0
    %4562 = vmatpush1.bf16.msra.mxu0 %v3153
    %4563 = vmatprep.subr.bf16.mxu0 0
    %4564 = vmatpush1.bf16.msra.mxu0 %v3156
    %4565 = vmatprep.subr.bf16.mxu0 0
    %4566 = vmatpush1.bf16.msra.mxu0 %v3159
    %4567 = vmatprep.subr.bf16.mxu0 0
    %4568 = vmatpush1.bf16.msra.mxu0 %v3162
    %4569 = vmatprep.subr.bf16.mxu0 0
    %4570 = vmatpush1.bf16.msra.mxu0 0
    %4571 = vmatprep.subr.bf16.mxu0 0
    %4572 = vmatpush1.bf16.msra.mxu0 0
    %4573 = vmatprep.subr.bf16.mxu0 0
    %4574 = vmatpush1.bf16.msra.mxu0 0
    %4575 = vmatprep.subr.bf16.mxu0 0
    %4576 = vmatpush1.bf16.msra.mxu0 0
    %4577 = vmatprep.subr.bf16.mxu0 0
    %4578 = vmatpush1.bf16.msra.mxu0 0
    %4579 = vmatprep.subr.bf16.mxu0 0
    %4580 = vmatpush1.bf16.msra.mxu0 0
    %4581 = vmatprep.subr.bf16.mxu0 0
    %4582 = vmatpush1.bf16.msra.mxu0 0
    %4583 = vmatprep.subr.bf16.mxu0 0
    %4584 = vmatpush1.bf16.msra.mxu0 0
    %4585 = vmatprep.subr.bf16.mxu0 0
    %4586 = vmatpush1.bf16.msra.mxu0 0
    %4587 = vmatprep.subr.bf16.mxu0 0
    %4588 = vmatpush1.bf16.msra.mxu0 0
    %4589 = vmatprep.subr.bf16.mxu0 0
    %4590 = vmatpush1.bf16.msra.mxu0 0
    %4591 = vmatprep.subr.bf16.mxu0 0
    %4592 = vmatpush1.bf16.msra.mxu0 0
    %4593 = vmatprep.mubr.bf16.mxu0 0
    %4594 = vmatmul.mubr.bf16.gmra.mrb[0].mxu0 %v4437
    %v4595 = vpop.f32.mrb[0].mxu0
    %v4596 = vadd.f32 %v4556, %v4595
    %v4597 = vpop.f32.mrb[0].mxu0
    %v4598 = vpop.f32.mrb[0].mxu0
    %v4599 = vpop.f32.mrb[0].mxu0
    %4600 = vdwg.mxu0
    %v4603 = vunpack.c.l.b16 %v4422
    %v4604 = vunpack.c.h.b16 %v4422
    %v4605 = vunpack.c.l.b16 %v4423
    %v4606 = vpack.c.b16 %v4603, %v4603
    %v4607 = vpack.c.b16 %v4604, %v4604
    %v4608 = vpack.c.b16 %v4605, %v4605
    %v4612 = vsel %vm3223, %v4608, 0
    %4614 = vmatprep.subr.bf16.mxu0 %v3600
    %4615 = vmatpush1.bf16.msra.mxu0 %v3599
    %4616 = vmatprep.subr.bf16.mxu0 %v3603
    %4617 = vmatpush1.bf16.msra.mxu0 %v3602
    %4618 = vmatprep.subr.bf16.mxu0 %v3606
    %4619 = vmatpush1.bf16.msra.mxu0 %v3605
    %4620 = vmatprep.subr.bf16.mxu0 %v3609
    %4621 = vmatpush1.bf16.msra.mxu0 %v3608
    %4622 = vmatprep.subr.bf16.mxu0 %v3612
    %4623 = vmatpush1.bf16.msra.mxu0 %v3611
    %4624 = vmatprep.subr.bf16.mxu0 %v3615
    %4625 = vmatpush1.bf16.msra.mxu0 %v3614
    %4626 = vmatprep.subr.bf16.mxu0 %v3618
    %4627 = vmatpush1.bf16.msra.mxu0 %v3617
    %4628 = vmatprep.subr.bf16.mxu0 %v3621
    %4629 = vmatpush1.bf16.msra.mxu0 %v3620
    %4630 = vmatprep.subr.bf16.mxu0 %v3624
    %4631 = vmatpush1.bf16.msra.mxu0 %v3623
    %4632 = vmatprep.subr.bf16.mxu0 %v3627
    %4633 = vmatpush1.bf16.msra.mxu0 %v3626
    %4634 = vmatprep.subr.bf16.mxu0 %v3630
    %4635 = vmatpush1.bf16.msra.mxu0 %v3629
    %4636 = vmatprep.subr.bf16.mxu0 %v3633
    %4637 = vmatpush1.bf16.msra.mxu0 %v3632
    %4638 = vmatprep.subr.bf16.mxu0 %v3636
    %4639 = vmatpush1.bf16.msra.mxu0 %v3635
    %4640 = vmatprep.subr.bf16.mxu0 %v3639
    %4641 = vmatpush1.bf16.msra.mxu0 %v3638
    %4642 = vmatprep.subr.bf16.mxu0 %v3642
    %4643 = vmatpush1.bf16.msra.mxu0 %v3641
    %4644 = vmatprep.subr.bf16.mxu0 %v3645
    %4645 = vmatpush1.bf16.msra.mxu0 %v3644
    %4646 = vmatprep.mubr.bf16.mxu0 %v4607
    %4647 = vmatmul.mubr.bf16.gmra.mrb[0].mxu0 %v4606
    %v4648 = vpop.f32.mrb[0].mxu0
    %v4649 = vadd.f32 %v4515, %v4648
    %v4650 = vpop.f32.mrb[0].mxu0
    %v4651 = vadd.f32 %v4517, %v4650
    %v4652 = vpop.f32.mrb[0].mxu0
    %v4653 = vpop.f32.mrb[0].mxu0
    %4654 = vdwg.mxu0
    %4655 = vmatprep.subr.bf16.mxu0 %v3648
    %4656 = vmatpush1.bf16.msra.mxu0 %v3647
    %4657 = vmatprep.subr.bf16.mxu0 %v3651
    %4658 = vmatpush1.bf16.msra.mxu0 %v3650
    %4659 = vmatprep.subr.bf16.mxu0 %v3654
    %4660 = vmatpush1.bf16.msra.mxu0 %v3653
    %4661 = vmatprep.subr.bf16.mxu0 %v3657
    %4662 = vmatpush1.bf16.msra.mxu0 %v3656
    %4663 = vmatprep.subr.bf16.mxu0 0
    %4664 = vmatpush1.bf16.msra.mxu0 0
    %4665 = vmatprep.subr.bf16.mxu0 0
    %4666 = vmatpush1.bf16.msra.mxu0 0
    %4667 = vmatprep.subr.bf16.mxu0 0
    %4668 = vmatpush1.bf16.msra.mxu0 0
    %4669 = vmatprep.subr.bf16.mxu0 0
    %4670 = vmatpush1.bf16.msra.mxu0 0
    %4671 = vmatprep.subr.bf16.mxu0 0
    %4672 = vmatpush1.bf16.msra.mxu0 0
    %4673 = vmatprep.subr.bf16.mxu0 0
    %4674 = vmatpush1.bf16.msra.mxu0 0
    %4675 = vmatprep.subr.bf16.mxu0 0
    %4676 = vmatpush1.bf16.msra.mxu0 0
    %4677 = vmatprep.subr.bf16.mxu0 0
    %4678 = vmatpush1.bf16.msra.mxu0 0
    %4679 = vmatprep.subr.bf16.mxu0 0
    %4680 = vmatpush1.bf16.msra.mxu0 0
    %4681 = vmatprep.subr.bf16.mxu0 0
    %4682 = vmatpush1.bf16.msra.mxu0 0
    %4683 = vmatprep.subr.bf16.mxu0 0
    %4684 = vmatpush1.bf16.msra.mxu0 0
    %4685 = vmatprep.subr.bf16.mxu0 0
    %4686 = vmatpush1.bf16.msra.mxu0 0
    %4687 = vmatprep.mubr.bf16.mxu0 0
    %4688 = vmatmul.mubr.bf16.gmra.mrb[0].mxu0 %v4612
    %v4689 = vpop.f32.mrb[0].mxu0
    %v4690 = vadd.f32 %v4649, %v4689
    %v4691 = vpop.f32.mrb[0].mxu0
    %v4692 = vadd.f32 %v4651, %v4691
    %v4693 = vpop.f32.mrb[0].mxu0
    %v4694 = vpop.f32.mrb[0].mxu0
    %4695 = vdwg.mxu0
    %4696 = vmatprep.subr.bf16.mxu0 0
    %4697 = vmatpush1.bf16.msra.mxu0 %v3601
    %4698 = vmatprep.subr.bf16.mxu0 0
    %4699 = vmatpush1.bf16.msra.mxu0 %v3604
    %4700 = vmatprep.subr.bf16.mxu0 0
    %4701 = vmatpush1.bf16.msra.mxu0 %v3607
    %4702 = vmatprep.subr.bf16.mxu0 0
    %4703 = vmatpush1.bf16.msra.mxu0 %v3610
    %4704 = vmatprep.subr.bf16.mxu0 0
    %4705 = vmatpush1.bf16.msra.mxu0 %v3613
    %4706 = vmatprep.subr.bf16.mxu0 0
    %4707 = vmatpush1.bf16.msra.mxu0 %v3616
    %4708 = vmatprep.subr.bf16.mxu0 0
    %4709 = vmatpush1.bf16.msra.mxu0 %v3619
    %4710 = vmatprep.subr.bf16.mxu0 0
    %4711 = vmatpush1.bf16.msra.mxu0 %v3622
    %4712 = vmatprep.subr.bf16.mxu0 0
    %4713 = vmatpush1.bf16.msra.mxu0 %v3625
    %4714 = vmatprep.subr.bf16.mxu0 0
    %4715 = vmatpush1.bf16.msra.mxu0 %v3628
    %4716 = vmatprep.subr.bf16.mxu0 0
    %4717 = vmatpush1.bf16.msra.mxu0 %v3631
    %4718 = vmatprep.subr.bf16.mxu0 0
    %4719 = vmatpush1.bf16.msra.mxu0 %v3634
    %4720 = vmatprep.subr.bf16.mxu0 0
    %4721 = vmatpush1.bf16.msra.mxu0 %v3637
    %4722 = vmatprep.subr.bf16.mxu0 0
    %4723 = vmatpush1.bf16.msra.mxu0 %v3640
    %4724 = vmatprep.subr.bf16.mxu0 0
    %4725 = vmatpush1.bf16.msra.mxu0 %v3643
    %4726 = vmatprep.subr.bf16.mxu0 0
    %4727 = vmatpush1.bf16.msra.mxu0 %v3646
    %4728 = vmatprep.mubr.bf16.mxu0 %v4607
    %4729 = vmatmul.mubr.bf16.gmra.mrb[0].mxu0 %v4606
    %v4730 = vpop.f32.mrb[0].mxu0
    %v4731 = vadd.f32 %v4596, %v4730
    %v4732 = vpop.f32.mrb[0].mxu0
    %v4733 = vpop.f32.mrb[0].mxu0
    %v4734 = vpop.f32.mrb[0].mxu0
    %4735 = vdwg.mxu0
    %4736 = vmatprep.subr.bf16.mxu0 0
    %4737 = vmatpush1.bf16.msra.mxu0 %v3649
    %4738 = vmatprep.subr.bf16.mxu0 0
    %4739 = vmatpush1.bf16.msra.mxu0 %v3652
    %4740 = vmatprep.subr.bf16.mxu0 0
    %4741 = vmatpush1.bf16.msra.mxu0 %v3655
    %4742 = vmatprep.subr.bf16.mxu0 0
    %4743 = vmatpush1.bf16.msra.mxu0 %v3658
    %4744 = vmatprep.subr.bf16.mxu0 0
    %4745 = vmatpush1.bf16.msra.mxu0 0
    %4746 = vmatprep.subr.bf16.mxu0 0
    %4747 = vmatpush1.bf16.msra.mxu0 0
    %4748 = vmatprep.subr.bf16.mxu0 0
    %4749 = vmatpush1.bf16.msra.mxu0 0
    %4750 = vmatprep.subr.bf16.mxu0 0
    %4751 = vmatpush1.bf16.msra.mxu0 0
    %4752 = vmatprep.subr.bf16.mxu0 0
    %4753 = vmatpush1.bf16.msra.mxu0 0
    %4754 = vmatprep.subr.bf16.mxu0 0
    %4755 = vmatpush1.bf16.msra.mxu0 0
    %4756 = vmatprep.subr.bf16.mxu0 0
    %4757 = vmatpush1.bf16.msra.mxu0 0
    %4758 = vmatprep.subr.bf16.mxu0 0
    %4759 = vmatpush1.bf16.msra.mxu0 0
    %4760 = vmatprep.subr.bf16.mxu0 0
    %4761 = vmatpush1.bf16.msra.mxu0 0
    %4762 = vmatprep.subr.bf16.mxu0 0
    %4763 = vmatpush1.bf16.msra.mxu0 0
    %4764 = vmatprep.subr.bf16.mxu0 0
    %4765 = vmatpush1.bf16.msra.mxu0 0
    %4766 = vmatprep.subr.bf16.mxu0 0
    %4767 = vmatpush1.bf16.msra.mxu0 0
    %4768 = vmatprep.mubr.bf16.mxu0 0
    %4769 = vmatmul.mubr.bf16.gmra.mrb[0].mxu0 %v4612
    %v4770 = vpop.f32.mrb[0].mxu0
    %v4771 = vadd.f32 %v4731, %v4770
    %v4772 = vpop.f32.mrb[0].mxu0
    %v4773 = vpop.f32.mrb[0].mxu0
    %v4774 = vpop.f32.mrb[0].mxu0
    %4775 = vdwg.mxu0
    %v4776 = vld [vmem:[%s1515] sm:$0xff]
    %v4777 = vld [vmem:[%s1515 + $0x8] sm:$0xf]
    %v4780 = vunpack.c.l.b16 %v4776
    %v4781 = vunpack.c.h.b16 %v4776
    %v4782 = vunpack.c.l.b16 %v4777
    %v4783 = vpack.c.b16 %v4780, %v4780
    %v4784 = vpack.c.b16 %v4781, %v4781
    %v4785 = vpack.c.b16 %v4782, %v4782
    %v4789 = vsel %vm3223, %v4785, 0
    %4791 = vmatprep.subr.bf16.mxu0 %v4097
    %4792 = vmatpush1.bf16.msra.mxu0 %v4096
    %4793 = vmatprep.subr.bf16.mxu0 %v4100
    %4794 = vmatpush1.bf16.msra.mxu0 %v4099
    %4795 = vmatprep.subr.bf16.mxu0 %v4103
    %4796 = vmatpush1.bf16.msra.mxu0 %v4102
    %4797 = vmatprep.subr.bf16.mxu0 %v4106
    %4798 = vmatpush1.bf16.msra.mxu0 %v4105
    %4799 = vmatprep.subr.bf16.mxu0 %v4109
    %4800 = vmatpush1.bf16.msra.mxu0 %v4108
    %4801 = vmatprep.subr.bf16.mxu0 %v4112
    %4802 = vmatpush1.bf16.msra.mxu0 %v4111
    %4803 = vmatprep.subr.bf16.mxu0 %v4115
    %4804 = vmatpush1.bf16.msra.mxu0 %v4114
    %4805 = vmatprep.subr.bf16.mxu0 %v4118
    %4806 = vmatpush1.bf16.msra.mxu0 %v4117
    %4807 = vmatprep.subr.bf16.mxu0 %v4121
    %4808 = vmatpush1.bf16.msra.mxu0 %v4120
    %4809 = vmatprep.subr.bf16.mxu0 %v4124
    %4810 = vmatpush1.bf16.msra.mxu0 %v4123
    %4811 = vmatprep.subr.bf16.mxu0 %v4127
    %4812 = vmatpush1.bf16.msra.mxu0 %v4126
    %4813 = vmatprep.subr.bf16.mxu0 %v4130
    %4814 = vmatpush1.bf16.msra.mxu0 %v4129
    %4815 = vmatprep.subr.bf16.mxu0 %v4133
    %4816 = vmatpush1.bf16.msra.mxu0 %v4132
    %4817 = vmatprep.subr.bf16.mxu0 %v4136
    %4818 = vmatpush1.bf16.msra.mxu0 %v4135
    %4819 = vmatprep.subr.bf16.mxu0 %v4139
    %4820 = vmatpush1.bf16.msra.mxu0 %v4138
    %4821 = vmatprep.subr.bf16.mxu0 %v4142
    %4822 = vmatpush1.bf16.msra.mxu0 %v4141
    %4823 = vmatprep.mubr.bf16.mxu0 %v4784
    %4824 = vmatmul.mubr.bf16.gmra.mrb[0].mxu0 %v4783
    %v4825 = vpop.f32.mrb[0].mxu0
    %v4826 = vadd.f32 0.0, %v4825
    %v4827 = vpop.f32.mrb[0].mxu0
    %v4828 = vadd.f32 0.0, %v4827
    %v4829 = vpop.f32.mrb[0].mxu0
    %v4830 = vpop.f32.mrb[0].mxu0
    %4831 = vdwg.mxu0
    %4832 = vmatprep.subr.bf16.mxu0 %v4145
    %4833 = vmatpush1.bf16.msra.mxu0 %v4144
    %4834 = vmatprep.subr.bf16.mxu0 %v4148
    %4835 = vmatpush1.bf16.msra.mxu0 %v4147
    %4836 = vmatprep.subr.bf16.mxu0 %v4151
    %4837 = vmatpush1.bf16.msra.mxu0 %v4150
    %4838 = vmatprep.subr.bf16.mxu0 %v4154
    %4839 = vmatpush1.bf16.msra.mxu0 %v4153
    %4840 = vmatprep.subr.bf16.mxu0 0
    %4841 = vmatpush1.bf16.msra.mxu0 0
    %4842 = vmatprep.subr.bf16.mxu0 0
    %4843 = vmatpush1.bf16.msra.mxu0 0
    %4844 = vmatprep.subr.bf16.mxu0 0
    %4845 = vmatpush1.bf16.msra.mxu0 0
    %4846 = vmatprep.subr.bf16.mxu0 0
    %4847 = vmatpush1.bf16.msra.mxu0 0
    %4848 = vmatprep.subr.bf16.mxu0 0
    %4849 = vmatpush1.bf16.msra.mxu0 0
    %4850 = vmatprep.subr.bf16.mxu0 0
    %4851 = vmatpush1.bf16.msra.mxu0 0
    %4852 = vmatprep.subr.bf16.mxu0 0
    %4853 = vmatpush1.bf16.msra.mxu0 0
    %4854 = vmatprep.subr.bf16.mxu0 0
    %4855 = vmatpush1.bf16.msra.mxu0 0
    %4856 = vmatprep.subr.bf16.mxu0 0
    %4857 = vmatpush1.bf16.msra.mxu0 0
    %4858 = vmatprep.subr.bf16.mxu0 0
    %4859 = vmatpush1.bf16.msra.mxu0 0
    %4860 = vmatprep.subr.bf16.mxu0 0
    %4861 = vmatpush1.bf16.msra.mxu0 0
    %4862 = vmatprep.subr.bf16.mxu0 0
    %4863 = vmatpush1.bf16.msra.mxu0 0
    %4864 = vmatprep.mubr.bf16.mxu0 0
    %4865 = vmatmul.mubr.bf16.gmra.mrb[0].mxu0 %v4789
    %v4866 = vpop.f32.mrb[0].mxu0
    %v4867 = vadd.f32 %v4826, %v4866
    %v4868 = vpop.f32.mrb[0].mxu0
    %v4869 = vadd.f32 %v4828, %v4868
    %v4870 = vpop.f32.mrb[0].mxu0
    %v4871 = vpop.f32.mrb[0].mxu0
    %4872 = vdwg.mxu0
    %4873 = vmatprep.subr.bf16.mxu0 0
    %4874 = vmatpush1.bf16.msra.mxu0 %v4098
    %4875 = vmatprep.subr.bf16.mxu0 0
    %4876 = vmatpush1.bf16.msra.mxu0 %v4101
    %4877 = vmatprep.subr.bf16.mxu0 0
    %4878 = vmatpush1.bf16.msra.mxu0 %v4104
    %4879 = vmatprep.subr.bf16.mxu0 0
    %4880 = vmatpush1.bf16.msra.mxu0 %v4107
    %4881 = vmatprep.subr.bf16.mxu0 0
    %4882 = vmatpush1.bf16.msra.mxu0 %v4110
    %4883 = vmatprep.subr.bf16.mxu0 0
    %4884 = vmatpush1.bf16.msra.mxu0 %v4113
    %4885 = vmatprep.subr.bf16.mxu0 0
    %4886 = vmatpush1.bf16.msra.mxu0 %v4116
    %4887 = vmatprep.subr.bf16.mxu0 0
    %4888 = vmatpush1.bf16.msra.mxu0 %v4119
    %4889 = vmatprep.subr.bf16.mxu0 0
    %4890 = vmatpush1.bf16.msra.mxu0 %v4122
    %4891 = vmatprep.subr.bf16.mxu0 0
    %4892 = vmatpush1.bf16.msra.mxu0 %v4125
    %4893 = vmatprep.subr.bf16.mxu0 0
    %4894 = vmatpush1.bf16.msra.mxu0 %v4128
    %4895 = vmatprep.subr.bf16.mxu0 0
    %4896 = vmatpush1.bf16.msra.mxu0 %v4131
    %4897 = vmatprep.subr.bf16.mxu0 0
    %4898 = vmatpush1.bf16.msra.mxu0 %v4134
    %4899 = vmatprep.subr.bf16.mxu0 0
    %4900 = vmatpush1.bf16.msra.mxu0 %v4137
    %4901 = vmatprep.subr.bf16.mxu0 0
    %4902 = vmatpush1.bf16.msra.mxu0 %v4140
    %4903 = vmatprep.subr.bf16.mxu0 0
    %4904 = vmatpush1.bf16.msra.mxu0 %v4143
    %4905 = vmatprep.mubr.bf16.mxu0 %v4784
    %4906 = vmatmul.mubr.bf16.gmra.mrb[0].mxu0 %v4783
    %v4907 = vpop.f32.mrb[0].mxu0
    %v4908 = vadd.f32 0.0, %v4907
    %v4909 = vpop.f32.mrb[0].mxu0
    %v4910 = vpop.f32.mrb[0].mxu0
    %v4911 = vpop.f32.mrb[0].mxu0
    %4912 = vdwg.mxu0
    %4913 = vmatprep.subr.bf16.mxu0 0
    %4914 = vmatpush1.bf16.msra.mxu0 %v4146
    %4915 = vmatprep.subr.bf16.mxu0 0
    %4916 = vmatpush1.bf16.msra.mxu0 %v4149
    %4917 = vmatprep.subr.bf16.mxu0 0
    %4918 = vmatpush1.bf16.msra.mxu0 %v4152
    %4919 = vmatprep.subr.bf16.mxu0 0
    %4920 = vmatpush1.bf16.msra.mxu0 %v4155
    %4921 = vmatprep.subr.bf16.mxu0 0
    %4922 = vmatpush1.bf16.msra.mxu0 0
    %4923 = vmatprep.subr.bf16.mxu0 0
    %4924 = vmatpush1.bf16.msra.mxu0 0
    %4925 = vmatprep.subr.bf16.mxu0 0
    %4926 = vmatpush1.bf16.msra.mxu0 0
    %4927 = vmatprep.subr.bf16.mxu0 0
    %4928 = vmatpush1.bf16.msra.mxu0 0
    %4929 = vmatprep.subr.bf16.mxu0 0
    %4930 = vmatpush1.bf16.msra.mxu0 0
    %4931 = vmatprep.subr.bf16.mxu0 0
    %4932 = vmatpush1.bf16.msra.mxu0 0
    %4933 = vmatprep.subr.bf16.mxu0 0
    %4934 = vmatpush1.bf16.msra.mxu0 0
    %4935 = vmatprep.subr.bf16.mxu0 0
    %4936 = vmatpush1.bf16.msra.mxu0 0
    %4937 = vmatprep.subr.bf16.mxu0 0
    %4938 = vmatpush1.bf16.msra.mxu0 0
    %4939 = vmatprep.subr.bf16.mxu0 0
    %4940 = vmatpush1.bf16.msra.mxu0 0
    %4941 = vmatprep.subr.bf16.mxu0 0
    %4942 = vmatpush1.bf16.msra.mxu0 0
    %4943 = vmatprep.subr.bf16.mxu0 0
    %4944 = vmatpush1.bf16.msra.mxu0 0
    %4945 = vmatprep.mubr.bf16.mxu0 0
    %4946 = vmatmul.mubr.bf16.gmra.mrb[0].mxu0 %v4789
    %v4947 = vpop.f32.mrb[0].mxu0
    %v4948 = vadd.f32 %v4908, %v4947
    %v4949 = vpop.f32.mrb[0].mxu0
    %v4950 = vpop.f32.mrb[0].mxu0
    %v4951 = vpop.f32.mrb[0].mxu0
    %4952 = vdwg.mxu0
    %v4953 = vadd.f32 %v4690, %v4867
    %v4954 = vadd.f32 %v4692, %v4869
    %v4955 = vadd.f32 %v4771, %v4948
    %v4956 = vadd.f32 %v4953, %v4388
    %v4957 = vadd.f32 %v4954, %v4392
    %v4958 = vadd.f32 %v4955, %v4396
    %v4959 = vmax.f32 %v4956, 0.0
    %v4960 = vmax.f32 %v4957, 0.0
    %v4961 = vmax.f32 %v4958, 0.0
    %v4962 = vpack.c.bf16 %v4959, %v4959
    %v4963 = vpack.c.bf16 %v4960, %v4960
    %v4964 = vpack.c.bf16 %v4961, %v4961
    %v4968 = vunpack.c.l.b16 %v4962
    %v4969 = vunpack.c.l.b16 %v4963
    %v4970 = vunpack.c.l.b16 %v4964
    %v4971 = vpack.c.b16 %v4969, %v4968
    %v4972 = vpack.c.b16 %v4970, %v4970
    %s4975 = scalar_lea.vmem [#allocation3], 24
    %4976 = vst [vmem:[%s4975] sm:$0xff] %v4971
    %4977 = vst [vmem:[%s4975 + $0x8] sm:$0xf] %v4972
    %v4978 = vld [vmem:[%s1515] sm:$0xff]
    %v4979 = vld [vmem:[%s1515 + $0x8] sm:$0xf]
    %v4980 = vld [vmem:[%s1797] sm:$0xff]
    %v4981 = vld [vmem:[%s1797 + $0x8] sm:$0xf]
    %v4984 = vunpack.c.l.b16 %v4980
    %v4985 = vunpack.c.h.b16 %v4980
    %v4986 = vunpack.c.l.b16 %v4981
    %v4987 = vpack.c.b16 %v4984, %v4984
    %v4988 = vpack.c.b16 %v4985, %v4985
    %v4989 = vpack.c.b16 %v4986, %v4986
    %v4993 = vsel %vm3223, %v4989, 0
    %4995 = vmatprep.subr.bf16.mxu0 %v3104
    %4996 = vmatpush1.bf16.msra.mxu0 %v3103
    %4997 = vmatprep.subr.bf16.mxu0 %v3107
    %4998 = vmatpush1.bf16.msra.mxu0 %v3106
    %4999 = vmatprep.subr.bf16.mxu0 %v3110
    %5000 = vmatpush1.bf16.msra.mxu0 %v3109
    %5001 = vmatprep.subr.bf16.mxu0 %v3113
    %5002 = vmatpush1.bf16.msra.mxu0 %v3112
    %5003 = vmatprep.subr.bf16.mxu0 %v3116
    %5004 = vmatpush1.bf16.msra.mxu0 %v3115
    %5005 = vmatprep.subr.bf16.mxu0 %v3119
    %5006 = vmatpush1.bf16.msra.mxu0 %v3118
    %5007 = vmatprep.subr.bf16.mxu0 %v3122
    %5008 = vmatpush1.bf16.msra.mxu0 %v3121
    %5009 = vmatprep.subr.bf16.mxu0 %v3125
    %5010 = vmatpush1.bf16.msra.mxu0 %v3124
    %5011 = vmatprep.subr.bf16.mxu0 %v3128
    %5012 = vmatpush1.bf16.msra.mxu0 %v3127
    %5013 = vmatprep.subr.bf16.mxu0 %v3131
    %5014 = vmatpush1.bf16.msra.mxu0 %v3130
    %5015 = vmatprep.subr.bf16.mxu0 %v3134
    %5016 = vmatpush1.bf16.msra.mxu0 %v3133
    %5017 = vmatprep.subr.bf16.mxu0 %v3137
    %5018 = vmatpush1.bf16.msra.mxu0 %v3136
    %5019 = vmatprep.subr.bf16.mxu0 %v3140
    %5020 = vmatpush1.bf16.msra.mxu0 %v3139
    %5021 = vmatprep.subr.bf16.mxu0 %v3143
    %5022 = vmatpush1.bf16.msra.mxu0 %v3142
    %5023 = vmatprep.subr.bf16.mxu0 %v3146
    %5024 = vmatpush1.bf16.msra.mxu0 %v3145
    %5025 = vmatprep.subr.bf16.mxu0 %v3149
    %5026 = vmatpush1.bf16.msra.mxu0 %v3148
    %5027 = vmatprep.mubr.bf16.mxu0 %v4988
    %5028 = vmatmul.mubr.bf16.gmra.mrb[0].mxu0 %v4987
    %v5029 = vpop.f32.mrb[0].mxu0
    %v5030 = vadd.f32 0.0, %v5029
    %v5031 = vpop.f32.mrb[0].mxu0
    %v5032 = vadd.f32 0.0, %v5031
    %v5033 = vpop.f32.mrb[0].mxu0
    %v5034 = vpop.f32.mrb[0].mxu0
    %5035 = vdwg.mxu0
    %5036 = vmatprep.subr.bf16.mxu0 %v3152
    %5037 = vmatpush1.bf16.msra.mxu0 %v3151
    %5038 = vmatprep.subr.bf16.mxu0 %v3155
    %5039 = vmatpush1.bf16.msra.mxu0 %v3154
    %5040 = vmatprep.subr.bf16.mxu0 %v3158
    %5041 = vmatpush1.bf16.msra.mxu0 %v3157
    %5042 = vmatprep.subr.bf16.mxu0 %v3161
    %5043 = vmatpush1.bf16.msra.mxu0 %v3160
    %5044 = vmatprep.subr.bf16.mxu0 0
    %5045 = vmatpush1.bf16.msra.mxu0 0
    %5046 = vmatprep.subr.bf16.mxu0 0
    %5047 = vmatpush1.bf16.msra.mxu0 0
    %5048 = vmatprep.subr.bf16.mxu0 0
    %5049 = vmatpush1.bf16.msra.mxu0 0
    %5050 = vmatprep.subr.bf16.mxu0 0
    %5051 = vmatpush1.bf16.msra.mxu0 0
    %5052 = vmatprep.subr.bf16.mxu0 0
    %5053 = vmatpush1.bf16.msra.mxu0 0
    %5054 = vmatprep.subr.bf16.mxu0 0
    %5055 = vmatpush1.bf16.msra.mxu0 0
    %5056 = vmatprep.subr.bf16.mxu0 0
    %5057 = vmatpush1.bf16.msra.mxu0 0
    %5058 = vmatprep.subr.bf16.mxu0 0
    %5059 = vmatpush1.bf16.msra.mxu0 0
    %5060 = vmatprep.subr.bf16.mxu0 0
    %5061 = vmatpush1.bf16.msra.mxu0 0
    %5062 = vmatprep.subr.bf16.mxu0 0
    %5063 = vmatpush1.bf16.msra.mxu0 0
    %5064 = vmatprep.subr.bf16.mxu0 0
    %5065 = vmatpush1.bf16.msra.mxu0 0
    %5066 = vmatprep.subr.bf16.mxu0 0
    %5067 = vmatpush1.bf16.msra.mxu0 0
    %5068 = vmatprep.mubr.bf16.mxu0 0
    %5069 = vmatmul.mubr.bf16.gmra.mrb[0].mxu0 %v4993
    %v5070 = vpop.f32.mrb[0].mxu0
    %v5071 = vadd.f32 %v5030, %v5070
    %v5072 = vpop.f32.mrb[0].mxu0
    %v5073 = vadd.f32 %v5032, %v5072
    %v5074 = vpop.f32.mrb[0].mxu0
    %v5075 = vpop.f32.mrb[0].mxu0
    %5076 = vdwg.mxu0
    %5077 = vmatprep.subr.bf16.mxu0 0
    %5078 = vmatpush1.bf16.msra.mxu0 %v3105
    %5079 = vmatprep.subr.bf16.mxu0 0
    %5080 = vmatpush1.bf16.msra.mxu0 %v3108
    %5081 = vmatprep.subr.bf16.mxu0 0
    %5082 = vmatpush1.bf16.msra.mxu0 %v3111
    %5083 = vmatprep.subr.bf16.mxu0 0
    %5084 = vmatpush1.bf16.msra.mxu0 %v3114
    %5085 = vmatprep.subr.bf16.mxu0 0
    %5086 = vmatpush1.bf16.msra.mxu0 %v3117
    %5087 = vmatprep.subr.bf16.mxu0 0
    %5088 = vmatpush1.bf16.msra.mxu0 %v3120
    %5089 = vmatprep.subr.bf16.mxu0 0
    %5090 = vmatpush1.bf16.msra.mxu0 %v3123
    %5091 = vmatprep.subr.bf16.mxu0 0
    %5092 = vmatpush1.bf16.msra.mxu0 %v3126
    %5093 = vmatprep.subr.bf16.mxu0 0
    %5094 = vmatpush1.bf16.msra.mxu0 %v3129
    %5095 = vmatprep.subr.bf16.mxu0 0
    %5096 = vmatpush1.bf16.msra.mxu0 %v3132
    %5097 = vmatprep.subr.bf16.mxu0 0
    %5098 = vmatpush1.bf16.msra.mxu0 %v3135
    %5099 = vmatprep.subr.bf16.mxu0 0
    %5100 = vmatpush1.bf16.msra.mxu0 %v3138
    %5101 = vmatprep.subr.bf16.mxu0 0
    %5102 = vmatpush1.bf16.msra.mxu0 %v3141
    %5103 = vmatprep.subr.bf16.mxu0 0
    %5104 = vmatpush1.bf16.msra.mxu0 %v3144
    %5105 = vmatprep.subr.bf16.mxu0 0
    %5106 = vmatpush1.bf16.msra.mxu0 %v3147
    %5107 = vmatprep.subr.bf16.mxu0 0
    %5108 = vmatpush1.bf16.msra.mxu0 %v3150
    %5109 = vmatprep.mubr.bf16.mxu0 %v4988
    %5110 = vmatmul.mubr.bf16.gmra.mrb[0].mxu0 %v4987
    %v5111 = vpop.f32.mrb[0].mxu0
    %v5112 = vadd.f32 0.0, %v5111
    %v5113 = vpop.f32.mrb[0].mxu0
    %v5114 = vpop.f32.mrb[0].mxu0
    %v5115 = vpop.f32.mrb[0].mxu0
    %5116 = vdwg.mxu0
    %5117 = vmatprep.subr.bf16.mxu0 0
    %5118 = vmatpush1.bf16.msra.mxu0 %v3153
    %5119 = vmatprep.subr.bf16.mxu0 0
    %5120 = vmatpush1.bf16.msra.mxu0 %v3156
    %5121 = vmatprep.subr.bf16.mxu0 0
    %5122 = vmatpush1.bf16.msra.mxu0 %v3159
    %5123 = vmatprep.subr.bf16.mxu0 0
    %5124 = vmatpush1.bf16.msra.mxu0 %v3162
    %5125 = vmatprep.subr.bf16.mxu0 0
    %5126 = vmatpush1.bf16.msra.mxu0 0
    %5127 = vmatprep.subr.bf16.mxu0 0
    %5128 = vmatpush1.bf16.msra.mxu0 0
    %5129 = vmatprep.subr.bf16.mxu0 0
    %5130 = vmatpush1.bf16.msra.mxu0 0
    %5131 = vmatprep.subr.bf16.mxu0 0
    %5132 = vmatpush1.bf16.msra.mxu0 0
    %5133 = vmatprep.subr.bf16.mxu0 0
    %5134 = vmatpush1.bf16.msra.mxu0 0
    %5135 = vmatprep.subr.bf16.mxu0 0
    %5136 = vmatpush1.bf16.msra.mxu0 0
    %5137 = vmatprep.subr.bf16.mxu0 0
    %5138 = vmatpush1.bf16.msra.mxu0 0
    %5139 = vmatprep.subr.bf16.mxu0 0
    %5140 = vmatpush1.bf16.msra.mxu0 0
    %5141 = vmatprep.subr.bf16.mxu0 0
    %5142 = vmatpush1.bf16.msra.mxu0 0
    %5143 = vmatprep.subr.bf16.mxu0 0
    %5144 = vmatpush1.bf16.msra.mxu0 0
    %5145 = vmatprep.subr.bf16.mxu0 0
    %5146 = vmatpush1.bf16.msra.mxu0 0
    %5147 = vmatprep.subr.bf16.mxu0 0
    %5148 = vmatpush1.bf16.msra.mxu0 0
    %5149 = vmatprep.mubr.bf16.mxu0 0
    %5150 = vmatmul.mubr.bf16.gmra.mrb[0].mxu0 %v4993
    %v5151 = vpop.f32.mrb[0].mxu0
    %v5152 = vadd.f32 %v5112, %v5151
    %v5153 = vpop.f32.mrb[0].mxu0
    %v5154 = vpop.f32.mrb[0].mxu0
    %v5155 = vpop.f32.mrb[0].mxu0
    %5156 = vdwg.mxu0
    %v5159 = vunpack.c.l.b16 %v4978
    %v5160 = vunpack.c.h.b16 %v4978
    %v5161 = vunpack.c.l.b16 %v4979
    %v5162 = vpack.c.b16 %v5159, %v5159
    %v5163 = vpack.c.b16 %v5160, %v5160
    %v5164 = vpack.c.b16 %v5161, %v5161
    %v5168 = vsel %vm3223, %v5164, 0
    %5170 = vmatprep.subr.bf16.mxu0 %v3600
    %5171 = vmatpush1.bf16.msra.mxu0 %v3599
    %5172 = vmatprep.subr.bf16.mxu0 %v3603
    %5173 = vmatpush1.bf16.msra.mxu0 %v3602
    %5174 = vmatprep.subr.bf16.mxu0 %v3606
    %5175 = vmatpush1.bf16.msra.mxu0 %v3605
    %5176 = vmatprep.subr.bf16.mxu0 %v3609
    %5177 = vmatpush1.bf16.msra.mxu0 %v3608
    %5178 = vmatprep.subr.bf16.mxu0 %v3612
    %5179 = vmatpush1.bf16.msra.mxu0 %v3611
    %5180 = vmatprep.subr.bf16.mxu0 %v3615
    %5181 = vmatpush1.bf16.msra.mxu0 %v3614
    %5182 = vmatprep.subr.bf16.mxu0 %v3618
    %5183 = vmatpush1.bf16.msra.mxu0 %v3617
    %5184 = vmatprep.subr.bf16.mxu0 %v3621
    %5185 = vmatpush1.bf16.msra.mxu0 %v3620
    %5186 = vmatprep.subr.bf16.mxu0 %v3624
    %5187 = vmatpush1.bf16.msra.mxu0 %v3623
    %5188 = vmatprep.subr.bf16.mxu0 %v3627
    %5189 = vmatpush1.bf16.msra.mxu0 %v3626
    %5190 = vmatprep.subr.bf16.mxu0 %v3630
    %5191 = vmatpush1.bf16.msra.mxu0 %v3629
    %5192 = vmatprep.subr.bf16.mxu0 %v3633
    %5193 = vmatpush1.bf16.msra.mxu0 %v3632
    %5194 = vmatprep.subr.bf16.mxu0 %v3636
    %5195 = vmatpush1.bf16.msra.mxu0 %v3635
    %5196 = vmatprep.subr.bf16.mxu0 %v3639
    %5197 = vmatpush1.bf16.msra.mxu0 %v3638
    %5198 = vmatprep.subr.bf16.mxu0 %v3642
    %5199 = vmatpush1.bf16.msra.mxu0 %v3641
    %5200 = vmatprep.subr.bf16.mxu0 %v3645
    %5201 = vmatpush1.bf16.msra.mxu0 %v3644
    %5202 = vmatprep.mubr.bf16.mxu0 %v5163
    %5203 = vmatmul.mubr.bf16.gmra.mrb[0].mxu0 %v5162
    %v5204 = vpop.f32.mrb[0].mxu0
    %v5205 = vadd.f32 %v5071, %v5204
    %v5206 = vpop.f32.mrb[0].mxu0
    %v5207 = vadd.f32 %v5073, %v5206
    %v5208 = vpop.f32.mrb[0].mxu0
    %v5209 = vpop.f32.mrb[0].mxu0
    %5210 = vdwg.mxu0
    %5211 = vmatprep.subr.bf16.mxu0 %v3648
    %5212 = vmatpush1.bf16.msra.mxu0 %v3647
    %5213 = vmatprep.subr.bf16.mxu0 %v3651
    %5214 = vmatpush1.bf16.msra.mxu0 %v3650
    %5215 = vmatprep.subr.bf16.mxu0 %v3654
    %5216 = vmatpush1.bf16.msra.mxu0 %v3653
    %5217 = vmatprep.subr.bf16.mxu0 %v3657
    %5218 = vmatpush1.bf16.msra.mxu0 %v3656
    %5219 = vmatprep.subr.bf16.mxu0 0
    %5220 = vmatpush1.bf16.msra.mxu0 0
    %5221 = vmatprep.subr.bf16.mxu0 0
    %5222 = vmatpush1.bf16.msra.mxu0 0
    %5223 = vmatprep.subr.bf16.mxu0 0
    %5224 = vmatpush1.bf16.msra.mxu0 0
    %5225 = vmatprep.subr.bf16.mxu0 0
    %5226 = vmatpush1.bf16.msra.mxu0 0
    %5227 = vmatprep.subr.bf16.mxu0 0
    %5228 = vmatpush1.bf16.msra.mxu0 0
    %5229 = vmatprep.subr.bf16.mxu0 0
    %5230 = vmatpush1.bf16.msra.mxu0 0
    %5231 = vmatprep.subr.bf16.mxu0 0
    %5232 = vmatpush1.bf16.msra.mxu0 0
    %5233 = vmatprep.subr.bf16.mxu0 0
    %5234 = vmatpush1.bf16.msra.mxu0 0
    %5235 = vmatprep.subr.bf16.mxu0 0
    %5236 = vmatpush1.bf16.msra.mxu0 0
    %5237 = vmatprep.subr.bf16.mxu0 0
    %5238 = vmatpush1.bf16.msra.mxu0 0
    %5239 = vmatprep.subr.bf16.mxu0 0
    %5240 = vmatpush1.bf16.msra.mxu0 0
    %5241 = vmatprep.subr.bf16.mxu0 0
    %5242 = vmatpush1.bf16.msra.mxu0 0
    %5243 = vmatprep.mubr.bf16.mxu0 0
    %5244 = vmatmul.mubr.bf16.gmra.mrb[0].mxu0 %v5168
    %v5245 = vpop.f32.mrb[0].mxu0
    %v5246 = vadd.f32 %v5205, %v5245
    %v5247 = vpop.f32.mrb[0].mxu0
    %v5248 = vadd.f32 %v5207, %v5247
    %v5249 = vpop.f32.mrb[0].mxu0
    %v5250 = vpop.f32.mrb[0].mxu0
    %5251 = vdwg.mxu0
    %5252 = vmatprep.subr.bf16.mxu0 0
    %5253 = vmatpush1.bf16.msra.mxu0 %v3601
    %5254 = vmatprep.subr.bf16.mxu0 0
    %5255 = vmatpush1.bf16.msra.mxu0 %v3604
    %5256 = vmatprep.subr.bf16.mxu0 0
    %5257 = vmatpush1.bf16.msra.mxu0 %v3607
    %5258 = vmatprep.subr.bf16.mxu0 0
    %5259 = vmatpush1.bf16.msra.mxu0 %v3610
    %5260 = vmatprep.subr.bf16.mxu0 0
    %5261 = vmatpush1.bf16.msra.mxu0 %v3613
    %5262 = vmatprep.subr.bf16.mxu0 0
    %5263 = vmatpush1.bf16.msra.mxu0 %v3616
    %5264 = vmatprep.subr.bf16.mxu0 0
    %5265 = vmatpush1.bf16.msra.mxu0 %v3619
    %5266 = vmatprep.subr.bf16.mxu0 0
    %5267 = vmatpush1.bf16.msra.mxu0 %v3622
    %5268 = vmatprep.subr.bf16.mxu0 0
    %5269 = vmatpush1.bf16.msra.mxu0 %v3625
    %5270 = vmatprep.subr.bf16.mxu0 0
    %5271 = vmatpush1.bf16.msra.mxu0 %v3628
    %5272 = vmatprep.subr.bf16.mxu0 0
    %5273 = vmatpush1.bf16.msra.mxu0 %v3631
    %5274 = vmatprep.subr.bf16.mxu0 0
    %5275 = vmatpush1.bf16.msra.mxu0 %v3634
    %5276 = vmatprep.subr.bf16.mxu0 0
    %5277 = vmatpush1.bf16.msra.mxu0 %v3637
    %5278 = vmatprep.subr.bf16.mxu0 0
    %5279 = vmatpush1.bf16.msra.mxu0 %v3640
    %5280 = vmatprep.subr.bf16.mxu0 0
    %5281 = vmatpush1.bf16.msra.mxu0 %v3643
    %5282 = vmatprep.subr.bf16.mxu0 0
    %5283 = vmatpush1.bf16.msra.mxu0 %v3646
    %5284 = vmatprep.mubr.bf16.mxu0 %v5163
    %5285 = vmatmul.mubr.bf16.gmra.mrb[0].mxu0 %v5162
    %v5286 = vpop.f32.mrb[0].mxu0
    %v5287 = vadd.f32 %v5152, %v5286
    %v5288 = vpop.f32.mrb[0].mxu0
    %v5289 = vpop.f32.mrb[0].mxu0
    %v5290 = vpop.f32.mrb[0].mxu0
    %5291 = vdwg.mxu0
    %5292 = vmatprep.subr.bf16.mxu0 0
    %5293 = vmatpush1.bf16.msra.mxu0 %v3649
    %5294 = vmatprep.subr.bf16.mxu0 0
    %5295 = vmatpush1.bf16.msra.mxu0 %v3652
    %5296 = vmatprep.subr.bf16.mxu0 0
    %5297 = vmatpush1.bf16.msra.mxu0 %v3655
    %5298 = vmatprep.subr.bf16.mxu0 0
    %5299 = vmatpush1.bf16.msra.mxu0 %v3658
    %5300 = vmatprep.subr.bf16.mxu0 0
    %5301 = vmatpush1.bf16.msra.mxu0 0
    %5302 = vmatprep.subr.bf16.mxu0 0
    %5303 = vmatpush1.bf16.msra.mxu0 0
    %5304 = vmatprep.subr.bf16.mxu0 0
    %5305 = vmatpush1.bf16.msra.mxu0 0
    %5306 = vmatprep.subr.bf16.mxu0 0
    %5307 = vmatpush1.bf16.msra.mxu0 0
    %5308 = vmatprep.subr.bf16.mxu0 0
    %5309 = vmatpush1.bf16.msra.mxu0 0
    %5310 = vmatprep.subr.bf16.mxu0 0
    %5311 = vmatpush1.bf16.msra.mxu0 0
    %5312 = vmatprep.subr.bf16.mxu0 0
    %5313 = vmatpush1.bf16.msra.mxu0 0
    %5314 = vmatprep.subr.bf16.mxu0 0
    %5315 = vmatpush1.bf16.msra.mxu0 0
    %5316 = vmatprep.subr.bf16.mxu0 0
    %5317 = vmatpush1.bf16.msra.mxu0 0
    %5318 = vmatprep.subr.bf16.mxu0 0
    %5319 = vmatpush1.bf16.msra.mxu0 0
    %5320 = vmatprep.subr.bf16.mxu0 0
    %5321 = vmatpush1.bf16.msra.mxu0 0
    %5322 = vmatprep.subr.bf16.mxu0 0
    %5323 = vmatpush1.bf16.msra.mxu0 0
    %5324 = vmatprep.mubr.bf16.mxu0 0
    %5325 = vmatmul.mubr.bf16.gmra.mrb[0].mxu0 %v5168
    %v5326 = vpop.f32.mrb[0].mxu0
    %v5327 = vadd.f32 %v5287, %v5326
    %v5328 = vpop.f32.mrb[0].mxu0
    %v5329 = vpop.f32.mrb[0].mxu0
    %v5330 = vpop.f32.mrb[0].mxu0
    %5331 = vdwg.mxu0
    %v5332 = vld [vmem:[%s2079] sm:$0xff]
    %v5333 = vld [vmem:[%s2079 + $0x8] sm:$0xf]
    %v5336 = vunpack.c.l.b16 %v5332
    %v5337 = vunpack.c.h.b16 %v5332
    %v5338 = vunpack.c.l.b16 %v5333
    %v5339 = vpack.c.b16 %v5336, %v5336
    %v5340 = vpack.c.b16 %v5337, %v5337
    %v5341 = vpack.c.b16 %v5338, %v5338
    %v5345 = vsel %vm3223, %v5341, 0
    %5347 = vmatprep.subr.bf16.mxu0 %v4097
    %5348 = vmatpush1.bf16.msra.mxu0 %v4096
    %5349 = vmatprep.subr.bf16.mxu0 %v4100
    %5350 = vmatpush1.bf16.msra.mxu0 %v4099
    %5351 = vmatprep.subr.bf16.mxu0 %v4103
    %5352 = vmatpush1.bf16.msra.mxu0 %v4102
    %5353 = vmatprep.subr.bf16.mxu0 %v4106
    %5354 = vmatpush1.bf16.msra.mxu0 %v4105
    %5355 = vmatprep.subr.bf16.mxu0 %v4109
    %5356 = vmatpush1.bf16.msra.mxu0 %v4108
    %5357 = vmatprep.subr.bf16.mxu0 %v4112
    %5358 = vmatpush1.bf16.msra.mxu0 %v4111
    %5359 = vmatprep.subr.bf16.mxu0 %v4115
    %5360 = vmatpush1.bf16.msra.mxu0 %v4114
    %5361 = vmatprep.subr.bf16.mxu0 %v4118
    %5362 = vmatpush1.bf16.msra.mxu0 %v4117
    %5363 = vmatprep.subr.bf16.mxu0 %v4121
    %5364 = vmatpush1.bf16.msra.mxu0 %v4120
    %5365 = vmatprep.subr.bf16.mxu0 %v4124
    %5366 = vmatpush1.bf16.msra.mxu0 %v4123
    %5367 = vmatprep.subr.bf16.mxu0 %v4127
    %5368 = vmatpush1.bf16.msra.mxu0 %v4126
    %5369 = vmatprep.subr.bf16.mxu0 %v4130
    %5370 = vmatpush1.bf16.msra.mxu0 %v4129
    %5371 = vmatprep.subr.bf16.mxu0 %v4133
    %5372 = vmatpush1.bf16.msra.mxu0 %v4132
    %5373 = vmatprep.subr.bf16.mxu0 %v4136
    %5374 = vmatpush1.bf16.msra.mxu0 %v4135
    %5375 = vmatprep.subr.bf16.mxu0 %v4139
    %5376 = vmatpush1.bf16.msra.mxu0 %v4138
    %5377 = vmatprep.subr.bf16.mxu0 %v4142
    %5378 = vmatpush1.bf16.msra.mxu0 %v4141
    %5379 = vmatprep.mubr.bf16.mxu0 %v5340
    %5380 = vmatmul.mubr.bf16.gmra.mrb[0].mxu0 %v5339
    %v5381 = vpop.f32.mrb[0].mxu0
    %v5382 = vadd.f32 0.0, %v5381
    %v5383 = vpop.f32.mrb[0].mxu0
    %v5384 = vadd.f32 0.0, %v5383
    %v5385 = vpop.f32.mrb[0].mxu0
    %v5386 = vpop.f32.mrb[0].mxu0
    %5387 = vdwg.mxu0
    %5388 = vmatprep.subr.bf16.mxu0 %v4145
    %5389 = vmatpush1.bf16.msra.mxu0 %v4144
    %5390 = vmatprep.subr.bf16.mxu0 %v4148
    %5391 = vmatpush1.bf16.msra.mxu0 %v4147
    %5392 = vmatprep.subr.bf16.mxu0 %v4151
    %5393 = vmatpush1.bf16.msra.mxu0 %v4150
    %5394 = vmatprep.subr.bf16.mxu0 %v4154
    %5395 = vmatpush1.bf16.msra.mxu0 %v4153
    %5396 = vmatprep.subr.bf16.mxu0 0
    %5397 = vmatpush1.bf16.msra.mxu0 0
    %5398 = vmatprep.subr.bf16.mxu0 0
    %5399 = vmatpush1.bf16.msra.mxu0 0
    %5400 = vmatprep.subr.bf16.mxu0 0
    %5401 = vmatpush1.bf16.msra.mxu0 0
    %5402 = vmatprep.subr.bf16.mxu0 0
    %5403 = vmatpush1.bf16.msra.mxu0 0
    %5404 = vmatprep.subr.bf16.mxu0 0
    %5405 = vmatpush1.bf16.msra.mxu0 0
    %5406 = vmatprep.subr.bf16.mxu0 0
    %5407 = vmatpush1.bf16.msra.mxu0 0
    %5408 = vmatprep.subr.bf16.mxu0 0
    %5409 = vmatpush1.bf16.msra.mxu0 0
    %5410 = vmatprep.subr.bf16.mxu0 0
    %5411 = vmatpush1.bf16.msra.mxu0 0
    %5412 = vmatprep.subr.bf16.mxu0 0
    %5413 = vmatpush1.bf16.msra.mxu0 0
    %5414 = vmatprep.subr.bf16.mxu0 0
    %5415 = vmatpush1.bf16.msra.mxu0 0
    %5416 = vmatprep.subr.bf16.mxu0 0
    %5417 = vmatpush1.bf16.msra.mxu0 0
    %5418 = vmatprep.subr.bf16.mxu0 0
    %5419 = vmatpush1.bf16.msra.mxu0 0
    %5420 = vmatprep.mubr.bf16.mxu0 0
    %5421 = vmatmul.mubr.bf16.gmra.mrb[0].mxu0 %v5345
    %v5422 = vpop.f32.mrb[0].mxu0
    %v5423 = vadd.f32 %v5382, %v5422
    %v5424 = vpop.f32.mrb[0].mxu0
    %v5425 = vadd.f32 %v5384, %v5424
    %v5426 = vpop.f32.mrb[0].mxu0
    %v5427 = vpop.f32.mrb[0].mxu0
    %5428 = vdwg.mxu0
    %5429 = vmatprep.subr.bf16.mxu0 0
    %5430 = vmatpush1.bf16.msra.mxu0 %v4098
    %5431 = vmatprep.subr.bf16.mxu0 0
    %5432 = vmatpush1.bf16.msra.mxu0 %v4101
    %5433 = vmatprep.subr.bf16.mxu0 0
    %5434 = vmatpush1.bf16.msra.mxu0 %v4104
    %5435 = vmatprep.subr.bf16.mxu0 0
    %5436 = vmatpush1.bf16.msra.mxu0 %v4107
    %5437 = vmatprep.subr.bf16.mxu0 0
    %5438 = vmatpush1.bf16.msra.mxu0 %v4110
    %5439 = vmatprep.subr.bf16.mxu0 0
    %5440 = vmatpush1.bf16.msra.mxu0 %v4113
    %5441 = vmatprep.subr.bf16.mxu0 0
    %5442 = vmatpush1.bf16.msra.mxu0 %v4116
    %5443 = vmatprep.subr.bf16.mxu0 0
    %5444 = vmatpush1.bf16.msra.mxu0 %v4119
    %5445 = vmatprep.subr.bf16.mxu0 0
    %5446 = vmatpush1.bf16.msra.mxu0 %v4122
    %5447 = vmatprep.subr.bf16.mxu0 0
    %5448 = vmatpush1.bf16.msra.mxu0 %v4125
    %5449 = vmatprep.subr.bf16.mxu0 0
    %5450 = vmatpush1.bf16.msra.mxu0 %v4128
    %5451 = vmatprep.subr.bf16.mxu0 0
    %5452 = vmatpush1.bf16.msra.mxu0 %v4131
    %5453 = vmatprep.subr.bf16.mxu0 0
    %5454 = vmatpush1.bf16.msra.mxu0 %v4134
    %5455 = vmatprep.subr.bf16.mxu0 0
    %5456 = vmatpush1.bf16.msra.mxu0 %v4137
    %5457 = vmatprep.subr.bf16.mxu0 0
    %5458 = vmatpush1.bf16.msra.mxu0 %v4140
    %5459 = vmatprep.subr.bf16.mxu0 0
    %5460 = vmatpush1.bf16.msra.mxu0 %v4143
    %5461 = vmatprep.mubr.bf16.mxu0 %v5340
    %5462 = vmatmul.mubr.bf16.gmra.mrb[0].mxu0 %v5339
    %v5463 = vpop.f32.mrb[0].mxu0
    %v5464 = vadd.f32 0.0, %v5463
    %v5465 = vpop.f32.mrb[0].mxu0
    %v5466 = vpop.f32.mrb[0].mxu0
    %v5467 = vpop.f32.mrb[0].mxu0
    %5468 = vdwg.mxu0
    %5469 = vmatprep.subr.bf16.mxu0 0
    %5470 = vmatpush1.bf16.msra.mxu0 %v4146
    %5471 = vmatprep.subr.bf16.mxu0 0
    %5472 = vmatpush1.bf16.msra.mxu0 %v4149
    %5473 = vmatprep.subr.bf16.mxu0 0
    %5474 = vmatpush1.bf16.msra.mxu0 %v4152
    %5475 = vmatprep.subr.bf16.mxu0 0
    %5476 = vmatpush1.bf16.msra.mxu0 %v4155
    %5477 = vmatprep.subr.bf16.mxu0 0
    %5478 = vmatpush1.bf16.msra.mxu0 0
    %5479 = vmatprep.subr.bf16.mxu0 0
    %5480 = vmatpush1.bf16.msra.mxu0 0
    %5481 = vmatprep.subr.bf16.mxu0 0
    %5482 = vmatpush1.bf16.msra.mxu0 0
    %5483 = vmatprep.subr.bf16.mxu0 0
    %5484 = vmatpush1.bf16.msra.mxu0 0
    %5485 = vmatprep.subr.bf16.mxu0 0
    %5486 = vmatpush1.bf16.msra.mxu0 0
    %5487 = vmatprep.subr.bf16.mxu0 0
    %5488 = vmatpush1.bf16.msra.mxu0 0
    %5489 = vmatprep.subr.bf16.mxu0 0
    %5490 = vmatpush1.bf16.msra.mxu0 0
    %5491 = vmatprep.subr.bf16.mxu0 0
    %5492 = vmatpush1.bf16.msra.mxu0 0
    %5493 = vmatprep.subr.bf16.mxu0 0
    %5494 = vmatpush1.bf16.msra.mxu0 0
    %5495 = vmatprep.subr.bf16.mxu0 0
    %5496 = vmatpush1.bf16.msra.mxu0 0
    %5497 = vmatprep.subr.bf16.mxu0 0
    %5498 = vmatpush1.bf16.msra.mxu0 0
    %5499 = vmatprep.subr.bf16.mxu0 0
    %5500 = vmatpush1.bf16.msra.mxu0 0
    %5501 = vmatprep.mubr.bf16.mxu0 0
    %5502 = vmatmul.mubr.bf16.gmra.mrb[0].mxu0 %v5345
    %v5503 = vpop.f32.mrb[0].mxu0
    %v5504 = vadd.f32 %v5464, %v5503
    %v5505 = vpop.f32.mrb[0].mxu0
    %v5506 = vpop.f32.mrb[0].mxu0
    %v5507 = vpop.f32.mrb[0].mxu0
    %5508 = vdwg.mxu0
    %v5509 = vadd.f32 %v5246, %v5423
    %v5510 = vadd.f32 %v5248, %v5425
    %v5511 = vadd.f32 %v5327, %v5504
    %v5512 = vadd.f32 %v5509, %v4388
    %v5513 = vadd.f32 %v5510, %v4392
    %v5514 = vadd.f32 %v5511, %v4396
    %v5515 = vmax.f32 %v5512, 0.0
    %v5516 = vmax.f32 %v5513, 0.0
    %v5517 = vmax.f32 %v5514, 0.0
    %v5518 = vpack.c.bf16 %v5515, %v5515
    %v5519 = vpack.c.bf16 %v5516, %v5516
    %v5520 = vpack.c.bf16 %v5517, %v5517
    %v5524 = vunpack.c.l.b16 %v5518
    %v5525 = vunpack.c.l.b16 %v5519
    %v5526 = vunpack.c.l.b16 %v5520
    %v5527 = vpack.c.b16 %v5525, %v5524
    %v5528 = vpack.c.b16 %v5526, %v5526
    %s5531 = scalar_lea.vmem [#allocation3], 36
    %5532 = vst [vmem:[%s5531] sm:$0xff] %v5527
    %5533 = vst [vmem:[%s5531 + $0x8] sm:$0xf] %v5528
    %v5534 = vld [vmem:[%s2079] sm:$0xff]
    %v5535 = vld [vmem:[%s2079 + $0x8] sm:$0xf]
    %v5536 = vld [vmem:[%s2361] sm:$0xff]
    %v5537 = vld [vmem:[%s2361 + $0x8] sm:$0xf]
    %v5540 = vunpack.c.l.b16 %v5536
    %v5541 = vunpack.c.h.b16 %v5536
    %v5542 = vunpack.c.l.b16 %v5537
    %v5543 = vpack.c.b16 %v5540, %v5540
    %v5544 = vpack.c.b16 %v5541, %v5541
    %v5545 = vpack.c.b16 %v5542, %v5542
    %v5549 = vsel %vm3223, %v5545, 0
    %5551 = vmatprep.subr.bf16.mxu0 %v3104
    %5552 = vmatpush1.bf16.msra.mxu0 %v3103
    %5553 = vmatprep.subr.bf16.mxu0 %v3107
    %5554 = vmatpush1.bf16.msra.mxu0 %v3106
    %5555 = vmatprep.subr.bf16.mxu0 %v3110
    %5556 = vmatpush1.bf16.msra.mxu0 %v3109
    %5557 = vmatprep.subr.bf16.mxu0 %v3113
    %5558 = vmatpush1.bf16.msra.mxu0 %v3112
    %5559 = vmatprep.subr.bf16.mxu0 %v3116
    %5560 = vmatpush1.bf16.msra.mxu0 %v3115
    %5561 = vmatprep.subr.bf16.mxu0 %v3119
    %5562 = vmatpush1.bf16.msra.mxu0 %v3118
    %5563 = vmatprep.subr.bf16.mxu0 %v3122
    %5564 = vmatpush1.bf16.msra.mxu0 %v3121
    %5565 = vmatprep.subr.bf16.mxu0 %v3125
    %5566 = vmatpush1.bf16.msra.mxu0 %v3124
    %5567 = vmatprep.subr.bf16.mxu0 %v3128
    %5568 = vmatpush1.bf16.msra.mxu0 %v3127
    %5569 = vmatprep.subr.bf16.mxu0 %v3131
    %5570 = vmatpush1.bf16.msra.mxu0 %v3130
    %5571 = vmatprep.subr.bf16.mxu0 %v3134
    %5572 = vmatpush1.bf16.msra.mxu0 %v3133
    %5573 = vmatprep.subr.bf16.mxu0 %v3137
    %5574 = vmatpush1.bf16.msra.mxu0 %v3136
    %5575 = vmatprep.subr.bf16.mxu0 %v3140
    %5576 = vmatpush1.bf16.msra.mxu0 %v3139
    %5577 = vmatprep.subr.bf16.mxu0 %v3143
    %5578 = vmatpush1.bf16.msra.mxu0 %v3142
    %5579 = vmatprep.subr.bf16.mxu0 %v3146
    %5580 = vmatpush1.bf16.msra.mxu0 %v3145
    %5581 = vmatprep.subr.bf16.mxu0 %v3149
    %5582 = vmatpush1.bf16.msra.mxu0 %v3148
    %5583 = vmatprep.mubr.bf16.mxu0 %v5544
    %5584 = vmatmul.mubr.bf16.gmra.mrb[0].mxu0 %v5543
    %v5585 = vpop.f32.mrb[0].mxu0
    %v5586 = vadd.f32 0.0, %v5585
    %v5587 = vpop.f32.mrb[0].mxu0
    %v5588 = vadd.f32 0.0, %v5587
    %v5589 = vpop.f32.mrb[0].mxu0
    %v5590 = vpop.f32.mrb[0].mxu0
    %5591 = vdwg.mxu0
    %5592 = vmatprep.subr.bf16.mxu0 %v3152
    %5593 = vmatpush1.bf16.msra.mxu0 %v3151
    %5594 = vmatprep.subr.bf16.mxu0 %v3155
    %5595 = vmatpush1.bf16.msra.mxu0 %v3154
    %5596 = vmatprep.subr.bf16.mxu0 %v3158
    %5597 = vmatpush1.bf16.msra.mxu0 %v3157
    %5598 = vmatprep.subr.bf16.mxu0 %v3161
    %5599 = vmatpush1.bf16.msra.mxu0 %v3160
    %5600 = vmatprep.subr.bf16.mxu0 0
    %5601 = vmatpush1.bf16.msra.mxu0 0
    %5602 = vmatprep.subr.bf16.mxu0 0
    %5603 = vmatpush1.bf16.msra.mxu0 0
    %5604 = vmatprep.subr.bf16.mxu0 0
    %5605 = vmatpush1.bf16.msra.mxu0 0
    %5606 = vmatprep.subr.bf16.mxu0 0
    %5607 = vmatpush1.bf16.msra.mxu0 0
    %5608 = vmatprep.subr.bf16.mxu0 0
    %5609 = vmatpush1.bf16.msra.mxu0 0
    %5610 = vmatprep.subr.bf16.mxu0 0
    %5611 = vmatpush1.bf16.msra.mxu0 0
    %5612 = vmatprep.subr.bf16.mxu0 0
    %5613 = vmatpush1.bf16.msra.mxu0 0
    %5614 = vmatprep.subr.bf16.mxu0 0
    %5615 = vmatpush1.bf16.msra.mxu0 0
    %5616 = vmatprep.subr.bf16.mxu0 0
    %5617 = vmatpush1.bf16.msra.mxu0 0
    %5618 = vmatprep.subr.bf16.mxu0 0
    %5619 = vmatpush1.bf16.msra.mxu0 0
    %5620 = vmatprep.subr.bf16.mxu0 0
    %5621 = vmatpush1.bf16.msra.mxu0 0
    %5622 = vmatprep.subr.bf16.mxu0 0
    %5623 = vmatpush1.bf16.msra.mxu0 0
    %5624 = vmatprep.mubr.bf16.mxu0 0
    %5625 = vmatmul.mubr.bf16.gmra.mrb[0].mxu0 %v5549
    %v5626 = vpop.f32.mrb[0].mxu0
    %v5627 = vadd.f32 %v5586, %v5626
    %v5628 = vpop.f32.mrb[0].mxu0
    %v5629 = vadd.f32 %v5588, %v5628
    %v5630 = vpop.f32.mrb[0].mxu0
    %v5631 = vpop.f32.mrb[0].mxu0
    %5632 = vdwg.mxu0
    %5633 = vmatprep.subr.bf16.mxu0 0
    %5634 = vmatpush1.bf16.msra.mxu0 %v3105
    %5635 = vmatprep.subr.bf16.mxu0 0
    %5636 = vmatpush1.bf16.msra.mxu0 %v3108
    %5637 = vmatprep.subr.bf16.mxu0 0
    %5638 = vmatpush1.bf16.msra.mxu0 %v3111
    %5639 = vmatprep.subr.bf16.mxu0 0
    %5640 = vmatpush1.bf16.msra.mxu0 %v3114
    %5641 = vmatprep.subr.bf16.mxu0 0
    %5642 = vmatpush1.bf16.msra.mxu0 %v3117
    %5643 = vmatprep.subr.bf16.mxu0 0
    %5644 = vmatpush1.bf16.msra.mxu0 %v3120
    %5645 = vmatprep.subr.bf16.mxu0 0
    %5646 = vmatpush1.bf16.msra.mxu0 %v3123
    %5647 = vmatprep.subr.bf16.mxu0 0
    %5648 = vmatpush1.bf16.msra.mxu0 %v3126
    %5649 = vmatprep.subr.bf16.mxu0 0
    %5650 = vmatpush1.bf16.msra.mxu0 %v3129
    %5651 = vmatprep.subr.bf16.mxu0 0
    %5652 = vmatpush1.bf16.msra.mxu0 %v3132
    %5653 = vmatprep.subr.bf16.mxu0 0
    %5654 = vmatpush1.bf16.msra.mxu0 %v3135
    %5655 = vmatprep.subr.bf16.mxu0 0
    %5656 = vmatpush1.bf16.msra.mxu0 %v3138
    %5657 = vmatprep.subr.bf16.mxu0 0
    %5658 = vmatpush1.bf16.msra.mxu0 %v3141
    %5659 = vmatprep.subr.bf16.mxu0 0
    %5660 = vmatpush1.bf16.msra.mxu0 %v3144
    %5661 = vmatprep.subr.bf16.mxu0 0
    %5662 = vmatpush1.bf16.msra.mxu0 %v3147
    %5663 = vmatprep.subr.bf16.mxu0 0
    %5664 = vmatpush1.bf16.msra.mxu0 %v3150
    %5665 = vmatprep.mubr.bf16.mxu0 %v5544
    %5666 = vmatmul.mubr.bf16.gmra.mrb[0].mxu0 %v5543
    %v5667 = vpop.f32.mrb[0].mxu0
    %v5668 = vadd.f32 0.0, %v5667
    %v5669 = vpop.f32.mrb[0].mxu0
    %v5670 = vpop.f32.mrb[0].mxu0
    %v5671 = vpop.f32.mrb[0].mxu0
    %5672 = vdwg.mxu0
    %5673 = vmatprep.subr.bf16.mxu0 0
    %5674 = vmatpush1.bf16.msra.mxu0 %v3153
    %5675 = vmatprep.subr.bf16.mxu0 0
    %5676 = vmatpush1.bf16.msra.mxu0 %v3156
    %5677 = vmatprep.subr.bf16.mxu0 0
    %5678 = vmatpush1.bf16.msra.mxu0 %v3159
    %5679 = vmatprep.subr.bf16.mxu0 0
    %5680 = vmatpush1.bf16.msra.mxu0 %v3162
    %5681 = vmatprep.subr.bf16.mxu0 0
    %5682 = vmatpush1.bf16.msra.mxu0 0
    %5683 = vmatprep.subr.bf16.mxu0 0
    %5684 = vmatpush1.bf16.msra.mxu0 0
    %5685 = vmatprep.subr.bf16.mxu0 0
    %5686 = vmatpush1.bf16.msra.mxu0 0
    %5687 = vmatprep.subr.bf16.mxu0 0
    %5688 = vmatpush1.bf16.msra.mxu0 0
    %5689 = vmatprep.subr.bf16.mxu0 0
    %5690 = vmatpush1.bf16.msra.mxu0 0
    %5691 = vmatprep.subr.bf16.mxu0 0
    %5692 = vmatpush1.bf16.msra.mxu0 0
    %5693 = vmatprep.subr.bf16.mxu0 0
    %5694 = vmatpush1.bf16.msra.mxu0 0
    %5695 = vmatprep.subr.bf16.mxu0 0
    %5696 = vmatpush1.bf16.msra.mxu0 0
    %5697 = vmatprep.subr.bf16.mxu0 0
    %5698 = vmatpush1.bf16.msra.mxu0 0
    %5699 = vmatprep.subr.bf16.mxu0 0
    %5700 = vmatpush1.bf16.msra.mxu0 0
    %5701 = vmatprep.subr.bf16.mxu0 0
    %5702 = vmatpush1.bf16.msra.mxu0 0
    %5703 = vmatprep.subr.bf16.mxu0 0
    %5704 = vmatpush1.bf16.msra.mxu0 0
    %5705 = vmatprep.mubr.bf16.mxu0 0
    %5706 = vmatmul.mubr.bf16.gmra.mrb[0].mxu0 %v5549
    %v5707 = vpop.f32.mrb[0].mxu0
    %v5708 = vadd.f32 %v5668, %v5707
    %v5709 = vpop.f32.mrb[0].mxu0
    %v5710 = vpop.f32.mrb[0].mxu0
    %v5711 = vpop.f32.mrb[0].mxu0
    %5712 = vdwg.mxu0
    %v5715 = vunpack.c.l.b16 %v5534
    %v5716 = vunpack.c.h.b16 %v5534
    %v5717 = vunpack.c.l.b16 %v5535
    %v5718 = vpack.c.b16 %v5715, %v5715
    %v5719 = vpack.c.b16 %v5716, %v5716
    %v5720 = vpack.c.b16 %v5717, %v5717
    %v5724 = vsel %vm3223, %v5720, 0
    %5726 = vmatprep.subr.bf16.mxu0 %v3600
    %5727 = vmatpush1.bf16.msra.mxu0 %v3599
    %5728 = vmatprep.subr.bf16.mxu0 %v3603
    %5729 = vmatpush1.bf16.msra.mxu0 %v3602
    %5730 = vmatprep.subr.bf16.mxu0 %v3606
    %5731 = vmatpush1.bf16.msra.mxu0 %v3605
    %5732 = vmatprep.subr.bf16.mxu0 %v3609
    %5733 = vmatpush1.bf16.msra.mxu0 %v3608
    %5734 = vmatprep.subr.bf16.mxu0 %v3612
    %5735 = vmatpush1.bf16.msra.mxu0 %v3611
    %5736 = vmatprep.subr.bf16.mxu0 %v3615
    %5737 = vmatpush1.bf16.msra.mxu0 %v3614
    %5738 = vmatprep.subr.bf16.mxu0 %v3618
    %5739 = vmatpush1.bf16.msra.mxu0 %v3617
    %5740 = vmatprep.subr.bf16.mxu0 %v3621
    %5741 = vmatpush1.bf16.msra.mxu0 %v3620
    %5742 = vmatprep.subr.bf16.mxu0 %v3624
    %5743 = vmatpush1.bf16.msra.mxu0 %v3623
    %5744 = vmatprep.subr.bf16.mxu0 %v3627
    %5745 = vmatpush1.bf16.msra.mxu0 %v3626
    %5746 = vmatprep.subr.bf16.mxu0 %v3630
    %5747 = vmatpush1.bf16.msra.mxu0 %v3629
    %5748 = vmatprep.subr.bf16.mxu0 %v3633
    %5749 = vmatpush1.bf16.msra.mxu0 %v3632
    %5750 = vmatprep.subr.bf16.mxu0 %v3636
    %5751 = vmatpush1.bf16.msra.mxu0 %v3635
    %5752 = vmatprep.subr.bf16.mxu0 %v3639
    %5753 = vmatpush1.bf16.msra.mxu0 %v3638
    %5754 = vmatprep.subr.bf16.mxu0 %v3642
    %5755 = vmatpush1.bf16.msra.mxu0 %v3641
    %5756 = vmatprep.subr.bf16.mxu0 %v3645
    %5757 = vmatpush1.bf16.msra.mxu0 %v3644
    %5758 = vmatprep.mubr.bf16.mxu0 %v5719
    %5759 = vmatmul.mubr.bf16.gmra.mrb[0].mxu0 %v5718
    %v5760 = vpop.f32.mrb[0].mxu0
    %v5761 = vadd.f32 %v5627, %v5760
    %v5762 = vpop.f32.mrb[0].mxu0
    %v5763 = vadd.f32 %v5629, %v5762
    %v5764 = vpop.f32.mrb[0].mxu0
    %v5765 = vpop.f32.mrb[0].mxu0
    %5766 = vdwg.mxu0
    %5767 = vmatprep.subr.bf16.mxu0 %v3648
    %5768 = vmatpush1.bf16.msra.mxu0 %v3647
    %5769 = vmatprep.subr.bf16.mxu0 %v3651
    %5770 = vmatpush1.bf16.msra.mxu0 %v3650
    %5771 = vmatprep.subr.bf16.mxu0 %v3654
    %5772 = vmatpush1.bf16.msra.mxu0 %v3653
    %5773 = vmatprep.subr.bf16.mxu0 %v3657
    %5774 = vmatpush1.bf16.msra.mxu0 %v3656
    %5775 = vmatprep.subr.bf16.mxu0 0
    %5776 = vmatpush1.bf16.msra.mxu0 0
    %5777 = vmatprep.subr.bf16.mxu0 0
    %5778 = vmatpush1.bf16.msra.mxu0 0
    %5779 = vmatprep.subr.bf16.mxu0 0
    %5780 = vmatpush1.bf16.msra.mxu0 0
    %5781 = vmatprep.subr.bf16.mxu0 0
    %5782 = vmatpush1.bf16.msra.mxu0 0
    %5783 = vmatprep.subr.bf16.mxu0 0
    %5784 = vmatpush1.bf16.msra.mxu0 0
    %5785 = vmatprep.subr.bf16.mxu0 0
    %5786 = vmatpush1.bf16.msra.mxu0 0
    %5787 = vmatprep.subr.bf16.mxu0 0
    %5788 = vmatpush1.bf16.msra.mxu0 0
    %5789 = vmatprep.subr.bf16.mxu0 0
    %5790 = vmatpush1.bf16.msra.mxu0 0
    %5791 = vmatprep.subr.bf16.mxu0 0
    %5792 = vmatpush1.bf16.msra.mxu0 0
    %5793 = vmatprep.subr.bf16.mxu0 0
    %5794 = vmatpush1.bf16.msra.mxu0 0
    %5795 = vmatprep.subr.bf16.mxu0 0
    %5796 = vmatpush1.bf16.msra.mxu0 0
    %5797 = vmatprep.subr.bf16.mxu0 0
    %5798 = vmatpush1.bf16.msra.mxu0 0
    %5799 = vmatprep.mubr.bf16.mxu0 0
    %5800 = vmatmul.mubr.bf16.gmra.mrb[0].mxu0 %v5724
    %v5801 = vpop.f32.mrb[0].mxu0
    %v5802 = vadd.f32 %v5761, %v5801
    %v5803 = vpop.f32.mrb[0].mxu0
    %v5804 = vadd.f32 %v5763, %v5803
    %v5805 = vpop.f32.mrb[0].mxu0
    %v5806 = vpop.f32.mrb[0].mxu0
    %5807 = vdwg.mxu0
    %5808 = vmatprep.subr.bf16.mxu0 0
    %5809 = vmatpush1.bf16.msra.mxu0 %v3601
    %5810 = vmatprep.subr.bf16.mxu0 0
    %5811 = vmatpush1.bf16.msra.mxu0 %v3604
    %5812 = vmatprep.subr.bf16.mxu0 0
    %5813 = vmatpush1.bf16.msra.mxu0 %v3607
    %5814 = vmatprep.subr.bf16.mxu0 0
    %5815 = vmatpush1.bf16.msra.mxu0 %v3610
    %5816 = vmatprep.subr.bf16.mxu0 0
    %5817 = vmatpush1.bf16.msra.mxu0 %v3613
    %5818 = vmatprep.subr.bf16.mxu0 0
    %5819 = vmatpush1.bf16.msra.mxu0 %v3616
    %5820 = vmatprep.subr.bf16.mxu0 0
    %5821 = vmatpush1.bf16.msra.mxu0 %v3619
    %5822 = vmatprep.subr.bf16.mxu0 0
    %5823 = vmatpush1.bf16.msra.mxu0 %v3622
    %5824 = vmatprep.subr.bf16.mxu0 0
    %5825 = vmatpush1.bf16.msra.mxu0 %v3625
    %5826 = vmatprep.subr.bf16.mxu0 0
    %5827 = vmatpush1.bf16.msra.mxu0 %v3628
    %5828 = vmatprep.subr.bf16.mxu0 0
    %5829 = vmatpush1.bf16.msra.mxu0 %v3631
    %5830 = vmatprep.subr.bf16.mxu0 0
    %5831 = vmatpush1.bf16.msra.mxu0 %v3634
    %5832 = vmatprep.subr.bf16.mxu0 0
    %5833 = vmatpush1.bf16.msra.mxu0 %v3637
    %5834 = vmatprep.subr.bf16.mxu0 0
    %5835 = vmatpush1.bf16.msra.mxu0 %v3640
    %5836 = vmatprep.subr.bf16.mxu0 0
    %5837 = vmatpush1.bf16.msra.mxu0 %v3643
    %5838 = vmatprep.subr.bf16.mxu0 0
    %5839 = vmatpush1.bf16.msra.mxu0 %v3646
    %5840 = vmatprep.mubr.bf16.mxu0 %v5719
    %5841 = vmatmul.mubr.bf16.gmra.mrb[0].mxu0 %v5718
    %v5842 = vpop.f32.mrb[0].mxu0
    %v5843 = vadd.f32 %v5708, %v5842
    %v5844 = vpop.f32.mrb[0].mxu0
    %v5845 = vpop.f32.mrb[0].mxu0
    %v5846 = vpop.f32.mrb[0].mxu0
    %5847 = vdwg.mxu0
    %5848 = vmatprep.subr.bf16.mxu0 0
    %5849 = vmatpush1.bf16.msra.mxu0 %v3649
    %5850 = vmatprep.subr.bf16.mxu0 0
    %5851 = vmatpush1.bf16.msra.mxu0 %v3652
    %5852 = vmatprep.subr.bf16.mxu0 0
    %5853 = vmatpush1.bf16.msra.mxu0 %v3655
    %5854 = vmatprep.subr.bf16.mxu0 0
    %5855 = vmatpush1.bf16.msra.mxu0 %v3658
    %5856 = vmatprep.subr.bf16.mxu0 0
    %5857 = vmatpush1.bf16.msra.mxu0 0
    %5858 = vmatprep.subr.bf16.mxu0 0
    %5859 = vmatpush1.bf16.msra.mxu0 0
    %5860 = vmatprep.subr.bf16.mxu0 0
    %5861 = vmatpush1.bf16.msra.mxu0 0
    %5862 = vmatprep.subr.bf16.mxu0 0
    %5863 = vmatpush1.bf16.msra.mxu0 0
    %5864 = vmatprep.subr.bf16.mxu0 0
    %5865 = vmatpush1.bf16.msra.mxu0 0
    %5866 = vmatprep.subr.bf16.mxu0 0
    %5867 = vmatpush1.bf16.msra.mxu0 0
    %5868 = vmatprep.subr.bf16.mxu0 0
    %5869 = vmatpush1.bf16.msra.mxu0 0
    %5870 = vmatprep.subr.bf16.mxu0 0
    %5871 = vmatpush1.bf16.msra.mxu0 0
    %5872 = vmatprep.subr.bf16.mxu0 0
    %5873 = vmatpush1.bf16.msra.mxu0 0
    %5874 = vmatprep.subr.bf16.mxu0 0
    %5875 = vmatpush1.bf16.msra.mxu0 0
    %5876 = vmatprep.subr.bf16.mxu0 0
    %5877 = vmatpush1.bf16.msra.mxu0 0
    %5878 = vmatprep.subr.bf16.mxu0 0
    %5879 = vmatpush1.bf16.msra.mxu0 0
    %5880 = vmatprep.mubr.bf16.mxu0 0
    %5881 = vmatmul.mubr.bf16.gmra.mrb[0].mxu0 %v5724
    %v5882 = vpop.f32.mrb[0].mxu0
    %v5883 = vadd.f32 %v5843, %v5882
    %v5884 = vpop.f32.mrb[0].mxu0
    %v5885 = vpop.f32.mrb[0].mxu0
    %v5886 = vpop.f32.mrb[0].mxu0
    %5887 = vdwg.mxu0
    %v5888 = vld [vmem:[%s2643] sm:$0xff]
    %v5889 = vld [vmem:[%s2643 + $0x8] sm:$0xf]
    %v5892 = vunpack.c.l.b16 %v5888
    %v5893 = vunpack.c.h.b16 %v5888
    %v5894 = vunpack.c.l.b16 %v5889
    %v5895 = vpack.c.b16 %v5892, %v5892
    %v5896 = vpack.c.b16 %v5893, %v5893
    %v5897 = vpack.c.b16 %v5894, %v5894
    %v5901 = vsel %vm3223, %v5897, 0
    %5903 = vmatprep.subr.bf16.mxu0 %v4097
    %5904 = vmatpush1.bf16.msra.mxu0 %v4096
    %5905 = vmatprep.subr.bf16.mxu0 %v4100
    %5906 = vmatpush1.bf16.msra.mxu0 %v4099
    %5907 = vmatprep.subr.bf16.mxu0 %v4103
    %5908 = vmatpush1.bf16.msra.mxu0 %v4102
    %5909 = vmatprep.subr.bf16.mxu0 %v4106
    %5910 = vmatpush1.bf16.msra.mxu0 %v4105
    %5911 = vmatprep.subr.bf16.mxu0 %v4109
    %5912 = vmatpush1.bf16.msra.mxu0 %v4108
    %5913 = vmatprep.subr.bf16.mxu0 %v4112
    %5914 = vmatpush1.bf16.msra.mxu0 %v4111
    %5915 = vmatprep.subr.bf16.mxu0 %v4115
    %5916 = vmatpush1.bf16.msra.mxu0 %v4114
    %5917 = vmatprep.subr.bf16.mxu0 %v4118
    %5918 = vmatpush1.bf16.msra.mxu0 %v4117
    %5919 = vmatprep.subr.bf16.mxu0 %v4121
    %5920 = vmatpush1.bf16.msra.mxu0 %v4120
    %5921 = vmatprep.subr.bf16.mxu0 %v4124
    %5922 = vmatpush1.bf16.msra.mxu0 %v4123
    %5923 = vmatprep.subr.bf16.mxu0 %v4127
    %5924 = vmatpush1.bf16.msra.mxu0 %v4126
    %5925 = vmatprep.subr.bf16.mxu0 %v4130
    %5926 = vmatpush1.bf16.msra.mxu0 %v4129
    %5927 = vmatprep.subr.bf16.mxu0 %v4133
    %5928 = vmatpush1.bf16.msra.mxu0 %v4132
    %5929 = vmatprep.subr.bf16.mxu0 %v4136
    %5930 = vmatpush1.bf16.msra.mxu0 %v4135
    %5931 = vmatprep.subr.bf16.mxu0 %v4139
    %5932 = vmatpush1.bf16.msra.mxu0 %v4138
    %5933 = vmatprep.subr.bf16.mxu0 %v4142
    %5934 = vmatpush1.bf16.msra.mxu0 %v4141
    %5935 = vmatprep.mubr.bf16.mxu0 %v5896
    %5936 = vmatmul.mubr.bf16.gmra.mrb[0].mxu0 %v5895
    %v5937 = vpop.f32.mrb[0].mxu0
    %v5938 = vadd.f32 0.0, %v5937
    %v5939 = vpop.f32.mrb[0].mxu0
    %v5940 = vadd.f32 0.0, %v5939
    %v5941 = vpop.f32.mrb[0].mxu0
    %v5942 = vpop.f32.mrb[0].mxu0
    %5943 = vdwg.mxu0
    %5944 = vmatprep.subr.bf16.mxu0 %v4145
    %5945 = vmatpush1.bf16.msra.mxu0 %v4144
    %5946 = vmatprep.subr.bf16.mxu0 %v4148
    %5947 = vmatpush1.bf16.msra.mxu0 %v4147
    %5948 = vmatprep.subr.bf16.mxu0 %v4151
    %5949 = vmatpush1.bf16.msra.mxu0 %v4150
    %5950 = vmatprep.subr.bf16.mxu0 %v4154
    %5951 = vmatpush1.bf16.msra.mxu0 %v4153
    %5952 = vmatprep.subr.bf16.mxu0 0
    %5953 = vmatpush1.bf16.msra.mxu0 0
    %5954 = vmatprep.subr.bf16.mxu0 0
    %5955 = vmatpush1.bf16.msra.mxu0 0
    %5956 = vmatprep.subr.bf16.mxu0 0
    %5957 = vmatpush1.bf16.msra.mxu0 0
    %5958 = vmatprep.subr.bf16.mxu0 0
    %5959 = vmatpush1.bf16.msra.mxu0 0
    %5960 = vmatprep.subr.bf16.mxu0 0
    %5961 = vmatpush1.bf16.msra.mxu0 0
    %5962 = vmatprep.subr.bf16.mxu0 0
    %5963 = vmatpush1.bf16.msra.mxu0 0
    %5964 = vmatprep.subr.bf16.mxu0 0
    %5965 = vmatpush1.bf16.msra.mxu0 0
    %5966 = vmatprep.subr.bf16.mxu0 0
    %5967 = vmatpush1.bf16.msra.mxu0 0
    %5968 = vmatprep.subr.bf16.mxu0 0
    %5969 = vmatpush1.bf16.msra.mxu0 0
    %5970 = vmatprep.subr.bf16.mxu0 0
    %5971 = vmatpush1.bf16.msra.mxu0 0
    %5972 = vmatprep.subr.bf16.mxu0 0
    %5973 = vmatpush1.bf16.msra.mxu0 0
    %5974 = vmatprep.subr.bf16.mxu0 0
    %5975 = vmatpush1.bf16.msra.mxu0 0
    %5976 = vmatprep.mubr.bf16.mxu0 0
    %5977 = vmatmul.mubr.bf16.gmra.mrb[0].mxu0 %v5901
    %v5978 = vpop.f32.mrb[0].mxu0
    %v5979 = vadd.f32 %v5938, %v5978
    %v5980 = vpop.f32.mrb[0].mxu0
    %v5981 = vadd.f32 %v5940, %v5980
    %v5982 = vpop.f32.mrb[0].mxu0
    %v5983 = vpop.f32.mrb[0].mxu0
    %5984 = vdwg.mxu0
    %5985 = vmatprep.subr.bf16.mxu0 0
    %5986 = vmatpush1.bf16.msra.mxu0 %v4098
    %5987 = vmatprep.subr.bf16.mxu0 0
    %5988 = vmatpush1.bf16.msra.mxu0 %v4101
    %5989 = vmatprep.subr.bf16.mxu0 0
    %5990 = vmatpush1.bf16.msra.mxu0 %v4104
    %5991 = vmatprep.subr.bf16.mxu0 0
    %5992 = vmatpush1.bf16.msra.mxu0 %v4107
    %5993 = vmatprep.subr.bf16.mxu0 0
    %5994 = vmatpush1.bf16.msra.mxu0 %v4110
    %5995 = vmatprep.subr.bf16.mxu0 0
    %5996 = vmatpush1.bf16.msra.mxu0 %v4113
    %5997 = vmatprep.subr.bf16.mxu0 0
    %5998 = vmatpush1.bf16.msra.mxu0 %v4116
    %5999 = vmatprep.subr.bf16.mxu0 0
    %6000 = vmatpush1.bf16.msra.mxu0 %v4119
    %6001 = vmatprep.subr.bf16.mxu0 0
    %6002 = vmatpush1.bf16.msra.mxu0 %v4122
    %6003 = vmatprep.subr.bf16.mxu0 0
    %6004 = vmatpush1.bf16.msra.mxu0 %v4125
    %6005 = vmatprep.subr.bf16.mxu0 0
    %6006 = vmatpush1.bf16.msra.mxu0 %v4128
    %6007 = vmatprep.subr.bf16.mxu0 0
    %6008 = vmatpush1.bf16.msra.mxu0 %v4131
    %6009 = vmatprep.subr.bf16.mxu0 0
    %6010 = vmatpush1.bf16.msra.mxu0 %v4134
    %6011 = vmatprep.subr.bf16.mxu0 0
    %6012 = vmatpush1.bf16.msra.mxu0 %v4137
    %6013 = vmatprep.subr.bf16.mxu0 0
    %6014 = vmatpush1.bf16.msra.mxu0 %v4140
    %6015 = vmatprep.subr.bf16.mxu0 0
    %6016 = vmatpush1.bf16.msra.mxu0 %v4143
    %6017 = vmatprep.mubr.bf16.mxu0 %v5896
    %6018 = vmatmul.mubr.bf16.gmra.mrb[0].mxu0 %v5895
    %v6019 = vpop.f32.mrb[0].mxu0
    %v6020 = vadd.f32 0.0, %v6019
    %v6021 = vpop.f32.mrb[0].mxu0
    %v6022 = vpop.f32.mrb[0].mxu0
    %v6023 = vpop.f32.mrb[0].mxu0
    %6024 = vdwg.mxu0
    %6025 = vmatprep.subr.bf16.mxu0 0
    %6026 = vmatpush1.bf16.msra.mxu0 %v4146
    %6027 = vmatprep.subr.bf16.mxu0 0
    %6028 = vmatpush1.bf16.msra.mxu0 %v4149
    %6029 = vmatprep.subr.bf16.mxu0 0
    %6030 = vmatpush1.bf16.msra.mxu0 %v4152
    %6031 = vmatprep.subr.bf16.mxu0 0
    %6032 = vmatpush1.bf16.msra.mxu0 %v4155
    %6033 = vmatprep.subr.bf16.mxu0 0
    %6034 = vmatpush1.bf16.msra.mxu0 0
    %6035 = vmatprep.subr.bf16.mxu0 0
    %6036 = vmatpush1.bf16.msra.mxu0 0
    %6037 = vmatprep.subr.bf16.mxu0 0
    %6038 = vmatpush1.bf16.msra.mxu0 0
    %6039 = vmatprep.subr.bf16.mxu0 0
    %6040 = vmatpush1.bf16.msra.mxu0 0
    %6041 = vmatprep.subr.bf16.mxu0 0
    %6042 = vmatpush1.bf16.msra.mxu0 0
    %6043 = vmatprep.subr.bf16.mxu0 0
    %6044 = vmatpush1.bf16.msra.mxu0 0
    %6045 = vmatprep.subr.bf16.mxu0 0
    %6046 = vmatpush1.bf16.msra.mxu0 0
    %6047 = vmatprep.subr.bf16.mxu0 0
    %6048 = vmatpush1.bf16.msra.mxu0 0
    %6049 = vmatprep.subr.bf16.mxu0 0
    %6050 = vmatpush1.bf16.msra.mxu0 0
    %6051 = vmatprep.subr.bf16.mxu0 0
    %6052 = vmatpush1.bf16.msra.mxu0 0
    %6053 = vmatprep.subr.bf16.mxu0 0
    %6054 = vmatpush1.bf16.msra.mxu0 0
    %6055 = vmatprep.subr.bf16.mxu0 0
    %6056 = vmatpush1.bf16.msra.mxu0 0
    %6057 = vmatprep.mubr.bf16.mxu0 0
    %6058 = vmatmul.mubr.bf16.gmra.mrb[0].mxu0 %v5901
    %v6059 = vpop.f32.mrb[0].mxu0
    %v6060 = vadd.f32 %v6020, %v6059
    %v6061 = vpop.f32.mrb[0].mxu0
    %v6062 = vpop.f32.mrb[0].mxu0
    %v6063 = vpop.f32.mrb[0].mxu0
    %6064 = vdwg.mxu0
    %v6065 = vadd.f32 %v5802, %v5979
    %v6066 = vadd.f32 %v5804, %v5981
    %v6067 = vadd.f32 %v5883, %v6060
    %v6068 = vadd.f32 %v6065, %v4388
    %v6069 = vadd.f32 %v6066, %v4392
    %v6070 = vadd.f32 %v6067, %v4396
    %v6071 = vmax.f32 %v6068, 0.0
    %v6072 = vmax.f32 %v6069, 0.0
    %v6073 = vmax.f32 %v6070, 0.0
    %v6074 = vpack.c.bf16 %v6071, %v6071
    %v6075 = vpack.c.bf16 %v6072, %v6072
    %v6076 = vpack.c.bf16 %v6073, %v6073
    %v6080 = vunpack.c.l.b16 %v6074
    %v6081 = vunpack.c.l.b16 %v6075
    %v6082 = vunpack.c.l.b16 %v6076
    %v6083 = vpack.c.b16 %v6081, %v6080
    %v6084 = vpack.c.b16 %v6082, %v6082
    %s6087 = scalar_lea.vmem [#allocation3], 48
    %6088 = vst [vmem:[%s6087] sm:$0xff] %v6083
    %6089 = vst [vmem:[%s6087 + $0x8] sm:$0xf] %v6084
    %v6090 = vld [vmem:[#allocation7] sm:$0xff]
    %v6091 = vld [vmem:[#allocation7 + $0x8] sm:$0xff]
    %v6092 = vld [vmem:[#allocation7 + $0x10] sm:$0xff]
    %v6093 = vld [vmem:[#allocation7 + $0x18] sm:$0xff]
    %v6094 = vld [vmem:[#allocation7 + $0x20] sm:$0xff]
    %v6095 = vld [vmem:[#allocation7 + $0x28] sm:$0xff]
    %v6096 = vld [vmem:[#allocation7 + $0x30] sm:$0xff]
    %v6097 = vld [vmem:[#allocation7 + $0x38] sm:$0xff]
    %v6098 = vld [vmem:[#allocation7 + $0x40] sm:$0xff]
    %v6099 = vld [vmem:[#allocation7 + $0x48] sm:$0xff]
    %v6100 = vld [vmem:[#allocation7 + $0x50] sm:$0xff]
    %v6101 = vld [vmem:[#allocation7 + $0x58] sm:$0xff]
    %v6102 = vld [vmem:[#allocation7 + $0x60] sm:$0xff]
    %v6103 = vld [vmem:[#allocation7 + $0x68] sm:$0xff]
    %v6104 = vld [vmem:[#allocation7 + $0x70] sm:$0xff]
    %v6105 = vld [vmem:[#allocation7 + $0x78] sm:$0xff]
    %v6106 = vld [vmem:[#allocation7 + $0x80] sm:$0xff]
    %v6107 = vld [vmem:[#allocation7 + $0x88] sm:$0xff]
    %v6108 = vld [vmem:[#allocation7 + $0x90] sm:$0xff]
    %v6109 = vld [vmem:[#allocation7 + $0x98] sm:$0xff]
    %v6110 = vld [vmem:[#allocation7 + $0xa0] sm:$0xff]
    %v6111 = vld [vmem:[#allocation7 + $0xa8] sm:$0xff]
    %v6112 = vld [vmem:[#allocation7 + $0xb0] sm:$0xff]
    %v6113 = vld [vmem:[#allocation7 + $0xb8] sm:$0xff]
    %v6114 = vld [vmem:[#allocation7 + $0xc0] sm:$0xff]
    %v6115 = vld [vmem:[#allocation7 + $0xc8] sm:$0xff]
    %v6116 = vld [vmem:[#allocation7 + $0xd0] sm:$0xff]
    %v6117 = vld [vmem:[#allocation7 + $0xd8] sm:$0xff]
    %v6118 = vld [vmem:[#allocation7 + $0xe0] sm:$0xff]
    %v6119 = vld [vmem:[#allocation7 + $0xe8] sm:$0xff]
    %v6120 = vld [vmem:[#allocation7 + $0xf0] sm:$0xff]
    %v6121 = vld [vmem:[#allocation7 + $0xf8] sm:$0xff]
    %v6122 = vld [vmem:[#allocation7 + $0x100] sm:$0xff]
    %v6123 = vld [vmem:[#allocation7 + $0x108] sm:$0xff]
    %v6124 = vld [vmem:[#allocation7 + $0x110] sm:$0xff]
    %v6125 = vld [vmem:[#allocation7 + $0x118] sm:$0xff]
    %v6126 = vld [vmem:[#allocation7 + $0x120] sm:$0xff]
    %v6127 = vld [vmem:[#allocation7 + $0x128] sm:$0xff]
    %v6128 = vld [vmem:[#allocation7 + $0x130] sm:$0xff]
    %v6129 = vld [vmem:[#allocation7 + $0x138] sm:$0xff]
    %v6130 = vld [vmem:[#allocation7 + $0x140] sm:$0xff]
    %v6131 = vld [vmem:[#allocation7 + $0x148] sm:$0xff]
    %v6132 = vld [vmem:[#allocation7 + $0x150] sm:$0xff]
    %v6133 = vld [vmem:[#allocation7 + $0x158] sm:$0xff]
    %v6134 = vld [vmem:[#allocation7 + $0x160] sm:$0xff]
    %v6135 = vld [vmem:[#allocation7 + $0x168] sm:$0xff]
    %v6136 = vld [vmem:[#allocation7 + $0x170] sm:$0xff]
    %v6137 = vld [vmem:[#allocation7 + $0x178] sm:$0xff]
    %s6138 = scalar_lea.vmem [#allocation7], 384
    %v6139 = vld [vmem:[%s6138] sm:$0xff]
    %v6140 = vld [vmem:[%s6138 + $0x8] sm:$0xff]
    %v6141 = vld [vmem:[%s6138 + $0x10] sm:$0xff]
    %v6142 = vld [vmem:[%s6138 + $0x18] sm:$0xff]
    %v6143 = vld [vmem:[%s6138 + $0x20] sm:$0xff]
    %v6144 = vld [vmem:[%s6138 + $0x28] sm:$0xff]
    %v6145 = vld [vmem:[%s6138 + $0x30] sm:$0xff]
    %v6146 = vld [vmem:[%s6138 + $0x38] sm:$0xff]
    %v6147 = vld [vmem:[%s6138 + $0x40] sm:$0xff]
    %v6148 = vld [vmem:[%s6138 + $0x48] sm:$0xff]
    %v6149 = vld [vmem:[%s6138 + $0x50] sm:$0xff]
    %v6150 = vld [vmem:[%s6138 + $0x58] sm:$0xff]
    %v6151 = vld [vmem:[%s6138 + $0x60] sm:$0xff]
    %v6152 = vld [vmem:[%s6138 + $0x68] sm:$0xff]
    %v6153 = vld [vmem:[%s6138 + $0x70] sm:$0xff]
    %v6154 = vld [vmem:[%s6138 + $0x78] sm:$0xff]
    %v6155 = vld [vmem:[%s6138 + $0x80] sm:$0xff]
    %v6156 = vld [vmem:[%s6138 + $0x88] sm:$0xff]
    %v6157 = vld [vmem:[%s6138 + $0x90] sm:$0xff]
    %v6158 = vld [vmem:[%s6138 + $0x98] sm:$0xff]
    %v6159 = vld [vmem:[%s6138 + $0xa0] sm:$0xff]
    %v6160 = vld [vmem:[%s6138 + $0xa8] sm:$0xff]
    %v6161 = vld [vmem:[%s6138 + $0xb0] sm:$0xff]
    %v6162 = vld [vmem:[%s6138 + $0xb8] sm:$0xff]
    %v6163 = vld [vmem:[%s6138 + $0xc0] sm:$0xff]
    %v6164 = vld [vmem:[%s6138 + $0xc8] sm:$0xff]
    %v6165 = vld [vmem:[%s6138 + $0xd0] sm:$0xff]
    %v6166 = vld [vmem:[%s6138 + $0xd8] sm:$0xff]
    %v6167 = vld [vmem:[%s6138 + $0xe0] sm:$0xff]
    %v6168 = vld [vmem:[%s6138 + $0xe8] sm:$0xff]
    %v6169 = vld [vmem:[%s6138 + $0xf0] sm:$0xff]
    %v6170 = vld [vmem:[%s6138 + $0xf8] sm:$0xff]
    %v6171 = vld [vmem:[%s6138 + $0x100] sm:$0xff]
    %v6172 = vld [vmem:[%s6138 + $0x108] sm:$0xff]
    %v6173 = vld [vmem:[%s6138 + $0x110] sm:$0xff]
    %v6174 = vld [vmem:[%s6138 + $0x118] sm:$0xff]
    %v6175 = vld [vmem:[%s6138 + $0x120] sm:$0xff]
    %v6176 = vld [vmem:[%s6138 + $0x128] sm:$0xff]
    %v6177 = vld [vmem:[%s6138 + $0x130] sm:$0xff]
    %v6178 = vld [vmem:[%s6138 + $0x138] sm:$0xff]
    %v6179 = vld [vmem:[%s6138 + $0x140] sm:$0xff]
    %v6180 = vld [vmem:[%s6138 + $0x148] sm:$0xff]
    %v6181 = vld [vmem:[%s6138 + $0x150] sm:$0xff]
    %v6182 = vld [vmem:[%s6138 + $0x158] sm:$0xff]
    %v6183 = vld [vmem:[%s6138 + $0x160] sm:$0xff]
    %v6184 = vld [vmem:[%s6138 + $0x168] sm:$0xff]
    %v6185 = vld [vmem:[%s6138 + $0x170] sm:$0xff]
    %v6186 = vld [vmem:[%s6138 + $0x178] sm:$0xff]
    %s6187 = scalar_lea.vmem [#allocation7], 768
    %v6188 = vld [vmem:[%s6187] sm:$0xff]
    %v6189 = vld [vmem:[%s6187 + $0x8] sm:$0xff]
    %v6190 = vld [vmem:[%s6187 + $0x10] sm:$0xff]
    %v6191 = vld [vmem:[%s6187 + $0x18] sm:$0xff]
    %v6192 = vld [vmem:[%s6187 + $0x20] sm:$0xff]
    %v6193 = vld [vmem:[%s6187 + $0x28] sm:$0xff]
    %v6194 = vld [vmem:[%s6187 + $0x30] sm:$0xff]
    %v6195 = vld [vmem:[%s6187 + $0x38] sm:$0xff]
    %v6196 = vld [vmem:[%s6187 + $0x40] sm:$0xff]
    %v6197 = vld [vmem:[%s6187 + $0x48] sm:$0xff]
    %v6198 = vld [vmem:[%s6187 + $0x50] sm:$0xff]
    %v6199 = vld [vmem:[%s6187 + $0x58] sm:$0xff]
    %v6200 = vld [vmem:[%s6187 + $0x60] sm:$0xff]
    %v6201 = vld [vmem:[%s6187 + $0x68] sm:$0xff]
    %v6202 = vld [vmem:[%s6187 + $0x70] sm:$0xff]
    %v6203 = vld [vmem:[%s6187 + $0x78] sm:$0xff]
    %v6204 = vld [vmem:[%s6187 + $0x80] sm:$0xff]
    %v6205 = vld [vmem:[%s6187 + $0x88] sm:$0xff]
    %v6206 = vld [vmem:[%s6187 + $0x90] sm:$0xff]
    %v6207 = vld [vmem:[%s6187 + $0x98] sm:$0xff]
    %v6208 = vld [vmem:[%s6187 + $0xa0] sm:$0xff]
    %v6209 = vld [vmem:[%s6187 + $0xa8] sm:$0xff]
    %v6210 = vld [vmem:[%s6187 + $0xb0] sm:$0xff]
    %v6211 = vld [vmem:[%s6187 + $0xb8] sm:$0xff]
    %v6212 = vld [vmem:[%s6187 + $0xc0] sm:$0xff]
    %v6213 = vld [vmem:[%s6187 + $0xc8] sm:$0xff]
    %v6214 = vld [vmem:[%s6187 + $0xd0] sm:$0xff]
    %v6215 = vld [vmem:[%s6187 + $0xd8] sm:$0xff]
    %v6216 = vld [vmem:[%s6187 + $0xe0] sm:$0xff]
    %v6217 = vld [vmem:[%s6187 + $0xe8] sm:$0xff]
    %v6218 = vld [vmem:[%s6187 + $0xf0] sm:$0xff]
    %v6219 = vld [vmem:[%s6187 + $0xf8] sm:$0xff]
    %v6220 = vld [vmem:[%s6187 + $0x100] sm:$0xff]
    %v6221 = vld [vmem:[%s6187 + $0x108] sm:$0xff]
    %v6222 = vld [vmem:[%s6187 + $0x110] sm:$0xff]
    %v6223 = vld [vmem:[%s6187 + $0x118] sm:$0xff]
    %v6224 = vld [vmem:[%s6187 + $0x120] sm:$0xff]
    %v6225 = vld [vmem:[%s6187 + $0x128] sm:$0xff]
    %v6226 = vld [vmem:[%s6187 + $0x130] sm:$0xff]
    %v6227 = vld [vmem:[%s6187 + $0x138] sm:$0xff]
    %v6228 = vld [vmem:[%s6187 + $0x140] sm:$0xff]
    %v6229 = vld [vmem:[%s6187 + $0x148] sm:$0xff]
    %v6230 = vld [vmem:[%s6187 + $0x150] sm:$0xff]
    %v6231 = vld [vmem:[%s6187 + $0x158] sm:$0xff]
    %v6232 = vld [vmem:[%s6187 + $0x160] sm:$0xff]
    %v6233 = vld [vmem:[%s6187 + $0x168] sm:$0xff]
    %v6234 = vld [vmem:[%s6187 + $0x170] sm:$0xff]
    %v6235 = vld [vmem:[%s6187 + $0x178] sm:$0xff]
    %v6236 = vld [vmem:[%s6] sm:$0x3]
    %v6237 = vld [vmem:[#allocation3] sm:$0xff]
    %v6238 = vld [vmem:[#allocation3 + $0x8] sm:$0xf]
    %v6239 = vld [vmem:[%s4419] sm:$0xff]
    %v6240 = vld [vmem:[%s4419 + $0x8] sm:$0xf]
    %v6243 = vunpack.c.l.b16 %v6239
    %v6244 = vunpack.c.h.b16 %v6239
    %v6245 = vunpack.c.l.b16 %v6240
    %v6246 = vpack.c.b16 %v6243, %v6243
    %v6247 = vpack.c.b16 %v6244, %v6244
    %v6248 = vpack.c.b16 %v6245, %v6245
    %v6300 = vunpack.c.l.b16 %v6139
    %v6301 = vunpack.c.h.b16 %v6139
    %v6302 = vunpack.c.l.b16 %v6140
    %v6303 = vunpack.c.h.b16 %v6140
    %v6304 = vunpack.c.l.b16 %v6141
    %v6305 = vunpack.c.h.b16 %v6141
    %v6306 = vunpack.c.l.b16 %v6142
    %v6307 = vunpack.c.h.b16 %v6142
    %v6308 = vunpack.c.l.b16 %v6143
    %v6309 = vunpack.c.h.b16 %v6143
    %v6310 = vunpack.c.l.b16 %v6144
    %v6311 = vunpack.c.h.b16 %v6144
    %v6312 = vunpack.c.l.b16 %v6145
    %v6313 = vunpack.c.h.b16 %v6145
    %v6314 = vunpack.c.l.b16 %v6146
    %v6315 = vunpack.c.h.b16 %v6146
    %v6316 = vunpack.c.l.b16 %v6147
    %v6317 = vunpack.c.h.b16 %v6147
    %v6318 = vunpack.c.l.b16 %v6148
    %v6319 = vunpack.c.h.b16 %v6148
    %v6320 = vunpack.c.l.b16 %v6149
    %v6321 = vunpack.c.h.b16 %v6149
    %v6322 = vunpack.c.l.b16 %v6150
    %v6323 = vunpack.c.h.b16 %v6150
    %v6324 = vunpack.c.l.b16 %v6151
    %v6325 = vunpack.c.h.b16 %v6151
    %v6326 = vunpack.c.l.b16 %v6152
    %v6327 = vunpack.c.h.b16 %v6152
    %v6328 = vunpack.c.l.b16 %v6153
    %v6329 = vunpack.c.h.b16 %v6153
    %v6330 = vunpack.c.l.b16 %v6154
    %v6331 = vunpack.c.h.b16 %v6154
    %v6332 = vunpack.c.l.b16 %v6155
    %v6333 = vunpack.c.h.b16 %v6155
    %v6334 = vunpack.c.l.b16 %v6156
    %v6335 = vunpack.c.h.b16 %v6156
    %v6336 = vunpack.c.l.b16 %v6157
    %v6337 = vunpack.c.h.b16 %v6157
    %v6338 = vunpack.c.l.b16 %v6158
    %v6339 = vunpack.c.h.b16 %v6158
    %v6340 = vunpack.c.l.b16 %v6159
    %v6341 = vunpack.c.h.b16 %v6159
    %v6342 = vunpack.c.l.b16 %v6160
    %v6343 = vunpack.c.h.b16 %v6160
    %v6344 = vunpack.c.l.b16 %v6161
    %v6345 = vunpack.c.h.b16 %v6161
    %v6346 = vunpack.c.l.b16 %v6162
    %v6347 = vunpack.c.h.b16 %v6162
    %v6348 = vunpack.c.l.b16 %v6163
    %v6349 = vunpack.c.h.b16 %v6163
    %v6350 = vunpack.c.l.b16 %v6164
    %v6351 = vunpack.c.h.b16 %v6164
    %v6352 = vunpack.c.l.b16 %v6165
    %v6353 = vunpack.c.h.b16 %v6165
    %v6354 = vunpack.c.l.b16 %v6166
    %v6355 = vunpack.c.h.b16 %v6166
    %v6356 = vunpack.c.l.b16 %v6167
    %v6357 = vunpack.c.h.b16 %v6167
    %v6358 = vunpack.c.l.b16 %v6168
    %v6359 = vunpack.c.h.b16 %v6168
    %v6360 = vunpack.c.l.b16 %v6169
    %v6361 = vunpack.c.h.b16 %v6169
    %v6362 = vunpack.c.l.b16 %v6170
    %v6363 = vunpack.c.h.b16 %v6170
    %v6364 = vunpack.c.l.b16 %v6171
    %v6365 = vunpack.c.h.b16 %v6171
    %v6366 = vunpack.c.l.b16 %v6172
    %v6367 = vunpack.c.h.b16 %v6172
    %v6368 = vunpack.c.l.b16 %v6173
    %v6369 = vunpack.c.h.b16 %v6173
    %v6370 = vunpack.c.l.b16 %v6174
    %v6371 = vunpack.c.h.b16 %v6174
    %v6372 = vunpack.c.l.b16 %v6175
    %v6373 = vunpack.c.h.b16 %v6175
    %v6374 = vunpack.c.l.b16 %v6176
    %v6375 = vunpack.c.h.b16 %v6176
    %v6376 = vunpack.c.l.b16 %v6177
    %v6377 = vunpack.c.h.b16 %v6177
    %v6378 = vunpack.c.l.b16 %v6178
    %v6379 = vunpack.c.h.b16 %v6178
    %v6380 = vunpack.c.l.b16 %v6179
    %v6381 = vunpack.c.h.b16 %v6179
    %v6382 = vunpack.c.l.b16 %v6180
    %v6383 = vunpack.c.h.b16 %v6180
    %v6384 = vunpack.c.l.b16 %v6181
    %v6385 = vunpack.c.h.b16 %v6181
    %v6386 = vunpack.c.l.b16 %v6182
    %v6387 = vunpack.c.h.b16 %v6182
    %v6388 = vunpack.c.l.b16 %v6183
    %v6389 = vunpack.c.h.b16 %v6183
    %v6390 = vunpack.c.l.b16 %v6184
    %v6391 = vunpack.c.h.b16 %v6184
    %v6392 = vunpack.c.l.b16 %v6185
    %v6393 = vunpack.c.h.b16 %v6185
    %v6394 = vunpack.c.l.b16 %v6186
    %v6395 = vunpack.c.h.b16 %v6186
    %v6396 = vpack.c.b16 %v6302, %v6300
    %v6397 = vpack.c.b16 %v6303, %v6301
    %v6398 = vpack.c.b16 %v6306, %v6304
    %v6399 = vpack.c.b16 %v6307, %v6305
    %v6400 = vpack.c.b16 %v6310, %v6308
    %v6401 = vpack.c.b16 %v6311, %v6309
    %v6402 = vpack.c.b16 %v6314, %v6312
    %v6403 = vpack.c.b16 %v6315, %v6313
    %v6404 = vpack.c.b16 %v6318, %v6316
    %v6405 = vpack.c.b16 %v6319, %v6317
    %v6406 = vpack.c.b16 %v6322, %v6320
    %v6407 = vpack.c.b16 %v6323, %v6321
    %v6408 = vpack.c.b16 %v6326, %v6324
    %v6409 = vpack.c.b16 %v6327, %v6325
    %v6410 = vpack.c.b16 %v6330, %v6328
    %v6411 = vpack.c.b16 %v6331, %v6329
    %v6412 = vpack.c.b16 %v6334, %v6332
    %v6413 = vpack.c.b16 %v6335, %v6333
    %v6414 = vpack.c.b16 %v6338, %v6336
    %v6415 = vpack.c.b16 %v6339, %v6337
    %v6416 = vpack.c.b16 %v6342, %v6340
    %v6417 = vpack.c.b16 %v6343, %v6341
    %v6418 = vpack.c.b16 %v6346, %v6344
    %v6419 = vpack.c.b16 %v6347, %v6345
    %v6420 = vpack.c.b16 %v6350, %v6348
    %v6421 = vpack.c.b16 %v6351, %v6349
    %v6422 = vpack.c.b16 %v6354, %v6352
    %v6423 = vpack.c.b16 %v6355, %v6353
    %v6424 = vpack.c.b16 %v6358, %v6356
    %v6425 = vpack.c.b16 %v6359, %v6357
    %v6426 = vpack.c.b16 %v6362, %v6360
    %v6427 = vpack.c.b16 %v6363, %v6361
    %v6428 = vpack.c.b16 %v6366, %v6364
    %v6429 = vpack.c.b16 %v6367, %v6365
    %v6430 = vpack.c.b16 %v6370, %v6368
    %v6431 = vpack.c.b16 %v6371, %v6369
    %v6432 = vpack.c.b16 %v6374, %v6372
    %v6433 = vpack.c.b16 %v6375, %v6373
    %v6434 = vpack.c.b16 %v6378, %v6376
    %v6435 = vpack.c.b16 %v6379, %v6377
    %v6436 = vpack.c.b16 %v6382, %v6380
    %v6437 = vpack.c.b16 %v6383, %v6381
    %v6438 = vpack.c.b16 %v6386, %v6384
    %v6439 = vpack.c.b16 %v6387, %v6385
    %v6440 = vpack.c.b16 %v6390, %v6388
    %v6441 = vpack.c.b16 %v6391, %v6389
    %v6442 = vpack.c.b16 %v6394, %v6392
    %v6443 = vpack.c.b16 %v6395, %v6393
    %6492 = vmatprep.subr.bf16.mxu0 %v6397
    %6493 = vmatpush1.bf16.msra.mxu0 %v6396
    %6494 = vmatprep.subr.bf16.mxu0 %v6399
    %6495 = vmatpush1.bf16.msra.mxu0 %v6398
    %6496 = vmatprep.subr.bf16.mxu0 %v6401
    %6497 = vmatpush1.bf16.msra.mxu0 %v6400
    %6498 = vmatprep.subr.bf16.mxu0 %v6403
    %6499 = vmatpush1.bf16.msra.mxu0 %v6402
    %6500 = vmatprep.subr.bf16.mxu0 %v6405
    %6501 = vmatpush1.bf16.msra.mxu0 %v6404
    %6502 = vmatprep.subr.bf16.mxu0 %v6407
    %6503 = vmatpush1.bf16.msra.mxu0 %v6406
    %6504 = vmatprep.subr.bf16.mxu0 %v6409
    %6505 = vmatpush1.bf16.msra.mxu0 %v6408
    %6506 = vmatprep.subr.bf16.mxu0 %v6411
    %6507 = vmatpush1.bf16.msra.mxu0 %v6410
    %6508 = vmatprep.subr.bf16.mxu0 %v6413
    %6509 = vmatpush1.bf16.msra.mxu0 %v6412
    %6510 = vmatprep.subr.bf16.mxu0 %v6415
    %6511 = vmatpush1.bf16.msra.mxu0 %v6414
    %6512 = vmatprep.subr.bf16.mxu0 %v6417
    %6513 = vmatpush1.bf16.msra.mxu0 %v6416
    %6514 = vmatprep.subr.bf16.mxu0 %v6419
    %6515 = vmatpush1.bf16.msra.mxu0 %v6418
    %6516 = vmatprep.subr.bf16.mxu0 %v6421
    %6517 = vmatpush1.bf16.msra.mxu0 %v6420
    %6518 = vmatprep.subr.bf16.mxu0 %v6423
    %6519 = vmatpush1.bf16.msra.mxu0 %v6422
    %6520 = vmatprep.subr.bf16.mxu0 %v6425
    %6521 = vmatpush1.bf16.msra.mxu0 %v6424
    %6522 = vmatprep.subr.bf16.mxu0 %v6427
    %6523 = vmatpush1.bf16.msra.mxu0 %v6426
    %6524 = vmatprep.mubr.bf16.mxu0 %v6247
    %6525 = vmatmul.mubr.bf16.gmra.mrb[0].mxu0 %v6246
    %v6526 = vpop.f32.mrb[0].mxu0
    %v6527 = vadd.f32 0.0, %v6526
    %v6528 = vpop.f32.mrb[0].mxu0
    %v6529 = vadd.f32 0.0, %v6528
    %v6530 = vpop.f32.mrb[0].mxu0
    %v6531 = vpop.f32.mrb[0].mxu0
    %6532 = vdwg.mxu0
    %6533 = vmatprep.subr.bf16.mxu0 %v6429
    %6534 = vmatpush1.bf16.msra.mxu0 %v6428
    %6535 = vmatprep.subr.bf16.mxu0 %v6431
    %6536 = vmatpush1.bf16.msra.mxu0 %v6430
    %6537 = vmatprep.subr.bf16.mxu0 %v6433
    %6538 = vmatpush1.bf16.msra.mxu0 %v6432
    %6539 = vmatprep.subr.bf16.mxu0 %v6435
    %6540 = vmatpush1.bf16.msra.mxu0 %v6434
    %6541 = vmatprep.subr.bf16.mxu0 %v6437
    %6542 = vmatpush1.bf16.msra.mxu0 %v6436
    %6543 = vmatprep.subr.bf16.mxu0 %v6439
    %6544 = vmatpush1.bf16.msra.mxu0 %v6438
    %6545 = vmatprep.subr.bf16.mxu0 %v6441
    %6546 = vmatpush1.bf16.msra.mxu0 %v6440
    %6547 = vmatprep.subr.bf16.mxu0 %v6443
    %6548 = vmatpush1.bf16.msra.mxu0 %v6442
    %6549 = vmatprep.subr.bf16.mxu0 0
    %6550 = vmatpush1.bf16.msra.mxu0 0
    %6551 = vmatprep.subr.bf16.mxu0 0
    %6552 = vmatpush1.bf16.msra.mxu0 0
    %6553 = vmatprep.subr.bf16.mxu0 0
    %6554 = vmatpush1.bf16.msra.mxu0 0
    %6555 = vmatprep.subr.bf16.mxu0 0
    %6556 = vmatpush1.bf16.msra.mxu0 0
    %6557 = vmatprep.subr.bf16.mxu0 0
    %6558 = vmatpush1.bf16.msra.mxu0 0
    %6559 = vmatprep.subr.bf16.mxu0 0
    %6560 = vmatpush1.bf16.msra.mxu0 0
    %6561 = vmatprep.subr.bf16.mxu0 0
    %6562 = vmatpush1.bf16.msra.mxu0 0
    %6563 = vmatprep.subr.bf16.mxu0 0
    %6564 = vmatpush1.bf16.msra.mxu0 0
    %6565 = vmatprep.mubr.bf16.mxu0 0
    %6566 = vmatmul.mubr.bf16.gmra.mrb[0].mxu0 %v6248
    %v6567 = vpop.f32.mrb[0].mxu0
    %v6568 = vadd.f32 %v6527, %v6567
    %v6569 = vpop.f32.mrb[0].mxu0
    %v6570 = vadd.f32 %v6529, %v6569
    %v6571 = vpop.f32.mrb[0].mxu0
    %v6572 = vpop.f32.mrb[0].mxu0
    %6573 = vdwg.mxu0
    %v6576 = vunpack.c.l.b16 %v6237
    %v6577 = vunpack.c.h.b16 %v6237
    %v6578 = vunpack.c.l.b16 %v6238
    %v6579 = vpack.c.b16 %v6576, %v6576
    %v6580 = vpack.c.b16 %v6577, %v6577
    %v6581 = vpack.c.b16 %v6578, %v6578
    %v6633 = vunpack.c.l.b16 %v6090
    %v6634 = vunpack.c.h.b16 %v6090
    %v6635 = vunpack.c.l.b16 %v6091
    %v6636 = vunpack.c.h.b16 %v6091
    %v6637 = vunpack.c.l.b16 %v6092
    %v6638 = vunpack.c.h.b16 %v6092
    %v6639 = vunpack.c.l.b16 %v6093
    %v6640 = vunpack.c.h.b16 %v6093
    %v6641 = vunpack.c.l.b16 %v6094
    %v6642 = vunpack.c.h.b16 %v6094
    %v6643 = vunpack.c.l.b16 %v6095
    %v6644 = vunpack.c.h.b16 %v6095
    %v6645 = vunpack.c.l.b16 %v6096
    %v6646 = vunpack.c.h.b16 %v6096
    %v6647 = vunpack.c.l.b16 %v6097
    %v6648 = vunpack.c.h.b16 %v6097
    %v6649 = vunpack.c.l.b16 %v6098
    %v6650 = vunpack.c.h.b16 %v6098
    %v6651 = vunpack.c.l.b16 %v6099
    %v6652 = vunpack.c.h.b16 %v6099
    %v6653 = vunpack.c.l.b16 %v6100
    %v6654 = vunpack.c.h.b16 %v6100
    %v6655 = vunpack.c.l.b16 %v6101
    %v6656 = vunpack.c.h.b16 %v6101
    %v6657 = vunpack.c.l.b16 %v6102
    %v6658 = vunpack.c.h.b16 %v6102
    %v6659 = vunpack.c.l.b16 %v6103
    %v6660 = vunpack.c.h.b16 %v6103
    %v6661 = vunpack.c.l.b16 %v6104
    %v6662 = vunpack.c.h.b16 %v6104
    %v6663 = vunpack.c.l.b16 %v6105
    %v6664 = vunpack.c.h.b16 %v6105
    %v6665 = vunpack.c.l.b16 %v6106
    %v6666 = vunpack.c.h.b16 %v6106
    %v6667 = vunpack.c.l.b16 %v6107
    %v6668 = vunpack.c.h.b16 %v6107
    %v6669 = vunpack.c.l.b16 %v6108
    %v6670 = vunpack.c.h.b16 %v6108
    %v6671 = vunpack.c.l.b16 %v6109
    %v6672 = vunpack.c.h.b16 %v6109
    %v6673 = vunpack.c.l.b16 %v6110
    %v6674 = vunpack.c.h.b16 %v6110
    %v6675 = vunpack.c.l.b16 %v6111
    %v6676 = vunpack.c.h.b16 %v6111
    %v6677 = vunpack.c.l.b16 %v6112
    %v6678 = vunpack.c.h.b16 %v6112
    %v6679 = vunpack.c.l.b16 %v6113
    %v6680 = vunpack.c.h.b16 %v6113
    %v6681 = vunpack.c.l.b16 %v6114
    %v6682 = vunpack.c.h.b16 %v6114
    %v6683 = vunpack.c.l.b16 %v6115
    %v6684 = vunpack.c.h.b16 %v6115
    %v6685 = vunpack.c.l.b16 %v6116
    %v6686 = vunpack.c.h.b16 %v6116
    %v6687 = vunpack.c.l.b16 %v6117
    %v6688 = vunpack.c.h.b16 %v6117
    %v6689 = vunpack.c.l.b16 %v6118
    %v6690 = vunpack.c.h.b16 %v6118
    %v6691 = vunpack.c.l.b16 %v6119
    %v6692 = vunpack.c.h.b16 %v6119
    %v6693 = vunpack.c.l.b16 %v6120
    %v6694 = vunpack.c.h.b16 %v6120
    %v6695 = vunpack.c.l.b16 %v6121
    %v6696 = vunpack.c.h.b16 %v6121
    %v6697 = vunpack.c.l.b16 %v6122
    %v6698 = vunpack.c.h.b16 %v6122
    %v6699 = vunpack.c.l.b16 %v6123
    %v6700 = vunpack.c.h.b16 %v6123
    %v6701 = vunpack.c.l.b16 %v6124
    %v6702 = vunpack.c.h.b16 %v6124
    %v6703 = vunpack.c.l.b16 %v6125
    %v6704 = vunpack.c.h.b16 %v6125
    %v6705 = vunpack.c.l.b16 %v6126
    %v6706 = vunpack.c.h.b16 %v6126
    %v6707 = vunpack.c.l.b16 %v6127
    %v6708 = vunpack.c.h.b16 %v6127
    %v6709 = vunpack.c.l.b16 %v6128
    %v6710 = vunpack.c.h.b16 %v6128
    %v6711 = vunpack.c.l.b16 %v6129
    %v6712 = vunpack.c.h.b16 %v6129
    %v6713 = vunpack.c.l.b16 %v6130
    %v6714 = vunpack.c.h.b16 %v6130
    %v6715 = vunpack.c.l.b16 %v6131
    %v6716 = vunpack.c.h.b16 %v6131
    %v6717 = vunpack.c.l.b16 %v6132
    %v6718 = vunpack.c.h.b16 %v6132
    %v6719 = vunpack.c.l.b16 %v6133
    %v6720 = vunpack.c.h.b16 %v6133
    %v6721 = vunpack.c.l.b16 %v6134
    %v6722 = vunpack.c.h.b16 %v6134
    %v6723 = vunpack.c.l.b16 %v6135
    %v6724 = vunpack.c.h.b16 %v6135
    %v6725 = vunpack.c.l.b16 %v6136
    %v6726 = vunpack.c.h.b16 %v6136
    %v6727 = vunpack.c.l.b16 %v6137
    %v6728 = vunpack.c.h.b16 %v6137
    %v6729 = vpack.c.b16 %v6635, %v6633
    %v6730 = vpack.c.b16 %v6636, %v6634
    %v6731 = vpack.c.b16 %v6639, %v6637
    %v6732 = vpack.c.b16 %v6640, %v6638
    %v6733 = vpack.c.b16 %v6643, %v6641
    %v6734 = vpack.c.b16 %v6644, %v6642
    %v6735 = vpack.c.b16 %v6647, %v6645
    %v6736 = vpack.c.b16 %v6648, %v6646
    %v6737 = vpack.c.b16 %v6651, %v6649
    %v6738 = vpack.c.b16 %v6652, %v6650
    %v6739 = vpack.c.b16 %v6655, %v6653
    %v6740 = vpack.c.b16 %v6656, %v6654
    %v6741 = vpack.c.b16 %v6659, %v6657
    %v6742 = vpack.c.b16 %v6660, %v6658
    %v6743 = vpack.c.b16 %v6663, %v6661
    %v6744 = vpack.c.b16 %v6664, %v6662
    %v6745 = vpack.c.b16 %v6667, %v6665
    %v6746 = vpack.c.b16 %v6668, %v6666
    %v6747 = vpack.c.b16 %v6671, %v6669
    %v6748 = vpack.c.b16 %v6672, %v6670
    %v6749 = vpack.c.b16 %v6675, %v6673
    %v6750 = vpack.c.b16 %v6676, %v6674
    %v6751 = vpack.c.b16 %v6679, %v6677
    %v6752 = vpack.c.b16 %v6680, %v6678
    %v6753 = vpack.c.b16 %v6683, %v6681
    %v6754 = vpack.c.b16 %v6684, %v6682
    %v6755 = vpack.c.b16 %v6687, %v6685
    %v6756 = vpack.c.b16 %v6688, %v6686
    %v6757 = vpack.c.b16 %v6691, %v6689
    %v6758 = vpack.c.b16 %v6692, %v6690
    %v6759 = vpack.c.b16 %v6695, %v6693
    %v6760 = vpack.c.b16 %v6696, %v6694
    %v6761 = vpack.c.b16 %v6699, %v6697
    %v6762 = vpack.c.b16 %v6700, %v6698
    %v6763 = vpack.c.b16 %v6703, %v6701
    %v6764 = vpack.c.b16 %v6704, %v6702
    %v6765 = vpack.c.b16 %v6707, %v6705
    %v6766 = vpack.c.b16 %v6708, %v6706
    %v6767 = vpack.c.b16 %v6711, %v6709
    %v6768 = vpack.c.b16 %v6712, %v6710
    %v6769 = vpack.c.b16 %v6715, %v6713
    %v6770 = vpack.c.b16 %v6716, %v6714
    %v6771 = vpack.c.b16 %v6719, %v6717
    %v6772 = vpack.c.b16 %v6720, %v6718
    %v6773 = vpack.c.b16 %v6723, %v6721
    %v6774 = vpack.c.b16 %v6724, %v6722
    %v6775 = vpack.c.b16 %v6727, %v6725
    %v6776 = vpack.c.b16 %v6728, %v6726
    %6825 = vmatprep.subr.bf16.mxu0 %v6730
    %6826 = vmatpush1.bf16.msra.mxu0 %v6729
    %6827 = vmatprep.subr.bf16.mxu0 %v6732
    %6828 = vmatpush1.bf16.msra.mxu0 %v6731
    %6829 = vmatprep.subr.bf16.mxu0 %v6734
    %6830 = vmatpush1.bf16.msra.mxu0 %v6733
    %6831 = vmatprep.subr.bf16.mxu0 %v6736
    %6832 = vmatpush1.bf16.msra.mxu0 %v6735
    %6833 = vmatprep.subr.bf16.mxu0 %v6738
    %6834 = vmatpush1.bf16.msra.mxu0 %v6737
    %6835 = vmatprep.subr.bf16.mxu0 %v6740
    %6836 = vmatpush1.bf16.msra.mxu0 %v6739
    %6837 = vmatprep.subr.bf16.mxu0 %v6742
    %6838 = vmatpush1.bf16.msra.mxu0 %v6741
    %6839 = vmatprep.subr.bf16.mxu0 %v6744
    %6840 = vmatpush1.bf16.msra.mxu0 %v6743
    %6841 = vmatprep.subr.bf16.mxu0 %v6746
    %6842 = vmatpush1.bf16.msra.mxu0 %v6745
    %6843 = vmatprep.subr.bf16.mxu0 %v6748
    %6844 = vmatpush1.bf16.msra.mxu0 %v6747
    %6845 = vmatprep.subr.bf16.mxu0 %v6750
    %6846 = vmatpush1.bf16.msra.mxu0 %v6749
    %6847 = vmatprep.subr.bf16.mxu0 %v6752
    %6848 = vmatpush1.bf16.msra.mxu0 %v6751
    %6849 = vmatprep.subr.bf16.mxu0 %v6754
    %6850 = vmatpush1.bf16.msra.mxu0 %v6753
    %6851 = vmatprep.subr.bf16.mxu0 %v6756
    %6852 = vmatpush1.bf16.msra.mxu0 %v6755
    %6853 = vmatprep.subr.bf16.mxu0 %v6758
    %6854 = vmatpush1.bf16.msra.mxu0 %v6757
    %6855 = vmatprep.subr.bf16.mxu0 %v6760
    %6856 = vmatpush1.bf16.msra.mxu0 %v6759
    %6857 = vmatprep.mubr.bf16.mxu0 %v6580
    %6858 = vmatmul.mubr.bf16.gmra.mrb[0].mxu0 %v6579
    %v6859 = vpop.f32.mrb[0].mxu0
    %v6860 = vadd.f32 %v6568, %v6859
    %v6861 = vpop.f32.mrb[0].mxu0
    %v6862 = vadd.f32 %v6570, %v6861
    %v6863 = vpop.f32.mrb[0].mxu0
    %v6864 = vpop.f32.mrb[0].mxu0
    %6865 = vdwg.mxu0
    %6866 = vmatprep.subr.bf16.mxu0 %v6762
    %6867 = vmatpush1.bf16.msra.mxu0 %v6761
    %6868 = vmatprep.subr.bf16.mxu0 %v6764
    %6869 = vmatpush1.bf16.msra.mxu0 %v6763
    %6870 = vmatprep.subr.bf16.mxu0 %v6766
    %6871 = vmatpush1.bf16.msra.mxu0 %v6765
    %6872 = vmatprep.subr.bf16.mxu0 %v6768
    %6873 = vmatpush1.bf16.msra.mxu0 %v6767
    %6874 = vmatprep.subr.bf16.mxu0 %v6770
    %6875 = vmatpush1.bf16.msra.mxu0 %v6769
    %6876 = vmatprep.subr.bf16.mxu0 %v6772
    %6877 = vmatpush1.bf16.msra.mxu0 %v6771
    %6878 = vmatprep.subr.bf16.mxu0 %v6774
    %6879 = vmatpush1.bf16.msra.mxu0 %v6773
    %6880 = vmatprep.subr.bf16.mxu0 %v6776
    %6881 = vmatpush1.bf16.msra.mxu0 %v6775
    %6882 = vmatprep.subr.bf16.mxu0 0
    %6883 = vmatpush1.bf16.msra.mxu0 0
    %6884 = vmatprep.subr.bf16.mxu0 0
    %6885 = vmatpush1.bf16.msra.mxu0 0
    %6886 = vmatprep.subr.bf16.mxu0 0
    %6887 = vmatpush1.bf16.msra.mxu0 0
    %6888 = vmatprep.subr.bf16.mxu0 0
    %6889 = vmatpush1.bf16.msra.mxu0 0
    %6890 = vmatprep.subr.bf16.mxu0 0
    %6891 = vmatpush1.bf16.msra.mxu0 0
    %6892 = vmatprep.subr.bf16.mxu0 0
    %6893 = vmatpush1.bf16.msra.mxu0 0
    %6894 = vmatprep.subr.bf16.mxu0 0
    %6895 = vmatpush1.bf16.msra.mxu0 0
    %6896 = vmatprep.subr.bf16.mxu0 0
    %6897 = vmatpush1.bf16.msra.mxu0 0
    %6898 = vmatprep.mubr.bf16.mxu0 0
    %6899 = vmatmul.mubr.bf16.gmra.mrb[0].mxu0 %v6581
    %v6900 = vpop.f32.mrb[0].mxu0
    %v6901 = vadd.f32 %v6860, %v6900
    %v6902 = vpop.f32.mrb[0].mxu0
    %v6903 = vadd.f32 %v6862, %v6902
    %v6904 = vpop.f32.mrb[0].mxu0
    %v6905 = vpop.f32.mrb[0].mxu0
    %6906 = vdwg.mxu0
    %v6907 = vld [vmem:[%s4975] sm:$0xff]
    %v6908 = vld [vmem:[%s4975 + $0x8] sm:$0xf]
    %v6911 = vunpack.c.l.b16 %v6907
    %v6912 = vunpack.c.h.b16 %v6907
    %v6913 = vunpack.c.l.b16 %v6908
    %v6914 = vpack.c.b16 %v6911, %v6911
    %v6915 = vpack.c.b16 %v6912, %v6912
    %v6916 = vpack.c.b16 %v6913, %v6913
    %v6968 = vunpack.c.l.b16 %v6188
    %v6969 = vunpack.c.h.b16 %v6188
    %v6970 = vunpack.c.l.b16 %v6189
    %v6971 = vunpack.c.h.b16 %v6189
    %v6972 = vunpack.c.l.b16 %v6190
    %v6973 = vunpack.c.h.b16 %v6190
    %v6974 = vunpack.c.l.b16 %v6191
    %v6975 = vunpack.c.h.b16 %v6191
    %v6976 = vunpack.c.l.b16 %v6192
    %v6977 = vunpack.c.h.b16 %v6192
    %v6978 = vunpack.c.l.b16 %v6193
    %v6979 = vunpack.c.h.b16 %v6193
    %v6980 = vunpack.c.l.b16 %v6194
    %v6981 = vunpack.c.h.b16 %v6194
    %v6982 = vunpack.c.l.b16 %v6195
    %v6983 = vunpack.c.h.b16 %v6195
    %v6984 = vunpack.c.l.b16 %v6196
    %v6985 = vunpack.c.h.b16 %v6196
    %v6986 = vunpack.c.l.b16 %v6197
    %v6987 = vunpack.c.h.b16 %v6197
    %v6988 = vunpack.c.l.b16 %v6198
    %v6989 = vunpack.c.h.b16 %v6198
    %v6990 = vunpack.c.l.b16 %v6199
    %v6991 = vunpack.c.h.b16 %v6199
    %v6992 = vunpack.c.l.b16 %v6200
    %v6993 = vunpack.c.h.b16 %v6200
    %v6994 = vunpack.c.l.b16 %v6201
    %v6995 = vunpack.c.h.b16 %v6201
    %v6996 = vunpack.c.l.b16 %v6202
    %v6997 = vunpack.c.h.b16 %v6202
    %v6998 = vunpack.c.l.b16 %v6203
    %v6999 = vunpack.c.h.b16 %v6203
    %v7000 = vunpack.c.l.b16 %v6204
    %v7001 = vunpack.c.h.b16 %v6204
    %v7002 = vunpack.c.l.b16 %v6205
    %v7003 = vunpack.c.h.b16 %v6205
    %v7004 = vunpack.c.l.b16 %v6206
    %v7005 = vunpack.c.h.b16 %v6206
    %v7006 = vunpack.c.l.b16 %v6207
    %v7007 = vunpack.c.h.b16 %v6207
    %v7008 = vunpack.c.l.b16 %v6208
    %v7009 = vunpack.c.h.b16 %v6208
    %v7010 = vunpack.c.l.b16 %v6209
    %v7011 = vunpack.c.h.b16 %v6209
    %v7012 = vunpack.c.l.b16 %v6210
    %v7013 = vunpack.c.h.b16 %v6210
    %v7014 = vunpack.c.l.b16 %v6211
    %v7015 = vunpack.c.h.b16 %v6211
    %v7016 = vunpack.c.l.b16 %v6212
    %v7017 = vunpack.c.h.b16 %v6212
    %v7018 = vunpack.c.l.b16 %v6213
    %v7019 = vunpack.c.h.b16 %v6213
    %v7020 = vunpack.c.l.b16 %v6214
    %v7021 = vunpack.c.h.b16 %v6214
    %v7022 = vunpack.c.l.b16 %v6215
    %v7023 = vunpack.c.h.b16 %v6215
    %v7024 = vunpack.c.l.b16 %v6216
    %v7025 = vunpack.c.h.b16 %v6216
    %v7026 = vunpack.c.l.b16 %v6217
    %v7027 = vunpack.c.h.b16 %v6217
    %v7028 = vunpack.c.l.b16 %v6218
    %v7029 = vunpack.c.h.b16 %v6218
    %v7030 = vunpack.c.l.b16 %v6219
    %v7031 = vunpack.c.h.b16 %v6219
    %v7032 = vunpack.c.l.b16 %v6220
    %v7033 = vunpack.c.h.b16 %v6220
    %v7034 = vunpack.c.l.b16 %v6221
    %v7035 = vunpack.c.h.b16 %v6221
    %v7036 = vunpack.c.l.b16 %v6222
    %v7037 = vunpack.c.h.b16 %v6222
    %v7038 = vunpack.c.l.b16 %v6223
    %v7039 = vunpack.c.h.b16 %v6223
    %v7040 = vunpack.c.l.b16 %v6224
    %v7041 = vunpack.c.h.b16 %v6224
    %v7042 = vunpack.c.l.b16 %v6225
    %v7043 = vunpack.c.h.b16 %v6225
    %v7044 = vunpack.c.l.b16 %v6226
    %v7045 = vunpack.c.h.b16 %v6226
    %v7046 = vunpack.c.l.b16 %v6227
    %v7047 = vunpack.c.h.b16 %v6227
    %v7048 = vunpack.c.l.b16 %v6228
    %v7049 = vunpack.c.h.b16 %v6228
    %v7050 = vunpack.c.l.b16 %v6229
    %v7051 = vunpack.c.h.b16 %v6229
    %v7052 = vunpack.c.l.b16 %v6230
    %v7053 = vunpack.c.h.b16 %v6230
    %v7054 = vunpack.c.l.b16 %v6231
    %v7055 = vunpack.c.h.b16 %v6231
    %v7056 = vunpack.c.l.b16 %v6232
    %v7057 = vunpack.c.h.b16 %v6232
    %v7058 = vunpack.c.l.b16 %v6233
    %v7059 = vunpack.c.h.b16 %v6233
    %v7060 = vunpack.c.l.b16 %v6234
    %v7061 = vunpack.c.h.b16 %v6234
    %v7062 = vunpack.c.l.b16 %v6235
    %v7063 = vunpack.c.h.b16 %v6235
    %v7064 = vpack.c.b16 %v6970, %v6968
    %v7065 = vpack.c.b16 %v6971, %v6969
    %v7066 = vpack.c.b16 %v6974, %v6972
    %v7067 = vpack.c.b16 %v6975, %v6973
    %v7068 = vpack.c.b16 %v6978, %v6976
    %v7069 = vpack.c.b16 %v6979, %v6977
    %v7070 = vpack.c.b16 %v6982, %v6980
    %v7071 = vpack.c.b16 %v6983, %v6981
    %v7072 = vpack.c.b16 %v6986, %v6984
    %v7073 = vpack.c.b16 %v6987, %v6985
    %v7074 = vpack.c.b16 %v6990, %v6988
    %v7075 = vpack.c.b16 %v6991, %v6989
    %v7076 = vpack.c.b16 %v6994, %v6992
    %v7077 = vpack.c.b16 %v6995, %v6993
    %v7078 = vpack.c.b16 %v6998, %v6996
    %v7079 = vpack.c.b16 %v6999, %v6997
    %v7080 = vpack.c.b16 %v7002, %v7000
    %v7081 = vpack.c.b16 %v7003, %v7001
    %v7082 = vpack.c.b16 %v7006, %v7004
    %v7083 = vpack.c.b16 %v7007, %v7005
    %v7084 = vpack.c.b16 %v7010, %v7008
    %v7085 = vpack.c.b16 %v7011, %v7009
    %v7086 = vpack.c.b16 %v7014, %v7012
    %v7087 = vpack.c.b16 %v7015, %v7013
    %v7088 = vpack.c.b16 %v7018, %v7016
    %v7089 = vpack.c.b16 %v7019, %v7017
    %v7090 = vpack.c.b16 %v7022, %v7020
    %v7091 = vpack.c.b16 %v7023, %v7021
    %v7092 = vpack.c.b16 %v7026, %v7024
    %v7093 = vpack.c.b16 %v7027, %v7025
    %v7094 = vpack.c.b16 %v7030, %v7028
    %v7095 = vpack.c.b16 %v7031, %v7029
    %v7096 = vpack.c.b16 %v7034, %v7032
    %v7097 = vpack.c.b16 %v7035, %v7033
    %v7098 = vpack.c.b16 %v7038, %v7036
    %v7099 = vpack.c.b16 %v7039, %v7037
    %v7100 = vpack.c.b16 %v7042, %v7040
    %v7101 = vpack.c.b16 %v7043, %v7041
    %v7102 = vpack.c.b16 %v7046, %v7044
    %v7103 = vpack.c.b16 %v7047, %v7045
    %v7104 = vpack.c.b16 %v7050, %v7048
    %v7105 = vpack.c.b16 %v7051, %v7049
    %v7106 = vpack.c.b16 %v7054, %v7052
    %v7107 = vpack.c.b16 %v7055, %v7053
    %v7108 = vpack.c.b16 %v7058, %v7056
    %v7109 = vpack.c.b16 %v7059, %v7057
    %v7110 = vpack.c.b16 %v7062, %v7060
    %v7111 = vpack.c.b16 %v7063, %v7061
    %7160 = vmatprep.subr.bf16.mxu0 %v7065
    %7161 = vmatpush1.bf16.msra.mxu0 %v7064
    %7162 = vmatprep.subr.bf16.mxu0 %v7067
    %7163 = vmatpush1.bf16.msra.mxu0 %v7066
    %7164 = vmatprep.subr.bf16.mxu0 %v7069
    %7165 = vmatpush1.bf16.msra.mxu0 %v7068
    %7166 = vmatprep.subr.bf16.mxu0 %v7071
    %7167 = vmatpush1.bf16.msra.mxu0 %v7070
    %7168 = vmatprep.subr.bf16.mxu0 %v7073
    %7169 = vmatpush1.bf16.msra.mxu0 %v7072
    %7170 = vmatprep.subr.bf16.mxu0 %v7075
    %7171 = vmatpush1.bf16.msra.mxu0 %v7074
    %7172 = vmatprep.subr.bf16.mxu0 %v7077
    %7173 = vmatpush1.bf16.msra.mxu0 %v7076
    %7174 = vmatprep.subr.bf16.mxu0 %v7079
    %7175 = vmatpush1.bf16.msra.mxu0 %v7078
    %7176 = vmatprep.subr.bf16.mxu0 %v7081
    %7177 = vmatpush1.bf16.msra.mxu0 %v7080
    %7178 = vmatprep.subr.bf16.mxu0 %v7083
    %7179 = vmatpush1.bf16.msra.mxu0 %v7082
    %7180 = vmatprep.subr.bf16.mxu0 %v7085
    %7181 = vmatpush1.bf16.msra.mxu0 %v7084
    %7182 = vmatprep.subr.bf16.mxu0 %v7087
    %7183 = vmatpush1.bf16.msra.mxu0 %v7086
    %7184 = vmatprep.subr.bf16.mxu0 %v7089
    %7185 = vmatpush1.bf16.msra.mxu0 %v7088
    %7186 = vmatprep.subr.bf16.mxu0 %v7091
    %7187 = vmatpush1.bf16.msra.mxu0 %v7090
    %7188 = vmatprep.subr.bf16.mxu0 %v7093
    %7189 = vmatpush1.bf16.msra.mxu0 %v7092
    %7190 = vmatprep.subr.bf16.mxu0 %v7095
    %7191 = vmatpush1.bf16.msra.mxu0 %v7094
    %7192 = vmatprep.mubr.bf16.mxu0 %v6915
    %7193 = vmatmul.mubr.bf16.gmra.mrb[0].mxu0 %v6914
    %v7194 = vpop.f32.mrb[0].mxu0
    %v7195 = vadd.f32 0.0, %v7194
    %v7196 = vpop.f32.mrb[0].mxu0
    %v7197 = vadd.f32 0.0, %v7196
    %v7198 = vpop.f32.mrb[0].mxu0
    %v7199 = vpop.f32.mrb[0].mxu0
    %7200 = vdwg.mxu0
    %7201 = vmatprep.subr.bf16.mxu0 %v7097
    %7202 = vmatpush1.bf16.msra.mxu0 %v7096
    %7203 = vmatprep.subr.bf16.mxu0 %v7099
    %7204 = vmatpush1.bf16.msra.mxu0 %v7098
    %7205 = vmatprep.subr.bf16.mxu0 %v7101
    %7206 = vmatpush1.bf16.msra.mxu0 %v7100
    %7207 = vmatprep.subr.bf16.mxu0 %v7103
    %7208 = vmatpush1.bf16.msra.mxu0 %v7102
    %7209 = vmatprep.subr.bf16.mxu0 %v7105
    %7210 = vmatpush1.bf16.msra.mxu0 %v7104
    %7211 = vmatprep.subr.bf16.mxu0 %v7107
    %7212 = vmatpush1.bf16.msra.mxu0 %v7106
    %7213 = vmatprep.subr.bf16.mxu0 %v7109
    %7214 = vmatpush1.bf16.msra.mxu0 %v7108
    %7215 = vmatprep.subr.bf16.mxu0 %v7111
    %7216 = vmatpush1.bf16.msra.mxu0 %v7110
    %7217 = vmatprep.subr.bf16.mxu0 0
    %7218 = vmatpush1.bf16.msra.mxu0 0
    %7219 = vmatprep.subr.bf16.mxu0 0
    %7220 = vmatpush1.bf16.msra.mxu0 0
    %7221 = vmatprep.subr.bf16.mxu0 0
    %7222 = vmatpush1.bf16.msra.mxu0 0
    %7223 = vmatprep.subr.bf16.mxu0 0
    %7224 = vmatpush1.bf16.msra.mxu0 0
    %7225 = vmatprep.subr.bf16.mxu0 0
    %7226 = vmatpush1.bf16.msra.mxu0 0
    %7227 = vmatprep.subr.bf16.mxu0 0
    %7228 = vmatpush1.bf16.msra.mxu0 0
    %7229 = vmatprep.subr.bf16.mxu0 0
    %7230 = vmatpush1.bf16.msra.mxu0 0
    %7231 = vmatprep.subr.bf16.mxu0 0
    %7232 = vmatpush1.bf16.msra.mxu0 0
    %7233 = vmatprep.mubr.bf16.mxu0 0
    %7234 = vmatmul.mubr.bf16.gmra.mrb[0].mxu0 %v6916
    %v7235 = vpop.f32.mrb[0].mxu0
    %v7236 = vadd.f32 %v7195, %v7235
    %v7237 = vpop.f32.mrb[0].mxu0
    %v7238 = vadd.f32 %v7197, %v7237
    %v7239 = vpop.f32.mrb[0].mxu0
    %v7240 = vpop.f32.mrb[0].mxu0
    %7241 = vdwg.mxu0
    %v7242 = vadd.f32 %v6901, %v7236
    %v7243 = vadd.f32 %v6903, %v7238
    %v7245 = vlaneseq
    %v7246 = vshrl.u32 %v7245, 7
    %v7247 = vsub.s32 0, %v7246
    %v7248 = vrot.slane %v6236, %v7247
    %v7249 = vlaneseq
    %v7250 = vshrl.u32 %v7249, 7
    %v7251 = vsub.s32 1, %v7250
    %v7252 = vrot.slane %v6236, %v7251
    %v7255 = vadd.f32 %v7242, %v7248
    %v7256 = vadd.f32 %v7243, %v7252
    %v7257 = vmax.f32 %v7255, 0.0
    %v7258 = vmax.f32 %v7256, 0.0
    %v7259 = vpack.c.bf16 %v7257, %v7257
    %v7260 = vpack.c.bf16 %v7258, %v7258
    %v7263 = vunpack.c.l.b16 %v7259
    %v7264 = vunpack.c.l.b16 %v7260
    %v7265 = vpack.c.b16 %v7264, %v7263
    %7267 = vst [vmem:[#allocation4] sm:$0xff] %v7265
    %v7268 = vld [vmem:[%s4975] sm:$0xff]
    %v7269 = vld [vmem:[%s4975 + $0x8] sm:$0xf]
    %v7270 = vld [vmem:[%s5531] sm:$0xff]
    %v7271 = vld [vmem:[%s5531 + $0x8] sm:$0xf]
    %v7274 = vunpack.c.l.b16 %v7270
    %v7275 = vunpack.c.h.b16 %v7270
    %v7276 = vunpack.c.l.b16 %v7271
    %v7277 = vpack.c.b16 %v7274, %v7274
    %v7278 = vpack.c.b16 %v7275, %v7275
    %v7279 = vpack.c.b16 %v7276, %v7276
    %7283 = vmatprep.subr.bf16.mxu0 %v6397
    %7284 = vmatpush1.bf16.msra.mxu0 %v6396
    %7285 = vmatprep.subr.bf16.mxu0 %v6399
    %7286 = vmatpush1.bf16.msra.mxu0 %v6398
    %7287 = vmatprep.subr.bf16.mxu0 %v6401
    %7288 = vmatpush1.bf16.msra.mxu0 %v6400
    %7289 = vmatprep.subr.bf16.mxu0 %v6403
    %7290 = vmatpush1.bf16.msra.mxu0 %v6402
    %7291 = vmatprep.subr.bf16.mxu0 %v6405
    %7292 = vmatpush1.bf16.msra.mxu0 %v6404
    %7293 = vmatprep.subr.bf16.mxu0 %v6407
    %7294 = vmatpush1.bf16.msra.mxu0 %v6406
    %7295 = vmatprep.subr.bf16.mxu0 %v6409
    %7296 = vmatpush1.bf16.msra.mxu0 %v6408
    %7297 = vmatprep.subr.bf16.mxu0 %v6411
    %7298 = vmatpush1.bf16.msra.mxu0 %v6410
    %7299 = vmatprep.subr.bf16.mxu0 %v6413
    %7300 = vmatpush1.bf16.msra.mxu0 %v6412
    %7301 = vmatprep.subr.bf16.mxu0 %v6415
    %7302 = vmatpush1.bf16.msra.mxu0 %v6414
    %7303 = vmatprep.subr.bf16.mxu0 %v6417
    %7304 = vmatpush1.bf16.msra.mxu0 %v6416
    %7305 = vmatprep.subr.bf16.mxu0 %v6419
    %7306 = vmatpush1.bf16.msra.mxu0 %v6418
    %7307 = vmatprep.subr.bf16.mxu0 %v6421
    %7308 = vmatpush1.bf16.msra.mxu0 %v6420
    %7309 = vmatprep.subr.bf16.mxu0 %v6423
    %7310 = vmatpush1.bf16.msra.mxu0 %v6422
    %7311 = vmatprep.subr.bf16.mxu0 %v6425
    %7312 = vmatpush1.bf16.msra.mxu0 %v6424
    %7313 = vmatprep.subr.bf16.mxu0 %v6427
    %7314 = vmatpush1.bf16.msra.mxu0 %v6426
    %7315 = vmatprep.mubr.bf16.mxu0 %v7278
    %7316 = vmatmul.mubr.bf16.gmra.mrb[0].mxu0 %v7277
    %v7317 = vpop.f32.mrb[0].mxu0
    %v7318 = vadd.f32 0.0, %v7317
    %v7319 = vpop.f32.mrb[0].mxu0
    %v7320 = vadd.f32 0.0, %v7319
    %v7321 = vpop.f32.mrb[0].mxu0
    %v7322 = vpop.f32.mrb[0].mxu0
    %7323 = vdwg.mxu0
    %7324 = vmatprep.subr.bf16.mxu0 %v6429
    %7325 = vmatpush1.bf16.msra.mxu0 %v6428
    %7326 = vmatprep.subr.bf16.mxu0 %v6431
    %7327 = vmatpush1.bf16.msra.mxu0 %v6430
    %7328 = vmatprep.subr.bf16.mxu0 %v6433
    %7329 = vmatpush1.bf16.msra.mxu0 %v6432
    %7330 = vmatprep.subr.bf16.mxu0 %v6435
    %7331 = vmatpush1.bf16.msra.mxu0 %v6434
    %7332 = vmatprep.subr.bf16.mxu0 %v6437
    %7333 = vmatpush1.bf16.msra.mxu0 %v6436
    %7334 = vmatprep.subr.bf16.mxu0 %v6439
    %7335 = vmatpush1.bf16.msra.mxu0 %v6438
    %7336 = vmatprep.subr.bf16.mxu0 %v6441
    %7337 = vmatpush1.bf16.msra.mxu0 %v6440
    %7338 = vmatprep.subr.bf16.mxu0 %v6443
    %7339 = vmatpush1.bf16.msra.mxu0 %v6442
    %7340 = vmatprep.subr.bf16.mxu0 0
    %7341 = vmatpush1.bf16.msra.mxu0 0
    %7342 = vmatprep.subr.bf16.mxu0 0
    %7343 = vmatpush1.bf16.msra.mxu0 0
    %7344 = vmatprep.subr.bf16.mxu0 0
    %7345 = vmatpush1.bf16.msra.mxu0 0
    %7346 = vmatprep.subr.bf16.mxu0 0
    %7347 = vmatpush1.bf16.msra.mxu0 0
    %7348 = vmatprep.subr.bf16.mxu0 0
    %7349 = vmatpush1.bf16.msra.mxu0 0
    %7350 = vmatprep.subr.bf16.mxu0 0
    %7351 = vmatpush1.bf16.msra.mxu0 0
    %7352 = vmatprep.subr.bf16.mxu0 0
    %7353 = vmatpush1.bf16.msra.mxu0 0
    %7354 = vmatprep.subr.bf16.mxu0 0
    %7355 = vmatpush1.bf16.msra.mxu0 0
    %7356 = vmatprep.mubr.bf16.mxu0 0
    %7357 = vmatmul.mubr.bf16.gmra.mrb[0].mxu0 %v7279
    %v7358 = vpop.f32.mrb[0].mxu0
    %v7359 = vadd.f32 %v7318, %v7358
    %v7360 = vpop.f32.mrb[0].mxu0
    %v7361 = vadd.f32 %v7320, %v7360
    %v7362 = vpop.f32.mrb[0].mxu0
    %v7363 = vpop.f32.mrb[0].mxu0
    %7364 = vdwg.mxu0
    %v7367 = vunpack.c.l.b16 %v7268
    %v7368 = vunpack.c.h.b16 %v7268
    %v7369 = vunpack.c.l.b16 %v7269
    %v7370 = vpack.c.b16 %v7367, %v7367
    %v7371 = vpack.c.b16 %v7368, %v7368
    %v7372 = vpack.c.b16 %v7369, %v7369
    %7376 = vmatprep.subr.bf16.mxu0 %v6730
    %7377 = vmatpush1.bf16.msra.mxu0 %v6729
    %7378 = vmatprep.subr.bf16.mxu0 %v6732
    %7379 = vmatpush1.bf16.msra.mxu0 %v6731
    %7380 = vmatprep.subr.bf16.mxu0 %v6734
    %7381 = vmatpush1.bf16.msra.mxu0 %v6733
    %7382 = vmatprep.subr.bf16.mxu0 %v6736
    %7383 = vmatpush1.bf16.msra.mxu0 %v6735
    %7384 = vmatprep.subr.bf16.mxu0 %v6738
    %7385 = vmatpush1.bf16.msra.mxu0 %v6737
    %7386 = vmatprep.subr.bf16.mxu0 %v6740
    %7387 = vmatpush1.bf16.msra.mxu0 %v6739
    %7388 = vmatprep.subr.bf16.mxu0 %v6742
    %7389 = vmatpush1.bf16.msra.mxu0 %v6741
    %7390 = vmatprep.subr.bf16.mxu0 %v6744
    %7391 = vmatpush1.bf16.msra.mxu0 %v6743
    %7392 = vmatprep.subr.bf16.mxu0 %v6746
    %7393 = vmatpush1.bf16.msra.mxu0 %v6745
    %7394 = vmatprep.subr.bf16.mxu0 %v6748
    %7395 = vmatpush1.bf16.msra.mxu0 %v6747
    %7396 = vmatprep.subr.bf16.mxu0 %v6750
    %7397 = vmatpush1.bf16.msra.mxu0 %v6749
    %7398 = vmatprep.subr.bf16.mxu0 %v6752
    %7399 = vmatpush1.bf16.msra.mxu0 %v6751
    %7400 = vmatprep.subr.bf16.mxu0 %v6754
    %7401 = vmatpush1.bf16.msra.mxu0 %v6753
    %7402 = vmatprep.subr.bf16.mxu0 %v6756
    %7403 = vmatpush1.bf16.msra.mxu0 %v6755
    %7404 = vmatprep.subr.bf16.mxu0 %v6758
    %7405 = vmatpush1.bf16.msra.mxu0 %v6757
    %7406 = vmatprep.subr.bf16.mxu0 %v6760
    %7407 = vmatpush1.bf16.msra.mxu0 %v6759
    %7408 = vmatprep.mubr.bf16.mxu0 %v7371
    %7409 = vmatmul.mubr.bf16.gmra.mrb[0].mxu0 %v7370
    %v7410 = vpop.f32.mrb[0].mxu0
    %v7411 = vadd.f32 %v7359, %v7410
    %v7412 = vpop.f32.mrb[0].mxu0
    %v7413 = vadd.f32 %v7361, %v7412
    %v7414 = vpop.f32.mrb[0].mxu0
    %v7415 = vpop.f32.mrb[0].mxu0
    %7416 = vdwg.mxu0
    %7417 = vmatprep.subr.bf16.mxu0 %v6762
    %7418 = vmatpush1.bf16.msra.mxu0 %v6761
    %7419 = vmatprep.subr.bf16.mxu0 %v6764
    %7420 = vmatpush1.bf16.msra.mxu0 %v6763
    %7421 = vmatprep.subr.bf16.mxu0 %v6766
    %7422 = vmatpush1.bf16.msra.mxu0 %v6765
    %7423 = vmatprep.subr.bf16.mxu0 %v6768
    %7424 = vmatpush1.bf16.msra.mxu0 %v6767
    %7425 = vmatprep.subr.bf16.mxu0 %v6770
    %7426 = vmatpush1.bf16.msra.mxu0 %v6769
    %7427 = vmatprep.subr.bf16.mxu0 %v6772
    %7428 = vmatpush1.bf16.msra.mxu0 %v6771
    %7429 = vmatprep.subr.bf16.mxu0 %v6774
    %7430 = vmatpush1.bf16.msra.mxu0 %v6773
    %7431 = vmatprep.subr.bf16.mxu0 %v6776
    %7432 = vmatpush1.bf16.msra.mxu0 %v6775
    %7433 = vmatprep.subr.bf16.mxu0 0
    %7434 = vmatpush1.bf16.msra.mxu0 0
    %7435 = vmatprep.subr.bf16.mxu0 0
    %7436 = vmatpush1.bf16.msra.mxu0 0
    %7437 = vmatprep.subr.bf16.mxu0 0
    %7438 = vmatpush1.bf16.msra.mxu0 0
    %7439 = vmatprep.subr.bf16.mxu0 0
    %7440 = vmatpush1.bf16.msra.mxu0 0
    %7441 = vmatprep.subr.bf16.mxu0 0
    %7442 = vmatpush1.bf16.msra.mxu0 0
    %7443 = vmatprep.subr.bf16.mxu0 0
    %7444 = vmatpush1.bf16.msra.mxu0 0
    %7445 = vmatprep.subr.bf16.mxu0 0
    %7446 = vmatpush1.bf16.msra.mxu0 0
    %7447 = vmatprep.subr.bf16.mxu0 0
    %7448 = vmatpush1.bf16.msra.mxu0 0
    %7449 = vmatprep.mubr.bf16.mxu0 0
    %7450 = vmatmul.mubr.bf16.gmra.mrb[0].mxu0 %v7372
    %v7451 = vpop.f32.mrb[0].mxu0
    %v7452 = vadd.f32 %v7411, %v7451
    %v7453 = vpop.f32.mrb[0].mxu0
    %v7454 = vadd.f32 %v7413, %v7453
    %v7455 = vpop.f32.mrb[0].mxu0
    %v7456 = vpop.f32.mrb[0].mxu0
    %7457 = vdwg.mxu0
    %v7458 = vld [vmem:[%s6087] sm:$0xff]
    %v7459 = vld [vmem:[%s6087 + $0x8] sm:$0xf]
    %v7462 = vunpack.c.l.b16 %v7458
    %v7463 = vunpack.c.h.b16 %v7458
    %v7464 = vunpack.c.l.b16 %v7459
    %v7465 = vpack.c.b16 %v7462, %v7462
    %v7466 = vpack.c.b16 %v7463, %v7463
    %v7467 = vpack.c.b16 %v7464, %v7464
    %7471 = vmatprep.subr.bf16.mxu0 %v7065
    %7472 = vmatpush1.bf16.msra.mxu0 %v7064
    %7473 = vmatprep.subr.bf16.mxu0 %v7067
    %7474 = vmatpush1.bf16.msra.mxu0 %v7066
    %7475 = vmatprep.subr.bf16.mxu0 %v7069
    %7476 = vmatpush1.bf16.msra.mxu0 %v7068
    %7477 = vmatprep.subr.bf16.mxu0 %v7071
    %7478 = vmatpush1.bf16.msra.mxu0 %v7070
    %7479 = vmatprep.subr.bf16.mxu0 %v7073
    %7480 = vmatpush1.bf16.msra.mxu0 %v7072
    %7481 = vmatprep.subr.bf16.mxu0 %v7075
    %7482 = vmatpush1.bf16.msra.mxu0 %v7074
    %7483 = vmatprep.subr.bf16.mxu0 %v7077
    %7484 = vmatpush1.bf16.msra.mxu0 %v7076
    %7485 = vmatprep.subr.bf16.mxu0 %v7079
    %7486 = vmatpush1.bf16.msra.mxu0 %v7078
    %7487 = vmatprep.subr.bf16.mxu0 %v7081
    %7488 = vmatpush1.bf16.msra.mxu0 %v7080
    %7489 = vmatprep.subr.bf16.mxu0 %v7083
    %7490 = vmatpush1.bf16.msra.mxu0 %v7082
    %7491 = vmatprep.subr.bf16.mxu0 %v7085
    %7492 = vmatpush1.bf16.msra.mxu0 %v7084
    %7493 = vmatprep.subr.bf16.mxu0 %v7087
    %7494 = vmatpush1.bf16.msra.mxu0 %v7086
    %7495 = vmatprep.subr.bf16.mxu0 %v7089
    %7496 = vmatpush1.bf16.msra.mxu0 %v7088
    %7497 = vmatprep.subr.bf16.mxu0 %v7091
    %7498 = vmatpush1.bf16.msra.mxu0 %v7090
    %7499 = vmatprep.subr.bf16.mxu0 %v7093
    %7500 = vmatpush1.bf16.msra.mxu0 %v7092
    %7501 = vmatprep.subr.bf16.mxu0 %v7095
    %7502 = vmatpush1.bf16.msra.mxu0 %v7094
    %7503 = vmatprep.mubr.bf16.mxu0 %v7466
    %7504 = vmatmul.mubr.bf16.gmra.mrb[0].mxu0 %v7465
    %v7505 = vpop.f32.mrb[0].mxu0
    %v7506 = vadd.f32 0.0, %v7505
    %v7507 = vpop.f32.mrb[0].mxu0
    %v7508 = vadd.f32 0.0, %v7507
    %v7509 = vpop.f32.mrb[0].mxu0
    %v7510 = vpop.f32.mrb[0].mxu0
    %7511 = vdwg.mxu0
    %7512 = vmatprep.subr.bf16.mxu0 %v7097
    %7513 = vmatpush1.bf16.msra.mxu0 %v7096
    %7514 = vmatprep.subr.bf16.mxu0 %v7099
    %7515 = vmatpush1.bf16.msra.mxu0 %v7098
    %7516 = vmatprep.subr.bf16.mxu0 %v7101
    %7517 = vmatpush1.bf16.msra.mxu0 %v7100
    %7518 = vmatprep.subr.bf16.mxu0 %v7103
    %7519 = vmatpush1.bf16.msra.mxu0 %v7102
    %7520 = vmatprep.subr.bf16.mxu0 %v7105
    %7521 = vmatpush1.bf16.msra.mxu0 %v7104
    %7522 = vmatprep.subr.bf16.mxu0 %v7107
    %7523 = vmatpush1.bf16.msra.mxu0 %v7106
    %7524 = vmatprep.subr.bf16.mxu0 %v7109
    %7525 = vmatpush1.bf16.msra.mxu0 %v7108
    %7526 = vmatprep.subr.bf16.mxu0 %v7111
    %7527 = vmatpush1.bf16.msra.mxu0 %v7110
    %7528 = vmatprep.subr.bf16.mxu0 0
    %7529 = vmatpush1.bf16.msra.mxu0 0
    %7530 = vmatprep.subr.bf16.mxu0 0
    %7531 = vmatpush1.bf16.msra.mxu0 0
    %7532 = vmatprep.subr.bf16.mxu0 0
    %7533 = vmatpush1.bf16.msra.mxu0 0
    %7534 = vmatprep.subr.bf16.mxu0 0
    %7535 = vmatpush1.bf16.msra.mxu0 0
    %7536 = vmatprep.subr.bf16.mxu0 0
    %7537 = vmatpush1.bf16.msra.mxu0 0
    %7538 = vmatprep.subr.bf16.mxu0 0
    %7539 = vmatpush1.bf16.msra.mxu0 0
    %7540 = vmatprep.subr.bf16.mxu0 0
    %7541 = vmatpush1.bf16.msra.mxu0 0
    %7542 = vmatprep.subr.bf16.mxu0 0
    %7543 = vmatpush1.bf16.msra.mxu0 0
    %7544 = vmatprep.mubr.bf16.mxu0 0
    %7545 = vmatmul.mubr.bf16.gmra.mrb[0].mxu0 %v7467
    %v7546 = vpop.f32.mrb[0].mxu0
    %v7547 = vadd.f32 %v7506, %v7546
    %v7548 = vpop.f32.mrb[0].mxu0
    %v7549 = vadd.f32 %v7508, %v7548
    %v7550 = vpop.f32.mrb[0].mxu0
    %v7551 = vpop.f32.mrb[0].mxu0
    %7552 = vdwg.mxu0
    %v7553 = vadd.f32 %v7452, %v7547
    %v7554 = vadd.f32 %v7454, %v7549
    %v7555 = vadd.f32 %v7553, %v7248
    %v7556 = vadd.f32 %v7554, %v7252
    %v7557 = vmax.f32 %v7555, 0.0
    %v7558 = vmax.f32 %v7556, 0.0
    %v7559 = vpack.c.bf16 %v7557, %v7557
    %v7560 = vpack.c.bf16 %v7558, %v7558
    %v7563 = vunpack.c.l.b16 %v7559
    %v7564 = vunpack.c.l.b16 %v7560
    %v7565 = vpack.c.b16 %v7564, %v7563
    %s7567 = scalar_lea.vmem [#allocation4], 8
    %7568 = vst [vmem:[%s7567] sm:$0xff] %v7565
    %v7569 = vld [vmem:[#allocation4] sm:$0xff]
    %v7570 = vld [vmem:[%s7] sm:$0xf]
    %v7571 = vld [vmem:[%s7 + $0x4] sm:$0xf]
    %v7572 = vld [vmem:[%s7 + $0x8] sm:$0xf]
    %v7573 = vld [vmem:[%s7 + $0xc] sm:$0xf]
    %v7574 = vld [vmem:[%s7 + $0x10] sm:$0xf]
    %v7575 = vld [vmem:[%s7 + $0x14] sm:$0xf]
    %v7576 = vld [vmem:[%s7 + $0x18] sm:$0xf]
    %v7577 = vld [vmem:[%s7 + $0x1c] sm:$0xf]
    %v7578 = vld [vmem:[%s7 + $0x20] sm:$0xf]
    %v7579 = vld [vmem:[%s7 + $0x24] sm:$0xf]
    %v7580 = vld [vmem:[%s7 + $0x28] sm:$0xf]
    %v7581 = vld [vmem:[%s7 + $0x2c] sm:$0xf]
    %v7582 = vld [vmem:[%s7 + $0x30] sm:$0xf]
    %v7583 = vld [vmem:[%s7 + $0x34] sm:$0xf]
    %v7584 = vld [vmem:[%s7 + $0x38] sm:$0xf]
    %v7585 = vld [vmem:[%s7 + $0x3c] sm:$0xf]
    %v7586 = vld [vmem:[%s7 + $0x40] sm:$0xf]
    %v7587 = vld [vmem:[%s7 + $0x44] sm:$0xf]
    %v7588 = vld [vmem:[%s7 + $0x48] sm:$0xf]
    %v7589 = vld [vmem:[%s7 + $0x4c] sm:$0xf]
    %v7590 = vld [vmem:[%s7 + $0x50] sm:$0xf]
    %v7591 = vld [vmem:[%s7 + $0x54] sm:$0xf]
    %v7592 = vld [vmem:[%s7 + $0x58] sm:$0xf]
    %v7593 = vld [vmem:[%s7 + $0x5c] sm:$0xf]
    %v7594 = vld [vmem:[%s7 + $0x60] sm:$0xf]
    %v7595 = vld [vmem:[%s7 + $0x64] sm:$0xf]
    %v7596 = vld [vmem:[%s7 + $0x68] sm:$0xf]
    %v7597 = vld [vmem:[%s7 + $0x6c] sm:$0xf]
    %v7598 = vld [vmem:[%s7 + $0x70] sm:$0xf]
    %v7599 = vld [vmem:[%s7 + $0x74] sm:$0xf]
    %v7600 = vld [vmem:[%s7 + $0x78] sm:$0xf]
    %v7601 = vld [vmem:[%s7 + $0x7c] sm:$0xf]
    %v7602 = vld [vmem:[%s7567] sm:$0xff]
    %s7603 = scalar_lea.vmem %s7, 128
    %v7604 = vld [vmem:[%s7603] sm:$0xf]
    %v7605 = vld [vmem:[%s7603 + $0x4] sm:$0xf]
    %v7606 = vld [vmem:[%s7603 + $0x8] sm:$0xf]
    %v7607 = vld [vmem:[%s7603 + $0xc] sm:$0xf]
    %v7608 = vld [vmem:[%s7603 + $0x10] sm:$0xf]
    %v7609 = vld [vmem:[%s7603 + $0x14] sm:$0xf]
    %v7610 = vld [vmem:[%s7603 + $0x18] sm:$0xf]
    %v7611 = vld [vmem:[%s7603 + $0x1c] sm:$0xf]
    %v7612 = vld [vmem:[%s7603 + $0x20] sm:$0xf]
    %v7613 = vld [vmem:[%s7603 + $0x24] sm:$0xf]
    %v7614 = vld [vmem:[%s7603 + $0x28] sm:$0xf]
    %v7615 = vld [vmem:[%s7603 + $0x2c] sm:$0xf]
    %v7616 = vld [vmem:[%s7603 + $0x30] sm:$0xf]
    %v7617 = vld [vmem:[%s7603 + $0x34] sm:$0xf]
    %v7618 = vld [vmem:[%s7603 + $0x38] sm:$0xf]
    %v7619 = vld [vmem:[%s7603 + $0x3c] sm:$0xf]
    %v7620 = vld [vmem:[%s7603 + $0x40] sm:$0xf]
    %v7621 = vld [vmem:[%s7603 + $0x44] sm:$0xf]
    %v7622 = vld [vmem:[%s7603 + $0x48] sm:$0xf]
    %v7623 = vld [vmem:[%s7603 + $0x4c] sm:$0xf]
    %v7624 = vld [vmem:[%s7603 + $0x50] sm:$0xf]
    %v7625 = vld [vmem:[%s7603 + $0x54] sm:$0xf]
    %v7626 = vld [vmem:[%s7603 + $0x58] sm:$0xf]
    %v7627 = vld [vmem:[%s7603 + $0x5c] sm:$0xf]
    %v7628 = vld [vmem:[%s7603 + $0x60] sm:$0xf]
    %v7629 = vld [vmem:[%s7603 + $0x64] sm:$0xf]
    %v7630 = vld [vmem:[%s7603 + $0x68] sm:$0xf]
    %v7631 = vld [vmem:[%s7603 + $0x6c] sm:$0xf]
    %v7632 = vld [vmem:[%s7603 + $0x70] sm:$0xf]
    %v7633 = vld [vmem:[%s7603 + $0x74] sm:$0xf]
    %v7634 = vld [vmem:[%s7603 + $0x78] sm:$0xf]
    %v7635 = vld [vmem:[%s7603 + $0x7c] sm:$0xf]
    %v7637 = vunpack.c.l.b16 %v7602
    %v7638 = vunpack.c.h.b16 %v7602
    %v7639 = vpack.c.b16 %v7637, %v7637
    %v7640 = vpack.c.b16 %v7638, %v7638
    %v7675 = vunpack.c.l.b16 %v7604
    %v7676 = vunpack.c.l.b16 %v7605
    %v7677 = vunpack.c.l.b16 %v7606
    %v7678 = vunpack.c.l.b16 %v7607
    %v7679 = vunpack.c.l.b16 %v7608
    %v7680 = vunpack.c.l.b16 %v7609
    %v7681 = vunpack.c.l.b16 %v7610
    %v7682 = vunpack.c.l.b16 %v7611
    %v7683 = vunpack.c.l.b16 %v7612
    %v7684 = vunpack.c.l.b16 %v7613
    %v7685 = vunpack.c.l.b16 %v7614
    %v7686 = vunpack.c.l.b16 %v7615
    %v7687 = vunpack.c.l.b16 %v7616
    %v7688 = vunpack.c.l.b16 %v7617
    %v7689 = vunpack.c.l.b16 %v7618
    %v7690 = vunpack.c.l.b16 %v7619
    %v7691 = vunpack.c.l.b16 %v7620
    %v7692 = vunpack.c.l.b16 %v7621
    %v7693 = vunpack.c.l.b16 %v7622
    %v7694 = vunpack.c.l.b16 %v7623
    %v7695 = vunpack.c.l.b16 %v7624
    %v7696 = vunpack.c.l.b16 %v7625
    %v7697 = vunpack.c.l.b16 %v7626
    %v7698 = vunpack.c.l.b16 %v7627
    %v7699 = vunpack.c.l.b16 %v7628
    %v7700 = vunpack.c.l.b16 %v7629
    %v7701 = vunpack.c.l.b16 %v7630
    %v7702 = vunpack.c.l.b16 %v7631
    %v7703 = vunpack.c.l.b16 %v7632
    %v7704 = vunpack.c.l.b16 %v7633
    %v7705 = vunpack.c.l.b16 %v7634
    %v7706 = vunpack.c.l.b16 %v7635
    %v7707 = vpack.c.b16 %v7676, %v7675
    %v7708 = vpack.c.b16 %v7678, %v7677
    %v7709 = vpack.c.b16 %v7680, %v7679
    %v7710 = vpack.c.b16 %v7682, %v7681
    %v7711 = vpack.c.b16 %v7684, %v7683
    %v7712 = vpack.c.b16 %v7686, %v7685
    %v7713 = vpack.c.b16 %v7688, %v7687
    %v7714 = vpack.c.b16 %v7690, %v7689
    %v7715 = vpack.c.b16 %v7692, %v7691
    %v7716 = vpack.c.b16 %v7694, %v7693
    %v7717 = vpack.c.b16 %v7696, %v7695
    %v7718 = vpack.c.b16 %v7698, %v7697
    %v7719 = vpack.c.b16 %v7700, %v7699
    %v7720 = vpack.c.b16 %v7702, %v7701
    %v7721 = vpack.c.b16 %v7704, %v7703
    %v7722 = vpack.c.b16 %v7706, %v7705
    %7739 = vmatprep.subr.bf16.mxu0 0
    %7740 = vmatpush1.bf16.msra.mxu0 %v7707
    %7741 = vmatprep.subr.bf16.mxu0 0
    %7742 = vmatpush1.bf16.msra.mxu0 %v7708
    %7743 = vmatprep.subr.bf16.mxu0 0
    %7744 = vmatpush1.bf16.msra.mxu0 %v7709
    %7745 = vmatprep.subr.bf16.mxu0 0
    %7746 = vmatpush1.bf16.msra.mxu0 %v7710
    %7747 = vmatprep.subr.bf16.mxu0 0
    %7748 = vmatpush1.bf16.msra.mxu0 %v7711
    %7749 = vmatprep.subr.bf16.mxu0 0
    %7750 = vmatpush1.bf16.msra.mxu0 %v7712
    %7751 = vmatprep.subr.bf16.mxu0 0
    %7752 = vmatpush1.bf16.msra.mxu0 %v7713
    %7753 = vmatprep.subr.bf16.mxu0 0
    %7754 = vmatpush1.bf16.msra.mxu0 %v7714
    %7755 = vmatprep.subr.bf16.mxu0 0
    %7756 = vmatpush1.bf16.msra.mxu0 %v7715
    %7757 = vmatprep.subr.bf16.mxu0 0
    %7758 = vmatpush1.bf16.msra.mxu0 %v7716
    %7759 = vmatprep.subr.bf16.mxu0 0
    %7760 = vmatpush1.bf16.msra.mxu0 %v7717
    %7761 = vmatprep.subr.bf16.mxu0 0
    %7762 = vmatpush1.bf16.msra.mxu0 %v7718
    %7763 = vmatprep.subr.bf16.mxu0 0
    %7764 = vmatpush1.bf16.msra.mxu0 %v7719
    %7765 = vmatprep.subr.bf16.mxu0 0
    %7766 = vmatpush1.bf16.msra.mxu0 %v7720
    %7767 = vmatprep.subr.bf16.mxu0 0
    %7768 = vmatpush1.bf16.msra.mxu0 %v7721
    %7769 = vmatprep.subr.bf16.mxu0 0
    %7770 = vmatpush1.bf16.msra.mxu0 %v7722
    %7771 = vmatprep.mubr.bf16.mxu0 %v7640
    %7772 = vmatmul.mubr.bf16.gmra.mrb[0].mxu0 %v7639
    %v7773 = vpop.f32.mrb[0].mxu0
    %v7774 = vadd.f32 0.0, %v7773
    %v7775 = vpop.f32.mrb[0].mxu0
    %v7776 = vpop.f32.mrb[0].mxu0
    %v7777 = vpop.f32.mrb[0].mxu0
    %7778 = vdwg.mxu0
    %v7780 = vunpack.c.l.b16 %v7569
    %v7781 = vunpack.c.h.b16 %v7569
    %v7782 = vpack.c.b16 %v7780, %v7780
    %v7783 = vpack.c.b16 %v7781, %v7781
    %v7818 = vunpack.c.l.b16 %v7570
    %v7819 = vunpack.c.l.b16 %v7571
    %v7820 = vunpack.c.l.b16 %v7572
    %v7821 = vunpack.c.l.b16 %v7573
    %v7822 = vunpack.c.l.b16 %v7574
    %v7823 = vunpack.c.l.b16 %v7575
    %v7824 = vunpack.c.l.b16 %v7576
    %v7825 = vunpack.c.l.b16 %v7577
    %v7826 = vunpack.c.l.b16 %v7578
    %v7827 = vunpack.c.l.b16 %v7579
    %v7828 = vunpack.c.l.b16 %v7580
    %v7829 = vunpack.c.l.b16 %v7581
    %v7830 = vunpack.c.l.b16 %v7582
    %v7831 = vunpack.c.l.b16 %v7583
    %v7832 = vunpack.c.l.b16 %v7584
    %v7833 = vunpack.c.l.b16 %v7585
    %v7834 = vunpack.c.l.b16 %v7586
    %v7835 = vunpack.c.l.b16 %v7587
    %v7836 = vunpack.c.l.b16 %v7588
    %v7837 = vunpack.c.l.b16 %v7589
    %v7838 = vunpack.c.l.b16 %v7590
    %v7839 = vunpack.c.l.b16 %v7591
    %v7840 = vunpack.c.l.b16 %v7592
    %v7841 = vunpack.c.l.b16 %v7593
    %v7842 = vunpack.c.l.b16 %v7594
    %v7843 = vunpack.c.l.b16 %v7595
    %v7844 = vunpack.c.l.b16 %v7596
    %v7845 = vunpack.c.l.b16 %v7597
    %v7846 = vunpack.c.l.b16 %v7598
    %v7847 = vunpack.c.l.b16 %v7599
    %v7848 = vunpack.c.l.b16 %v7600
    %v7849 = vunpack.c.l.b16 %v7601
    %v7850 = vpack.c.b16 %v7819, %v7818
    %v7851 = vpack.c.b16 %v7821, %v7820
    %v7852 = vpack.c.b16 %v7823, %v7822
    %v7853 = vpack.c.b16 %v7825, %v7824
    %v7854 = vpack.c.b16 %v7827, %v7826
    %v7855 = vpack.c.b16 %v7829, %v7828
    %v7856 = vpack.c.b16 %v7831, %v7830
    %v7857 = vpack.c.b16 %v7833, %v7832
    %v7858 = vpack.c.b16 %v7835, %v7834
    %v7859 = vpack.c.b16 %v7837, %v7836
    %v7860 = vpack.c.b16 %v7839, %v7838
    %v7861 = vpack.c.b16 %v7841, %v7840
    %v7862 = vpack.c.b16 %v7843, %v7842
    %v7863 = vpack.c.b16 %v7845, %v7844
    %v7864 = vpack.c.b16 %v7847, %v7846
    %v7865 = vpack.c.b16 %v7849, %v7848
    %7882 = vmatprep.subr.bf16.mxu0 0
    %7883 = vmatpush1.bf16.msra.mxu0 %v7850
    %7884 = vmatprep.subr.bf16.mxu0 0
    %7885 = vmatpush1.bf16.msra.mxu0 %v7851
    %7886 = vmatprep.subr.bf16.mxu0 0
    %7887 = vmatpush1.bf16.msra.mxu0 %v7852
    %7888 = vmatprep.subr.bf16.mxu0 0
    %7889 = vmatpush1.bf16.msra.mxu0 %v7853
    %7890 = vmatprep.subr.bf16.mxu0 0
    %7891 = vmatpush1.bf16.msra.mxu0 %v7854
    %7892 = vmatprep.subr.bf16.mxu0 0
    %7893 = vmatpush1.bf16.msra.mxu0 %v7855
    %7894 = vmatprep.subr.bf16.mxu0 0
    %7895 = vmatpush1.bf16.msra.mxu0 %v7856
    %7896 = vmatprep.subr.bf16.mxu0 0
    %7897 = vmatpush1.bf16.msra.mxu0 %v7857
    %7898 = vmatprep.subr.bf16.mxu0 0
    %7899 = vmatpush1.bf16.msra.mxu0 %v7858
    %7900 = vmatprep.subr.bf16.mxu0 0
    %7901 = vmatpush1.bf16.msra.mxu0 %v7859
    %7902 = vmatprep.subr.bf16.mxu0 0
    %7903 = vmatpush1.bf16.msra.mxu0 %v7860
    %7904 = vmatprep.subr.bf16.mxu0 0
    %7905 = vmatpush1.bf16.msra.mxu0 %v7861
    %7906 = vmatprep.subr.bf16.mxu0 0
    %7907 = vmatpush1.bf16.msra.mxu0 %v7862
    %7908 = vmatprep.subr.bf16.mxu0 0
    %7909 = vmatpush1.bf16.msra.mxu0 %v7863
    %7910 = vmatprep.subr.bf16.mxu0 0
    %7911 = vmatpush1.bf16.msra.mxu0 %v7864
    %7912 = vmatprep.subr.bf16.mxu0 0
    %7913 = vmatpush1.bf16.msra.mxu0 %v7865
    %7914 = vmatprep.mubr.bf16.mxu0 %v7783
    %7915 = vmatmul.mubr.bf16.gmra.mrb[0].mxu0 %v7782
    %v7916 = vpop.f32.mrb[0].mxu0
    %v7917 = vadd.f32 %v7774, %v7916
    %v7918 = vpop.f32.mrb[0].mxu0
    %v7919 = vpop.f32.mrb[0].mxu0
    %v7920 = vpop.f32.mrb[0].mxu0
    %7921 = vdwg.mxu0
    %v7922 = vld [vmem:[%s8] sm:$0x1]
    %v7924 = vlaneseq
    %v7925 = vshrl.u32 %v7924, 7
    %v7926 = vsub.s32 0, %v7925
    %v7927 = vrot.slane %v7922, %v7926
    %v7929 = vadd.f32 %v7917, %v7927
    %7930 = vst [vmem:[%s9] sm:$0xff] %v7929
    // Predicated region
    $region46: #{simple_cnn_forward.1} parent=1 // pred_check
      _
    $region47: #{simple_cnn_forward.1} parent=1 // pred_check_branch
      %7932 = sbr.rel (0) target = $region49
    $region48: #{simple_cnn_forward.1} parent=1 // pred_region
      _
    $region49: #{simple_cnn_forward.1} parent=1 // pred_fallthru
      _
    // Predicated region
    $region50: #{simple_cnn_forward.1} parent=1 // pred_check
      _
    $region51: #{simple_cnn_forward.1} parent=1 // pred_check_branch
      %7934 = sbr.rel (0) target = $region53
    $region52: #{simple_cnn_forward.1} parent=1 // pred_region
      _
    $region53: #{simple_cnn_forward.1} parent=1 // pred_fallthru
      _
    %7935 = vsyncpa [#allocation6], 1
    %7936 = vsyncpa [#allocation8], 1

</llo_original>
